<compile_context>
chip_gen: v5e
topology: v5e:2x2
jax: 0.10.0
libtpu: 0.0.40
codegen_flags: <defaults>
</compile_context>

<pallas_src>
import functools

import numpy as np
import jax
import jax.numpy as jnp
from jax.experimental import pallas as pl
from jax.experimental.pallas import tpu as pltpu

# ----------------------------- configuration -----------------------------
IMG = 32
PATCH = 4
IN_CH = 3
EMBED = 32
DEPTHS = (2, 2)
HEADS = (2, 4)
WINDOW = 4
MLP_RATIO = 4
LN_EPS = 1e-5

_VMEM_LIMIT = 32 * 1024 * 1024  # > v5e's 16 MiB scoped default, <= v7x physical

_PARALLEL1 = pltpu.CompilerParams(dimension_semantics=("parallel",),
                                  vmem_limit_bytes=_VMEM_LIMIT)
_PARALLEL2 = pltpu.CompilerParams(dimension_semantics=("parallel", "parallel"),
                                  vmem_limit_bytes=_VMEM_LIMIT)


def _pick_row_tile(m, row_bytes, vmem_budget=8 * 1024 * 1024):
    """Largest sublane-aligned row tile under a per-buffer VMEM budget that
    still leaves >=2 grid steps for the BlockSpec pipeline to overlap."""
    cap = max(8, vmem_budget // max(row_bytes, 1))
    for t in (2048, 1024, 512, 256, 128, 64, 32, 16, 8):
        if t <= cap and m % t == 0 and m // t >= 2:
            return t
    return m


def _ln_f32(x, g, b):
    mu = jnp.mean(x, axis=-1, keepdims=True)
    var = jnp.mean(jnp.square(x - mu), axis=-1, keepdims=True)
    return (x - mu) * jax.lax.rsqrt(var + LN_EPS) * g + b


# ------------------------------ Pallas kernels ----------------------------


def _patch_embed_kernel(x_ref, w_ref, b_ref, g_ref, be_ref, o_ref):
    w = w_ref[...]
    y = jnp.dot(x_ref[...].astype(w.dtype), w,
                preferred_element_type=jnp.float32) + b_ref[...]
    o_ref[...] = _ln_f32(y, g_ref[...], be_ref[...]).astype(o_ref.dtype)


def patch_embed(x2d, p):
    """Fused patch-projection + LayerNorm.  x2d: (M, Cin*P*P) bf16 -> (M, EMBED) bf16."""
    M, K = x2d.shape
    N = p["patch_w"].shape[1]
    tm = _pick_row_tile(M, (K + N) * 2 * 2)
    return pl.pallas_call(
        _patch_embed_kernel,
        out_shape=jax.ShapeDtypeStruct((M, N), jnp.bfloat16),
        grid=(M // tm,),
        in_specs=[
            pl.BlockSpec((tm, K), lambda i: (i, 0)),
            pl.BlockSpec((K, N), lambda i: (0, 0)),
            pl.BlockSpec((1, N), lambda i: (0, 0)),
            pl.BlockSpec((1, N), lambda i: (0, 0)),
            pl.BlockSpec((1, N), lambda i: (0, 0)),
        ],
        out_specs=pl.BlockSpec((tm, N), lambda i: (i, 0)),
        compiler_params=_PARALLEL1,
    )(x2d, p["patch_w"], p["patch_b"], p["patch_ln_g"], p["patch_ln_b"])


def _attn_window_kernel(*refs, heads, has_mask):
    if has_mask:
        (x_ref, g1_ref, b1_ref, qkvw_ref, qkvb_ref,
         projw_ref, projb_ref, bias_ref, mask_ref, o_ref) = refs
    else:
        (x_ref, g1_ref, b1_ref, qkvw_ref, qkvb_ref,
         projw_ref, projb_ref, bias_ref, o_ref) = refs
        mask_ref = None

    _, N, C = x_ref.shape
    x = x_ref[...].astype(jnp.float32)                        # (1, N, C)
    xn = _ln_f32(x, g1_ref[...], b1_ref[...])                 # fused LN1

    qkvw = qkvw_ref[...]                                      # (C, 3C) bf16, q cols pre-scaled
    qkv = jnp.dot(xn.reshape(N, C).astype(qkvw.dtype), qkvw,
                  preferred_element_type=jnp.float32) + qkvb_ref[...]
    qkv = qkv.reshape(1, N, 3 * C)

    add = bias_ref[...]                                       # (heads, N, N)
    if has_mask:
        add = add + mask_ref[...]                             # + (1, N, N) shift mask

    dh = C // heads
    head_outs = []
    for h in range(heads):                                    # static unroll (lane slices)
        q = qkv[:, :, h * dh:(h + 1) * dh]
        k = qkv[:, :, C + h * dh:C + (h + 1) * dh]
        v = qkv[:, :, 2 * C + h * dh:2 * C + (h + 1) * dh]
        s = jnp.einsum("wqd,wkd->wqk", q, k,
                       preferred_element_type=jnp.float32)    # (1, N, N)
        s = s + add[h:h + 1]
        s = s - jnp.max(s, axis=-1, keepdims=True)
        pexp = jnp.exp(s)
        pexp = pexp * pl.reciprocal(jnp.sum(pexp, axis=-1, keepdims=True),
                                    approx=True)
        head_outs.append(jnp.einsum("wqk,wkd->wqd", pexp, v,
                                    preferred_element_type=jnp.float32))
    o = jnp.concatenate(head_outs, axis=-1)                   # (1, N, C)

    projw = projw_ref[...]
    y = jnp.dot(o.reshape(N, C).astype(projw.dtype), projw,
                preferred_element_type=jnp.float32) + projb_ref[...]
    o_ref[...] = y.reshape(1, N, C).astype(o_ref.dtype)


def attn_block(xw, p, bias, mask, heads, nW):
    """Fused LN1 + QKV + windowed multi-head attention + proj.

    xw: (B*nW, N, C) bf16 windowed tokens; grid over (image, window)."""
    B_, N, C = xw.shape
    B = B_ // nW
    has_mask = mask is not None
    kernel = functools.partial(_attn_window_kernel, heads=heads,
                               has_mask=has_mask)
    in_specs = [
        pl.BlockSpec((1, N, C), lambda b, w: (b * nW + w, 0, 0)),
        pl.BlockSpec((1, C), lambda b, w: (0, 0)),
        pl.BlockSpec((1, C), lambda b, w: (0, 0)),
        pl.BlockSpec((C, 3 * C), lambda b, w: (0, 0)),
        pl.BlockSpec((1, 3 * C), lambda b, w: (0, 0)),
        pl.BlockSpec((C, C), lambda b, w: (0, 0)),
        pl.BlockSpec((1, C), lambda b, w: (0, 0)),
        pl.BlockSpec((heads, N, N), lambda b, w: (0, 0, 0)),
    ]
    args = [xw, p["ln1_g"], p["ln1_b"], p["qkv_w"], p["qkv_b"],
            p["proj_w"], p["proj_b"], bias]
    if has_mask:
        in_specs.append(pl.BlockSpec((1, N, N), lambda b, w: (w, 0, 0)))
        args.append(mask)
    return pl.pallas_call(
        kernel,
        out_shape=jax.ShapeDtypeStruct((B_, N, C), jnp.bfloat16),
        grid=(B, nW),
        in_specs=in_specs,
        out_specs=pl.BlockSpec((1, N, C), lambda b, w: (b * nW + w, 0, 0)),
        compiler_params=_PARALLEL2,
    )(*args)


def _mlp_kernel(x_ref, a_ref, g_ref, b_ref, w1_ref, b1_ref, w2_ref, b2_ref,
                o_ref):
    x = x_ref[...].astype(jnp.float32)
    a = a_ref[...].astype(jnp.float32)
    res = x + a                                               # fused attention residual
    h = _ln_f32(res, g_ref[...], b_ref[...])
    w1 = w1_ref[...]
    h = jnp.dot(h.astype(w1.dtype), w1,
                preferred_element_type=jnp.float32) + b1_ref[...]
    # TODO(synk): PyTorch nn.GELU default is exact erf GELU; tanh approximation used.
    h = jax.nn.gelu(h, approximate=True)
    w2 = w2_ref[...]
    y = jnp.dot(h.astype(w2.dtype), w2,
                preferred_element_type=jnp.float32) + b2_ref[...]
    o_ref[...] = (res + y).astype(o_ref.dtype)                # fused MLP residual


def mlp_block(x2d, a2d, p):
    """Fused (x + attn) residual + LN2 + fc1/GELU + fc2 + residual."""
    M, C = x2d.shape
    H = p["fc1_w"].shape[1]
    tm = _pick_row_tile(M, (3 * C) * 2 * 2 + 2 * H * 4)
    return pl.pallas_call(
        _mlp_kernel,
        out_shape=jax.ShapeDtypeStruct((M, C), jnp.bfloat16),
        grid=(M // tm,),
        in_specs=[
            pl.BlockSpec((tm, C), lambda i: (i, 0)),
            pl.BlockSpec((tm, C), lambda i: (i, 0)),
            pl.BlockSpec((1, C), lambda i: (0, 0)),
            pl.BlockSpec((1, C), lambda i: (0, 0)),
            pl.BlockSpec((C, H), lambda i: (0, 0)),
            pl.BlockSpec((1, H), lambda i: (0, 0)),
            pl.BlockSpec((H, C), lambda i: (0, 0)),
            pl.BlockSpec((1, C), lambda i: (0, 0)),
        ],
        out_specs=pl.BlockSpec((tm, C), lambda i: (i, 0)),
        compiler_params=_PARALLEL1,
    )(x2d, a2d, p["ln2_g"], p["ln2_b"], p["fc1_w"], p["fc1_b"],
      p["fc2_w"], p["fc2_b"])


def _merge_kernel(x_ref, g_ref, b_ref, w_ref, o_ref):
    x = x_ref[...].astype(jnp.float32)
    h = _ln_f32(x, g_ref[...], b_ref[...])
    w = w_ref[...]
    o_ref[...] = jnp.dot(h.astype(w.dtype), w,
                         preferred_element_type=jnp.float32).astype(o_ref.dtype)


def patch_merge_reduce(m2d, p):
    """Fused LayerNorm + 4C->2C reduction (bias-free).  m2d: (M, 4C) bf16."""
    M, K = m2d.shape
    N = p["red_w"].shape[1]
    tm = _pick_row_tile(M, (K + N) * 2 * 2)
    return pl.pallas_call(
        _merge_kernel,
        out_shape=jax.ShapeDtypeStruct((M, N), jnp.bfloat16),
        grid=(M // tm,),
        in_specs=[
            pl.BlockSpec((tm, K), lambda i: (i, 0)),
            pl.BlockSpec((1, K), lambda i: (0, 0)),
            pl.BlockSpec((1, K), lambda i: (0, 0)),
            pl.BlockSpec((K, N), lambda i: (0, 0)),
        ],
        out_specs=pl.BlockSpec((tm, N), lambda i: (i, 0)),
        compiler_params=_PARALLEL1,
    )(m2d, p["ln_g"], p["ln_b"], p["red_w"])


def _final_norm_pool_kernel(x_ref, g_ref, b_ref, o_ref):
    x = x_ref[...].astype(jnp.float32)                        # (1, L, C)
    h = _ln_f32(x, g_ref[...], b_ref[...])
    o_ref[...] = jnp.mean(h, axis=1, keepdims=True).astype(o_ref.dtype)


def final_norm_pool(x, g, b):
    """Fused final LayerNorm + token mean-pool (== forward_features().mean(1))."""
    B, L, C = x.shape
    out = pl.pallas_call(
        _final_norm_pool_kernel,
        out_shape=jax.ShapeDtypeStruct((B, 1, C), jnp.float32),
        grid=(B,),
        in_specs=[pl.BlockSpec((1, L, C), lambda b: (b, 0, 0)),
                  pl.BlockSpec((1, C), lambda b: (0, 0)),
                  pl.BlockSpec((1, C), lambda b: (0, 0))],
        out_specs=pl.BlockSpec((1, 1, C), lambda b: (b, 0, 0)),
        compiler_params=_PARALLEL1,
    )(x, g, b)
    return out.reshape(B, C)


# ----------------------------- static helpers ------------------------------


def relative_position_index(ws):
    coords = np.stack(np.meshgrid(np.arange(ws), np.arange(ws), indexing="ij"))
    flat = coords.reshape(2, -1)
    rel = flat[:, :, None] - flat[:, None, :]
    rel = rel.transpose(1, 2, 0)
    rel[:, :, 0] += ws - 1
    rel[:, :, 1] += ws - 1
    rel[:, :, 0] *= 2 * ws - 1
    return rel.sum(-1)  # (N, N) int


def shift_attn_mask(Hh, Ww, ws, shift):
    img_mask = np.zeros((1, Hh, Ww, 1), np.float32)
    cnt = 0
    for hs in (slice(0, -ws), slice(-ws, -shift), slice(-shift, None)):
        for wsl in (slice(0, -ws), slice(-ws, -shift), slice(-shift, None)):
            img_mask[:, hs, wsl, :] = cnt
            cnt += 1
    mw = img_mask.reshape(1, Hh // ws, ws, Ww // ws, ws, 1)
    mw = mw.transpose(0, 1, 3, 2, 4, 5).reshape(-1, ws * ws)
    attn = mw[:, None, :] - mw[:, :, None]
    return jnp.asarray(np.where(attn != 0, -100.0, 0.0).astype(np.float32))


def window_partition(x, ws):
    B, H, W, C = x.shape
    x = x.reshape(B, H // ws, ws, W // ws, ws, C)
    x = x.transpose(0, 1, 3, 2, 4, 5)
    return x.reshape(-1, ws * ws, C)


def window_reverse(xw, ws, H, W, B):
    C = xw.shape[-1]
    x = xw.reshape(B, H // ws, W // ws, ws, ws, C)
    x = x.transpose(0, 1, 3, 2, 4, 5)
    return x.reshape(B, H, W, C)


# ------------------------------ model forward ------------------------------


def swin_block(p, x, res, num_heads, window, shift):
    B, L, C = x.shape
    Hh, Ww = res
    nW = (Hh // window) * (Ww // window)
    N = window * window

    # layout-only prep in XLA on bf16; LN1 is per-token so it commutes with the
    # roll/window-partition and is fused into the attention kernel instead.
    h = x.reshape(B, Hh, Ww, C)
    if shift > 0:
        h = jnp.roll(h, (-shift, -shift), axis=(1, 2))
    xw = window_partition(h, window)                          # (B*nW, N, C)

    mask = shift_attn_mask(Hh, Ww, window, shift) if shift > 0 else None
    attn = attn_block(xw, p, p["attn_bias"], mask, num_heads, nW)

    # fused: res = xw + attn; out = res + MLP(LN2(res)) — per-token, so it is
    # computed directly in the (rolled) windowed order.
    y = mlp_block(xw.reshape(B * nW * N, C), attn.reshape(B * nW * N, C), p)

    y = window_reverse(y.reshape(B * nW, N, C), window, Hh, Ww, B)
    if shift > 0:
        y = jnp.roll(y, (shift, shift), axis=(1, 2))
    return y.reshape(B, L, C)


def patch_merging(p, x, res):
    B, L, C = x.shape
    Hh, Ww = res
    h = x.reshape(B, Hh, Ww, C)
    x0 = h[:, 0::2, 0::2, :]
    x1 = h[:, 1::2, 0::2, :]
    x2 = h[:, 0::2, 1::2, :]
    x3 = h[:, 1::2, 1::2, :]
    m = jnp.concatenate([x0, x1, x2, x3], axis=-1)
    m = m.reshape(B * (Hh // 2) * (Ww // 2), 4 * C)
    m = patch_merge_reduce(m, p)                              # LN + reduction fused
    return m.reshape(B, (Hh // 2) * (Ww // 2), 2 * C)


def forward(params, x):
    # layout: x is NCHW (B, C, H, W), same as the PyTorch module input.
    B, Cin, H, W = x.shape

    # Patch embedding: Conv2d(k=4, s=4) expressed as unfold + matmul (flatten
    # order C_in, kh, kw — identical to the conv-weight flattening).
    xp = x.astype(jnp.bfloat16)
    xp = xp.reshape(B, Cin, H // PATCH, PATCH, W // PATCH, PATCH)
    xp = xp.transpose(0, 2, 4, 1, 3, 5).reshape(
        B, (H // PATCH) * (W // PATCH), Cin * PATCH * PATCH)
    L = xp.shape[1]
    tok = patch_embed(xp.reshape(B * L, -1), params).reshape(B, L, EMBED)
    # TODO(synk): dropout / stochastic depth are identity in eval mode and omitted.

    res = (H // PATCH, W // PATCH)
    for si, stage in enumerate(params["stages"]):
        heads = HEADS[si]
        for bi, blk in enumerate(stage["blocks"]):
            shift = 0 if (bi % 2 == 0 or min(res) <= WINDOW) else WINDOW // 2
            tok = swin_block(blk, tok, res, heads, WINDOW, shift)
        if stage["downsample"] is not None:
            tok = patch_merging(stage["downsample"], tok, res)
            res = (res[0] // 2, res[1] // 2)

    feat = final_norm_pool(tok, params["norm_g"], params["norm_b"])
    # TODO(synk): BatchNorm1d(affine=False) branch only runs when decouple=True (not default).
    return feat


# ------------------------------ parameter init -----------------------------


def make_params(key):
    keys = jax.random.split(key, 128)
    counter = [0]

    def nk():
        k = keys[counter[0]]
        counter[0] += 1
        return k

    def dense_f32(din, dout):
        w = jax.random.normal(nk(), (din, dout), jnp.float32) * 0.02
        b = jnp.zeros((1, dout), jnp.float32)
        return w, b

    def ln(d):
        return jnp.ones((1, d), jnp.float32), jnp.zeros((1, d), jnp.float32)

    pw, pb = dense_f32(IN_CH * PATCH * PATCH, EMBED)
    pg, pbe = ln(EMBED)
    params = {"patch_w": pw.astype(jnp.bfloat16), "patch_b": pb,
              "patch_ln_g": pg, "patch_ln_b": pbe}

    rel_idx = relative_position_index(WINDOW)
    N = WINDOW * WINDOW

    stages = []
    dim = EMBED
    for si, depth in enumerate(DEPTHS):
        heads = HEADS[si]
        scale = (dim // heads) ** -0.5
        # qk scale folded into the q columns of the QKV projection at init.
        col_scale = jnp.concatenate([
            jnp.full((dim,), scale, jnp.float32),
            jnp.ones((2 * dim,), jnp.float32)])[None, :]
        blocks = []
        for _ in range(depth):
            qkv_wf, qkv_bf = dense_f32(dim, 3 * dim)
            qkv_w = (qkv_wf * col_scale).astype(jnp.bfloat16)
            qkv_b = qkv_bf * col_scale
            proj_wf, proj_b = dense_f32(dim, dim)
            fc1_wf, fc1_b = dense_f32(dim, MLP_RATIO * dim)
            fc2_wf, fc2_b = dense_f32(MLP_RATIO * dim, dim)
            ln1_g, ln1_b = ln(dim)
            ln2_g, ln2_b = ln(dim)
            # relative-position bias gathered once at init (hoisted out of jit).
            rel_table = jax.random.normal(
                nk(), ((2 * WINDOW - 1) ** 2, heads), jnp.float32) * 0.02
            attn_bias = rel_table[rel_idx.reshape(-1)].reshape(
                N, N, heads).transpose(2, 0, 1)               # (heads, N, N)
            blocks.append(dict(
                qkv_w=qkv_w, qkv_b=qkv_b,
                proj_w=proj_wf.astype(jnp.bfloat16), proj_b=proj_b,
                fc1_w=fc1_wf.astype(jnp.bfloat16), fc1_b=fc1_b,
                fc2_w=fc2_wf.astype(jnp.bfloat16), fc2_b=fc2_b,
                ln1_g=ln1_g, ln1_b=ln1_b, ln2_g=ln2_g, ln2_b=ln2_b,
                attn_bias=attn_bias))
        if si < len(DEPTHS) - 1:
            red_wf, _ = dense_f32(4 * dim, 2 * dim)           # Linear(bias=False)
            mg, mb = ln(4 * dim)
            down = dict(red_w=red_wf.astype(jnp.bfloat16), ln_g=mg, ln_b=mb)
            dim *= 2
        else:
            down = None
        stages.append({"blocks": blocks, "downsample": down})
    params["stages"] = stages

    ng, nb = ln(dim)
    params["norm_g"] = ng
    params["norm_b"] = nb
    return params


# ----------------------------------- main ----------------------------------

if __name__ == "__main__":
    key = jax.random.PRNGKey(0)
    pkey, xkey = jax.random.split(key)
    params = make_params(pkey)
    x = jax.random.normal(xkey, (2, IN_CH, IMG, IMG), jnp.float32)

    fwd = jax.jit(forward)
    out = jax.block_until_ready(fwd(params, x))

    final_dim = EMBED * 2 ** (len(DEPTHS) - 1)
    assert out.shape == (2, final_dim), out.shape
    assert out.dtype == jnp.float32
    assert bool(jnp.all(jnp.isfinite(out)))
    print("KERNEL_OK")
</pallas_src>

<mosaic_0001>
module attributes {stable_mosaic.version = 11 : i64} {
  func.func @_patch_embed_kernel(%arg0: i32, %arg1: memref<64x48xbf16, #tpu.memory_space<vmem>>, %arg2: memref<48x32xbf16, #tpu.memory_space<vmem>>, %arg3: memref<1x32xf32, #tpu.memory_space<vmem>>, %arg4: memref<1x32xf32, #tpu.memory_space<vmem>>, %arg5: memref<1x32xf32, #tpu.memory_space<vmem>>, %arg6: memref<64x32xbf16, #tpu.memory_space<vmem>>) attributes {dimension_semantics = [#tpu.dimension_semantics<parallel>], iteration_bounds = array<i64: 2>, scalar_prefetch = 0 : i64, scratch_operands = 0 : i64, tpu.core_type = #tpu.core_type<tc>, window_params = [{transform_indices = @transform_0, window_bounds = array<i64: 64, 48>}, {pipeline_mode = #tpu.pipeline_mode<synchronous>, transform_indices = @transform_1, window_bounds = array<i64: 48, 32>}, {pipeline_mode = #tpu.pipeline_mode<synchronous>, transform_indices = @transform_2, window_bounds = array<i64: 1, 32>}, {pipeline_mode = #tpu.pipeline_mode<synchronous>, transform_indices = @transform_3, window_bounds = array<i64: 1, 32>}, {pipeline_mode = #tpu.pipeline_mode<synchronous>, transform_indices = @transform_4, window_bounds = array<i64: 1, 32>}, {transform_indices = @transform_5, window_bounds = array<i64: 64, 32>}]} {
    %c0 = arith.constant 0 : index
    %c0_0 = arith.constant 0 : index
    %0 = vector.load %arg2[%c0, %c0_0] : memref<48x32xbf16, #tpu.memory_space<vmem>>, vector<48x32xbf16>
    %c0_1 = arith.constant 0 : index
    %c0_2 = arith.constant 0 : index
    %1 = vector.load %arg1[%c0_1, %c0_2] : memref<64x48xbf16, #tpu.memory_space<vmem>>, vector<64x48xbf16>
    %cst = arith.constant dense<0.000000e+00> : vector<64x32xf32>
    %2 = tpu.matmul %1, %0, %cst {dimension_numbers = #tpu.dot_dimension_numbers<[1], [0], [0], [1], [0, 0, 1, 1], [], []>} : vector<64x48xbf16>, vector<48x32xbf16>, vector<64x32xf32> -> vector<64x32xf32>
    %c0_3 = arith.constant 0 : index
    %c0_4 = arith.constant 0 : index
    %3 = vector.load %arg3[%c0_3, %c0_4] : memref<1x32xf32, #tpu.memory_space<vmem>>, vector<1x32xf32>
    %4 = vector.broadcast %3 : vector<1x32xf32> to vector<64x32xf32>
    %5 = arith.addf %2, %4 : vector<64x32xf32>
    %c0_5 = arith.constant 0 : index
    %c0_6 = arith.constant 0 : index
    %6 = vector.load %arg4[%c0_5, %c0_6] : memref<1x32xf32, #tpu.memory_space<vmem>>, vector<1x32xf32>
    %c0_7 = arith.constant 0 : index
    %c0_8 = arith.constant 0 : index
    %7 = vector.load %arg5[%c0_7, %c0_8] : memref<1x32xf32, #tpu.memory_space<vmem>>, vector<1x32xf32>
    %cst_9 = arith.constant dense<0.000000e+00> : vector<64xf32>
    %8 = vector.multi_reduction <add>, %5, %cst_9 [1] : vector<64x32xf32> to vector<64xf32>
    %9 = vector.shape_cast %8 : vector<64xf32> to vector<64x1xf32>
    %cst_10 = arith.constant 3.200000e+01 : f32
    %10 = vector.broadcast %cst_10 : f32 to vector<64x1xf32>
    %11 = arith.divf %9, %10 : vector<64x1xf32>
    %12 = vector.broadcast %11 : vector<64x1xf32> to vector<64x32xf32>
    %13 = arith.subf %5, %12 : vector<64x32xf32>
    %14 = arith.mulf %13, %13 : vector<64x32xf32>
    %cst_11 = arith.constant dense<0.000000e+00> : vector<64xf32>
    %15 = vector.multi_reduction <add>, %14, %cst_11 [1] : vector<64x32xf32> to vector<64xf32>
    %16 = vector.shape_cast %15 : vector<64xf32> to vector<64x1xf32>
    %cst_12 = arith.constant 3.200000e+01 : f32
    %17 = vector.broadcast %cst_12 : f32 to vector<64x1xf32>
    %18 = arith.divf %16, %17 : vector<64x1xf32>
    %19 = vector.broadcast %11 : vector<64x1xf32> to vector<64x32xf32>
    %20 = arith.subf %5, %19 : vector<64x32xf32>
    %cst_13 = arith.constant 9.99999974E-6 : f32
    %21 = vector.broadcast %cst_13 : f32 to vector<64x1xf32>
    %22 = arith.addf %18, %21 : vector<64x1xf32>
    %23 = math.rsqrt %22 : vector<64x1xf32>
    %24 = vector.broadcast %23 : vector<64x1xf32> to vector<64x32xf32>
    %25 = arith.mulf %20, %24 : vector<64x32xf32>
    %26 = vector.broadcast %6 : vector<1x32xf32> to vector<64x32xf32>
    %27 = arith.mulf %25, %26 : vector<64x32xf32>
    %28 = vector.broadcast %7 : vector<1x32xf32> to vector<64x32xf32>
    %29 = arith.addf %27, %28 : vector<64x32xf32>
    %30 = arith.truncf %29 : vector<64x32xf32> to vector<64x32xbf16>
    %c0_14 = arith.constant 0 : index
    %c0_15 = arith.constant 0 : index
    %31 = vector.load %arg6[%c0_14, %c0_15] : memref<64x32xbf16, #tpu.memory_space<vmem>>, vector<64x32xbf16>
    tpu.vector_store %arg6[%c0_14, %c0_15], %30 {strides = array<i32>} : memref<64x32xbf16, #tpu.memory_space<vmem>>, vector<64x32xbf16>,
    return
  }
  func.func @transform_0(%arg0: i32) -> (i32, i32) {
    %c0_i32 = arith.constant 0 : i32
    %c0_i32_0 = arith.constant 0 : i32
    return %arg0, %c0_i32 : i32, i32
  }
  func.func @transform_1(%arg0: i32) -> (i32, i32) {
    %c0_i32 = arith.constant 0 : i32
    %c0_i32_0 = arith.constant 0 : i32
    %c0_i32_1 = arith.constant 0 : i32
    return %c0_i32, %c0_i32_0 : i32, i32
  }
  func.func @transform_2(%arg0: i32) -> (i32, i32) {
    %c0_i32 = arith.constant 0 : i32
    %c0_i32_0 = arith.constant 0 : i32
    %c0_i32_1 = arith.constant 0 : i32
    return %c0_i32, %c0_i32_0 : i32, i32
  }
  func.func @transform_3(%arg0: i32) -> (i32, i32) {
    %c0_i32 = arith.constant 0 : i32
    %c0_i32_0 = arith.constant 0 : i32
    %c0_i32_1 = arith.constant 0 : i32
    return %c0_i32, %c0_i32_0 : i32, i32
  }
  func.func @transform_4(%arg0: i32) -> (i32, i32) {
    %c0_i32 = arith.constant 0 : i32
    %c0_i32_0 = arith.constant 0 : i32
    %c0_i32_1 = arith.constant 0 : i32
    return %c0_i32, %c0_i32_0 : i32, i32
  }
  func.func @transform_5(%arg0: i32) -> (i32, i32) {
    %c0_i32 = arith.constant 0 : i32
    %c0_i32_0 = arith.constant 0 : i32
    return %arg0, %c0_i32 : i32, i32
  }
}

module attributes {stable_mosaic.version = 11 : i64} {
  func.func @_attn_window_kernel(%arg0: i32, %arg1: i32, %arg2: memref<1x16x32xbf16, #tpu.memory_space<vmem>>, %arg3: memref<1x32xf32, #tpu.memory_space<vmem>>, %arg4: memref<1x32xf32, #tpu.memory_space<vmem>>, %arg5: memref<32x96xbf16, #tpu.memory_space<vmem>>, %arg6: memref<1x96xf32, #tpu.memory_space<vmem>>, %arg7: memref<32x32xbf16, #tpu.memory_space<vmem>>, %arg8: memref<1x32xf32, #tpu.memory_space<vmem>>, %arg9: memref<2x16x16xf32, #tpu.memory_space<vmem>>, %arg10: memref<1x16x32xbf16, #tpu.memory_space<vmem>>) attributes {dimension_semantics = [#tpu.dimension_semantics<parallel>, #tpu.dimension_semantics<parallel>], iteration_bounds = array<i64: 2, 4>, scalar_prefetch = 0 : i64, scratch_operands = 0 : i64, tpu.core_type = #tpu.core_type<tc>, window_params = [{transform_indices = @transform_0, window_bounds = array<i64: 1, 16, 32>}, {pipeline_mode = #tpu.pipeline_mode<synchronous>, transform_indices = @transform_1, window_bounds = array<i64: 1, 32>}, {pipeline_mode = #tpu.pipeline_mode<synchronous>, transform_indices = @transform_2, window_bounds = array<i64: 1, 32>}, {pipeline_mode = #tpu.pipeline_mode<synchronous>, transform_indices = @transform_3, window_bounds = array<i64: 32, 96>}, {pipeline_mode = #tpu.pipeline_mode<synchronous>, transform_indices = @transform_4, window_bounds = array<i64: 1, 96>}, {pipeline_mode = #tpu.pipeline_mode<synchronous>, transform_indices = @transform_5, window_bounds = array<i64: 32, 32>}, {pipeline_mode = #tpu.pipeline_mode<synchronous>, transform_indices = @transform_6, window_bounds = array<i64: 1, 32>}, {pipeline_mode = #tpu.pipeline_mode<synchronous>, transform_indices = @transform_7, window_bounds = array<i64: 2, 16, 16>}, {transform_indices = @transform_8, window_bounds = array<i64: 1, 16, 32>}]} {
    %c0 = arith.constant 0 : index
    %c0_0 = arith.constant 0 : index
    %c0_1 = arith.constant 0 : index
    %0 = vector.load %arg2[%c0, %c0_0, %c0_1] : memref<1x16x32xbf16, #tpu.memory_space<vmem>>, vector<1x16x32xbf16>
    %1 = arith.extf %0 : vector<1x16x32xbf16> to vector<1x16x32xf32>
    %c0_2 = arith.constant 0 : index
    %c0_3 = arith.constant 0 : index
    %2 = vector.load %arg3[%c0_2, %c0_3] : memref<1x32xf32, #tpu.memory_space<vmem>>, vector<1x32xf32>
    %c0_4 = arith.constant 0 : index
    %c0_5 = arith.constant 0 : index
    %3 = vector.load %arg4[%c0_4, %c0_5] : memref<1x32xf32, #tpu.memory_space<vmem>>, vector<1x32xf32>
    %cst = arith.constant dense<0.000000e+00> : vector<1x16xf32>
    %4 = vector.multi_reduction <add>, %1, %cst [2] : vector<1x16x32xf32> to vector<1x16xf32>
    %5 = vector.shape_cast %4 : vector<1x16xf32> to vector<1x16x1xf32>
    %cst_6 = arith.constant 3.200000e+01 : f32
    %6 = vector.broadcast %cst_6 : f32 to vector<1x16x1xf32>
    %7 = arith.divf %5, %6 : vector<1x16x1xf32>
    %8 = vector.broadcast %7 : vector<1x16x1xf32> to vector<1x16x32xf32>
    %9 = arith.subf %1, %8 : vector<1x16x32xf32>
    %10 = arith.mulf %9, %9 : vector<1x16x32xf32>
    %cst_7 = arith.constant dense<0.000000e+00> : vector<1x16xf32>
    %11 = vector.multi_reduction <add>, %10, %cst_7 [2] : vector<1x16x32xf32> to vector<1x16xf32>
    %12 = vector.shape_cast %11 : vector<1x16xf32> to vector<1x16x1xf32>
    %cst_8 = arith.constant 3.200000e+01 : f32
    %13 = vector.broadcast %cst_8 : f32 to vector<1x16x1xf32>
    %14 = arith.divf %12, %13 : vector<1x16x1xf32>
    %15 = vector.broadcast %7 : vector<1x16x1xf32> to vector<1x16x32xf32>
    %16 = arith.subf %1, %15 : vector<1x16x32xf32>
    %cst_9 = arith.constant 9.99999974E-6 : f32
    %17 = vector.broadcast %cst_9 : f32 to vector<1x16x1xf32>
    %18 = arith.addf %14, %17 : vector<1x16x1xf32>
    %19 = math.rsqrt %18 : vector<1x16x1xf32>
    %20 = vector.broadcast %19 : vector<1x16x1xf32> to vector<1x16x32xf32>
    %21 = arith.mulf %16, %20 : vector<1x16x32xf32>
    %22 = vector.shape_cast %2 : vector<1x32xf32> to vector<1x1x32xf32>
    %23 = vector.broadcast %22 : vector<1x1x32xf32> to vector<1x16x32xf32>
    %24 = arith.mulf %21, %23 : vector<1x16x32xf32>
    %25 = vector.shape_cast %3 : vector<1x32xf32> to vector<1x1x32xf32>
    %26 = vector.broadcast %25 : vector<1x1x32xf32> to vector<1x16x32xf32>
    %27 = arith.addf %24, %26 : vector<1x16x32xf32>
    %c0_10 = arith.constant 0 : index
    %c0_11 = arith.constant 0 : index
    %28 = vector.load %arg5[%c0_10, %c0_11] : memref<32x96xbf16, #tpu.memory_space<vmem>>, vector<32x96xbf16>
    %29 = vector.shape_cast %27 : vector<1x16x32xf32> to vector<16x32xf32>
    %30 = arith.truncf %29 : vector<16x32xf32> to vector<16x32xbf16>
    %cst_12 = arith.constant dense<0.000000e+00> : vector<16x96xf32>
    %31 = tpu.matmul %30, %28, %cst_12 {dimension_numbers = #tpu.dot_dimension_numbers<[1], [0], [0], [1], [0, 0, 1, 1], [], []>} : vector<16x32xbf16>, vector<32x96xbf16>, vector<16x96xf32> -> vector<16x96xf32>
    %c0_13 = arith.constant 0 : index
    %c0_14 = arith.constant 0 : index
    %32 = vector.load %arg6[%c0_13, %c0_14] : memref<1x96xf32, #tpu.memory_space<vmem>>, vector<1x96xf32>
    %33 = vector.broadcast %32 : vector<1x96xf32> to vector<16x96xf32>
    %34 = arith.addf %31, %33 : vector<16x96xf32>
    %35 = vector.shape_cast %34 : vector<16x96xf32> to vector<1x16x96xf32>
    %c0_15 = arith.constant 0 : index
    %c0_16 = arith.constant 0 : index
    %c0_17 = arith.constant 0 : index
    %36 = vector.load %arg9[%c0_15, %c0_16, %c0_17] : memref<2x16x16xf32, #tpu.memory_space<vmem>>, vector<2x16x16xf32>
    %37 = vector.extract_strided_slice %35 {offsets = [0, 0, 0], sizes = [1, 16, 16], strides = [1, 1, 1]} : vector<1x16x96xf32> to vector<1x16x16xf32>
    %38 = vector.extract_strided_slice %35 {offsets = [0, 0, 32], sizes = [1, 16, 16], strides = [1, 1, 1]} : vector<1x16x96xf32> to vector<1x16x16xf32>
    %39 = vector.extract_strided_slice %35 {offsets = [0, 0, 64], sizes = [1, 16, 16], strides = [1, 1, 1]} : vector<1x16x96xf32> to vector<1x16x16xf32>
    "tpu.trace_start"() <{level = 10 : i32, message = "wqd,wkd->wqk"}> : () -> ()
    %cst_18 = arith.constant dense<0.000000e+00> : vector<1x16x16xf32>
    %40 = tpu.matmul %37, %38, %cst_18 {dimension_numbers = #tpu.dot_dimension_numbers<[2], [2], [1], [1], [0, 0, 0, 1, 1, 1], [0], [0]>} : vector<1x16x16xf32>, vector<1x16x16xf32>, vector<1x16x16xf32> -> vector<1x16x16xf32>
    "tpu.trace_stop"() : () -> ()
    %41 = vector.extract_strided_slice %36 {offsets = [0, 0, 0], sizes = [1, 16, 16], strides = [1, 1, 1]} : vector<2x16x16xf32> to vector<1x16x16xf32>
    %42 = arith.addf %40, %41 : vector<1x16x16xf32>
    %cst_19 = arith.constant dense<0xFF800000> : vector<1x16xf32>
    %43 = vector.multi_reduction <maximumf>, %42, %cst_19 [2] : vector<1x16x16xf32> to vector<1x16xf32>
    %44 = vector.shape_cast %43 : vector<1x16xf32> to vector<1x16x1xf32>
    %45 = vector.broadcast %44 : vector<1x16x1xf32> to vector<1x16x16xf32>
    %46 = arith.subf %42, %45 : vector<1x16x16xf32>
    %47 = math.exp %46 : vector<1x16x16xf32>
    %cst_20 = arith.constant dense<0.000000e+00> : vector<1x16xf32>
    %48 = vector.multi_reduction <add>, %47, %cst_20 [2] : vector<1x16x16xf32> to vector<1x16xf32>
    %49 = vector.shape_cast %48 : vector<1x16xf32> to vector<1x16x1xf32>
    %50 = tpu.reciprocal %49 {approx = true} : vector<1x16x1xf32> -> vector<1x16x1xf32>
    %51 = vector.broadcast %50 : vector<1x16x1xf32> to vector<1x16x16xf32>
    %52 = arith.mulf %47, %51 : vector<1x16x16xf32>
    "tpu.trace_start"() <{level = 10 : i32, message = "wqk,wkd->wqd"}> : () -> ()
    %cst_21 = arith.constant dense<0.000000e+00> : vector<1x16x16xf32>
    %53 = tpu.matmul %52, %39, %cst_21 {dimension_numbers = #tpu.dot_dimension_numbers<[2], [1], [1], [2], [0, 0, 0, 1, 1, 2], [0], [0]>} : vector<1x16x16xf32>, vector<1x16x16xf32>, vector<1x16x16xf32> -> vector<1x16x16xf32>
    "tpu.trace_stop"() : () -> ()
    %54 = vector.extract_strided_slice %35 {offsets = [0, 0, 16], sizes = [1, 16, 16], strides = [1, 1, 1]} : vector<1x16x96xf32> to vector<1x16x16xf32>
    %55 = vector.extract_strided_slice %35 {offsets = [0, 0, 48], sizes = [1, 16, 16], strides = [1, 1, 1]} : vector<1x16x96xf32> to vector<1x16x16xf32>
    %56 = vector.extract_strided_slice %35 {offsets = [0, 0, 80], sizes = [1, 16, 16], strides = [1, 1, 1]} : vector<1x16x96xf32> to vector<1x16x16xf32>
    "tpu.trace_start"() <{level = 10 : i32, message = "wqd,wkd->wqk"}> : () -> ()
    %cst_22 = arith.constant dense<0.000000e+00> : vector<1x16x16xf32>
    %57 = tpu.matmul %54, %55, %cst_22 {dimension_numbers = #tpu.dot_dimension_numbers<[2], [2], [1], [1], [0, 0, 0, 1, 1, 1], [0], [0]>} : vector<1x16x16xf32>, vector<1x16x16xf32>, vector<1x16x16xf32> -> vector<1x16x16xf32>
    "tpu.trace_stop"() : () -> ()
    %58 = vector.extract_strided_slice %36 {offsets = [1, 0, 0], sizes = [1, 16, 16], strides = [1, 1, 1]} : vector<2x16x16xf32> to vector<1x16x16xf32>
    %59 = arith.addf %57, %58 : vector<1x16x16xf32>
    %cst_23 = arith.constant dense<0xFF800000> : vector<1x16xf32>
    %60 = vector.multi_reduction <maximumf>, %59, %cst_23 [2] : vector<1x16x16xf32> to vector<1x16xf32>
    %61 = vector.shape_cast %60 : vector<1x16xf32> to vector<1x16x1xf32>
    %62 = vector.broadcast %61 : vector<1x16x1xf32> to vector<1x16x16xf32>
    %63 = arith.subf %59, %62 : vector<1x16x16xf32>
    %64 = math.exp %63 : vector<1x16x16xf32>
    %cst_24 = arith.constant dense<0.000000e+00> : vector<1x16xf32>
    %65 = vector.multi_reduction <add>, %64, %cst_24 [2] : vector<1x16x16xf32> to vector<1x16xf32>
    %66 = vector.shape_cast %65 : vector<1x16xf32> to vector<1x16x1xf32>
    %67 = tpu.reciprocal %66 {approx = true} : vector<1x16x1xf32> -> vector<1x16x1xf32>
    %68 = vector.broadcast %67 : vector<1x16x1xf32> to vector<1x16x16xf32>
    %69 = arith.mulf %64, %68 : vector<1x16x16xf32>
    "tpu.trace_start"() <{level = 10 : i32, message = "wqk,wkd->wqd"}> : () -> ()
    %cst_25 = arith.constant dense<0.000000e+00> : vector<1x16x16xf32>
    %70 = tpu.matmul %69, %56, %cst_25 {dimension_numbers = #tpu.dot_dimension_numbers<[2], [1], [1], [2], [0, 0, 0, 1, 1, 2], [0], [0]>} : vector<1x16x16xf32>, vector<1x16x16xf32>, vector<1x16x16xf32> -> vector<1x16x16xf32>
    "tpu.trace_stop"() : () -> ()
    %71 = tpu.concatenate %53, %70 in 2 : vector<1x16x16xf32>, vector<1x16x16xf32> -> vector<1x16x32xf32>
    %c0_26 = arith.constant 0 : index
    %c0_27 = arith.constant 0 : index
    %72 = vector.load %arg7[%c0_26, %c0_27] : memref<32x32xbf16, #tpu.memory_space<vmem>>, vector<32x32xbf16>
    %73 = vector.shape_cast %71 : vector<1x16x32xf32> to vector<16x32xf32>
    %74 = arith.truncf %73 : vector<16x32xf32> to vector<16x32xbf16>
    %cst_28 = arith.constant dense<0.000000e+00> : vector<16x32xf32>
    %75 = tpu.matmul %74, %72, %cst_28 {dimension_numbers = #tpu.dot_dimension_numbers<[1], [0], [0], [1], [0, 0, 1, 1], [], []>} : vector<16x32xbf16>, vector<32x32xbf16>, vector<16x32xf32> -> vector<16x32xf32>
    %c0_29 = arith.constant 0 : index
    %c0_30 = arith.constant 0 : index
    %76 = vector.load %arg8[%c0_29, %c0_30] : memref<1x32xf32, #tpu.memory_space<vmem>>, vector<1x32xf32>
    %77 = vector.broadcast %76 : vector<1x32xf32> to vector<16x32xf32>
    %78 = arith.addf %75, %77 : vector<16x32xf32>
    %79 = vector.shape_cast %78 : vector<16x32xf32> to vector<1x16x32xf32>
    %80 = arith.truncf %79 : vector<1x16x32xf32> to vector<1x16x32xbf16>
    %c0_31 = arith.constant 0 : index
    %c0_32 = arith.constant 0 : index
    %c0_33 = arith.constant 0 : index
    %81 = vector.load %arg10[%c0_31, %c0_32, %c0_33] : memref<1x16x32xbf16, #tpu.memory_space<vmem>>, vector<1x16x32xbf16>
    tpu.vector_store %arg10[%c0_31, %c0_32, %c0_33], %80 {strides = array<i32>} : memref<1x16x32xbf16, #tpu.memory_space<vmem>>, vector<1x16x32xbf16>,
    return
  }
  func.func @transform_0(%arg0: i32, %arg1: i32) -> (i32, i32, i32) {
    %c4_i32 = arith.constant 4 : i32
    %0 = arith.muli %arg0, %c4_i32 : i32
    %1 = arith.addi %0, %arg1 : i32
    %c0_i32 = arith.constant 0 : i32
    %c0_i32_0 = arith.constant 0 : i32
    %c0_i32_1 = arith.constant 0 : i32
    return %1, %c0_i32, %c0_i32_0 : i32, i32, i32
  }
  func.func @transform_1(%arg0: i32, %arg1: i32) -> (i32, i32) {
    %c0_i32 = arith.constant 0 : i32
    %c0_i32_0 = arith.constant 0 : i32
    %c0_i32_1 = arith.constant 0 : i32
    return %c0_i32, %c0_i32_0 : i32, i32
  }
  func.func @transform_2(%arg0: i32, %arg1: i32) -> (i32, i32) {
    %c0_i32 = arith.constant 0 : i32
    %c0_i32_0 = arith.constant 0 : i32
    %c0_i32_1 = arith.constant 0 : i32
    return %c0_i32, %c0_i32_0 : i32, i32
  }
  func.func @transform_3(%arg0: i32, %arg1: i32) -> (i32, i32) {
    %c0_i32 = arith.constant 0 : i32
    %c0_i32_0 = arith.constant 0 : i32
    %c0_i32_1 = arith.constant 0 : i32
    return %c0_i32, %c0_i32_0 : i32, i32
  }
  func.func @transform_4(%arg0: i32, %arg1: i32) -> (i32, i32) {
    %c0_i32 = arith.constant 0 : i32
    %c0_i32_0 = arith.constant 0 : i32
    %c0_i32_1 = arith.constant 0 : i32
    return %c0_i32, %c0_i32_0 : i32, i32
  }
  func.func @transform_5(%arg0: i32, %arg1: i32) -> (i32, i32) {
    %c0_i32 = arith.constant 0 : i32
    %c0_i32_0 = arith.constant 0 : i32
    %c0_i32_1 = arith.constant 0 : i32
    return %c0_i32, %c0_i32_0 : i32, i32
  }
  func.func @transform_6(%arg0: i32, %arg1: i32) -> (i32, i32) {
    %c0_i32 = arith.constant 0 : i32
    %c0_i32_0 = arith.constant 0 : i32
    %c0_i32_1 = arith.constant 0 : i32
    return %c0_i32, %c0_i32_0 : i32, i32
  }
  func.func @transform_7(%arg0: i32, %arg1: i32) -> (i32, i32, i32) {
    %c0_i32 = arith.constant 0 : i32
    %c0_i32_0 = arith.constant 0 : i32
    %c0_i32_1 = arith.constant 0 : i32
    %c0_i32_2 = arith.constant 0 : i32
    return %c0_i32, %c0_i32_0, %c0_i32_1 : i32, i32, i32
  }
  func.func @transform_8(%arg0: i32, %arg1: i32) -> (i32, i32, i32) {
    %c4_i32 = arith.constant 4 : i32
    %0 = arith.muli %arg0, %c4_i32 : i32
    %1 = arith.addi %0, %arg1 : i32
    %c0_i32 = arith.constant 0 : i32
    %c0_i32_0 = arith.constant 0 : i32
    %c0_i32_1 = arith.constant 0 : i32
    return %1, %c0_i32, %c0_i32_0 : i32, i32, i32
  }
}

module attributes {stable_mosaic.version = 11 : i64} {
  func.func @_mlp_kernel(%arg0: i32, %arg1: memref<64x32xbf16, #tpu.memory_space<vmem>>, %arg2: memref<64x32xbf16, #tpu.memory_space<vmem>>, %arg3: memref<1x32xf32, #tpu.memory_space<vmem>>, %arg4: memref<1x32xf32, #tpu.memory_space<vmem>>, %arg5: memref<32x128xbf16, #tpu.memory_space<vmem>>, %arg6: memref<1x128xf32, #tpu.memory_space<vmem>>, %arg7: memref<128x32xbf16, #tpu.memory_space<vmem>>, %arg8: memref<1x32xf32, #tpu.memory_space<vmem>>, %arg9: memref<64x32xbf16, #tpu.memory_space<vmem>>) attributes {dimension_semantics = [#tpu.dimension_semantics<parallel>], iteration_bounds = array<i64: 2>, scalar_prefetch = 0 : i64, scratch_operands = 0 : i64, tpu.core_type = #tpu.core_type<tc>, window_params = [{transform_indices = @transform_0, window_bounds = array<i64: 64, 32>}, {transform_indices = @transform_1, window_bounds = array<i64: 64, 32>}, {pipeline_mode = #tpu.pipeline_mode<synchronous>, transform_indices = @transform_2, window_bounds = array<i64: 1, 32>}, {pipeline_mode = #tpu.pipeline_mode<synchronous>, transform_indices = @transform_3, window_bounds = array<i64: 1, 32>}, {pipeline_mode = #tpu.pipeline_mode<synchronous>, transform_indices = @transform_4, window_bounds = array<i64: 32, 128>}, {pipeline_mode = #tpu.pipeline_mode<synchronous>, transform_indices = @transform_5, window_bounds = array<i64: 1, 128>}, {pipeline_mode = #tpu.pipeline_mode<synchronous>, transform_indices = @transform_6, window_bounds = array<i64: 128, 32>}, {pipeline_mode = #tpu.pipeline_mode<synchronous>, transform_indices = @transform_7, window_bounds = array<i64: 1, 32>}, {transform_indices = @transform_8, window_bounds = array<i64: 64, 32>}]} {
    %c0 = arith.constant 0 : index
    %c0_0 = arith.constant 0 : index
    %0 = vector.load %arg1[%c0, %c0_0] : memref<64x32xbf16, #tpu.memory_space<vmem>>, vector<64x32xbf16>
    %1 = arith.extf %0 : vector<64x32xbf16> to vector<64x32xf32>
    %c0_1 = arith.constant 0 : index
    %c0_2 = arith.constant 0 : index
    %2 = vector.load %arg2[%c0_1, %c0_2] : memref<64x32xbf16, #tpu.memory_space<vmem>>, vector<64x32xbf16>
    %3 = arith.extf %2 : vector<64x32xbf16> to vector<64x32xf32>
    %4 = arith.addf %1, %3 : vector<64x32xf32>
    %c0_3 = arith.constant 0 : index
    %c0_4 = arith.constant 0 : index
    %5 = vector.load %arg3[%c0_3, %c0_4] : memref<1x32xf32, #tpu.memory_space<vmem>>, vector<1x32xf32>
    %c0_5 = arith.constant 0 : index
    %c0_6 = arith.constant 0 : index
    %6 = vector.load %arg4[%c0_5, %c0_6] : memref<1x32xf32, #tpu.memory_space<vmem>>, vector<1x32xf32>
    %cst = arith.constant dense<0.000000e+00> : vector<64xf32>
    %7 = vector.multi_reduction <add>, %4, %cst [1] : vector<64x32xf32> to vector<64xf32>
    %8 = vector.shape_cast %7 : vector<64xf32> to vector<64x1xf32>
    %cst_7 = arith.constant 3.200000e+01 : f32
    %9 = vector.broadcast %cst_7 : f32 to vector<64x1xf32>
    %10 = arith.divf %8, %9 : vector<64x1xf32>
    %11 = vector.broadcast %10 : vector<64x1xf32> to vector<64x32xf32>
    %12 = arith.subf %4, %11 : vector<64x32xf32>
    %13 = arith.mulf %12, %12 : vector<64x32xf32>
    %cst_8 = arith.constant dense<0.000000e+00> : vector<64xf32>
    %14 = vector.multi_reduction <add>, %13, %cst_8 [1] : vector<64x32xf32> to vector<64xf32>
    %15 = vector.shape_cast %14 : vector<64xf32> to vector<64x1xf32>
    %cst_9 = arith.constant 3.200000e+01 : f32
    %16 = vector.broadcast %cst_9 : f32 to vector<64x1xf32>
    %17 = arith.divf %15, %16 : vector<64x1xf32>
    %18 = vector.broadcast %10 : vector<64x1xf32> to vector<64x32xf32>
    %19 = arith.subf %4, %18 : vector<64x32xf32>
    %cst_10 = arith.constant 9.99999974E-6 : f32
    %20 = vector.broadcast %cst_10 : f32 to vector<64x1xf32>
    %21 = arith.addf %17, %20 : vector<64x1xf32>
    %22 = math.rsqrt %21 : vector<64x1xf32>
    %23 = vector.broadcast %22 : vector<64x1xf32> to vector<64x32xf32>
    %24 = arith.mulf %19, %23 : vector<64x32xf32>
    %25 = vector.broadcast %5 : vector<1x32xf32> to vector<64x32xf32>
    %26 = arith.mulf %24, %25 : vector<64x32xf32>
    %27 = vector.broadcast %6 : vector<1x32xf32> to vector<64x32xf32>
    %28 = arith.addf %26, %27 : vector<64x32xf32>
    %c0_11 = arith.constant 0 : index
    %c0_12 = arith.constant 0 : index
    %29 = vector.load %arg5[%c0_11, %c0_12] : memref<32x128xbf16, #tpu.memory_space<vmem>>, vector<32x128xbf16>
    %30 = arith.truncf %28 : vector<64x32xf32> to vector<64x32xbf16>
    %cst_13 = arith.constant dense<0.000000e+00> : vector<64x128xf32>
    %31 = tpu.matmul %30, %29, %cst_13 {dimension_numbers = #tpu.dot_dimension_numbers<[1], [0], [0], [1], [0, 0, 1, 1], [], []>} : vector<64x32xbf16>, vector<32x128xbf16>, vector<64x128xf32> -> vector<64x128xf32>
    %c0_14 = arith.constant 0 : index
    %c0_15 = arith.constant 0 : index
    %32 = vector.load %arg6[%c0_14, %c0_15] : memref<1x128xf32, #tpu.memory_space<vmem>>, vector<1x128xf32>
    %33 = vector.broadcast %32 : vector<1x128xf32> to vector<64x128xf32>
    %34 = arith.addf %31, %33 : vector<64x128xf32>
    %35 = arith.mulf %34, %34 : vector<64x128xf32>
    %36 = arith.mulf %34, %35 : vector<64x128xf32>
    %cst_16 = arith.constant 4.471500e-02 : f32
    %37 = vector.broadcast %cst_16 : f32 to vector<64x128xf32>
    %38 = arith.mulf %37, %36 : vector<64x128xf32>
    %39 = arith.addf %34, %38 : vector<64x128xf32>
    %cst_17 = arith.constant 0.797884583 : f32
    %40 = vector.broadcast %cst_17 : f32 to vector<64x128xf32>
    %41 = arith.mulf %40, %39 : vector<64x128xf32>
    %42 = math.tanh %41 : vector<64x128xf32>
    %cst_18 = arith.constant 1.000000e+00 : f32
    %43 = vector.broadcast %cst_18 : f32 to vector<64x128xf32>
    %44 = arith.addf %43, %42 : vector<64x128xf32>
    %cst_19 = arith.constant 5.000000e-01 : f32
    %45 = vector.broadcast %cst_19 : f32 to vector<64x128xf32>
    %46 = arith.mulf %45, %44 : vector<64x128xf32>
    %47 = arith.mulf %34, %46 : vector<64x128xf32>
    %c0_20 = arith.constant 0 : index
    %c0_21 = arith.constant 0 : index
    %48 = vector.load %arg7[%c0_20, %c0_21] : memref<128x32xbf16, #tpu.memory_space<vmem>>, vector<128x32xbf16>
    %49 = arith.truncf %47 : vector<64x128xf32> to vector<64x128xbf16>
    %cst_22 = arith.constant dense<0.000000e+00> : vector<64x32xf32>
    %50 = tpu.matmul %49, %48, %cst_22 {dimension_numbers = #tpu.dot_dimension_numbers<[1], [0], [0], [1], [0, 0, 1, 1], [], []>} : vector<64x128xbf16>, vector<128x32xbf16>, vector<64x32xf32> -> vector<64x32xf32>
    %c0_23 = arith.constant 0 : index
    %c0_24 = arith.constant 0 : index
    %51 = vector.load %arg8[%c0_23, %c0_24] : memref<1x32xf32, #tpu.memory_space<vmem>>, vector<1x32xf32>
    %52 = vector.broadcast %51 : vector<1x32xf32> to vector<64x32xf32>
    %53 = arith.addf %50, %52 : vector<64x32xf32>
    %54 = arith.addf %4, %53 : vector<64x32xf32>
    %55 = arith.truncf %54 : vector<64x32xf32> to vector<64x32xbf16>
    %c0_25 = arith.constant 0 : index
    %c0_26 = arith.constant 0 : index
    %56 = vector.load %arg9[%c0_25, %c0_26] : memref<64x32xbf16, #tpu.memory_space<vmem>>, vector<64x32xbf16>
    tpu.vector_store %arg9[%c0_25, %c0_26], %55 {strides = array<i32>} : memref<64x32xbf16, #tpu.memory_space<vmem>>, vector<64x32xbf16>,
    return
  }
  func.func @transform_0(%arg0: i32) -> (i32, i32) {
    %c0_i32 = arith.constant 0 : i32
    %c0_i32_0 = arith.constant 0 : i32
    return %arg0, %c0_i32 : i32, i32
  }
  func.func @transform_1(%arg0: i32) -> (i32, i32) {
    %c0_i32 = arith.constant 0 : i32
    %c0_i32_0 = arith.constant 0 : i32
    return %arg0, %c0_i32 : i32, i32
  }
  func.func @transform_2(%arg0: i32) -> (i32, i32) {
    %c0_i32 = arith.constant 0 : i32
    %c0_i32_0 = arith.constant 0 : i32
    %c0_i32_1 = arith.constant 0 : i32
    return %c0_i32, %c0_i32_0 : i32, i32
  }
  func.func @transform_3(%arg0: i32) -> (i32, i32) {
    %c0_i32 = arith.constant 0 : i32
    %c0_i32_0 = arith.constant 0 : i32
    %c0_i32_1 = arith.constant 0 : i32
    return %c0_i32, %c0_i32_0 : i32, i32
  }
  func.func @transform_4(%arg0: i32) -> (i32, i32) {
    %c0_i32 = arith.constant 0 : i32
    %c0_i32_0 = arith.constant 0 : i32
    %c0_i32_1 = arith.constant 0 : i32
    return %c0_i32, %c0_i32_0 : i32, i32
  }
  func.func @transform_5(%arg0: i32) -> (i32, i32) {
    %c0_i32 = arith.constant 0 : i32
    %c0_i32_0 = arith.constant 0 : i32
    %c0_i32_1 = arith.constant 0 : i32
    return %c0_i32, %c0_i32_0 : i32, i32
  }
  func.func @transform_6(%arg0: i32) -> (i32, i32) {
    %c0_i32 = arith.constant 0 : i32
    %c0_i32_0 = arith.constant 0 : i32
    %c0_i32_1 = arith.constant 0 : i32
    return %c0_i32, %c0_i32_0 : i32, i32
  }
  func.func @transform_7(%arg0: i32) -> (i32, i32) {
    %c0_i32 = arith.constant 0 : i32
    %c0_i32_0 = arith.constant 0 : i32
    %c0_i32_1 = arith.constant 0 : i32
    return %c0_i32, %c0_i32_0 : i32, i32
  }
  func.func @transform_8(%arg0: i32) -> (i32, i32) {
    %c0_i32 = arith.constant 0 : i32
    %c0_i32_0 = arith.constant 0 : i32
    return %arg0, %c0_i32 : i32, i32
  }
}

module attributes {stable_mosaic.version = 11 : i64} {
  func.func @_attn_window_kernel(%arg0: i32, %arg1: i32, %arg2: memref<1x16x32xbf16, #tpu.memory_space<vmem>>, %arg3: memref<1x32xf32, #tpu.memory_space<vmem>>, %arg4: memref<1x32xf32, #tpu.memory_space<vmem>>, %arg5: memref<32x96xbf16, #tpu.memory_space<vmem>>, %arg6: memref<1x96xf32, #tpu.memory_space<vmem>>, %arg7: memref<32x32xbf16, #tpu.memory_space<vmem>>, %arg8: memref<1x32xf32, #tpu.memory_space<vmem>>, %arg9: memref<2x16x16xf32, #tpu.memory_space<vmem>>, %arg10: memref<1x16x16xf32, #tpu.memory_space<vmem>>, %arg11: memref<1x16x32xbf16, #tpu.memory_space<vmem>>) attributes {dimension_semantics = [#tpu.dimension_semantics<parallel>, #tpu.dimension_semantics<parallel>], iteration_bounds = array<i64: 2, 4>, scalar_prefetch = 0 : i64, scratch_operands = 0 : i64, tpu.core_type = #tpu.core_type<tc>, window_params = [{transform_indices = @transform_0, window_bounds = array<i64: 1, 16, 32>}, {pipeline_mode = #tpu.pipeline_mode<synchronous>, transform_indices = @transform_1, window_bounds = array<i64: 1, 32>}, {pipeline_mode = #tpu.pipeline_mode<synchronous>, transform_indices = @transform_2, window_bounds = array<i64: 1, 32>}, {pipeline_mode = #tpu.pipeline_mode<synchronous>, transform_indices = @transform_3, window_bounds = array<i64: 32, 96>}, {pipeline_mode = #tpu.pipeline_mode<synchronous>, transform_indices = @transform_4, window_bounds = array<i64: 1, 96>}, {pipeline_mode = #tpu.pipeline_mode<synchronous>, transform_indices = @transform_5, window_bounds = array<i64: 32, 32>}, {pipeline_mode = #tpu.pipeline_mode<synchronous>, transform_indices = @transform_6, window_bounds = array<i64: 1, 32>}, {pipeline_mode = #tpu.pipeline_mode<synchronous>, transform_indices = @transform_7, window_bounds = array<i64: 2, 16, 16>}, {transform_indices = @transform_8, window_bounds = array<i64: 1, 16, 16>}, {transform_indices = @transform_9, window_bounds = array<i64: 1, 16, 32>}]} {
    %c0 = arith.constant 0 : index
    %c0_0 = arith.constant 0 : index
    %c0_1 = arith.constant 0 : index
    %0 = vector.load %arg2[%c0, %c0_0, %c0_1] : memref<1x16x32xbf16, #tpu.memory_space<vmem>>, vector<1x16x32xbf16>
    %1 = arith.extf %0 : vector<1x16x32xbf16> to vector<1x16x32xf32>
    %c0_2 = arith.constant 0 : index
    %c0_3 = arith.constant 0 : index
    %2 = vector.load %arg3[%c0_2, %c0_3] : memref<1x32xf32, #tpu.memory_space<vmem>>, vector<1x32xf32>
    %c0_4 = arith.constant 0 : index
    %c0_5 = arith.constant 0 : index
    %3 = vector.load %arg4[%c0_4, %c0_5] : memref<1x32xf32, #tpu.memory_space<vmem>>, vector<1x32xf32>
    %cst = arith.constant dense<0.000000e+00> : vector<1x16xf32>
    %4 = vector.multi_reduction <add>, %1, %cst [2] : vector<1x16x32xf32> to vector<1x16xf32>
    %5 = vector.shape_cast %4 : vector<1x16xf32> to vector<1x16x1xf32>
    %cst_6 = arith.constant 3.200000e+01 : f32
    %6 = vector.broadcast %cst_6 : f32 to vector<1x16x1xf32>
    %7 = arith.divf %5, %6 : vector<1x16x1xf32>
    %8 = vector.broadcast %7 : vector<1x16x1xf32> to vector<1x16x32xf32>
    %9 = arith.subf %1, %8 : vector<1x16x32xf32>
    %10 = arith.mulf %9, %9 : vector<1x16x32xf32>
    %cst_7 = arith.constant dense<0.000000e+00> : vector<1x16xf32>
    %11 = vector.multi_reduction <add>, %10, %cst_7 [2] : vector<1x16x32xf32> to vector<1x16xf32>
    %12 = vector.shape_cast %11 : vector<1x16xf32> to vector<1x16x1xf32>
    %cst_8 = arith.constant 3.200000e+01 : f32
    %13 = vector.broadcast %cst_8 : f32 to vector<1x16x1xf32>
    %14 = arith.divf %12, %13 : vector<1x16x1xf32>
    %15 = vector.broadcast %7 : vector<1x16x1xf32> to vector<1x16x32xf32>
    %16 = arith.subf %1, %15 : vector<1x16x32xf32>
    %cst_9 = arith.constant 9.99999974E-6 : f32
    %17 = vector.broadcast %cst_9 : f32 to vector<1x16x1xf32>
    %18 = arith.addf %14, %17 : vector<1x16x1xf32>
    %19 = math.rsqrt %18 : vector<1x16x1xf32>
    %20 = vector.broadcast %19 : vector<1x16x1xf32> to vector<1x16x32xf32>
    %21 = arith.mulf %16, %20 : vector<1x16x32xf32>
    %22 = vector.shape_cast %2 : vector<1x32xf32> to vector<1x1x32xf32>
    %23 = vector.broadcast %22 : vector<1x1x32xf32> to vector<1x16x32xf32>
    %24 = arith.mulf %21, %23 : vector<1x16x32xf32>
    %25 = vector.shape_cast %3 : vector<1x32xf32> to vector<1x1x32xf32>
    %26 = vector.broadcast %25 : vector<1x1x32xf32> to vector<1x16x32xf32>
    %27 = arith.addf %24, %26 : vector<1x16x32xf32>
    %c0_10 = arith.constant 0 : index
    %c0_11 = arith.constant 0 : index
    %28 = vector.load %arg5[%c0_10, %c0_11] : memref<32x96xbf16, #tpu.memory_space<vmem>>, vector<32x96xbf16>
    %29 = vector.shape_cast %27 : vector<1x16x32xf32> to vector<16x32xf32>
    %30 = arith.truncf %29 : vector<16x32xf32> to vector<16x32xbf16>
    %cst_12 = arith.constant dense<0.000000e+00> : vector<16x96xf32>
    %31 = tpu.matmul %30, %28, %cst_12 {dimension_numbers = #tpu.dot_dimension_numbers<[1], [0], [0], [1], [0, 0, 1, 1], [], []>} : vector<16x32xbf16>, vector<32x96xbf16>, vector<16x96xf32> -> vector<16x96xf32>
    %c0_13 = arith.constant 0 : index
    %c0_14 = arith.constant 0 : index
    %32 = vector.load %arg6[%c0_13, %c0_14] : memref<1x96xf32, #tpu.memory_space<vmem>>, vector<1x96xf32>
    %33 = vector.broadcast %32 : vector<1x96xf32> to vector<16x96xf32>
    %34 = arith.addf %31, %33 : vector<16x96xf32>
    %35 = vector.shape_cast %34 : vector<16x96xf32> to vector<1x16x96xf32>
    %c0_15 = arith.constant 0 : index
    %c0_16 = arith.constant 0 : index
    %c0_17 = arith.constant 0 : index
    %36 = vector.load %arg9[%c0_15, %c0_16, %c0_17] : memref<2x16x16xf32, #tpu.memory_space<vmem>>, vector<2x16x16xf32>
    %c0_18 = arith.constant 0 : index
    %c0_19 = arith.constant 0 : index
    %c0_20 = arith.constant 0 : index
    %37 = vector.load %arg10[%c0_18, %c0_19, %c0_20] : memref<1x16x16xf32, #tpu.memory_space<vmem>>, vector<1x16x16xf32>
    %38 = vector.broadcast %37 : vector<1x16x16xf32> to vector<2x16x16xf32>
    %39 = arith.addf %36, %38 : vector<2x16x16xf32>
    %40 = vector.extract_strided_slice %35 {offsets = [0, 0, 0], sizes = [1, 16, 16], strides = [1, 1, 1]} : vector<1x16x96xf32> to vector<1x16x16xf32>
    %41 = vector.extract_strided_slice %35 {offsets = [0, 0, 32], sizes = [1, 16, 16], strides = [1, 1, 1]} : vector<1x16x96xf32> to vector<1x16x16xf32>
    %42 = vector.extract_strided_slice %35 {offsets = [0, 0, 64], sizes = [1, 16, 16], strides = [1, 1, 1]} : vector<1x16x96xf32> to vector<1x16x16xf32>
    "tpu.trace_start"() <{level = 10 : i32, message = "wqd,wkd->wqk"}> : () -> ()
    %cst_21 = arith.constant dense<0.000000e+00> : vector<1x16x16xf32>
    %43 = tpu.matmul %40, %41, %cst_21 {dimension_numbers = #tpu.dot_dimension_numbers<[2], [2], [1], [1], [0, 0, 0, 1, 1, 1], [0], [0]>} : vector<1x16x16xf32>, vector<1x16x16xf32>, vector<1x16x16xf32> -> vector<1x16x16xf32>
    "tpu.trace_stop"() : () -> ()
    %44 = vector.extract_strided_slice %39 {offsets = [0, 0, 0], sizes = [1, 16, 16], strides = [1, 1, 1]} : vector<2x16x16xf32> to vector<1x16x16xf32>
    %45 = arith.addf %43, %44 : vector<1x16x16xf32>
    %cst_22 = arith.constant dense<0xFF800000> : vector<1x16xf32>
    %46 = vector.multi_reduction <maximumf>, %45, %cst_22 [2] : vector<1x16x16xf32> to vector<1x16xf32>
    %47 = vector.shape_cast %46 : vector<1x16xf32> to vector<1x16x1xf32>
    %48 = vector.broadcast %47 : vector<1x16x1xf32> to vector<1x16x16xf32>
    %49 = arith.subf %45, %48 : vector<1x16x16xf32>
    %50 = math.exp %49 : vector<1x16x16xf32>
    %cst_23 = arith.constant dense<0.000000e+00> : vector<1x16xf32>
    %51 = vector.multi_reduction <add>, %50, %cst_23 [2] : vector<1x16x16xf32> to vector<1x16xf32>
    %52 = vector.shape_cast %51 : vector<1x16xf32> to vector<1x16x1xf32>
    %53 = tpu.reciprocal %52 {approx = true} : vector<1x16x1xf32> -> vector<1x16x1xf32>
    %54 = vector.broadcast %53 : vector<1x16x1xf32> to vector<1x16x16xf32>
    %55 = arith.mulf %50, %54 : vector<1x16x16xf32>
    "tpu.trace_start"() <{level = 10 : i32, message = "wqk,wkd->wqd"}> : () -> ()
    %cst_24 = arith.constant dense<0.000000e+00> : vector<1x16x16xf32>
    %56 = tpu.matmul %55, %42, %cst_24 {dimension_numbers = #tpu.dot_dimension_numbers<[2], [1], [1], [2], [0, 0, 0, 1, 1, 2], [0], [0]>} : vector<1x16x16xf32>, vector<1x16x16xf32>, vector<1x16x16xf32> -> vector<1x16x16xf32>
    "tpu.trace_stop"() : () -> ()
    %57 = vector.extract_strided_slice %35 {offsets = [0, 0, 16], sizes = [1, 16, 16], strides = [1, 1, 1]} : vector<1x16x96xf32> to vector<1x16x16xf32>
    %58 = vector.extract_strided_slice %35 {offsets = [0, 0, 48], sizes = [1, 16, 16], strides = [1, 1, 1]} : vector<1x16x96xf32> to vector<1x16x16xf32>
    %59 = vector.extract_strided_slice %35 {offsets = [0, 0, 80], sizes = [1, 16, 16], strides = [1, 1, 1]} : vector<1x16x96xf32> to vector<1x16x16xf32>
    "tpu.trace_start"() <{level = 10 : i32, message = "wqd,wkd->wqk"}> : () -> ()
    %cst_25 = arith.constant dense<0.000000e+00> : vector<1x16x16xf32>
    %60 = tpu.matmul %57, %58, %cst_25 {dimension_numbers = #tpu.dot_dimension_numbers<[2], [2], [1], [1], [0, 0, 0, 1, 1, 1], [0], [0]>} : vector<1x16x16xf32>, vector<1x16x16xf32>, vector<1x16x16xf32> -> vector<1x16x16xf32>
    "tpu.trace_stop"() : () -> ()
    %61 = vector.extract_strided_slice %39 {offsets = [1, 0, 0], sizes = [1, 16, 16], strides = [1, 1, 1]} : vector<2x16x16xf32> to vector<1x16x16xf32>
    %62 = arith.addf %60, %61 : vector<1x16x16xf32>
    %cst_26 = arith.constant dense<0xFF800000> : vector<1x16xf32>
    %63 = vector.multi_reduction <maximumf>, %62, %cst_26 [2] : vector<1x16x16xf32> to vector<1x16xf32>
    %64 = vector.shape_cast %63 : vector<1x16xf32> to vector<1x16x1xf32>
    %65 = vector.broadcast %64 : vector<1x16x1xf32> to vector<1x16x16xf32>
    %66 = arith.subf %62, %65 : vector<1x16x16xf32>
    %67 = math.exp %66 : vector<1x16x16xf32>
    %cst_27 = arith.constant dense<0.000000e+00> : vector<1x16xf32>
    %68 = vector.multi_reduction <add>, %67, %cst_27 [2] : vector<1x16x16xf32> to vector<1x16xf32>
    %69 = vector.shape_cast %68 : vector<1x16xf32> to vector<1x16x1xf32>
    %70 = tpu.reciprocal %69 {approx = true} : vector<1x16x1xf32> -> vector<1x16x1xf32>
    %71 = vector.broadcast %70 : vector<1x16x1xf32> to vector<1x16x16xf32>
    %72 = arith.mulf %67, %71 : vector<1x16x16xf32>
    "tpu.trace_start"() <{level = 10 : i32, message = "wqk,wkd->wqd"}> : () -> ()
    %cst_28 = arith.constant dense<0.000000e+00> : vector<1x16x16xf32>
    %73 = tpu.matmul %72, %59, %cst_28 {dimension_numbers = #tpu.dot_dimension_numbers<[2], [1], [1], [2], [0, 0, 0, 1, 1, 2], [0], [0]>} : vector<1x16x16xf32>, vector<1x16x16xf32>, vector<1x16x16xf32> -> vector<1x16x16xf32>
    "tpu.trace_stop"() : () -> ()
    %74 = tpu.concatenate %56, %73 in 2 : vector<1x16x16xf32>, vector<1x16x16xf32> -> vector<1x16x32xf32>
    %c0_29 = arith.constant 0 : index
    %c0_30 = arith.constant 0 : index
    %75 = vector.load %arg7[%c0_29, %c0_30] : memref<32x32xbf16, #tpu.memory_space<vmem>>, vector<32x32xbf16>
    %76 = vector.shape_cast %74 : vector<1x16x32xf32> to vector<16x32xf32>
    %77 = arith.truncf %76 : vector<16x32xf32> to vector<16x32xbf16>
    %cst_31 = arith.constant dense<0.000000e+00> : vector<16x32xf32>
    %78 = tpu.matmul %77, %75, %cst_31 {dimension_numbers = #tpu.dot_dimension_numbers<[1], [0], [0], [1], [0, 0, 1, 1], [], []>} : vector<16x32xbf16>, vector<32x32xbf16>, vector<16x32xf32> -> vector<16x32xf32>
    %c0_32 = arith.constant 0 : index
    %c0_33 = arith.constant 0 : index
    %79 = vector.load %arg8[%c0_32, %c0_33] : memref<1x32xf32, #tpu.memory_space<vmem>>, vector<1x32xf32>
    %80 = vector.broadcast %79 : vector<1x32xf32> to vector<16x32xf32>
    %81 = arith.addf %78, %80 : vector<16x32xf32>
    %82 = vector.shape_cast %81 : vector<16x32xf32> to vector<1x16x32xf32>
    %83 = arith.truncf %82 : vector<1x16x32xf32> to vector<1x16x32xbf16>
    %c0_34 = arith.constant 0 : index
    %c0_35 = arith.constant 0 : index
    %c0_36 = arith.constant 0 : index
    %84 = vector.load %arg11[%c0_34, %c0_35, %c0_36] : memref<1x16x32xbf16, #tpu.memory_space<vmem>>, vector<1x16x32xbf16>
    tpu.vector_store %arg11[%c0_34, %c0_35, %c0_36], %83 {strides = array<i32>} : memref<1x16x32xbf16, #tpu.memory_space<vmem>>, vector<1x16x32xbf16>,
    return
  }
  func.func @transform_0(%arg0: i32, %arg1: i32) -> (i32, i32, i32) {
    %c4_i32 = arith.constant 4 : i32
    %0 = arith.muli %arg0, %c4_i32 : i32
    %1 = arith.addi %0, %arg1 : i32
    %c0_i32 = arith.constant 0 : i32
    %c0_i32_0 = arith.constant 0 : i32
    %c0_i32_1 = arith.constant 0 : i32
    return %1, %c0_i32, %c0_i32_0 : i32, i32, i32
  }
  func.func @transform_1(%arg0: i32, %arg1: i32) -> (i32, i32) {
    %c0_i32 = arith.constant 0 : i32
    %c0_i32_0 = arith.constant 0 : i32
    %c0_i32_1 = arith.constant 0 : i32
    return %c0_i32, %c0_i32_0 : i32, i32
  }
  func.func @transform_2(%arg0: i32, %arg1: i32) -> (i32, i32) {
    %c0_i32 = arith.constant 0 : i32
    %c0_i32_0 = arith.constant 0 : i32
    %c0_i32_1 = arith.constant 0 : i32
    return %c0_i32, %c0_i32_0 : i32, i32
  }
  func.func @transform_3(%arg0: i32, %arg1: i32) -> (i32, i32) {
    %c0_i32 = arith.constant 0 : i32
    %c0_i32_0 = arith.constant 0 : i32
    %c0_i32_1 = arith.constant 0 : i32
    return %c0_i32, %c0_i32_0 : i32, i32
  }
  func.func @transform_4(%arg0: i32, %arg1: i32) -> (i32, i32) {
    %c0_i32 = arith.constant 0 : i32
    %c0_i32_0 = arith.constant 0 : i32
    %c0_i32_1 = arith.constant 0 : i32
    return %c0_i32, %c0_i32_0 : i32, i32
  }
  func.func @transform_5(%arg0: i32, %arg1: i32) -> (i32, i32) {
    %c0_i32 = arith.constant 0 : i32
    %c0_i32_0 = arith.constant 0 : i32
    %c0_i32_1 = arith.constant 0 : i32
    return %c0_i32, %c0_i32_0 : i32, i32
  }
  func.func @transform_6(%arg0: i32, %arg1: i32) -> (i32, i32) {
    %c0_i32 = arith.constant 0 : i32
    %c0_i32_0 = arith.constant 0 : i32
    %c0_i32_1 = arith.constant 0 : i32
    return %c0_i32, %c0_i32_0 : i32, i32
  }
  func.func @transform_7(%arg0: i32, %arg1: i32) -> (i32, i32, i32) {
    %c0_i32 = arith.constant 0 : i32
    %c0_i32_0 = arith.constant 0 : i32
    %c0_i32_1 = arith.constant 0 : i32
    %c0_i32_2 = arith.constant 0 : i32
    return %c0_i32, %c0_i32_0, %c0_i32_1 : i32, i32, i32
  }
  func.func @transform_8(%arg0: i32, %arg1: i32) -> (i32, i32, i32) {
    %c0_i32 = arith.constant 0 : i32
    %c0_i32_0 = arith.constant 0 : i32
    %c0_i32_1 = arith.constant 0 : i32
    return %arg1, %c0_i32, %c0_i32_0 : i32, i32, i32
  }
  func.func @transform_9(%arg0: i32, %arg1: i32) -> (i32, i32, i32) {
    %c4_i32 = arith.constant 4 : i32
    %0 = arith.muli %arg0, %c4_i32 : i32
    %1 = arith.addi %0, %arg1 : i32
    %c0_i32 = arith.constant 0 : i32
    %c0_i32_0 = arith.constant 0 : i32
    %c0_i32_1 = arith.constant 0 : i32
    return %1, %c0_i32, %c0_i32_0 : i32, i32, i32
  }
}

module attributes {stable_mosaic.version = 11 : i64} {
  func.func @_mlp_kernel(%arg0: i32, %arg1: memref<16x64xbf16, #tpu.memory_space<vmem>>, %arg2: memref<16x64xbf16, #tpu.memory_space<vmem>>, %arg3: memref<1x64xf32, #tpu.memory_space<vmem>>, %arg4: memref<1x64xf32, #tpu.memory_space<vmem>>, %arg5: memref<64x256xbf16, #tpu.memory_space<vmem>>, %arg6: memref<1x256xf32, #tpu.memory_space<vmem>>, %arg7: memref<256x64xbf16, #tpu.memory_space<vmem>>, %arg8: memref<1x64xf32, #tpu.memory_space<vmem>>, %arg9: memref<16x64xbf16, #tpu.memory_space<vmem>>) attributes {dimension_semantics = [#tpu.dimension_semantics<parallel>], iteration_bounds = array<i64: 2>, scalar_prefetch = 0 : i64, scratch_operands = 0 : i64, tpu.core_type = #tpu.core_type<tc>, window_params = [{transform_indices = @transform_0, window_bounds = array<i64: 16, 64>}, {transform_indices = @transform_1, window_bounds = array<i64: 16, 64>}, {pipeline_mode = #tpu.pipeline_mode<synchronous>, transform_indices = @transform_2, window_bounds = array<i64: 1, 64>}, {pipeline_mode = #tpu.pipeline_mode<synchronous>, transform_indices = @transform_3, window_bounds = array<i64: 1, 64>}, {pipeline_mode = #tpu.pipeline_mode<synchronous>, transform_indices = @transform_4, window_bounds = array<i64: 64, 256>}, {pipeline_mode = #tpu.pipeline_mode<synchronous>, transform_indices = @transform_5, window_bounds = array<i64: 1, 256>}, {pipeline_mode = #tpu.pipeline_mode<synchronous>, transform_indices = @transform_6, window_bounds = array<i64: 256, 64>}, {pipeline_mode = #tpu.pipeline_mode<synchronous>, transform_indices = @transform_7, window_bounds = array<i64: 1, 64>}, {transform_indices = @transform_8, window_bounds = array<i64: 16, 64>}]} {
    %c0 = arith.constant 0 : index
    %c0_0 = arith.constant 0 : index
    %0 = vector.load %arg1[%c0, %c0_0] : memref<16x64xbf16, #tpu.memory_space<vmem>>, vector<16x64xbf16>
    %1 = arith.extf %0 : vector<16x64xbf16> to vector<16x64xf32>
    %c0_1 = arith.constant 0 : index
    %c0_2 = arith.constant 0 : index
    %2 = vector.load %arg2[%c0_1, %c0_2] : memref<16x64xbf16, #tpu.memory_space<vmem>>, vector<16x64xbf16>
    %3 = arith.extf %2 : vector<16x64xbf16> to vector<16x64xf32>
    %4 = arith.addf %1, %3 : vector<16x64xf32>
    %c0_3 = arith.constant 0 : index
    %c0_4 = arith.constant 0 : index
    %5 = vector.load %arg3[%c0_3, %c0_4] : memref<1x64xf32, #tpu.memory_space<vmem>>, vector<1x64xf32>
    %c0_5 = arith.constant 0 : index
    %c0_6 = arith.constant 0 : index
    %6 = vector.load %arg4[%c0_5, %c0_6] : memref<1x64xf32, #tpu.memory_space<vmem>>, vector<1x64xf32>
    %cst = arith.constant dense<0.000000e+00> : vector<16xf32>
    %7 = vector.multi_reduction <add>, %4, %cst [1] : vector<16x64xf32> to vector<16xf32>
    %8 = vector.shape_cast %7 : vector<16xf32> to vector<16x1xf32>
    %cst_7 = arith.constant 6.400000e+01 : f32
    %9 = vector.broadcast %cst_7 : f32 to vector<16x1xf32>
    %10 = arith.divf %8, %9 : vector<16x1xf32>
    %11 = vector.broadcast %10 : vector<16x1xf32> to vector<16x64xf32>
    %12 = arith.subf %4, %11 : vector<16x64xf32>
    %13 = arith.mulf %12, %12 : vector<16x64xf32>
    %cst_8 = arith.constant dense<0.000000e+00> : vector<16xf32>
    %14 = vector.multi_reduction <add>, %13, %cst_8 [1] : vector<16x64xf32> to vector<16xf32>
    %15 = vector.shape_cast %14 : vector<16xf32> to vector<16x1xf32>
    %cst_9 = arith.constant 6.400000e+01 : f32
    %16 = vector.broadcast %cst_9 : f32 to vector<16x1xf32>
    %17 = arith.divf %15, %16 : vector<16x1xf32>
    %18 = vector.broadcast %10 : vector<16x1xf32> to vector<16x64xf32>
    %19 = arith.subf %4, %18 : vector<16x64xf32>
    %cst_10 = arith.constant 9.99999974E-6 : f32
    %20 = vector.broadcast %cst_10 : f32 to vector<16x1xf32>
    %21 = arith.addf %17, %20 : vector<16x1xf32>
    %22 = math.rsqrt %21 : vector<16x1xf32>
    %23 = vector.broadcast %22 : vector<16x1xf32> to vector<16x64xf32>
    %24 = arith.mulf %19, %23 : vector<16x64xf32>
    %25 = vector.broadcast %5 : vector<1x64xf32> to vector<16x64xf32>
    %26 = arith.mulf %24, %25 : vector<16x64xf32>
    %27 = vector.broadcast %6 : vector<1x64xf32> to vector<16x64xf32>
    %28 = arith.addf %26, %27 : vector<16x64xf32>
    %c0_11 = arith.constant 0 : index
    %c0_12 = arith.constant 0 : index
    %29 = vector.load %arg5[%c0_11, %c0_12] : memref<64x256xbf16, #tpu.memory_space<vmem>>, vector<64x256xbf16>
    %30 = arith.truncf %28 : vector<16x64xf32> to vector<16x64xbf16>
    %cst_13 = arith.constant dense<0.000000e+00> : vector<16x256xf32>
    %31 = tpu.matmul %30, %29, %cst_13 {dimension_numbers = #tpu.dot_dimension_numbers<[1], [0], [0], [1], [0, 0, 1, 1], [], []>} : vector<16x64xbf16>, vector<64x256xbf16>, vector<16x256xf32> -> vector<16x256xf32>
    %c0_14 = arith.constant 0 : index
    %c0_15 = arith.constant 0 : index
    %32 = vector.load %arg6[%c0_14, %c0_15] : memref<1x256xf32, #tpu.memory_space<vmem>>, vector<1x256xf32>
    %33 = vector.broadcast %32 : vector<1x256xf32> to vector<16x256xf32>
    %34 = arith.addf %31, %33 : vector<16x256xf32>
    %35 = arith.mulf %34, %34 : vector<16x256xf32>
    %36 = arith.mulf %34, %35 : vector<16x256xf32>
    %cst_16 = arith.constant 4.471500e-02 : f32
    %37 = vector.broadcast %cst_16 : f32 to vector<16x256xf32>
    %38 = arith.mulf %37, %36 : vector<16x256xf32>
    %39 = arith.addf %34, %38 : vector<16x256xf32>
    %cst_17 = arith.constant 0.797884583 : f32
    %40 = vector.broadcast %cst_17 : f32 to vector<16x256xf32>
    %41 = arith.mulf %40, %39 : vector<16x256xf32>
    %42 = math.tanh %41 : vector<16x256xf32>
    %cst_18 = arith.constant 1.000000e+00 : f32
    %43 = vector.broadcast %cst_18 : f32 to vector<16x256xf32>
    %44 = arith.addf %43, %42 : vector<16x256xf32>
    %cst_19 = arith.constant 5.000000e-01 : f32
    %45 = vector.broadcast %cst_19 : f32 to vector<16x256xf32>
    %46 = arith.mulf %45, %44 : vector<16x256xf32>
    %47 = arith.mulf %34, %46 : vector<16x256xf32>
    %c0_20 = arith.constant 0 : index
    %c0_21 = arith.constant 0 : index
    %48 = vector.load %arg7[%c0_20, %c0_21] : memref<256x64xbf16, #tpu.memory_space<vmem>>, vector<256x64xbf16>
    %49 = arith.truncf %47 : vector<16x256xf32> to vector<16x256xbf16>
    %cst_22 = arith.constant dense<0.000000e+00> : vector<16x64xf32>
    %50 = tpu.matmul %49, %48, %cst_22 {dimension_numbers = #tpu.dot_dimension_numbers<[1], [0], [0], [1], [0, 0, 1, 1], [], []>} : vector<16x256xbf16>, vector<256x64xbf16>, vector<16x64xf32> -> vector<16x64xf32>
    %c0_23 = arith.constant 0 : index
    %c0_24 = arith.constant 0 : index
    %51 = vector.load %arg8[%c0_23, %c0_24] : memref<1x64xf32, #tpu.memory_space<vmem>>, vector<1x64xf32>
    %52 = vector.broadcast %51 : vector<1x64xf32> to vector<16x64xf32>
    %53 = arith.addf %50, %52 : vector<16x64xf32>
    %54 = arith.addf %4, %53 : vector<16x64xf32>
    %55 = arith.truncf %54 : vector<16x64xf32> to vector<16x64xbf16>
    %c0_25 = arith.constant 0 : index
    %c0_26 = arith.constant 0 : index
    %56 = vector.load %arg9[%c0_25, %c0_26] : memref<16x64xbf16, #tpu.memory_space<vmem>>, vector<16x64xbf16>
    tpu.vector_store %arg9[%c0_25, %c0_26], %55 {strides = array<i32>} : memref<16x64xbf16, #tpu.memory_space<vmem>>, vector<16x64xbf16>,
    return
  }
  func.func @transform_0(%arg0: i32) -> (i32, i32) {
    %c0_i32 = arith.constant 0 : i32
    %c0_i32_0 = arith.constant 0 : i32
    return %arg0, %c0_i32 : i32, i32
  }
  func.func @transform_1(%arg0: i32) -> (i32, i32) {
    %c0_i32 = arith.constant 0 : i32
    %c0_i32_0 = arith.constant 0 : i32
    return %arg0, %c0_i32 : i32, i32
  }
  func.func @transform_2(%arg0: i32) -> (i32, i32) {
    %c0_i32 = arith.constant 0 : i32
    %c0_i32_0 = arith.constant 0 : i32
    %c0_i32_1 = arith.constant 0 : i32
    return %c0_i32, %c0_i32_0 : i32, i32
  }
  func.func @transform_3(%arg0: i32) -> (i32, i32) {
    %c0_i32 = arith.constant 0 : i32
    %c0_i32_0 = arith.constant 0 : i32
    %c0_i32_1 = arith.constant 0 : i32
    return %c0_i32, %c0_i32_0 : i32, i32
  }
  func.func @transform_4(%arg0: i32) -> (i32, i32) {
    %c0_i32 = arith.constant 0 : i32
    %c0_i32_0 = arith.constant 0 : i32
    %c0_i32_1 = arith.constant 0 : i32
    return %c0_i32, %c0_i32_0 : i32, i32
  }
  func.func @transform_5(%arg0: i32) -> (i32, i32) {
    %c0_i32 = arith.constant 0 : i32
    %c0_i32_0 = arith.constant 0 : i32
    %c0_i32_1 = arith.constant 0 : i32
    return %c0_i32, %c0_i32_0 : i32, i32
  }
  func.func @transform_6(%arg0: i32) -> (i32, i32) {
    %c0_i32 = arith.constant 0 : i32
    %c0_i32_0 = arith.constant 0 : i32
    %c0_i32_1 = arith.constant 0 : i32
    return %c0_i32, %c0_i32_0 : i32, i32
  }
  func.func @transform_7(%arg0: i32) -> (i32, i32) {
    %c0_i32 = arith.constant 0 : i32
    %c0_i32_0 = arith.constant 0 : i32
    %c0_i32_1 = arith.constant 0 : i32
    return %c0_i32, %c0_i32_0 : i32, i32
  }
  func.func @transform_8(%arg0: i32) -> (i32, i32) {
    %c0_i32 = arith.constant 0 : i32
    %c0_i32_0 = arith.constant 0 : i32
    return %arg0, %c0_i32 : i32, i32
  }
}

module attributes {stable_mosaic.version = 11 : i64} {
  func.func @_attn_window_kernel(%arg0: i32, %arg1: i32, %arg2: memref<1x16x64xbf16, #tpu.memory_space<vmem>>, %arg3: memref<1x64xf32, #tpu.memory_space<vmem>>, %arg4: memref<1x64xf32, #tpu.memory_space<vmem>>, %arg5: memref<64x192xbf16, #tpu.memory_space<vmem>>, %arg6: memref<1x192xf32, #tpu.memory_space<vmem>>, %arg7: memref<64x64xbf16, #tpu.memory_space<vmem>>, %arg8: memref<1x64xf32, #tpu.memory_space<vmem>>, %arg9: memref<4x16x16xf32, #tpu.memory_space<vmem>>, %arg10: memref<1x16x64xbf16, #tpu.memory_space<vmem>>) attributes {dimension_semantics = [#tpu.dimension_semantics<parallel>, #tpu.dimension_semantics<parallel>], iteration_bounds = array<i64: 2, 1>, scalar_prefetch = 0 : i64, scratch_operands = 0 : i64, tpu.core_type = #tpu.core_type<tc>, window_params = [{transform_indices = @transform_0, window_bounds = array<i64: 1, 16, 64>}, {pipeline_mode = #tpu.pipeline_mode<synchronous>, transform_indices = @transform_1, window_bounds = array<i64: 1, 64>}, {pipeline_mode = #tpu.pipeline_mode<synchronous>, transform_indices = @transform_2, window_bounds = array<i64: 1, 64>}, {pipeline_mode = #tpu.pipeline_mode<synchronous>, transform_indices = @transform_3, window_bounds = array<i64: 64, 192>}, {pipeline_mode = #tpu.pipeline_mode<synchronous>, transform_indices = @transform_4, window_bounds = array<i64: 1, 192>}, {pipeline_mode = #tpu.pipeline_mode<synchronous>, transform_indices = @transform_5, window_bounds = array<i64: 64, 64>}, {pipeline_mode = #tpu.pipeline_mode<synchronous>, transform_indices = @transform_6, window_bounds = array<i64: 1, 64>}, {pipeline_mode = #tpu.pipeline_mode<synchronous>, transform_indices = @transform_7, window_bounds = array<i64: 4, 16, 16>}, {transform_indices = @transform_8, window_bounds = array<i64: 1, 16, 64>}]} {
    %c0 = arith.constant 0 : index
    %c0_0 = arith.constant 0 : index
    %c0_1 = arith.constant 0 : index
    %0 = vector.load %arg2[%c0, %c0_0, %c0_1] : memref<1x16x64xbf16, #tpu.memory_space<vmem>>, vector<1x16x64xbf16>
    %1 = arith.extf %0 : vector<1x16x64xbf16> to vector<1x16x64xf32>
    %c0_2 = arith.constant 0 : index
    %c0_3 = arith.constant 0 : index
    %2 = vector.load %arg3[%c0_2, %c0_3] : memref<1x64xf32, #tpu.memory_space<vmem>>, vector<1x64xf32>
    %c0_4 = arith.constant 0 : index
    %c0_5 = arith.constant 0 : index
    %3 = vector.load %arg4[%c0_4, %c0_5] : memref<1x64xf32, #tpu.memory_space<vmem>>, vector<1x64xf32>
    %cst = arith.constant dense<0.000000e+00> : vector<1x16xf32>
    %4 = vector.multi_reduction <add>, %1, %cst [2] : vector<1x16x64xf32> to vector<1x16xf32>
    %5 = vector.shape_cast %4 : vector<1x16xf32> to vector<1x16x1xf32>
    %cst_6 = arith.constant 6.400000e+01 : f32
    %6 = vector.broadcast %cst_6 : f32 to vector<1x16x1xf32>
    %7 = arith.divf %5, %6 : vector<1x16x1xf32>
    %8 = vector.broadcast %7 : vector<1x16x1xf32> to vector<1x16x64xf32>
    %9 = arith.subf %1, %8 : vector<1x16x64xf32>
    %10 = arith.mulf %9, %9 : vector<1x16x64xf32>
    %cst_7 = arith.constant dense<0.000000e+00> : vector<1x16xf32>
    %11 = vector.multi_reduction <add>, %10, %cst_7 [2] : vector<1x16x64xf32> to vector<1x16xf32>
    %12 = vector.shape_cast %11 : vector<1x16xf32> to vector<1x16x1xf32>
    %cst_8 = arith.constant 6.400000e+01 : f32
    %13 = vector.broadcast %cst_8 : f32 to vector<1x16x1xf32>
    %14 = arith.divf %12, %13 : vector<1x16x1xf32>
    %15 = vector.broadcast %7 : vector<1x16x1xf32> to vector<1x16x64xf32>
    %16 = arith.subf %1, %15 : vector<1x16x64xf32>
    %cst_9 = arith.constant 9.99999974E-6 : f32
    %17 = vector.broadcast %cst_9 : f32 to vector<1x16x1xf32>
    %18 = arith.addf %14, %17 : vector<1x16x1xf32>
    %19 = math.rsqrt %18 : vector<1x16x1xf32>
    %20 = vector.broadcast %19 : vector<1x16x1xf32> to vector<1x16x64xf32>
    %21 = arith.mulf %16, %20 : vector<1x16x64xf32>
    %22 = vector.shape_cast %2 : vector<1x64xf32> to vector<1x1x64xf32>
    %23 = vector.broadcast %22 : vector<1x1x64xf32> to vector<1x16x64xf32>
    %24 = arith.mulf %21, %23 : vector<1x16x64xf32>
    %25 = vector.shape_cast %3 : vector<1x64xf32> to vector<1x1x64xf32>
    %26 = vector.broadcast %25 : vector<1x1x64xf32> to vector<1x16x64xf32>
    %27 = arith.addf %24, %26 : vector<1x16x64xf32>
    %c0_10 = arith.constant 0 : index
    %c0_11 = arith.constant 0 : index
    %28 = vector.load %arg5[%c0_10, %c0_11] : memref<64x192xbf16, #tpu.memory_space<vmem>>, vector<64x192xbf16>
    %29 = vector.shape_cast %27 : vector<1x16x64xf32> to vector<16x64xf32>
    %30 = arith.truncf %29 : vector<16x64xf32> to vector<16x64xbf16>
    %cst_12 = arith.constant dense<0.000000e+00> : vector<16x192xf32>
    %31 = tpu.matmul %30, %28, %cst_12 {dimension_numbers = #tpu.dot_dimension_numbers<[1], [0], [0], [1], [0, 0, 1, 1], [], []>} : vector<16x64xbf16>, vector<64x192xbf16>, vector<16x192xf32> -> vector<16x192xf32>
    %c0_13 = arith.constant 0 : index
    %c0_14 = arith.constant 0 : index
    %32 = vector.load %arg6[%c0_13, %c0_14] : memref<1x192xf32, #tpu.memory_space<vmem>>, vector<1x192xf32>
    %33 = vector.broadcast %32 : vector<1x192xf32> to vector<16x192xf32>
    %34 = arith.addf %31, %33 : vector<16x192xf32>
    %35 = vector.shape_cast %34 : vector<16x192xf32> to vector<1x16x192xf32>
    %c0_15 = arith.constant 0 : index
    %c0_16 = arith.constant 0 : index
    %c0_17 = arith.constant 0 : index
    %36 = vector.load %arg9[%c0_15, %c0_16, %c0_17] : memref<4x16x16xf32, #tpu.memory_space<vmem>>, vector<4x16x16xf32>
    %37 = vector.extract_strided_slice %35 {offsets = [0, 0, 0], sizes = [1, 16, 16], strides = [1, 1, 1]} : vector<1x16x192xf32> to vector<1x16x16xf32>
    %38 = vector.extract_strided_slice %35 {offsets = [0, 0, 64], sizes = [1, 16, 16], strides = [1, 1, 1]} : vector<1x16x192xf32> to vector<1x16x16xf32>
    %39 = vector.extract_strided_slice %35 {offsets = [0, 0, 128], sizes = [1, 16, 16], strides = [1, 1, 1]} : vector<1x16x192xf32> to vector<1x16x16xf32>
    "tpu.trace_start"() <{level = 10 : i32, message = "wqd,wkd->wqk"}> : () -> ()
    %cst_18 = arith.constant dense<0.000000e+00> : vector<1x16x16xf32>
    %40 = tpu.matmul %37, %38, %cst_18 {dimension_numbers = #tpu.dot_dimension_numbers<[2], [2], [1], [1], [0, 0, 0, 1, 1, 1], [0], [0]>} : vector<1x16x16xf32>, vector<1x16x16xf32>, vector<1x16x16xf32> -> vector<1x16x16xf32>
    "tpu.trace_stop"() : () -> ()
    %41 = vector.extract_strided_slice %36 {offsets = [0, 0, 0], sizes = [1, 16, 16], strides = [1, 1, 1]} : vector<4x16x16xf32> to vector<1x16x16xf32>
    %42 = arith.addf %40, %41 : vector<1x16x16xf32>
    %cst_19 = arith.constant dense<0xFF800000> : vector<1x16xf32>
    %43 = vector.multi_reduction <maximumf>, %42, %cst_19 [2] : vector<1x16x16xf32> to vector<1x16xf32>
    %44 = vector.shape_cast %43 : vector<1x16xf32> to vector<1x16x1xf32>
    %45 = vector.broadcast %44 : vector<1x16x1xf32> to vector<1x16x16xf32>
    %46 = arith.subf %42, %45 : vector<1x16x16xf32>
    %47 = math.exp %46 : vector<1x16x16xf32>
    %cst_20 = arith.constant dense<0.000000e+00> : vector<1x16xf32>
    %48 = vector.multi_reduction <add>, %47, %cst_20 [2] : vector<1x16x16xf32> to vector<1x16xf32>
    %49 = vector.shape_cast %48 : vector<1x16xf32> to vector<1x16x1xf32>
    %50 = tpu.reciprocal %49 {approx = true} : vector<1x16x1xf32> -> vector<1x16x1xf32>
    %51 = vector.broadcast %50 : vector<1x16x1xf32> to vector<1x16x16xf32>
    %52 = arith.mulf %47, %51 : vector<1x16x16xf32>
    "tpu.trace_start"() <{level = 10 : i32, message = "wqk,wkd->wqd"}> : () -> ()
    %cst_21 = arith.constant dense<0.000000e+00> : vector<1x16x16xf32>
    %53 = tpu.matmul %52, %39, %cst_21 {dimension_numbers = #tpu.dot_dimension_numbers<[2], [1], [1], [2], [0, 0, 0, 1, 1, 2], [0], [0]>} : vector<1x16x16xf32>, vector<1x16x16xf32>, vector<1x16x16xf32> -> vector<1x16x16xf32>
    "tpu.trace_stop"() : () -> ()
    %54 = vector.extract_strided_slice %35 {offsets = [0, 0, 16], sizes = [1, 16, 16], strides = [1, 1, 1]} : vector<1x16x192xf32> to vector<1x16x16xf32>
    %55 = vector.extract_strided_slice %35 {offsets = [0, 0, 80], sizes = [1, 16, 16], strides = [1, 1, 1]} : vector<1x16x192xf32> to vector<1x16x16xf32>
    %56 = vector.extract_strided_slice %35 {offsets = [0, 0, 144], sizes = [1, 16, 16], strides = [1, 1, 1]} : vector<1x16x192xf32> to vector<1x16x16xf32>
    "tpu.trace_start"() <{level = 10 : i32, message = "wqd,wkd->wqk"}> : () -> ()
    %cst_22 = arith.constant dense<0.000000e+00> : vector<1x16x16xf32>
    %57 = tpu.matmul %54, %55, %cst_22 {dimension_numbers = #tpu.dot_dimension_numbers<[2], [2], [1], [1], [0, 0, 0, 1, 1, 1], [0], [0]>} : vector<1x16x16xf32>, vector<1x16x16xf32>, vector<1x16x16xf32> -> vector<1x16x16xf32>
    "tpu.trace_stop"() : () -> ()
    %58 = vector.extract_strided_slice %36 {offsets = [1, 0, 0], sizes = [1, 16, 16], strides = [1, 1, 1]} : vector<4x16x16xf32> to vector<1x16x16xf32>
    %59 = arith.addf %57, %58 : vector<1x16x16xf32>
    %cst_23 = arith.constant dense<0xFF800000> : vector<1x16xf32>
    %60 = vector.multi_reduction <maximumf>, %59, %cst_23 [2] : vector<1x16x16xf32> to vector<1x16xf32>
    %61 = vector.shape_cast %60 : vector<1x16xf32> to vector<1x16x1xf32>
    %62 = vector.broadcast %61 : vector<1x16x1xf32> to vector<1x16x16xf32>
    %63 = arith.subf %59, %62 : vector<1x16x16xf32>
    %64 = math.exp %63 : vector<1x16x16xf32>
    %cst_24 = arith.constant dense<0.000000e+00> : vector<1x16xf32>
    %65 = vector.multi_reduction <add>, %64, %cst_24 [2] : vector<1x16x16xf32> to vector<1x16xf32>
    %66 = vector.shape_cast %65 : vector<1x16xf32> to vector<1x16x1xf32>
    %67 = tpu.reciprocal %66 {approx = true} : vector<1x16x1xf32> -> vector<1x16x1xf32>
    %68 = vector.broadcast %67 : vector<1x16x1xf32> to vector<1x16x16xf32>
    %69 = arith.mulf %64, %68 : vector<1x16x16xf32>
    "tpu.trace_start"() <{level = 10 : i32, message = "wqk,wkd->wqd"}> : () -> ()
    %cst_25 = arith.constant dense<0.000000e+00> : vector<1x16x16xf32>
    %70 = tpu.matmul %69, %56, %cst_25 {dimension_numbers = #tpu.dot_dimension_numbers<[2], [1], [1], [2], [0, 0, 0, 1, 1, 2], [0], [0]>} : vector<1x16x16xf32>, vector<1x16x16xf32>, vector<1x16x16xf32> -> vector<1x16x16xf32>
    "tpu.trace_stop"() : () -> ()
    %71 = vector.extract_strided_slice %35 {offsets = [0, 0, 32], sizes = [1, 16, 16], strides = [1, 1, 1]} : vector<1x16x192xf32> to vector<1x16x16xf32>
    %72 = vector.extract_strided_slice %35 {offsets = [0, 0, 96], sizes = [1, 16, 16], strides = [1, 1, 1]} : vector<1x16x192xf32> to vector<1x16x16xf32>
    %73 = vector.extract_strided_slice %35 {offsets = [0, 0, 160], sizes = [1, 16, 16], strides = [1, 1, 1]} : vector<1x16x192xf32> to vector<1x16x16xf32>
    "tpu.trace_start"() <{level = 10 : i32, message = "wqd,wkd->wqk"}> : () -> ()
    %cst_26 = arith.constant dense<0.000000e+00> : vector<1x16x16xf32>
    %74 = tpu.matmul %71, %72, %cst_26 {dimension_numbers = #tpu.dot_dimension_numbers<[2], [2], [1], [1], [0, 0, 0, 1, 1, 1], [0], [0]>} : vector<1x16x16xf32>, vector<1x16x16xf32>, vector<1x16x16xf32> -> vector<1x16x16xf32>
    "tpu.trace_stop"() : () -> ()
    %75 = vector.extract_strided_slice %36 {offsets = [2, 0, 0], sizes = [1, 16, 16], strides = [1, 1, 1]} : vector<4x16x16xf32> to vector<1x16x16xf32>
    %76 = arith.addf %74, %75 : vector<1x16x16xf32>
    %cst_27 = arith.constant dense<0xFF800000> : vector<1x16xf32>
    %77 = vector.multi_reduction <maximumf>, %76, %cst_27 [2] : vector<1x16x16xf32> to vector<1x16xf32>
    %78 = vector.shape_cast %77 : vector<1x16xf32> to vector<1x16x1xf32>
    %79 = vector.broadcast %78 : vector<1x16x1xf32> to vector<1x16x16xf32>
    %80 = arith.subf %76, %79 : vector<1x16x16xf32>
    %81 = math.exp %80 : vector<1x16x16xf32>
    %cst_28 = arith.constant dense<0.000000e+00> : vector<1x16xf32>
    %82 = vector.multi_reduction <add>, %81, %cst_28 [2] : vector<1x16x16xf32> to vector<1x16xf32>
    %83 = vector.shape_cast %82 : vector<1x16xf32> to vector<1x16x1xf32>
    %84 = tpu.reciprocal %83 {approx = true} : vector<1x16x1xf32> -> vector<1x16x1xf32>
    %85 = vector.broadcast %84 : vector<1x16x1xf32> to vector<1x16x16xf32>
    %86 = arith.mulf %81, %85 : vector<1x16x16xf32>
    "tpu.trace_start"() <{level = 10 : i32, message = "wqk,wkd->wqd"}> : () -> ()
    %cst_29 = arith.constant dense<0.000000e+00> : vector<1x16x16xf32>
    %87 = tpu.matmul %86, %73, %cst_29 {dimension_numbers = #tpu.dot_dimension_numbers<[2], [1], [1], [2], [0, 0, 0, 1, 1, 2], [0], [0]>} : vector<1x16x16xf32>, vector<1x16x16xf32>, vector<1x16x16xf32> -> vector<1x16x16xf32>
    "tpu.trace_stop"() : () -> ()
    %88 = vector.extract_strided_slice %35 {offsets = [0, 0, 48], sizes = [1, 16, 16], strides = [1, 1, 1]} : vector<1x16x192xf32> to vector<1x16x16xf32>
    %89 = vector.extract_strided_slice %35 {offsets = [0, 0, 112], sizes = [1, 16, 16], strides = [1, 1, 1]} : vector<1x16x192xf32> to vector<1x16x16xf32>
    %90 = vector.extract_strided_slice %35 {offsets = [0, 0, 176], sizes = [1, 16, 16], strides = [1, 1, 1]} : vector<1x16x192xf32> to vector<1x16x16xf32>
    "tpu.trace_start"() <{level = 10 : i32, message = "wqd,wkd->wqk"}> : () -> ()
    %cst_30 = arith.constant dense<0.000000e+00> : vector<1x16x16xf32>
    %91 = tpu.matmul %88, %89, %cst_30 {dimension_numbers = #tpu.dot_dimension_numbers<[2], [2], [1], [1], [0, 0, 0, 1, 1, 1], [0], [0]>} : vector<1x16x16xf32>, vector<1x16x16xf32>, vector<1x16x16xf32> -> vector<1x16x16xf32>
    "tpu.trace_stop"() : () -> ()
    %92 = vector.extract_strided_slice %36 {offsets = [3, 0, 0], sizes = [1, 16, 16], strides = [1, 1, 1]} : vector<4x16x16xf32> to vector<1x16x16xf32>
    %93 = arith.addf %91, %92 : vector<1x16x16xf32>
    %cst_31 = arith.constant dense<0xFF800000> : vector<1x16xf32>
    %94 = vector.multi_reduction <maximumf>, %93, %cst_31 [2] : vector<1x16x16xf32> to vector<1x16xf32>
    %95 = vector.shape_cast %94 : vector<1x16xf32> to vector<1x16x1xf32>
    %96 = vector.broadcast %95 : vector<1x16x1xf32> to vector<1x16x16xf32>
    %97 = arith.subf %93, %96 : vector<1x16x16xf32>
    %98 = math.exp %97 : vector<1x16x16xf32>
    %cst_32 = arith.constant dense<0.000000e+00> : vector<1x16xf32>
    %99 = vector.multi_reduction <add>, %98, %cst_32 [2] : vector<1x16x16xf32> to vector<1x16xf32>
    %100 = vector.shape_cast %99 : vector<1x16xf32> to vector<1x16x1xf32>
    %101 = tpu.reciprocal %100 {approx = true} : vector<1x16x1xf32> -> vector<1x16x1xf32>
    %102 = vector.broadcast %101 : vector<1x16x1xf32> to vector<1x16x16xf32>
    %103 = arith.mulf %98, %102 : vector<1x16x16xf32>
    "tpu.trace_start"() <{level = 10 : i32, message = "wqk,wkd->wqd"}> : () -> ()
    %cst_33 = arith.constant dense<0.000000e+00> : vector<1x16x16xf32>
    %104 = tpu.matmul %103, %90, %cst_33 {dimension_numbers = #tpu.dot_dimension_numbers<[2], [1], [1], [2], [0, 0, 0, 1, 1, 2], [0], [0]>} : vector<1x16x16xf32>, vector<1x16x16xf32>, vector<1x16x16xf32> -> vector<1x16x16xf32>
    "tpu.trace_stop"() : () -> ()
    %105 = tpu.concatenate %53, %70, %87, %104 in 2 : vector<1x16x16xf32>, vector<1x16x16xf32>, vector<1x16x16xf32>, vector<1x16x16xf32> -> vector<1x16x64xf32>
    %c0_34 = arith.constant 0 : index
    %c0_35 = arith.constant 0 : index
    %106 = vector.load %arg7[%c0_34, %c0_35] : memref<64x64xbf16, #tpu.memory_space<vmem>>, vector<64x64xbf16>
    %107 = vector.shape_cast %105 : vector<1x16x64xf32> to vector<16x64xf32>
    %108 = arith.truncf %107 : vector<16x64xf32> to vector<16x64xbf16>
    %cst_36 = arith.constant dense<0.000000e+00> : vector<16x64xf32>
    %109 = tpu.matmul %108, %106, %cst_36 {dimension_numbers = #tpu.dot_dimension_numbers<[1], [0], [0], [1], [0, 0, 1, 1], [], []>} : vector<16x64xbf16>, vector<64x64xbf16>, vector<16x64xf32> -> vector<16x64xf32>
    %c0_37 = arith.constant 0 : index
    %c0_38 = arith.constant 0 : index
    %110 = vector.load %arg8[%c0_37, %c0_38] : memref<1x64xf32, #tpu.memory_space<vmem>>, vector<1x64xf32>
    %111 = vector.broadcast %110 : vector<1x64xf32> to vector<16x64xf32>
    %112 = arith.addf %109, %111 : vector<16x64xf32>
    %113 = vector.shape_cast %112 : vector<16x64xf32> to vector<1x16x64xf32>
    %114 = arith.truncf %113 : vector<1x16x64xf32> to vector<1x16x64xbf16>
    %c0_39 = arith.constant 0 : index
    %c0_40 = arith.constant 0 : index
    %c0_41 = arith.constant 0 : index
    %115 = vector.load %arg10[%c0_39, %c0_40, %c0_41] : memref<1x16x64xbf16, #tpu.memory_space<vmem>>, vector<1x16x64xbf16>
    tpu.vector_store %arg10[%c0_39, %c0_40, %c0_41], %114 {strides = array<i32>} : memref<1x16x64xbf16, #tpu.memory_space<vmem>>, vector<1x16x64xbf16>,
    return
  }
  func.func @transform_0(%arg0: i32, %arg1: i32) -> (i32, i32, i32) {
    %c1_i32 = arith.constant 1 : i32
    %0 = arith.muli %arg0, %c1_i32 : i32
    %1 = arith.addi %0, %arg1 : i32
    %c0_i32 = arith.constant 0 : i32
    %c0_i32_0 = arith.constant 0 : i32
    %c0_i32_1 = arith.constant 0 : i32
    return %1, %c0_i32, %c0_i32_0 : i32, i32, i32
  }
  func.func @transform_1(%arg0: i32, %arg1: i32) -> (i32, i32) {
    %c0_i32 = arith.constant 0 : i32
    %c0_i32_0 = arith.constant 0 : i32
    %c0_i32_1 = arith.constant 0 : i32
    return %c0_i32, %c0_i32_0 : i32, i32
  }
  func.func @transform_2(%arg0: i32, %arg1: i32) -> (i32, i32) {
    %c0_i32 = arith.constant 0 : i32
    %c0_i32_0 = arith.constant 0 : i32
    %c0_i32_1 = arith.constant 0 : i32
    return %c0_i32, %c0_i32_0 : i32, i32
  }
  func.func @transform_3(%arg0: i32, %arg1: i32) -> (i32, i32) {
    %c0_i32 = arith.constant 0 : i32
    %c0_i32_0 = arith.constant 0 : i32
    %c0_i32_1 = arith.constant 0 : i32
    return %c0_i32, %c0_i32_0 : i32, i32
  }
  func.func @transform_4(%arg0: i32, %arg1: i32) -> (i32, i32) {
    %c0_i32 = arith.constant 0 : i32
    %c0_i32_0 = arith.constant 0 : i32
    %c0_i32_1 = arith.constant 0 : i32
    return %c0_i32, %c0_i32_0 : i32, i32
  }
  func.func @transform_5(%arg0: i32, %arg1: i32) -> (i32, i32) {
    %c0_i32 = arith.constant 0 : i32
    %c0_i32_0 = arith.constant 0 : i32
    %c0_i32_1 = arith.constant 0 : i32
    return %c0_i32, %c0_i32_0 : i32, i32
  }
  func.func @transform_6(%arg0: i32, %arg1: i32) -> (i32, i32) {
    %c0_i32 = arith.constant 0 : i32
    %c0_i32_0 = arith.constant 0 : i32
    %c0_i32_1 = arith.constant 0 : i32
    return %c0_i32, %c0_i32_0 : i32, i32
  }
  func.func @transform_7(%arg0: i32, %arg1: i32) -> (i32, i32, i32) {
    %c0_i32 = arith.constant 0 : i32
    %c0_i32_0 = arith.constant 0 : i32
    %c0_i32_1 = arith.constant 0 : i32
    %c0_i32_2 = arith.constant 0 : i32
    return %c0_i32, %c0_i32_0, %c0_i32_1 : i32, i32, i32
  }
  func.func @transform_8(%arg0: i32, %arg1: i32) -> (i32, i32, i32) {
    %c1_i32 = arith.constant 1 : i32
    %0 = arith.muli %arg0, %c1_i32 : i32
    %1 = arith.addi %0, %arg1 : i32
    %c0_i32 = arith.constant 0 : i32
    %c0_i32_0 = arith.constant 0 : i32
    %c0_i32_1 = arith.constant 0 : i32
    return %1, %c0_i32, %c0_i32_0 : i32, i32, i32
  }
}

module attributes {stable_mosaic.version = 11 : i64} {
  func.func @_merge_kernel(%arg0: i32, %arg1: memref<16x128xbf16, #tpu.memory_space<vmem>>, %arg2: memref<1x128xf32, #tpu.memory_space<vmem>>, %arg3: memref<1x128xf32, #tpu.memory_space<vmem>>, %arg4: memref<128x64xbf16, #tpu.memory_space<vmem>>, %arg5: memref<16x64xbf16, #tpu.memory_space<vmem>>) attributes {dimension_semantics = [#tpu.dimension_semantics<parallel>], iteration_bounds = array<i64: 2>, scalar_prefetch = 0 : i64, scratch_operands = 0 : i64, tpu.core_type = #tpu.core_type<tc>, window_params = [{transform_indices = @transform_0, window_bounds = array<i64: 16, 128>}, {pipeline_mode = #tpu.pipeline_mode<synchronous>, transform_indices = @transform_1, window_bounds = array<i64: 1, 128>}, {pipeline_mode = #tpu.pipeline_mode<synchronous>, transform_indices = @transform_2, window_bounds = array<i64: 1, 128>}, {pipeline_mode = #tpu.pipeline_mode<synchronous>, transform_indices = @transform_3, window_bounds = array<i64: 128, 64>}, {transform_indices = @transform_4, window_bounds = array<i64: 16, 64>}]} {
    %c0 = arith.constant 0 : index
    %c0_0 = arith.constant 0 : index
    %0 = vector.load %arg1[%c0, %c0_0] : memref<16x128xbf16, #tpu.memory_space<vmem>>, vector<16x128xbf16>
    %1 = arith.extf %0 : vector<16x128xbf16> to vector<16x128xf32>
    %c0_1 = arith.constant 0 : index
    %c0_2 = arith.constant 0 : index
    %2 = vector.load %arg2[%c0_1, %c0_2] : memref<1x128xf32, #tpu.memory_space<vmem>>, vector<1x128xf32>
    %c0_3 = arith.constant 0 : index
    %c0_4 = arith.constant 0 : index
    %3 = vector.load %arg3[%c0_3, %c0_4] : memref<1x128xf32, #tpu.memory_space<vmem>>, vector<1x128xf32>
    %cst = arith.constant dense<0.000000e+00> : vector<16xf32>
    %4 = vector.multi_reduction <add>, %1, %cst [1] : vector<16x128xf32> to vector<16xf32>
    %5 = vector.shape_cast %4 : vector<16xf32> to vector<16x1xf32>
    %cst_5 = arith.constant 1.280000e+02 : f32
    %6 = vector.broadcast %cst_5 : f32 to vector<16x1xf32>
    %7 = arith.divf %5, %6 : vector<16x1xf32>
    %8 = vector.broadcast %7 : vector<16x1xf32> to vector<16x128xf32>
    %9 = arith.subf %1, %8 : vector<16x128xf32>
    %10 = arith.mulf %9, %9 : vector<16x128xf32>
    %cst_6 = arith.constant dense<0.000000e+00> : vector<16xf32>
    %11 = vector.multi_reduction <add>, %10, %cst_6 [1] : vector<16x128xf32> to vector<16xf32>
    %12 = vector.shape_cast %11 : vector<16xf32> to vector<16x1xf32>
    %cst_7 = arith.constant 1.280000e+02 : f32
    %13 = vector.broadcast %cst_7 : f32 to vector<16x1xf32>
    %14 = arith.divf %12, %13 : vector<16x1xf32>
    %15 = vector.broadcast %7 : vector<16x1xf32> to vector<16x128xf32>
    %16 = arith.subf %1, %15 : vector<16x128xf32>
    %cst_8 = arith.constant 9.99999974E-6 : f32
    %17 = vector.broadcast %cst_8 : f32 to vector<16x1xf32>
    %18 = arith.addf %14, %17 : vector<16x1xf32>
    %19 = math.rsqrt %18 : vector<16x1xf32>
    %20 = vector.broadcast %19 : vector<16x1xf32> to vector<16x128xf32>
    %21 = arith.mulf %16, %20 : vector<16x128xf32>
    %22 = vector.broadcast %2 : vector<1x128xf32> to vector<16x128xf32>
    %23 = arith.mulf %21, %22 : vector<16x128xf32>
    %24 = vector.broadcast %3 : vector<1x128xf32> to vector<16x128xf32>
    %25 = arith.addf %23, %24 : vector<16x128xf32>
    %c0_9 = arith.constant 0 : index
    %c0_10 = arith.constant 0 : index
    %26 = vector.load %arg4[%c0_9, %c0_10] : memref<128x64xbf16, #tpu.memory_space<vmem>>, vector<128x64xbf16>
    %27 = arith.truncf %25 : vector<16x128xf32> to vector<16x128xbf16>
    %cst_11 = arith.constant dense<0.000000e+00> : vector<16x64xf32>
    %28 = tpu.matmul %27, %26, %cst_11 {dimension_numbers = #tpu.dot_dimension_numbers<[1], [0], [0], [1], [0, 0, 1, 1], [], []>} : vector<16x128xbf16>, vector<128x64xbf16>, vector<16x64xf32> -> vector<16x64xf32>
    %29 = arith.truncf %28 : vector<16x64xf32> to vector<16x64xbf16>
    %c0_12 = arith.constant 0 : index
    %c0_13 = arith.constant 0 : index
    %30 = vector.load %arg5[%c0_12, %c0_13] : memref<16x64xbf16, #tpu.memory_space<vmem>>, vector<16x64xbf16>
    tpu.vector_store %arg5[%c0_12, %c0_13], %29 {strides = array<i32>} : memref<16x64xbf16, #tpu.memory_space<vmem>>, vector<16x64xbf16>,
    return
  }
  func.func @transform_0(%arg0: i32) -> (i32, i32) {
    %c0_i32 = arith.constant 0 : i32
    %c0_i32_0 = arith.constant 0 : i32
    return %arg0, %c0_i32 : i32, i32
  }
  func.func @transform_1(%arg0: i32) -> (i32, i32) {
    %c0_i32 = arith.constant 0 : i32
    %c0_i32_0 = arith.constant 0 : i32
    %c0_i32_1 = arith.constant 0 : i32
    return %c0_i32, %c0_i32_0 : i32, i32
  }
  func.func @transform_2(%arg0: i32) -> (i32, i32) {
    %c0_i32 = arith.constant 0 : i32
    %c0_i32_0 = arith.constant 0 : i32
    %c0_i32_1 = arith.constant 0 : i32
    return %c0_i32, %c0_i32_0 : i32, i32
  }
  func.func @transform_3(%arg0: i32) -> (i32, i32) {
    %c0_i32 = arith.constant 0 : i32
    %c0_i32_0 = arith.constant 0 : i32
    %c0_i32_1 = arith.constant 0 : i32
    return %c0_i32, %c0_i32_0 : i32, i32
  }
  func.func @transform_4(%arg0: i32) -> (i32, i32) {
    %c0_i32 = arith.constant 0 : i32
    %c0_i32_0 = arith.constant 0 : i32
    return %arg0, %c0_i32 : i32, i32
  }
}

module attributes {stable_mosaic.version = 11 : i64} {
  func.func @_final_norm_pool_kernel(%arg0: i32, %arg1: memref<1x16x64xbf16, #tpu.memory_space<vmem>>, %arg2: memref<1x64xf32, #tpu.memory_space<vmem>>, %arg3: memref<1x64xf32, #tpu.memory_space<vmem>>, %arg4: memref<1x1x64xf32, #tpu.memory_space<vmem>>) attributes {dimension_semantics = [#tpu.dimension_semantics<parallel>], iteration_bounds = array<i64: 2>, scalar_prefetch = 0 : i64, scratch_operands = 0 : i64, tpu.core_type = #tpu.core_type<tc>, window_params = [{transform_indices = @transform_0, window_bounds = array<i64: 1, 16, 64>}, {pipeline_mode = #tpu.pipeline_mode<synchronous>, transform_indices = @transform_1, window_bounds = array<i64: 1, 64>}, {pipeline_mode = #tpu.pipeline_mode<synchronous>, transform_indices = @transform_2, window_bounds = array<i64: 1, 64>}, {transform_indices = @transform_3, window_bounds = array<i64: 1, 1, 64>}]} {
    %c0 = arith.constant 0 : index
    %c0_0 = arith.constant 0 : index
    %c0_1 = arith.constant 0 : index
    %0 = vector.load %arg1[%c0, %c0_0, %c0_1] : memref<1x16x64xbf16, #tpu.memory_space<vmem>>, vector<1x16x64xbf16>
    %1 = arith.extf %0 : vector<1x16x64xbf16> to vector<1x16x64xf32>
    %c0_2 = arith.constant 0 : index
    %c0_3 = arith.constant 0 : index
    %2 = vector.load %arg2[%c0_2, %c0_3] : memref<1x64xf32, #tpu.memory_space<vmem>>, vector<1x64xf32>
    %c0_4 = arith.constant 0 : index
    %c0_5 = arith.constant 0 : index
    %3 = vector.load %arg3[%c0_4, %c0_5] : memref<1x64xf32, #tpu.memory_space<vmem>>, vector<1x64xf32>
    %cst = arith.constant dense<0.000000e+00> : vector<1x16xf32>
    %4 = vector.multi_reduction <add>, %1, %cst [2] : vector<1x16x64xf32> to vector<1x16xf32>
    %5 = vector.shape_cast %4 : vector<1x16xf32> to vector<1x16x1xf32>
    %cst_6 = arith.constant 6.400000e+01 : f32
    %6 = vector.broadcast %cst_6 : f32 to vector<1x16x1xf32>
    %7 = arith.divf %5, %6 : vector<1x16x1xf32>
    %8 = vector.broadcast %7 : vector<1x16x1xf32> to vector<1x16x64xf32>
    %9 = arith.subf %1, %8 : vector<1x16x64xf32>
    %10 = arith.mulf %9, %9 : vector<1x16x64xf32>
    %cst_7 = arith.constant dense<0.000000e+00> : vector<1x16xf32>
    %11 = vector.multi_reduction <add>, %10, %cst_7 [2] : vector<1x16x64xf32> to vector<1x16xf32>
    %12 = vector.shape_cast %11 : vector<1x16xf32> to vector<1x16x1xf32>
    %cst_8 = arith.constant 6.400000e+01 : f32
    %13 = vector.broadcast %cst_8 : f32 to vector<1x16x1xf32>
    %14 = arith.divf %12, %13 : vector<1x16x1xf32>
    %15 = vector.broadcast %7 : vector<1x16x1xf32> to vector<1x16x64xf32>
    %16 = arith.subf %1, %15 : vector<1x16x64xf32>
    %cst_9 = arith.constant 9.99999974E-6 : f32
    %17 = vector.broadcast %cst_9 : f32 to vector<1x16x1xf32>
    %18 = arith.addf %14, %17 : vector<1x16x1xf32>
    %19 = math.rsqrt %18 : vector<1x16x1xf32>
    %20 = vector.broadcast %19 : vector<1x16x1xf32> to vector<1x16x64xf32>
    %21 = arith.mulf %16, %20 : vector<1x16x64xf32>
    %22 = vector.shape_cast %2 : vector<1x64xf32> to vector<1x1x64xf32>
    %23 = vector.broadcast %22 : vector<1x1x64xf32> to vector<1x16x64xf32>
    %24 = arith.mulf %21, %23 : vector<1x16x64xf32>
    %25 = vector.shape_cast %3 : vector<1x64xf32> to vector<1x1x64xf32>
    %26 = vector.broadcast %25 : vector<1x1x64xf32> to vector<1x16x64xf32>
    %27 = arith.addf %24, %26 : vector<1x16x64xf32>
    %cst_10 = arith.constant dense<0.000000e+00> : vector<1x64xf32>
    %28 = vector.multi_reduction <add>, %27, %cst_10 [1] : vector<1x16x64xf32> to vector<1x64xf32>
    %29 = vector.shape_cast %28 : vector<1x64xf32> to vector<1x1x64xf32>
    %cst_11 = arith.constant 1.600000e+01 : f32
    %30 = vector.broadcast %cst_11 : f32 to vector<1x1x64xf32>
    %31 = arith.divf %29, %30 : vector<1x1x64xf32>
    %c0_12 = arith.constant 0 : index
    %c0_13 = arith.constant 0 : index
    %c0_14 = arith.constant 0 : index
    %32 = vector.load %arg4[%c0_12, %c0_13, %c0_14] : memref<1x1x64xf32, #tpu.memory_space<vmem>>, vector<1x1x64xf32>
    tpu.vector_store %arg4[%c0_12, %c0_13, %c0_14], %31 {strides = array<i32>} : memref<1x1x64xf32, #tpu.memory_space<vmem>>, vector<1x1x64xf32>,
    return
  }
  func.func @transform_0(%arg0: i32) -> (i32, i32, i32) {
    %c0_i32 = arith.constant 0 : i32
    %c0_i32_0 = arith.constant 0 : i32
    %c0_i32_1 = arith.constant 0 : i32
    return %arg0, %c0_i32, %c0_i32_0 : i32, i32, i32
  }
  func.func @transform_1(%arg0: i32) -> (i32, i32) {
    %c0_i32 = arith.constant 0 : i32
    %c0_i32_0 = arith.constant 0 : i32
    %c0_i32_1 = arith.constant 0 : i32
    return %c0_i32, %c0_i32_0 : i32, i32
  }
  func.func @transform_2(%arg0: i32) -> (i32, i32) {
    %c0_i32 = arith.constant 0 : i32
    %c0_i32_0 = arith.constant 0 : i32
    %c0_i32_1 = arith.constant 0 : i32
    return %c0_i32, %c0_i32_0 : i32, i32
  }
  func.func @transform_3(%arg0: i32) -> (i32, i32, i32) {
    %c0_i32 = arith.constant 0 : i32
    %c0_i32_0 = arith.constant 0 : i32
    %c0_i32_1 = arith.constant 0 : i32
    return %arg0, %c0_i32, %c0_i32_0 : i32, i32, i32
  }
}

</mosaic_0001>

<llo_original>
// kernel: forward.11
$region0: #{forward.11}
  #allocation0 [shape = 'u32[]', space=smem, size = 0x4, offset = 0x4, fixed_abs, tag = 'smem constant byte address 0x4 - core index']
  #allocation1 [shape = 'u32[72,128]{1,0:T(1,128)}', space=vmem, size = 0x9000, scoped, tag = 'internal scratch']
  %s0 = inlined_call_operand.vmem [shape: bf16[128,48], index: 0, kind: input, shape index: {}]
  %s1 = inlined_call_operand.vmem [shape: bf16[48,32], index: 1, kind: input, shape index: {}]
  %s2 = inlined_call_operand.vmem [shape: f32[1,32], index: 2, kind: input, shape index: {}]
  %s3 = inlined_call_operand.vmem [shape: f32[1,32], index: 3, kind: input, shape index: {}]
  %s4 = inlined_call_operand.vmem [shape: f32[1,32], index: 4, kind: input, shape index: {}]
  %s5 = inlined_call_operand.vmem [shape: bf16[128,32], index: 5, kind: output, shape index: {}]
  %s6 = sld [smem:[#allocation0]]
  $region53: #{forward.11} parent=0
    _
  %s8 = ssub.s32 1, %s6
  %s9 = scalar_select 0, %s8, %s6
  loop: start=0, step=1, limit=4
  $region2: #{forward.11} parent=0 // loop_pre_header
    _
  $region3: #{forward.11} parent=0 // loop_header
    %s11 = sphi 0, %s15
    %p12 = scmp.ge.s32.totalorder %s11, 4
    %s21 = sphi 0, %s23
    %s24 = sphi 0, %s21
    %s25 = sphi 0, %s24
    %s41 = sphi 0, %s25
    %s45 = sphi 0, %s45
    %s47 = sphi 0, %s45
    %s48 = sphi 0, %s47
    %s62 = sphi 0, %s48
    %s66 = sphi 0, %s66
    %s68 = sphi 0, %s66
    %s69 = sphi 0, %s68
    %s83 = sphi 0, %s69
    %s87 = sphi 0, %s87
    %s89 = sphi 0, %s87
    %s90 = sphi 0, %s89
    %s104 = sphi 0, %s90
    %s108 = sphi 0, %s108
    %s110 = sphi 0, %s108
    %s111 = sphi 0, %s110
    %s125 = sphi 0, %s111
    %s131 = sphi 0, %s133
    %s134 = sphi 0, %s131
    %s135 = sphi 0, %s134
    %s151 = sphi 0, %s135
  $region4: #{forward.11} parent=0 // loop_header_branch
    %14 = sbr.rel (%p12) target = $region8
  $region5: #{forward.11} parent=0 // loop_body
    %s16 = ssub.s32 %s11, 1
    %s17 = ssub.s32 %s11, 2
    %s18 = sadd.s32 %s11, 1
    %s19 = ssub.s32 %s11, %s18
    %p20 = scmp.eq.s32.totalorder %s19, 0
    %s22 = sadd.s32 %s21, 1
    %s23 = scalar_select %p20, %s21, %s22
    %p26 = pneg %p20
    %p27 = scmp.eq.s32.totalorder %s11, 1
    %p28 = por %p26, %p27
    %p29 = scmp.ne.s32.totalorder %s21, %s24
    %p30 = scmp.eq.s32.totalorder %s11, 0
    %p31 = por %p29, %p30
    %p32 = scmp.ne.s32.totalorder %s21, %s24
    %p33 = scmp.eq.s32.totalorder %s16, 1
    %p34 = por %p32, %p33
    %p35 = scmp.ne.s32.totalorder %s24, %s25
    %p36 = scmp.eq.s32.totalorder %s16, 0
    %p37 = por %p35, %p36
    %p38 = scmp.ne.s32.totalorder %s24, %s25
    %p39 = scmp.eq.s32.totalorder %s17, 1
    %p40 = por %p38, %p39
    %p42 = scmp.ne.s32.totalorder %s25, %s41
    %p43 = scmp.eq.s32.totalorder %s17, 0
    %p44 = por %p42, %p43
    %s46 = sadd.s32 %s45, 1
    %p49 = scmp.eq.s32.totalorder %s11, 1
    %p50 = scmp.ne.s32.totalorder %s45, %s47
    %p51 = scmp.eq.s32.totalorder %s11, 0
    %p52 = por %p50, %p51
    %p53 = scmp.ne.s32.totalorder %s45, %s47
    %p54 = scmp.eq.s32.totalorder %s16, 1
    %p55 = por %p53, %p54
    %p56 = scmp.ne.s32.totalorder %s47, %s48
    %p57 = scmp.eq.s32.totalorder %s16, 0
    %p58 = por %p56, %p57
    %p59 = scmp.ne.s32.totalorder %s47, %s48
    %p60 = scmp.eq.s32.totalorder %s17, 1
    %p61 = por %p59, %p60
    %p63 = scmp.ne.s32.totalorder %s48, %s62
    %p64 = scmp.eq.s32.totalorder %s17, 0
    %p65 = por %p63, %p64
    %s67 = sadd.s32 %s66, 1
    %p70 = scmp.eq.s32.totalorder %s11, 1
    %p71 = scmp.ne.s32.totalorder %s66, %s68
    %p72 = scmp.eq.s32.totalorder %s11, 0
    %p73 = por %p71, %p72
    %p74 = scmp.ne.s32.totalorder %s66, %s68
    %p75 = scmp.eq.s32.totalorder %s16, 1
    %p76 = por %p74, %p75
    %p77 = scmp.ne.s32.totalorder %s68, %s69
    %p78 = scmp.eq.s32.totalorder %s16, 0
    %p79 = por %p77, %p78
    %p80 = scmp.ne.s32.totalorder %s68, %s69
    %p81 = scmp.eq.s32.totalorder %s17, 1
    %p82 = por %p80, %p81
    %p84 = scmp.ne.s32.totalorder %s69, %s83
    %p85 = scmp.eq.s32.totalorder %s17, 0
    %p86 = por %p84, %p85
    %s88 = sadd.s32 %s87, 1
    %p91 = scmp.eq.s32.totalorder %s11, 1
    %p92 = scmp.ne.s32.totalorder %s87, %s89
    %p93 = scmp.eq.s32.totalorder %s11, 0
    %p94 = por %p92, %p93
    %p95 = scmp.ne.s32.totalorder %s87, %s89
    %p96 = scmp.eq.s32.totalorder %s16, 1
    %p97 = por %p95, %p96
    %p98 = scmp.ne.s32.totalorder %s89, %s90
    %p99 = scmp.eq.s32.totalorder %s16, 0
    %p100 = por %p98, %p99
    %p101 = scmp.ne.s32.totalorder %s89, %s90
    %p102 = scmp.eq.s32.totalorder %s17, 1
    %p103 = por %p101, %p102
    %p105 = scmp.ne.s32.totalorder %s90, %s104
    %p106 = scmp.eq.s32.totalorder %s17, 0
    %p107 = por %p105, %p106
    %s109 = sadd.s32 %s108, 1
    %p112 = scmp.eq.s32.totalorder %s11, 1
    %p113 = scmp.ne.s32.totalorder %s108, %s110
    %p114 = scmp.eq.s32.totalorder %s11, 0
    %p115 = por %p113, %p114
    %p116 = scmp.ne.s32.totalorder %s108, %s110
    %p117 = scmp.eq.s32.totalorder %s16, 1
    %p118 = por %p116, %p117
    %p119 = scmp.ne.s32.totalorder %s110, %s111
    %p120 = scmp.eq.s32.totalorder %s16, 0
    %p121 = por %p119, %p120
    %p122 = scmp.ne.s32.totalorder %s110, %s111
    %p123 = scmp.eq.s32.totalorder %s17, 1
    %p124 = por %p122, %p123
    %p126 = scmp.ne.s32.totalorder %s111, %s125
    %p127 = scmp.eq.s32.totalorder %s17, 0
    %p128 = por %p126, %p127
    %s129 = ssub.s32 %s11, %s18
    %p130 = scmp.eq.s32.totalorder %s129, 0
    %s132 = sadd.s32 %s131, 1
    %s133 = scalar_select %p130, %s131, %s132
    %p136 = pneg %p130
    %p137 = scmp.eq.s32.totalorder %s11, 1
    %p138 = por %p136, %p137
    %p139 = scmp.ne.s32.totalorder %s131, %s134
    %p140 = scmp.eq.s32.totalorder %s11, 0
    %p141 = por %p139, %p140
    %p142 = scmp.ne.s32.totalorder %s131, %s134
    %p143 = scmp.eq.s32.totalorder %s16, 1
    %p144 = por %p142, %p143
    %p145 = scmp.ne.s32.totalorder %s134, %s135
    %p146 = scmp.eq.s32.totalorder %s16, 0
    %p147 = por %p145, %p146
    %p148 = scmp.ne.s32.totalorder %s134, %s135
    %p149 = scmp.eq.s32.totalorder %s17, 1
    %p150 = por %p148, %p149
    %p152 = scmp.ne.s32.totalorder %s135, %s151
    %p153 = scmp.eq.s32.totalorder %s17, 0
    %p154 = por %p152, %p153
    %p155 = scmp.le.s32.totalorder 1, %s11
    %p156 = scmp.lt.s32.totalorder %s11, 3
    %p157 = pnand %p155, %p156
    %p158 = pneg %p157
    // Predicated region
    $region9: #{forward.11} parent=5 // pred_check
      _
    $region10: #{forward.11} parent=5 // pred_check_branch
      %160 = sbr.rel (%p157) target = $region12
    $region11: #{forward.11} parent=5 // pred_region
      %s161 = ssub.s32 %s11, 1
      // Predicated region
      $region13: #{forward.11} parent=11 // pred_check
        %p162 = pneg %p58
      $region14: #{forward.11} parent=11 // pred_check_branch
        %164 = sbr.rel (%p162) target = $region16
      $region15: #{forward.11} parent=11 // pred_region
        _
      $region16: #{forward.11} parent=11 // pred_fallthru
        _
      // Predicated region
      $region17: #{forward.11} parent=11 // pred_check
        %p165 = pneg %p79
      $region18: #{forward.11} parent=11 // pred_check_branch
        %167 = sbr.rel (%p165) target = $region20
      $region19: #{forward.11} parent=11 // pred_region
        _
      $region20: #{forward.11} parent=11 // pred_fallthru
        _
      // Predicated region
      $region21: #{forward.11} parent=11 // pred_check
        %p168 = pneg %p100
      $region22: #{forward.11} parent=11 // pred_check_branch
        %170 = sbr.rel (%p168) target = $region24
      $region23: #{forward.11} parent=11 // pred_region
        _
      $region24: #{forward.11} parent=11 // pred_fallthru
        _
      // Predicated region
      $region25: #{forward.11} parent=11 // pred_check
        %p171 = pneg %p121
      $region26: #{forward.11} parent=11 // pred_check_branch
        %173 = sbr.rel (%p171) target = $region28
      $region27: #{forward.11} parent=11 // pred_region
        _
      $region28: #{forward.11} parent=11 // pred_fallthru
        _
    $region12: #{forward.11} parent=5 // pred_fallthru
      _
    %p174 = scmp.lt.s32.totalorder %s11, 2
    // Predicated region
    $region29: #{forward.11} parent=5 // pred_check
      %p175 = pneg %p174
    $region30: #{forward.11} parent=5 // pred_check_branch
      %177 = sbr.rel (%p175) target = $region32
    $region31: #{forward.11} parent=5 // pred_region
      // Predicated region
      $region33: #{forward.11} parent=31 // pred_check
        %p178 = pneg %p31
      $region34: #{forward.11} parent=31 // pred_check_branch
        %180 = sbr.rel (%p178) target = $region36
      $region35: #{forward.11} parent=31 // pred_region
        %s181 = smul.u32 8, %s11
        %p182 = scmp.lt.s32.totalorder %s181, 15
        %s183 = scalar_select %p182, %s181, 15
        %s184 = smul.addr %s183, 4
        %s185 = scalar_lea.vmem %s0, %s184
        %s186 = smul.u32 8, %s11
      $region36: #{forward.11} parent=31 // pred_fallthru
        _
    $region32: #{forward.11} parent=5 // pred_fallthru
      _
    %p187 = scmp.le.s32.totalorder 1, %s11
    %p188 = scmp.lt.s32.totalorder %s11, 3
    %p189 = pnand %p187, %p188
    %p190 = pneg %p189
    // Predicated region
    $region37: #{forward.11} parent=5 // pred_check
      _
    $region38: #{forward.11} parent=5 // pred_check_branch
      %192 = sbr.rel (%p189) target = $region40
    $region39: #{forward.11} parent=5 // pred_region
      %s193 = ssub.s32 %s11, 1
      %s194 = smul.u32 8, %s16
      %p195 = scmp.lt.s32.totalorder %s194, 15
      %s196 = scalar_select %p195, %s194, 15
      %s197 = smul.addr %s196, 4
      %s198 = scalar_lea.vmem %s0, %s197
      %p199 = pneg %p37
      %p200 = pneg %p34
      %p201 = pneg %p58
      %p202 = pneg %p55
      %p203 = pneg %p79
      %p204 = pneg %p76
      %p205 = pneg %p100
      %p206 = pneg %p97
      %p207 = pneg %p121
      %p208 = pneg %p118
      %p209 = pneg %p147
      %p210 = pneg %p144
      %s211 = smul.u32 8, %s16
      %p212 = scmp.lt.s32.totalorder %s211, 15
      %s213 = scalar_select %p212, %s211, 15
      %s214 = smul.addr %s213, 4
      %s215 = scalar_lea.vmem %s5, %s214
      %s216 = smul.u32 8, %s16
      %p217 = scmp.lt.s32.totalorder %s216, 15
      %s218 = scalar_select %p217, %s216, 15
      %s219 = smul.addr %s218, 4
      %s220 = scalar_lea.vmem %s0, %s219
      %s221 = smul.u32 8, %s16
      %s222 = smul.u32 8, %s16
      %p223 = scmp.lt.s32.totalorder %s222, 15
      %s224 = scalar_select %p223, %s222, 15
      %s225 = smul.addr %s224, 4
      %s226 = scalar_lea.vmem %s5, %s225
      %s227 = smul.u32 8, %s16
      %v229 = vld [vmem:[%s1] sm:$0xf]
      %v230 = vld [vmem:[%s1 + $0x4] sm:$0xf]
      %v231 = vld [vmem:[%s1 + $0x8] sm:$0xf]
      %v232 = vld [vmem:[%s1 + $0xc] sm:$0xf]
      %v233 = vld [vmem:[%s1 + $0x10] sm:$0xf]
      %v234 = vld [vmem:[%s1 + $0x14] sm:$0xf]
      %v235 = vld [vmem:[%s220] sm:$0xf]
      %v236 = vld [vmem:[%s220 + $0x4] sm:$0xf]
      %v237 = vld [vmem:[%s220 + $0x8] sm:$0xf]
      %v238 = vld [vmem:[%s220 + $0xc] sm:$0xf]
      %v239 = vld [vmem:[%s220 + $0x10] sm:$0xf]
      %v240 = vld [vmem:[%s220 + $0x14] sm:$0xf]
      %v241 = vld [vmem:[%s220 + $0x18] sm:$0xf]
      %v242 = vld [vmem:[%s220 + $0x1c] sm:$0xf]
      %v243 = vld [vmem:[%s2] sm:$0x1]
      %v245 = vperm.slane %v243, 0
      %v255 = vunpack.c.l.b16 %v235
      %v256 = vunpack.c.l.b16 %v236
      %v257 = vunpack.c.l.b16 %v237
      %v258 = vunpack.c.l.b16 %v238
      %v259 = vunpack.c.l.b16 %v239
      %v260 = vunpack.c.l.b16 %v240
      %v261 = vunpack.c.l.b16 %v241
      %v262 = vunpack.c.l.b16 %v242
      %v263 = vpack.c.b16 %v256, %v255
      %v264 = vpack.c.b16 %v258, %v257
      %v265 = vpack.c.b16 %v260, %v259
      %v266 = vpack.c.b16 %v262, %v261
      %v273 = vunpack.c.l.b16 %v229
      %v274 = vunpack.c.l.b16 %v230
      %v275 = vunpack.c.l.b16 %v231
      %v276 = vunpack.c.l.b16 %v232
      %v277 = vunpack.c.l.b16 %v233
      %v278 = vunpack.c.l.b16 %v234
      %v279 = vpack.c.b16 %v274, %v273
      %v280 = vpack.c.b16 %v276, %v275
      %v281 = vpack.c.b16 %v278, %v277
      %vm285 = vcmask 392192
      %v287 = vsel %vm285, %v263, 0
      %v290 = vsel %vm285, %v264, 0
      %v293 = vsel %vm285, %v265, 0
      %v296 = vsel %vm285, %v266, 0
      %298 = vmatpush.bf16.msra.mxu0 0
      %299 = vmatpush.bf16.msra.mxu0 0
      %300 = vmatpush.bf16.msra.mxu0 0
      %301 = vmatpush.bf16.msra.mxu0 0
      %302 = vmatpush.bf16.msra.mxu0 0
      %303 = vmatpush.bf16.msra.mxu0 %v281
      %304 = vmatpush.bf16.msra.mxu0 %v280
      %305 = vmatpush.bf16.msra.mxu0 %v279
      %306 = vmatmul.bf16.gmra.mxu0 %v287
      %v307 = vpop.f32.mrf.mxu0
      %v308 = vadd.f32 %v245, %v307
      %v309 = vpop.f32.mrf.mxu0
      %v310 = vadd.f32 %v245, %v309
      %311 = vmatmul.bf16.gmra.mxu0 %v290
      %v312 = vpop.f32.mrf.mxu0
      %v313 = vadd.f32 %v245, %v312
      %v314 = vpop.f32.mrf.mxu0
      %v315 = vadd.f32 %v245, %v314
      %316 = vmatmul.bf16.gmra.mxu0 %v293
      %v317 = vpop.f32.mrf.mxu0
      %v318 = vadd.f32 %v245, %v317
      %v319 = vpop.f32.mrf.mxu0
      %v320 = vadd.f32 %v245, %v319
      %321 = vmatmul.bf16.gmra.mxu0 %v296
      %v322 = vpop.f32.mrf.mxu0
      %v323 = vadd.f32 %v245, %v322
      %v324 = vpop.f32.mrf.mxu0
      %v325 = vadd.f32 %v245, %v324
      %326 = vdwg.mxu0
      %v327 = vld [vmem:[%s3] sm:$0x1]
      %v328 = vld [vmem:[%s4] sm:$0x1]
      %vm329 = vcmask 261120
      %v330 = vsel %vm329, %v308, 0.0
      %331 = vadd.xlane.f32.xlu0 %v330
      %v332 = vpop.xlane.xlu0 %331
      %v333 = vsel %vm329, %v310, 0.0
      %334 = vadd.xlane.f32.xlu0 %v333
      %v335 = vpop.xlane.xlu0 %334
      %v336 = vsel %vm329, %v313, 0.0
      %337 = vadd.xlane.f32.xlu0 %v336
      %v338 = vpop.xlane.xlu0 %337
      %v339 = vsel %vm329, %v315, 0.0
      %340 = vadd.xlane.f32.xlu0 %v339
      %v341 = vpop.xlane.xlu0 %340
      %v342 = vsel %vm329, %v318, 0.0
      %343 = vadd.xlane.f32.xlu0 %v342
      %v344 = vpop.xlane.xlu0 %343
      %v345 = vsel %vm329, %v320, 0.0
      %346 = vadd.xlane.f32.xlu0 %v345
      %v347 = vpop.xlane.xlu0 %346
      %v348 = vsel %vm329, %v323, 0.0
      %349 = vadd.xlane.f32.xlu0 %v348
      %v350 = vpop.xlane.xlu0 %349
      %v351 = vsel %vm329, %v325, 0.0
      %352 = vadd.xlane.f32.xlu0 %v351
      %v353 = vpop.xlane.xlu0 %352
      %v354 = vrcp.pop 32.0
      %v355 = vmul.f32 32.0, %v354
      %v356 = vsub.f32 1.0, %v355
      %v357 = vmul.f32 %v354, %v356
      %v358 = vadd.f32 %v354, %v357
      %vm359 = vweird.f32 %v354
      %v360 = vsel %vm359, %v354, %v358
      %v361 = vmul.f32 %v332, %v360
      %v362 = vmul.f32 %v335, %v360
      %v363 = vmul.f32 %v338, %v360
      %v364 = vmul.f32 %v341, %v360
      %v365 = vmul.f32 %v344, %v360
      %v366 = vmul.f32 %v347, %v360
      %v367 = vmul.f32 %v350, %v360
      %v368 = vmul.f32 %v353, %v360
      %v369 = vsub.f32 %v308, %v361
      %v370 = vsub.f32 %v310, %v362
      %v371 = vsub.f32 %v313, %v363
      %v372 = vsub.f32 %v315, %v364
      %v373 = vsub.f32 %v318, %v365
      %v374 = vsub.f32 %v320, %v366
      %v375 = vsub.f32 %v323, %v367
      %v376 = vsub.f32 %v325, %v368
      %v377 = vmul.f32 %v369, %v369
      %v378 = vmul.f32 %v370, %v370
      %v379 = vmul.f32 %v371, %v371
      %v380 = vmul.f32 %v372, %v372
      %v381 = vmul.f32 %v373, %v373
      %v382 = vmul.f32 %v374, %v374
      %v383 = vmul.f32 %v375, %v375
      %v384 = vmul.f32 %v376, %v376
      %v385 = vsel %vm329, %v377, 0.0
      %386 = vadd.xlane.f32.xlu0 %v385
      %v387 = vpop.xlane.xlu0 %386
      %v388 = vsel %vm329, %v378, 0.0
      %389 = vadd.xlane.f32.xlu0 %v388
      %v390 = vpop.xlane.xlu0 %389
      %v391 = vsel %vm329, %v379, 0.0
      %392 = vadd.xlane.f32.xlu0 %v391
      %v393 = vpop.xlane.xlu0 %392
      %v394 = vsel %vm329, %v380, 0.0
      %395 = vadd.xlane.f32.xlu0 %v394
      %v396 = vpop.xlane.xlu0 %395
      %v397 = vsel %vm329, %v381, 0.0
      %398 = vadd.xlane.f32.xlu0 %v397
      %v399 = vpop.xlane.xlu0 %398
      %v400 = vsel %vm329, %v382, 0.0
      %401 = vadd.xlane.f32.xlu0 %v400
      %v402 = vpop.xlane.xlu0 %401
      %v403 = vsel %vm329, %v383, 0.0
      %404 = vadd.xlane.f32.xlu0 %v403
      %v405 = vpop.xlane.xlu0 %404
      %v406 = vsel %vm329, %v384, 0.0
      %407 = vadd.xlane.f32.xlu0 %v406
      %v408 = vpop.xlane.xlu0 %407
      %v409 = vmul.f32 %v387, %v360
      %v410 = vmul.f32 %v390, %v360
      %v411 = vmul.f32 %v393, %v360
      %v412 = vmul.f32 %v396, %v360
      %v413 = vmul.f32 %v399, %v360
      %v414 = vmul.f32 %v402, %v360
      %v415 = vmul.f32 %v405, %v360
      %v416 = vmul.f32 %v408, %v360
      %v417 = vadd.f32 %v409, 1e-05
      %v418 = vadd.f32 %v410, 1e-05
      %v419 = vadd.f32 %v411, 1e-05
      %v420 = vadd.f32 %v412, 1e-05
      %v421 = vadd.f32 %v413, 1e-05
      %v422 = vadd.f32 %v414, 1e-05
      %v423 = vadd.f32 %v415, 1e-05
      %v424 = vadd.f32 %v416, 1e-05
      %v425 = vrsqrt.pop %v417
      %v426 = vmul.f32 %v425, %v417
      %v427 = vmul.f32 %v426, %v425
      %v428 = vmul.f32 0.5, %v427
      %v429 = vsub.f32 1.5, %v428
      %v430 = vmul.f32 %v425, %v429
      %vm431 = vweird.f32 %v417
      %vm432 = vweird.f32 %v425
      %vm433 = vmor %vm431, %vm432
      %v434 = vsel %vm433, %v425, %v430
      %v435 = vrsqrt.pop %v418
      %v436 = vmul.f32 %v435, %v418
      %v437 = vmul.f32 %v436, %v435
      %v438 = vmul.f32 0.5, %v437
      %v439 = vsub.f32 1.5, %v438
      %v440 = vmul.f32 %v435, %v439
      %vm441 = vweird.f32 %v418
      %vm442 = vweird.f32 %v435
      %vm443 = vmor %vm441, %vm442
      %v444 = vsel %vm443, %v435, %v440
      %v445 = vrsqrt.pop %v419
      %v446 = vmul.f32 %v445, %v419
      %v447 = vmul.f32 %v446, %v445
      %v448 = vmul.f32 0.5, %v447
      %v449 = vsub.f32 1.5, %v448
      %v450 = vmul.f32 %v445, %v449
      %vm451 = vweird.f32 %v419
      %vm452 = vweird.f32 %v445
      %vm453 = vmor %vm451, %vm452
      %v454 = vsel %vm453, %v445, %v450
      %v455 = vrsqrt.pop %v420
      %v456 = vmul.f32 %v455, %v420
      %v457 = vmul.f32 %v456, %v455
      %v458 = vmul.f32 0.5, %v457
      %v459 = vsub.f32 1.5, %v458
      %v460 = vmul.f32 %v455, %v459
      %vm461 = vweird.f32 %v420
      %vm462 = vweird.f32 %v455
      %vm463 = vmor %vm461, %vm462
      %v464 = vsel %vm463, %v455, %v460
      %v465 = vrsqrt.pop %v421
      %v466 = vmul.f32 %v465, %v421
      %v467 = vmul.f32 %v466, %v465
      %v468 = vmul.f32 0.5, %v467
      %v469 = vsub.f32 1.5, %v468
      %v470 = vmul.f32 %v465, %v469
      %vm471 = vweird.f32 %v421
      %vm472 = vweird.f32 %v465
      %vm473 = vmor %vm471, %vm472
      %v474 = vsel %vm473, %v465, %v470
      %v475 = vrsqrt.pop %v422
      %v476 = vmul.f32 %v475, %v422
      %v477 = vmul.f32 %v476, %v475
      %v478 = vmul.f32 0.5, %v477
      %v479 = vsub.f32 1.5, %v478
      %v480 = vmul.f32 %v475, %v479
      %vm481 = vweird.f32 %v422
      %vm482 = vweird.f32 %v475
      %vm483 = vmor %vm481, %vm482
      %v484 = vsel %vm483, %v475, %v480
      %v485 = vrsqrt.pop %v423
      %v486 = vmul.f32 %v485, %v423
      %v487 = vmul.f32 %v486, %v485
      %v488 = vmul.f32 0.5, %v487
      %v489 = vsub.f32 1.5, %v488
      %v490 = vmul.f32 %v485, %v489
      %vm491 = vweird.f32 %v423
      %vm492 = vweird.f32 %v485
      %vm493 = vmor %vm491, %vm492
      %v494 = vsel %vm493, %v485, %v490
      %v495 = vrsqrt.pop %v424
      %v496 = vmul.f32 %v495, %v424
      %v497 = vmul.f32 %v496, %v495
      %v498 = vmul.f32 0.5, %v497
      %v499 = vsub.f32 1.5, %v498
      %v500 = vmul.f32 %v495, %v499
      %vm501 = vweird.f32 %v424
      %vm502 = vweird.f32 %v495
      %vm503 = vmor %vm501, %vm502
      %v504 = vsel %vm503, %v495, %v500
      %v505 = vmul.f32 %v369, %v434
      %v506 = vmul.f32 %v370, %v444
      %v507 = vmul.f32 %v371, %v454
      %v508 = vmul.f32 %v372, %v464
      %v509 = vmul.f32 %v373, %v474
      %v510 = vmul.f32 %v374, %v484
      %v511 = vmul.f32 %v375, %v494
      %v512 = vmul.f32 %v376, %v504
      %v514 = vperm.slane %v327, 0
      %v516 = vmul.f32 %v505, %v514
      %v517 = vmul.f32 %v506, %v514
      %v518 = vmul.f32 %v507, %v514
      %v519 = vmul.f32 %v508, %v514
      %v520 = vmul.f32 %v509, %v514
      %v521 = vmul.f32 %v510, %v514
      %v522 = vmul.f32 %v511, %v514
      %v523 = vmul.f32 %v512, %v514
      %v525 = vperm.slane %v328, 0
      %v527 = vadd.f32 %v516, %v525
      %v528 = vadd.f32 %v517, %v525
      %v529 = vadd.f32 %v518, %v525
      %v530 = vadd.f32 %v519, %v525
      %v531 = vadd.f32 %v520, %v525
      %v532 = vadd.f32 %v521, %v525
      %v533 = vadd.f32 %v522, %v525
      %v534 = vadd.f32 %v523, %v525
      %v535 = vpack.c.bf16 %v527, %v527
      %v536 = vpack.c.bf16 %v528, %v528
      %v537 = vpack.c.bf16 %v529, %v529
      %v538 = vpack.c.bf16 %v530, %v530
      %v539 = vpack.c.bf16 %v531, %v531
      %v540 = vpack.c.bf16 %v532, %v532
      %v541 = vpack.c.bf16 %v533, %v533
      %v542 = vpack.c.bf16 %v534, %v534
      %vm543 = vcmask 257024
      %544 = vst.msk [vmem:[%s226] sm:$0xf] %vm543, %v535
      %545 = vst.msk [vmem:[%s226 + $0x4] sm:$0xf] %vm543, %v536
      %546 = vst.msk [vmem:[%s226 + $0x8] sm:$0xf] %vm543, %v537
      %547 = vst.msk [vmem:[%s226 + $0xc] sm:$0xf] %vm543, %v538
      %548 = vst.msk [vmem:[%s226 + $0x10] sm:$0xf] %vm543, %v539
      %549 = vst.msk [vmem:[%s226 + $0x14] sm:$0xf] %vm543, %v540
      %550 = vst.msk [vmem:[%s226 + $0x18] sm:$0xf] %vm543, %v541
      %551 = vst.msk [vmem:[%s226 + $0x1c] sm:$0xf] %vm543, %v542
      %s552 = smul.u32 8, %s16
      %p553 = scmp.lt.s32.totalorder %s552, 15
      %s554 = scalar_select %p553, %s552, 15
      %s555 = smul.addr %s554, 4
      %s556 = scalar_lea.vmem %s5, %s555
      // Predicated region
      $region41: #{forward.11} parent=39 // pred_check
        %p557 = pneg %p144
      $region42: #{forward.11} parent=39 // pred_check_branch
        %559 = sbr.rel (%p557) target = $region44
      $region43: #{forward.11} parent=39 // pred_region
        %s560 = smul.u32 8, %s16
      $region44: #{forward.11} parent=39 // pred_fallthru
        _
    $region40: #{forward.11} parent=5 // pred_fallthru
      _
    %p561 = scmp.le.s32.totalorder 2, %s11
    // Predicated region
    $region45: #{forward.11} parent=5 // pred_check
      %p562 = pneg %p561
    $region46: #{forward.11} parent=5 // pred_check_branch
      %564 = sbr.rel (%p562) target = $region48
    $region47: #{forward.11} parent=5 // pred_region
      %s565 = ssub.s32 %s11, 2
      // Predicated region
      $region49: #{forward.11} parent=47 // pred_check
        %p566 = pneg %p150
      $region50: #{forward.11} parent=47 // pred_check_branch
        %568 = sbr.rel (%p566) target = $region52
      $region51: #{forward.11} parent=47 // pred_region
        %s569 = smul.u32 8, %s17
        %p570 = scmp.lt.s32.totalorder %s569, 15
        %s571 = scalar_select %p570, %s569, 15
        %s572 = smul.addr %s571, 4
        %s573 = scalar_lea.vmem %s5, %s572
      $region52: #{forward.11} parent=47 // pred_fallthru
        _
    $region48: #{forward.11} parent=5 // pred_fallthru
      _
  $region6: #{forward.11} parent=0 // loop_footer
    %s15 = sadd.s32 1, %s11
  $region7: #{forward.11} parent=0 // loop_footer_branch
    %10 = sbr.rel target = $region3
  $region8: #{forward.11} parent=0 // loop_exit
    _

// kernel: forward.12
$region0: #{forward.12}
  #allocation0 [shape = 'u32[]', space=smem, size = 0x4, offset = 0x4, fixed_abs, tag = 'smem constant byte address 0x4 - core index']
  #allocation1 [shape = 'u32[72,128]{1,0:T(1,128)}', space=vmem, size = 0x9000, scoped, tag = 'internal scratch']
  %s0 = inlined_call_operand.vmem [shape: bf16[8,16,32], index: 0, kind: input, shape index: {}]
  %s1 = inlined_call_operand.vmem [shape: f32[1,32], index: 1, kind: input, shape index: {}]
  %s2 = inlined_call_operand.vmem [shape: f32[1,32], index: 2, kind: input, shape index: {}]
  %s3 = inlined_call_operand.vmem [shape: bf16[32,96], index: 3, kind: input, shape index: {}]
  %s4 = inlined_call_operand.vmem [shape: f32[1,96], index: 4, kind: input, shape index: {}]
  %s5 = inlined_call_operand.vmem [shape: bf16[32,32], index: 5, kind: input, shape index: {}]
  %s6 = inlined_call_operand.vmem [shape: f32[1,32], index: 6, kind: input, shape index: {}]
  %s7 = inlined_call_operand.vmem [shape: f32[2,16,16], index: 7, kind: input, shape index: {}]
  %s8 = inlined_call_operand.vmem [shape: bf16[8,16,32], index: 8, kind: output, shape index: {}]
  %s9 = sld [smem:[#allocation0]]
  $region65: #{forward.12} parent=0
    _
  %s11 = ssub.s32 1, %s9
  %s12 = scalar_select 0, %s11, %s9
  loop: start=0, step=1, limit=10
  $region2: #{forward.12} parent=0 // loop_pre_header
    _
  $region3: #{forward.12} parent=0 // loop_header
    %s14 = sphi 0, %s18
    %p15 = scmp.ge.s32.totalorder %s14, 10
    %s21 = sphi 0, %s33
    %s22 = sphi 0, %s29
    %s23 = sphi 0, %s21
    %s24 = sphi 0, %s22
    %s25 = sphi 0, %s23
    %s26 = sphi 0, %s24
    %s40 = sphi 0, %s42
    %s43 = sphi 0, %s40
    %s44 = sphi 0, %s43
    %s60 = sphi 0, %s44
    %s64 = sphi 0, %s64
    %s66 = sphi 0, %s64
    %s67 = sphi 0, %s66
    %s81 = sphi 0, %s67
    %s85 = sphi 0, %s85
    %s87 = sphi 0, %s85
    %s88 = sphi 0, %s87
    %s102 = sphi 0, %s88
    %s106 = sphi 0, %s106
    %s108 = sphi 0, %s106
    %s109 = sphi 0, %s108
    %s123 = sphi 0, %s109
    %s127 = sphi 0, %s127
    %s129 = sphi 0, %s127
    %s130 = sphi 0, %s129
    %s144 = sphi 0, %s130
    %s148 = sphi 0, %s148
    %s150 = sphi 0, %s148
    %s151 = sphi 0, %s150
    %s165 = sphi 0, %s151
    %s169 = sphi 0, %s169
    %s171 = sphi 0, %s169
    %s172 = sphi 0, %s171
    %s186 = sphi 0, %s172
    %s190 = sphi 0, %s190
    %s192 = sphi 0, %s190
    %s193 = sphi 0, %s192
    %s207 = sphi 0, %s193
    %s217 = sphi 0, %s219
    %s220 = sphi 0, %s217
    %s221 = sphi 0, %s220
    %s237 = sphi 0, %s221
  $region4: #{forward.12} parent=0 // loop_header_branch
    %17 = sbr.rel (%p15) target = $region8
  $region5: #{forward.12} parent=0 // loop_body
    %s19 = ssub.s32 %s14, 1
    %s20 = ssub.s32 %s14, 2
    %s27 = sadd.s32 1, %s22
    %p28 = scmp.ge.s32.totalorder %s27, 4
    %s29 = scalar_select %p28, 0, %s27
    %s30 = sadd.s32 1, %s21
    %s31 = scalar_select %p28, %s30, %s21
    %p32 = scmp.ge.s32.totalorder %s31, 2
    %s33 = scalar_select %p32, 0, %s31
    %s34 = smul.u32 %s21, 4
    %s35 = sadd.s32 %s34, %s22
    %s36 = smul.u32 %s33, 4
    %s37 = sadd.s32 %s36, %s29
    %s38 = ssub.s32 %s35, %s37
    %p39 = scmp.eq.s32.totalorder %s38, 0
    %s41 = sadd.s32 %s40, 1
    %s42 = scalar_select %p39, %s40, %s41
    %p45 = pneg %p39
    %p46 = scmp.eq.s32.totalorder %s14, 7
    %p47 = por %p45, %p46
    %p48 = scmp.ne.s32.totalorder %s40, %s43
    %p49 = scmp.eq.s32.totalorder %s14, 0
    %p50 = por %p48, %p49
    %p51 = scmp.ne.s32.totalorder %s40, %s43
    %p52 = scmp.eq.s32.totalorder %s19, 7
    %p53 = por %p51, %p52
    %p54 = scmp.ne.s32.totalorder %s43, %s44
    %p55 = scmp.eq.s32.totalorder %s19, 0
    %p56 = por %p54, %p55
    %p57 = scmp.ne.s32.totalorder %s43, %s44
    %p58 = scmp.eq.s32.totalorder %s20, 7
    %p59 = por %p57, %p58
    %p61 = scmp.ne.s32.totalorder %s44, %s60
    %p62 = scmp.eq.s32.totalorder %s20, 0
    %p63 = por %p61, %p62
    %s65 = sadd.s32 %s64, 1
    %p68 = scmp.eq.s32.totalorder %s14, 7
    %p69 = scmp.ne.s32.totalorder %s64, %s66
    %p70 = scmp.eq.s32.totalorder %s14, 0
    %p71 = por %p69, %p70
    %p72 = scmp.ne.s32.totalorder %s64, %s66
    %p73 = scmp.eq.s32.totalorder %s19, 7
    %p74 = por %p72, %p73
    %p75 = scmp.ne.s32.totalorder %s66, %s67
    %p76 = scmp.eq.s32.totalorder %s19, 0
    %p77 = por %p75, %p76
    %p78 = scmp.ne.s32.totalorder %s66, %s67
    %p79 = scmp.eq.s32.totalorder %s20, 7
    %p80 = por %p78, %p79
    %p82 = scmp.ne.s32.totalorder %s67, %s81
    %p83 = scmp.eq.s32.totalorder %s20, 0
    %p84 = por %p82, %p83
    %s86 = sadd.s32 %s85, 1
    %p89 = scmp.eq.s32.totalorder %s14, 7
    %p90 = scmp.ne.s32.totalorder %s85, %s87
    %p91 = scmp.eq.s32.totalorder %s14, 0
    %p92 = por %p90, %p91
    %p93 = scmp.ne.s32.totalorder %s85, %s87
    %p94 = scmp.eq.s32.totalorder %s19, 7
    %p95 = por %p93, %p94
    %p96 = scmp.ne.s32.totalorder %s87, %s88
    %p97 = scmp.eq.s32.totalorder %s19, 0
    %p98 = por %p96, %p97
    %p99 = scmp.ne.s32.totalorder %s87, %s88
    %p100 = scmp.eq.s32.totalorder %s20, 7
    %p101 = por %p99, %p100
    %p103 = scmp.ne.s32.totalorder %s88, %s102
    %p104 = scmp.eq.s32.totalorder %s20, 0
    %p105 = por %p103, %p104
    %s107 = sadd.s32 %s106, 1
    %p110 = scmp.eq.s32.totalorder %s14, 7
    %p111 = scmp.ne.s32.totalorder %s106, %s108
    %p112 = scmp.eq.s32.totalorder %s14, 0
    %p113 = por %p111, %p112
    %p114 = scmp.ne.s32.totalorder %s106, %s108
    %p115 = scmp.eq.s32.totalorder %s19, 7
    %p116 = por %p114, %p115
    %p117 = scmp.ne.s32.totalorder %s108, %s109
    %p118 = scmp.eq.s32.totalorder %s19, 0
    %p119 = por %p117, %p118
    %p120 = scmp.ne.s32.totalorder %s108, %s109
    %p121 = scmp.eq.s32.totalorder %s20, 7
    %p122 = por %p120, %p121
    %p124 = scmp.ne.s32.totalorder %s109, %s123
    %p125 = scmp.eq.s32.totalorder %s20, 0
    %p126 = por %p124, %p125
    %s128 = sadd.s32 %s127, 1
    %p131 = scmp.eq.s32.totalorder %s14, 7
    %p132 = scmp.ne.s32.totalorder %s127, %s129
    %p133 = scmp.eq.s32.totalorder %s14, 0
    %p134 = por %p132, %p133
    %p135 = scmp.ne.s32.totalorder %s127, %s129
    %p136 = scmp.eq.s32.totalorder %s19, 7
    %p137 = por %p135, %p136
    %p138 = scmp.ne.s32.totalorder %s129, %s130
    %p139 = scmp.eq.s32.totalorder %s19, 0
    %p140 = por %p138, %p139
    %p141 = scmp.ne.s32.totalorder %s129, %s130
    %p142 = scmp.eq.s32.totalorder %s20, 7
    %p143 = por %p141, %p142
    %p145 = scmp.ne.s32.totalorder %s130, %s144
    %p146 = scmp.eq.s32.totalorder %s20, 0
    %p147 = por %p145, %p146
    %s149 = sadd.s32 %s148, 1
    %p152 = scmp.eq.s32.totalorder %s14, 7
    %p153 = scmp.ne.s32.totalorder %s148, %s150
    %p154 = scmp.eq.s32.totalorder %s14, 0
    %p155 = por %p153, %p154
    %p156 = scmp.ne.s32.totalorder %s148, %s150
    %p157 = scmp.eq.s32.totalorder %s19, 7
    %p158 = por %p156, %p157
    %p159 = scmp.ne.s32.totalorder %s150, %s151
    %p160 = scmp.eq.s32.totalorder %s19, 0
    %p161 = por %p159, %p160
    %p162 = scmp.ne.s32.totalorder %s150, %s151
    %p163 = scmp.eq.s32.totalorder %s20, 7
    %p164 = por %p162, %p163
    %p166 = scmp.ne.s32.totalorder %s151, %s165
    %p167 = scmp.eq.s32.totalorder %s20, 0
    %p168 = por %p166, %p167
    %s170 = sadd.s32 %s169, 1
    %p173 = scmp.eq.s32.totalorder %s14, 7
    %p174 = scmp.ne.s32.totalorder %s169, %s171
    %p175 = scmp.eq.s32.totalorder %s14, 0
    %p176 = por %p174, %p175
    %p177 = scmp.ne.s32.totalorder %s169, %s171
    %p178 = scmp.eq.s32.totalorder %s19, 7
    %p179 = por %p177, %p178
    %p180 = scmp.ne.s32.totalorder %s171, %s172
    %p181 = scmp.eq.s32.totalorder %s19, 0
    %p182 = por %p180, %p181
    %p183 = scmp.ne.s32.totalorder %s171, %s172
    %p184 = scmp.eq.s32.totalorder %s20, 7
    %p185 = por %p183, %p184
    %p187 = scmp.ne.s32.totalorder %s172, %s186
    %p188 = scmp.eq.s32.totalorder %s20, 0
    %p189 = por %p187, %p188
    %s191 = sadd.s32 %s190, 1
    %p194 = scmp.eq.s32.totalorder %s14, 7
    %p195 = scmp.ne.s32.totalorder %s190, %s192
    %p196 = scmp.eq.s32.totalorder %s14, 0
    %p197 = por %p195, %p196
    %p198 = scmp.ne.s32.totalorder %s190, %s192
    %p199 = scmp.eq.s32.totalorder %s19, 7
    %p200 = por %p198, %p199
    %p201 = scmp.ne.s32.totalorder %s192, %s193
    %p202 = scmp.eq.s32.totalorder %s19, 0
    %p203 = por %p201, %p202
    %p204 = scmp.ne.s32.totalorder %s192, %s193
    %p205 = scmp.eq.s32.totalorder %s20, 7
    %p206 = por %p204, %p205
    %p208 = scmp.ne.s32.totalorder %s193, %s207
    %p209 = scmp.eq.s32.totalorder %s20, 0
    %p210 = por %p208, %p209
    %s211 = smul.u32 %s21, 4
    %s212 = sadd.s32 %s211, %s22
    %s213 = smul.u32 %s33, 4
    %s214 = sadd.s32 %s213, %s29
    %s215 = ssub.s32 %s212, %s214
    %p216 = scmp.eq.s32.totalorder %s215, 0
    %s218 = sadd.s32 %s217, 1
    %s219 = scalar_select %p216, %s217, %s218
    %p222 = pneg %p216
    %p223 = scmp.eq.s32.totalorder %s14, 7
    %p224 = por %p222, %p223
    %p225 = scmp.ne.s32.totalorder %s217, %s220
    %p226 = scmp.eq.s32.totalorder %s14, 0
    %p227 = por %p225, %p226
    %p228 = scmp.ne.s32.totalorder %s217, %s220
    %p229 = scmp.eq.s32.totalorder %s19, 7
    %p230 = por %p228, %p229
    %p231 = scmp.ne.s32.totalorder %s220, %s221
    %p232 = scmp.eq.s32.totalorder %s19, 0
    %p233 = por %p231, %p232
    %p234 = scmp.ne.s32.totalorder %s220, %s221
    %p235 = scmp.eq.s32.totalorder %s20, 7
    %p236 = por %p234, %p235
    %p238 = scmp.ne.s32.totalorder %s221, %s237
    %p239 = scmp.eq.s32.totalorder %s20, 0
    %p240 = por %p238, %p239
    %p241 = scmp.le.s32.totalorder 1, %s14
    %p242 = scmp.lt.s32.totalorder %s14, 9
    %p243 = pnand %p241, %p242
    %p244 = pneg %p243
    // Predicated region
    $region9: #{forward.12} parent=5 // pred_check
      _
    $region10: #{forward.12} parent=5 // pred_check_branch
      %246 = sbr.rel (%p243) target = $region12
    $region11: #{forward.12} parent=5 // pred_region
      %s247 = ssub.s32 %s14, 1
      // Predicated region
      $region13: #{forward.12} parent=11 // pred_check
        %p248 = pneg %p77
      $region14: #{forward.12} parent=11 // pred_check_branch
        %250 = sbr.rel (%p248) target = $region16
      $region15: #{forward.12} parent=11 // pred_region
        _
      $region16: #{forward.12} parent=11 // pred_fallthru
        _
      // Predicated region
      $region17: #{forward.12} parent=11 // pred_check
        %p251 = pneg %p98
      $region18: #{forward.12} parent=11 // pred_check_branch
        %253 = sbr.rel (%p251) target = $region20
      $region19: #{forward.12} parent=11 // pred_region
        _
      $region20: #{forward.12} parent=11 // pred_fallthru
        _
      // Predicated region
      $region21: #{forward.12} parent=11 // pred_check
        %p254 = pneg %p119
      $region22: #{forward.12} parent=11 // pred_check_branch
        %256 = sbr.rel (%p254) target = $region24
      $region23: #{forward.12} parent=11 // pred_region
        _
      $region24: #{forward.12} parent=11 // pred_fallthru
        _
      // Predicated region
      $region25: #{forward.12} parent=11 // pred_check
        %p257 = pneg %p140
      $region26: #{forward.12} parent=11 // pred_check_branch
        %259 = sbr.rel (%p257) target = $region28
      $region27: #{forward.12} parent=11 // pred_region
        _
      $region28: #{forward.12} parent=11 // pred_fallthru
        _
      // Predicated region
      $region29: #{forward.12} parent=11 // pred_check
        %p260 = pneg %p161
      $region30: #{forward.12} parent=11 // pred_check_branch
        %262 = sbr.rel (%p260) target = $region32
      $region31: #{forward.12} parent=11 // pred_region
        _
      $region32: #{forward.12} parent=11 // pred_fallthru
        _
      // Predicated region
      $region33: #{forward.12} parent=11 // pred_check
        %p263 = pneg %p182
      $region34: #{forward.12} parent=11 // pred_check_branch
        %265 = sbr.rel (%p263) target = $region36
      $region35: #{forward.12} parent=11 // pred_region
        _
      $region36: #{forward.12} parent=11 // pred_fallthru
        _
      // Predicated region
      $region37: #{forward.12} parent=11 // pred_check
        %p266 = pneg %p203
      $region38: #{forward.12} parent=11 // pred_check_branch
        %268 = sbr.rel (%p266) target = $region40
      $region39: #{forward.12} parent=11 // pred_region
        _
      $region40: #{forward.12} parent=11 // pred_fallthru
        _
    $region12: #{forward.12} parent=5 // pred_fallthru
      _
    %p269 = scmp.lt.s32.totalorder %s14, 8
    // Predicated region
    $region41: #{forward.12} parent=5 // pred_check
      %p270 = pneg %p269
    $region42: #{forward.12} parent=5 // pred_check_branch
      %272 = sbr.rel (%p270) target = $region44
    $region43: #{forward.12} parent=5 // pred_region
      // Predicated region
      $region45: #{forward.12} parent=43 // pred_check
        %p273 = pneg %p50
      $region46: #{forward.12} parent=43 // pred_check_branch
        %275 = sbr.rel (%p273) target = $region48
      $region47: #{forward.12} parent=43 // pred_region
        %s276 = smul.u32 %s21, 4
        %s277 = sadd.s32 %s276, %s22
        %p278 = scmp.lt.s32.totalorder %s277, 7
        %s279 = scalar_select %p278, %s277, 7
        %s280 = smul.addr %s279, 2
        %s281 = smul.addr %s280, 4
        %s282 = scalar_lea.vmem %s0, %s281
        %s283 = smul.u32 %s21, 4
        %s284 = sadd.s32 %s283, %s22
      $region48: #{forward.12} parent=43 // pred_fallthru
        _
    $region44: #{forward.12} parent=5 // pred_fallthru
      _
    %p285 = scmp.le.s32.totalorder 1, %s14
    %p286 = scmp.lt.s32.totalorder %s14, 9
    %p287 = pnand %p285, %p286
    %p288 = pneg %p287
    // Predicated region
    $region49: #{forward.12} parent=5 // pred_check
      _
    $region50: #{forward.12} parent=5 // pred_check_branch
      %290 = sbr.rel (%p287) target = $region52
    $region51: #{forward.12} parent=5 // pred_region
      %s291 = ssub.s32 %s14, 1
      %s292 = smul.u32 %s23, 4
      %s293 = sadd.s32 %s292, %s24
      %p294 = scmp.lt.s32.totalorder %s293, 7
      %s295 = scalar_select %p294, %s293, 7
      %s296 = smul.addr %s295, 2
      %s297 = smul.addr %s296, 4
      %s298 = scalar_lea.vmem %s0, %s297
      %p299 = pneg %p56
      %p300 = pneg %p53
      %p301 = pneg %p77
      %p302 = pneg %p74
      %p303 = pneg %p98
      %p304 = pneg %p95
      %p305 = pneg %p119
      %p306 = pneg %p116
      %p307 = pneg %p140
      %p308 = pneg %p137
      %p309 = pneg %p161
      %p310 = pneg %p158
      %p311 = pneg %p182
      %p312 = pneg %p179
      %p313 = pneg %p203
      %p314 = pneg %p200
      %p315 = pneg %p233
      %p316 = pneg %p230
      %s317 = smul.u32 %s23, 4
      %s318 = sadd.s32 %s317, %s24
      %p319 = scmp.lt.s32.totalorder %s318, 7
      %s320 = scalar_select %p319, %s318, 7
      %s321 = smul.addr %s320, 2
      %s322 = smul.addr %s321, 4
      %s323 = scalar_lea.vmem %s8, %s322
      %s324 = smul.u32 %s23, 4
      %s325 = sadd.s32 %s324, %s24
      %p326 = scmp.lt.s32.totalorder %s325, 7
      %s327 = scalar_select %p326, %s325, 7
      %s328 = smul.addr %s327, 2
      %s329 = smul.addr %s328, 4
      %s330 = scalar_lea.vmem %s0, %s329
      %s331 = smul.u32 %s23, 4
      %s332 = sadd.s32 %s331, %s24
      %s333 = smul.u32 %s23, 4
      %s334 = sadd.s32 %s333, %s24
      %p335 = scmp.lt.s32.totalorder %s334, 7
      %s336 = scalar_select %p335, %s334, 7
      %s337 = smul.addr %s336, 2
      %s338 = smul.addr %s337, 4
      %s339 = scalar_lea.vmem %s8, %s338
      %s340 = smul.u32 %s23, 4
      %s341 = sadd.s32 %s340, %s24
      %v343 = vld [vmem:[%s330] sm:$0xf]
      %v344 = vld [vmem:[%s330 + $0x4] sm:$0xf]
      %v345 = vunpack.c.l.bf16 %v343
      %v346 = vunpack.c.l.bf16 %v344
      %v347 = vld [vmem:[%s1] sm:$0x1]
      %v348 = vld [vmem:[%s2] sm:$0x1]
      %vm349 = vcmask 261120
      %v350 = vsel %vm349, %v345, 0.0
      %351 = vadd.xlane.f32.xlu0 %v350
      %v352 = vpop.xlane.xlu0 %351
      %v353 = vsel %vm349, %v346, 0.0
      %354 = vadd.xlane.f32.xlu0 %v353
      %v355 = vpop.xlane.xlu0 %354
      %v356 = vrcp.pop 32.0
      %v357 = vmul.f32 32.0, %v356
      %v358 = vsub.f32 1.0, %v357
      %v359 = vmul.f32 %v356, %v358
      %v360 = vadd.f32 %v356, %v359
      %vm361 = vweird.f32 %v356
      %v362 = vsel %vm361, %v356, %v360
      %v363 = vmul.f32 %v352, %v362
      %v364 = vmul.f32 %v355, %v362
      %v365 = vsub.f32 %v345, %v363
      %v366 = vsub.f32 %v346, %v364
      %v367 = vmul.f32 %v365, %v365
      %v368 = vmul.f32 %v366, %v366
      %v369 = vsel %vm349, %v367, 0.0
      %370 = vadd.xlane.f32.xlu0 %v369
      %v371 = vpop.xlane.xlu0 %370
      %v372 = vsel %vm349, %v368, 0.0
      %373 = vadd.xlane.f32.xlu0 %v372
      %v374 = vpop.xlane.xlu0 %373
      %v375 = vmul.f32 %v371, %v362
      %v376 = vmul.f32 %v374, %v362
      %v377 = vadd.f32 %v375, 1e-05
      %v378 = vadd.f32 %v376, 1e-05
      %v379 = vrsqrt.pop %v377
      %v380 = vmul.f32 %v379, %v377
      %v381 = vmul.f32 %v380, %v379
      %v382 = vmul.f32 0.5, %v381
      %v383 = vsub.f32 1.5, %v382
      %v384 = vmul.f32 %v379, %v383
      %vm385 = vweird.f32 %v377
      %vm386 = vweird.f32 %v379
      %vm387 = vmor %vm385, %vm386
      %v388 = vsel %vm387, %v379, %v384
      %v389 = vrsqrt.pop %v378
      %v390 = vmul.f32 %v389, %v378
      %v391 = vmul.f32 %v390, %v389
      %v392 = vmul.f32 0.5, %v391
      %v393 = vsub.f32 1.5, %v392
      %v394 = vmul.f32 %v389, %v393
      %vm395 = vweird.f32 %v378
      %vm396 = vweird.f32 %v389
      %vm397 = vmor %vm395, %vm396
      %v398 = vsel %vm397, %v389, %v394
      %v399 = vmul.f32 %v365, %v388
      %v400 = vmul.f32 %v366, %v398
      %v402 = vperm.slane %v347, 0
      %v404 = vmul.f32 %v399, %v402
      %v405 = vmul.f32 %v400, %v402
      %v407 = vperm.slane %v348, 0
      %v409 = vadd.f32 %v404, %v407
      %v410 = vadd.f32 %v405, %v407
      %v411 = vld [vmem:[%s3] sm:$0xf]
      %v412 = vld [vmem:[%s3 + $0x4] sm:$0xf]
      %v413 = vld [vmem:[%s3 + $0x8] sm:$0xf]
      %v414 = vld [vmem:[%s3 + $0xc] sm:$0xf]
      %v415 = vpack.c.bf16 %v410, %v409
      %v416 = vld [vmem:[%s4] sm:$0x1]
      %v418 = vperm.slane %v416, 0
      %v424 = vunpack.c.l.b16 %v411
      %v425 = vunpack.c.l.b16 %v412
      %v426 = vunpack.c.l.b16 %v413
      %v427 = vunpack.c.l.b16 %v414
      %v428 = vpack.c.b16 %v425, %v424
      %v429 = vpack.c.b16 %v427, %v426
      %v433 = vsel %vm349, %v415, 0
      %435 = vmatpush.bf16.msra.mxu0 0
      %436 = vmatpush.bf16.msra.mxu0 0
      %437 = vmatpush.bf16.msra.mxu0 0
      %438 = vmatpush.bf16.msra.mxu0 0
      %439 = vmatpush.bf16.msra.mxu0 0
      %440 = vmatpush.bf16.msra.mxu0 0
      %441 = vmatpush.bf16.msra.mxu0 %v429
      %442 = vmatpush.bf16.msra.mxu0 %v428
      %443 = vmatmul.bf16.gmra.mxu0 %v433
      %v444 = vpop.f32.mrf.mxu0
      %v445 = vadd.f32 %v418, %v444
      %v446 = vpop.f32.mrf.mxu0
      %v447 = vadd.f32 %v418, %v446
      %448 = vdwg.mxu0
      %v449 = vld [vmem:[%s7] sm:$0xff]
      %v450 = vld [vmem:[%s7 + $0x8] sm:$0xff]
      %v451 = vld [vmem:[%s7 + $0x10] sm:$0xff]
      %v452 = vld [vmem:[%s7 + $0x18] sm:$0xff]
      %455 = vrot.lane.b32.xlu0 %v445, 96
      %v456 = vpop.permute.xlu0 %455
      %457 = vrot.lane.b32.xlu0 %v447, 96
      %v458 = vpop.permute.xlu0 %457
      %vm459 = vcmask 130048
      %v460 = vsel %vm459, %v445, 0
      %v462 = vsel %vm459, %v447, 0
      %v464 = vsel %vm459, %v456, 0
      %v466 = vsel %vm459, %v458, 0
      %468 = vmatpush.xpose.msra.mxu0 0.0
      %469 = vmatpush.xpose.msra.mxu0 0.0
      %470 = vmatpush.xpose.msra.mxu0 0.0
      %471 = vmatpush.xpose.msra.mxu0 0.0
      %472 = vmatpush.xpose.msra.mxu0 0.0
      %473 = vmatpush.xpose.msra.mxu0 0.0
      %474 = vmatpush.xpose.msra.mxu0 0.0
      %475 = vmatpush.xpose.msra.mxu0 0.0
      %476 = vmatpush.xpose.msra.mxu0 0.0
      %477 = vmatpush.xpose.msra.mxu0 0.0
      %478 = vmatpush.xpose.msra.mxu0 0.0
      %479 = vmatpush.xpose.msra.mxu0 0.0
      %480 = vmatpush.xpose.msra.mxu0 0.0
      %481 = vmatpush.xpose.msra.mxu0 0.0
      %482 = vmatpush.xpose.msra.mxu0 %v466
      %483 = vmatpush.xpose.msra.mxu0 %v464
      %484 = vmatmul.f32.gmra.mxu0 %v460
      %v485 = vpop.f32.mrf.mxu0
      %v486 = vadd.f32 %v449, %v485
      %487 = vmatmul.f32.gmra.mxu0 %v462
      %v488 = vpop.f32.mrf.mxu0
      %v489 = vadd.f32 %v450, %v488
      %490 = vdwg.mxu0
      %v491 = vsel %vm459, %v486, -inf
      %492 = vmax.xlane.f32.xlu0 %v491
      %v493 = vpop.xlane.xlu0 %492
      %v494 = vsel %vm459, %v489, -inf
      %495 = vmax.xlane.f32.xlu0 %v494
      %v496 = vpop.xlane.xlu0 %495
      %v497 = vsub.f32 %v486, %v493
      %v498 = vsub.f32 %v489, %v496
      %v499 = vmul.f32 %v497, 1.442695
      %v500 = vpow.pop %v499
      %v501 = vmul.f32 %v498, 1.442695
      %v502 = vpow.pop %v501
      %v503 = vsel %vm459, %v500, 0.0
      %504 = vadd.xlane.f32.xlu0 %v503
      %v505 = vpop.xlane.xlu0 %504
      %v506 = vsel %vm459, %v502, 0.0
      %507 = vadd.xlane.f32.xlu0 %v506
      %v508 = vpop.xlane.xlu0 %507
      %v509 = vrcp.pop %v505
      %v510 = vrcp.pop %v508
      %v511 = vmul.f32 %v500, %v509
      %v512 = vmul.f32 %v502, %v510
      %513 = vrot.lane.b32.xlu0 %v445, 64
      %v514 = vpop.permute.xlu0 %513
      %515 = vrot.lane.b32.xlu0 %v447, 64
      %v516 = vpop.permute.xlu0 %515
      %v520 = vsel %vm459, %v511, 0
      %v523 = vsel %vm459, %v512, 0
      %525 = vmatpush.msra.mxu0 0.0
      %526 = vmatpush.msra.mxu0 0.0
      %527 = vmatpush.msra.mxu0 0.0
      %528 = vmatpush.msra.mxu0 0.0
      %529 = vmatpush.msra.mxu0 0.0
      %530 = vmatpush.msra.mxu0 0.0
      %531 = vmatpush.msra.mxu0 0.0
      %532 = vmatpush.msra.mxu0 0.0
      %533 = vmatpush.msra.mxu0 0.0
      %534 = vmatpush.msra.mxu0 0.0
      %535 = vmatpush.msra.mxu0 0.0
      %536 = vmatpush.msra.mxu0 0.0
      %537 = vmatpush.msra.mxu0 0.0
      %538 = vmatpush.msra.mxu0 0.0
      %539 = vmatpush.msra.mxu0 %v516
      %540 = vmatpush.msra.mxu0 %v514
      %541 = vmatmul.f32.gmra.mxu0 %v520
      %v542 = vpop.f32.mrf.mxu0
      %v543 = vadd.f32 0.0, %v542
      %544 = vmatmul.f32.gmra.mxu0 %v523
      %v545 = vpop.f32.mrf.mxu0
      %v546 = vadd.f32 0.0, %v545
      %547 = vdwg.mxu0
      %548 = vrot.lane.b32.xlu0 %v445, 112
      %v549 = vpop.permute.xlu0 %548
      %550 = vrot.lane.b32.xlu0 %v447, 112
      %v551 = vpop.permute.xlu0 %550
      %552 = vrot.lane.b32.xlu0 %v445, 80
      %v553 = vpop.permute.xlu0 %552
      %554 = vrot.lane.b32.xlu0 %v447, 80
      %v555 = vpop.permute.xlu0 %554
      %v556 = vsel %vm459, %v549, 0
      %v558 = vsel %vm459, %v551, 0
      %v560 = vsel %vm459, %v553, 0
      %v562 = vsel %vm459, %v555, 0
      %564 = vmatpush.xpose.msra.mxu0 0.0
      %565 = vmatpush.xpose.msra.mxu0 0.0
      %566 = vmatpush.xpose.msra.mxu0 0.0
      %567 = vmatpush.xpose.msra.mxu0 0.0
      %568 = vmatpush.xpose.msra.mxu0 0.0
      %569 = vmatpush.xpose.msra.mxu0 0.0
      %570 = vmatpush.xpose.msra.mxu0 0.0
      %571 = vmatpush.xpose.msra.mxu0 0.0
      %572 = vmatpush.xpose.msra.mxu0 0.0
      %573 = vmatpush.xpose.msra.mxu0 0.0
      %574 = vmatpush.xpose.msra.mxu0 0.0
      %575 = vmatpush.xpose.msra.mxu0 0.0
      %576 = vmatpush.xpose.msra.mxu0 0.0
      %577 = vmatpush.xpose.msra.mxu0 0.0
      %578 = vmatpush.xpose.msra.mxu0 %v562
      %579 = vmatpush.xpose.msra.mxu0 %v560
      %580 = vmatmul.f32.gmra.mxu0 %v556
      %v581 = vpop.f32.mrf.mxu0
      %v582 = vadd.f32 %v451, %v581
      %583 = vmatmul.f32.gmra.mxu0 %v558
      %v584 = vpop.f32.mrf.mxu0
      %v585 = vadd.f32 %v452, %v584
      %586 = vdwg.mxu0
      %v587 = vsel %vm459, %v582, -inf
      %588 = vmax.xlane.f32.xlu0 %v587
      %v589 = vpop.xlane.xlu0 %588
      %v590 = vsel %vm459, %v585, -inf
      %591 = vmax.xlane.f32.xlu0 %v590
      %v592 = vpop.xlane.xlu0 %591
      %v593 = vsub.f32 %v582, %v589
      %v594 = vsub.f32 %v585, %v592
      %v595 = vmul.f32 %v593, 1.442695
      %v596 = vpow.pop %v595
      %v597 = vmul.f32 %v594, 1.442695
      %v598 = vpow.pop %v597
      %v599 = vsel %vm459, %v596, 0.0
      %600 = vadd.xlane.f32.xlu0 %v599
      %v601 = vpop.xlane.xlu0 %600
      %v602 = vsel %vm459, %v598, 0.0
      %603 = vadd.xlane.f32.xlu0 %v602
      %v604 = vpop.xlane.xlu0 %603
      %v605 = vrcp.pop %v601
      %v606 = vrcp.pop %v604
      %v607 = vmul.f32 %v596, %v605
      %v608 = vmul.f32 %v598, %v606
      %609 = vrot.lane.b32.xlu0 %v445, 48
      %v610 = vpop.permute.xlu0 %609
      %611 = vrot.lane.b32.xlu0 %v447, 48
      %v612 = vpop.permute.xlu0 %611
      %v616 = vsel %vm459, %v607, 0
      %v619 = vsel %vm459, %v608, 0
      %621 = vmatpush.msra.mxu0 0.0
      %622 = vmatpush.msra.mxu0 0.0
      %623 = vmatpush.msra.mxu0 0.0
      %624 = vmatpush.msra.mxu0 0.0
      %625 = vmatpush.msra.mxu0 0.0
      %626 = vmatpush.msra.mxu0 0.0
      %627 = vmatpush.msra.mxu0 0.0
      %628 = vmatpush.msra.mxu0 0.0
      %629 = vmatpush.msra.mxu0 0.0
      %630 = vmatpush.msra.mxu0 0.0
      %631 = vmatpush.msra.mxu0 0.0
      %632 = vmatpush.msra.mxu0 0.0
      %633 = vmatpush.msra.mxu0 0.0
      %634 = vmatpush.msra.mxu0 0.0
      %635 = vmatpush.msra.mxu0 %v612
      %636 = vmatpush.msra.mxu0 %v610
      %637 = vmatmul.f32.gmra.mxu0 %v616
      %v638 = vpop.f32.mrf.mxu0
      %v639 = vadd.f32 0.0, %v638
      %640 = vmatmul.f32.gmra.mxu0 %v619
      %v641 = vpop.f32.mrf.mxu0
      %v642 = vadd.f32 0.0, %v641
      %643 = vdwg.mxu0
      %646 = vrot.lane.b32.xlu0 %v639, 16
      %v647 = vpop.permute.xlu0 %646
      %648 = vrot.lane.b32.xlu0 %v642, 16
      %v649 = vpop.permute.xlu0 %648
      %v652 = vsel %vm459, %v543, %v647
      %v653 = vsel %vm459, %v546, %v649
      %v654 = vld [vmem:[%s5] sm:$0xf]
      %v655 = vld [vmem:[%s5 + $0x4] sm:$0xf]
      %v656 = vld [vmem:[%s5 + $0x8] sm:$0xf]
      %v657 = vld [vmem:[%s5 + $0xc] sm:$0xf]
      %v658 = vpack.c.bf16 %v653, %v652
      %v659 = vld [vmem:[%s6] sm:$0x1]
      %v661 = vperm.slane %v659, 0
      %v667 = vunpack.c.l.b16 %v654
      %v668 = vunpack.c.l.b16 %v655
      %v669 = vunpack.c.l.b16 %v656
      %v670 = vunpack.c.l.b16 %v657
      %v671 = vpack.c.b16 %v668, %v667
      %v672 = vpack.c.b16 %v670, %v669
      %v676 = vsel %vm349, %v658, 0
      %678 = vmatpush.bf16.msra.mxu0 0
      %679 = vmatpush.bf16.msra.mxu0 0
      %680 = vmatpush.bf16.msra.mxu0 0
      %681 = vmatpush.bf16.msra.mxu0 0
      %682 = vmatpush.bf16.msra.mxu0 0
      %683 = vmatpush.bf16.msra.mxu0 0
      %684 = vmatpush.bf16.msra.mxu0 %v672
      %685 = vmatpush.bf16.msra.mxu0 %v671
      %686 = vmatmul.bf16.gmra.mxu0 %v676
      %v687 = vpop.f32.mrf.mxu0
      %v688 = vadd.f32 %v661, %v687
      %v689 = vpop.f32.mrf.mxu0
      %v690 = vadd.f32 %v661, %v689
      %691 = vdwg.mxu0
      %v692 = vpack.c.bf16 %v688, %v688
      %v693 = vpack.c.bf16 %v690, %v690
      %vm694 = vcmask 257024
      %695 = vst.msk [vmem:[%s339] sm:$0xf] %vm694, %v692
      %696 = vst.msk [vmem:[%s339 + $0x4] sm:$0xf] %vm694, %v693
      %s697 = smul.u32 %s23, 4
      %s698 = sadd.s32 %s697, %s24
      %p699 = scmp.lt.s32.totalorder %s698, 7
      %s700 = scalar_select %p699, %s698, 7
      %s701 = smul.addr %s700, 2
      %s702 = smul.addr %s701, 4
      %s703 = scalar_lea.vmem %s8, %s702
      // Predicated region
      $region53: #{forward.12} parent=51 // pred_check
        %p704 = pneg %p230
      $region54: #{forward.12} parent=51 // pred_check_branch
        %706 = sbr.rel (%p704) target = $region56
      $region55: #{forward.12} parent=51 // pred_region
        %s707 = smul.u32 %s23, 4
        %s708 = sadd.s32 %s707, %s24
      $region56: #{forward.12} parent=51 // pred_fallthru
        _
    $region52: #{forward.12} parent=5 // pred_fallthru
      _
    %p709 = scmp.le.s32.totalorder 2, %s14
    // Predicated region
    $region57: #{forward.12} parent=5 // pred_check
      %p710 = pneg %p709
    $region58: #{forward.12} parent=5 // pred_check_branch
      %712 = sbr.rel (%p710) target = $region60
    $region59: #{forward.12} parent=5 // pred_region
      %s713 = ssub.s32 %s14, 2
      // Predicated region
      $region61: #{forward.12} parent=59 // pred_check
        %p714 = pneg %p236
      $region62: #{forward.12} parent=59 // pred_check_branch
        %716 = sbr.rel (%p714) target = $region64
      $region63: #{forward.12} parent=59 // pred_region
        %s717 = smul.u32 %s25, 4
        %s718 = sadd.s32 %s717, %s26
        %p719 = scmp.lt.s32.totalorder %s718, 7
        %s720 = scalar_select %p719, %s718, 7
        %s721 = smul.addr %s720, 2
        %s722 = smul.addr %s721, 4
        %s723 = scalar_lea.vmem %s8, %s722
      $region64: #{forward.12} parent=59 // pred_fallthru
        _
    $region60: #{forward.12} parent=5 // pred_fallthru
      _
  $region6: #{forward.12} parent=0 // loop_footer
    %s18 = sadd.s32 1, %s14
  $region7: #{forward.12} parent=0 // loop_footer_branch
    %13 = sbr.rel target = $region3
  $region8: #{forward.12} parent=0 // loop_exit
    _

// kernel: forward.13
$region0: #{forward.13}
  #allocation0 [shape = 'u32[]', space=smem, size = 0x4, offset = 0x4, fixed_abs, tag = 'smem constant byte address 0x4 - core index']
  #allocation1 [shape = 'u32[72,128]{1,0:T(1,128)}', space=vmem, size = 0x9000, scoped, tag = 'internal scratch']
  %s0 = inlined_call_operand.vmem [shape: bf16[128,32], index: 0, kind: input, shape index: {}]
  %s1 = inlined_call_operand.vmem [shape: bf16[128,32], index: 1, kind: input, shape index: {}]
  %s2 = inlined_call_operand.vmem [shape: f32[1,32], index: 2, kind: input, shape index: {}]
  %s3 = inlined_call_operand.vmem [shape: f32[1,32], index: 3, kind: input, shape index: {}]
  %s4 = inlined_call_operand.vmem [shape: bf16[32,128], index: 4, kind: input, shape index: {}]
  %s5 = inlined_call_operand.vmem [shape: f32[1,128], index: 5, kind: input, shape index: {}]
  %s6 = inlined_call_operand.vmem [shape: bf16[128,32], index: 6, kind: input, shape index: {}]
  %s7 = inlined_call_operand.vmem [shape: f32[1,32], index: 7, kind: input, shape index: {}]
  %s8 = inlined_call_operand.vmem [shape: bf16[128,32], index: 8, kind: output, shape index: {}]
  %s9 = sld [smem:[#allocation0]]
  $region65: #{forward.13} parent=0
    _
  %s11 = ssub.s32 1, %s9
  %s12 = scalar_select 0, %s11, %s9
  loop: start=0, step=1, limit=4
  $region2: #{forward.13} parent=0 // loop_pre_header
    _
  $region3: #{forward.13} parent=0 // loop_header
    %s14 = sphi 0, %s18
    %p15 = scmp.ge.s32.totalorder %s14, 4
    %s24 = sphi 0, %s26
    %s27 = sphi 0, %s24
    %s28 = sphi 0, %s27
    %s44 = sphi 0, %s28
    %s50 = sphi 0, %s52
    %s53 = sphi 0, %s50
    %s54 = sphi 0, %s53
    %s70 = sphi 0, %s54
    %s74 = sphi 0, %s74
    %s76 = sphi 0, %s74
    %s77 = sphi 0, %s76
    %s91 = sphi 0, %s77
    %s95 = sphi 0, %s95
    %s97 = sphi 0, %s95
    %s98 = sphi 0, %s97
    %s112 = sphi 0, %s98
    %s116 = sphi 0, %s116
    %s118 = sphi 0, %s116
    %s119 = sphi 0, %s118
    %s133 = sphi 0, %s119
    %s137 = sphi 0, %s137
    %s139 = sphi 0, %s137
    %s140 = sphi 0, %s139
    %s154 = sphi 0, %s140
    %s158 = sphi 0, %s158
    %s160 = sphi 0, %s158
    %s161 = sphi 0, %s160
    %s175 = sphi 0, %s161
    %s179 = sphi 0, %s179
    %s181 = sphi 0, %s179
    %s182 = sphi 0, %s181
    %s196 = sphi 0, %s182
    %s202 = sphi 0, %s204
    %s205 = sphi 0, %s202
    %s206 = sphi 0, %s205
    %s222 = sphi 0, %s206
  $region4: #{forward.13} parent=0 // loop_header_branch
    %17 = sbr.rel (%p15) target = $region8
  $region5: #{forward.13} parent=0 // loop_body
    %s19 = ssub.s32 %s14, 1
    %s20 = ssub.s32 %s14, 2
    %s21 = sadd.s32 %s14, 1
    %s22 = ssub.s32 %s14, %s21
    %p23 = scmp.eq.s32.totalorder %s22, 0
    %s25 = sadd.s32 %s24, 1
    %s26 = scalar_select %p23, %s24, %s25
    %p29 = pneg %p23
    %p30 = scmp.eq.s32.totalorder %s14, 1
    %p31 = por %p29, %p30
    %p32 = scmp.ne.s32.totalorder %s24, %s27
    %p33 = scmp.eq.s32.totalorder %s14, 0
    %p34 = por %p32, %p33
    %p35 = scmp.ne.s32.totalorder %s24, %s27
    %p36 = scmp.eq.s32.totalorder %s19, 1
    %p37 = por %p35, %p36
    %p38 = scmp.ne.s32.totalorder %s27, %s28
    %p39 = scmp.eq.s32.totalorder %s19, 0
    %p40 = por %p38, %p39
    %p41 = scmp.ne.s32.totalorder %s27, %s28
    %p42 = scmp.eq.s32.totalorder %s20, 1
    %p43 = por %p41, %p42
    %p45 = scmp.ne.s32.totalorder %s28, %s44
    %p46 = scmp.eq.s32.totalorder %s20, 0
    %p47 = por %p45, %p46
    %s48 = ssub.s32 %s14, %s21
    %p49 = scmp.eq.s32.totalorder %s48, 0
    %s51 = sadd.s32 %s50, 1
    %s52 = scalar_select %p49, %s50, %s51
    %p55 = pneg %p49
    %p56 = scmp.eq.s32.totalorder %s14, 1
    %p57 = por %p55, %p56
    %p58 = scmp.ne.s32.totalorder %s50, %s53
    %p59 = scmp.eq.s32.totalorder %s14, 0
    %p60 = por %p58, %p59
    %p61 = scmp.ne.s32.totalorder %s50, %s53
    %p62 = scmp.eq.s32.totalorder %s19, 1
    %p63 = por %p61, %p62
    %p64 = scmp.ne.s32.totalorder %s53, %s54
    %p65 = scmp.eq.s32.totalorder %s19, 0
    %p66 = por %p64, %p65
    %p67 = scmp.ne.s32.totalorder %s53, %s54
    %p68 = scmp.eq.s32.totalorder %s20, 1
    %p69 = por %p67, %p68
    %p71 = scmp.ne.s32.totalorder %s54, %s70
    %p72 = scmp.eq.s32.totalorder %s20, 0
    %p73 = por %p71, %p72
    %s75 = sadd.s32 %s74, 1
    %p78 = scmp.eq.s32.totalorder %s14, 1
    %p79 = scmp.ne.s32.totalorder %s74, %s76
    %p80 = scmp.eq.s32.totalorder %s14, 0
    %p81 = por %p79, %p80
    %p82 = scmp.ne.s32.totalorder %s74, %s76
    %p83 = scmp.eq.s32.totalorder %s19, 1
    %p84 = por %p82, %p83
    %p85 = scmp.ne.s32.totalorder %s76, %s77
    %p86 = scmp.eq.s32.totalorder %s19, 0
    %p87 = por %p85, %p86
    %p88 = scmp.ne.s32.totalorder %s76, %s77
    %p89 = scmp.eq.s32.totalorder %s20, 1
    %p90 = por %p88, %p89
    %p92 = scmp.ne.s32.totalorder %s77, %s91
    %p93 = scmp.eq.s32.totalorder %s20, 0
    %p94 = por %p92, %p93
    %s96 = sadd.s32 %s95, 1
    %p99 = scmp.eq.s32.totalorder %s14, 1
    %p100 = scmp.ne.s32.totalorder %s95, %s97
    %p101 = scmp.eq.s32.totalorder %s14, 0
    %p102 = por %p100, %p101
    %p103 = scmp.ne.s32.totalorder %s95, %s97
    %p104 = scmp.eq.s32.totalorder %s19, 1
    %p105 = por %p103, %p104
    %p106 = scmp.ne.s32.totalorder %s97, %s98
    %p107 = scmp.eq.s32.totalorder %s19, 0
    %p108 = por %p106, %p107
    %p109 = scmp.ne.s32.totalorder %s97, %s98
    %p110 = scmp.eq.s32.totalorder %s20, 1
    %p111 = por %p109, %p110
    %p113 = scmp.ne.s32.totalorder %s98, %s112
    %p114 = scmp.eq.s32.totalorder %s20, 0
    %p115 = por %p113, %p114
    %s117 = sadd.s32 %s116, 1
    %p120 = scmp.eq.s32.totalorder %s14, 1
    %p121 = scmp.ne.s32.totalorder %s116, %s118
    %p122 = scmp.eq.s32.totalorder %s14, 0
    %p123 = por %p121, %p122
    %p124 = scmp.ne.s32.totalorder %s116, %s118
    %p125 = scmp.eq.s32.totalorder %s19, 1
    %p126 = por %p124, %p125
    %p127 = scmp.ne.s32.totalorder %s118, %s119
    %p128 = scmp.eq.s32.totalorder %s19, 0
    %p129 = por %p127, %p128
    %p130 = scmp.ne.s32.totalorder %s118, %s119
    %p131 = scmp.eq.s32.totalorder %s20, 1
    %p132 = por %p130, %p131
    %p134 = scmp.ne.s32.totalorder %s119, %s133
    %p135 = scmp.eq.s32.totalorder %s20, 0
    %p136 = por %p134, %p135
    %s138 = sadd.s32 %s137, 1
    %p141 = scmp.eq.s32.totalorder %s14, 1
    %p142 = scmp.ne.s32.totalorder %s137, %s139
    %p143 = scmp.eq.s32.totalorder %s14, 0
    %p144 = por %p142, %p143
    %p145 = scmp.ne.s32.totalorder %s137, %s139
    %p146 = scmp.eq.s32.totalorder %s19, 1
    %p147 = por %p145, %p146
    %p148 = scmp.ne.s32.totalorder %s139, %s140
    %p149 = scmp.eq.s32.totalorder %s19, 0
    %p150 = por %p148, %p149
    %p151 = scmp.ne.s32.totalorder %s139, %s140
    %p152 = scmp.eq.s32.totalorder %s20, 1
    %p153 = por %p151, %p152
    %p155 = scmp.ne.s32.totalorder %s140, %s154
    %p156 = scmp.eq.s32.totalorder %s20, 0
    %p157 = por %p155, %p156
    %s159 = sadd.s32 %s158, 1
    %p162 = scmp.eq.s32.totalorder %s14, 1
    %p163 = scmp.ne.s32.totalorder %s158, %s160
    %p164 = scmp.eq.s32.totalorder %s14, 0
    %p165 = por %p163, %p164
    %p166 = scmp.ne.s32.totalorder %s158, %s160
    %p167 = scmp.eq.s32.totalorder %s19, 1
    %p168 = por %p166, %p167
    %p169 = scmp.ne.s32.totalorder %s160, %s161
    %p170 = scmp.eq.s32.totalorder %s19, 0
    %p171 = por %p169, %p170
    %p172 = scmp.ne.s32.totalorder %s160, %s161
    %p173 = scmp.eq.s32.totalorder %s20, 1
    %p174 = por %p172, %p173
    %p176 = scmp.ne.s32.totalorder %s161, %s175
    %p177 = scmp.eq.s32.totalorder %s20, 0
    %p178 = por %p176, %p177
    %s180 = sadd.s32 %s179, 1
    %p183 = scmp.eq.s32.totalorder %s14, 1
    %p184 = scmp.ne.s32.totalorder %s179, %s181
    %p185 = scmp.eq.s32.totalorder %s14, 0
    %p186 = por %p184, %p185
    %p187 = scmp.ne.s32.totalorder %s179, %s181
    %p188 = scmp.eq.s32.totalorder %s19, 1
    %p189 = por %p187, %p188
    %p190 = scmp.ne.s32.totalorder %s181, %s182
    %p191 = scmp.eq.s32.totalorder %s19, 0
    %p192 = por %p190, %p191
    %p193 = scmp.ne.s32.totalorder %s181, %s182
    %p194 = scmp.eq.s32.totalorder %s20, 1
    %p195 = por %p193, %p194
    %p197 = scmp.ne.s32.totalorder %s182, %s196
    %p198 = scmp.eq.s32.totalorder %s20, 0
    %p199 = por %p197, %p198
    %s200 = ssub.s32 %s14, %s21
    %p201 = scmp.eq.s32.totalorder %s200, 0
    %s203 = sadd.s32 %s202, 1
    %s204 = scalar_select %p201, %s202, %s203
    %p207 = pneg %p201
    %p208 = scmp.eq.s32.totalorder %s14, 1
    %p209 = por %p207, %p208
    %p210 = scmp.ne.s32.totalorder %s202, %s205
    %p211 = scmp.eq.s32.totalorder %s14, 0
    %p212 = por %p210, %p211
    %p213 = scmp.ne.s32.totalorder %s202, %s205
    %p214 = scmp.eq.s32.totalorder %s19, 1
    %p215 = por %p213, %p214
    %p216 = scmp.ne.s32.totalorder %s205, %s206
    %p217 = scmp.eq.s32.totalorder %s19, 0
    %p218 = por %p216, %p217
    %p219 = scmp.ne.s32.totalorder %s205, %s206
    %p220 = scmp.eq.s32.totalorder %s20, 1
    %p221 = por %p219, %p220
    %p223 = scmp.ne.s32.totalorder %s206, %s222
    %p224 = scmp.eq.s32.totalorder %s20, 0
    %p225 = por %p223, %p224
    %p226 = scmp.le.s32.totalorder 1, %s14
    %p227 = scmp.lt.s32.totalorder %s14, 3
    %p228 = pnand %p226, %p227
    %p229 = pneg %p228
    // Predicated region
    $region9: #{forward.13} parent=5 // pred_check
      _
    $region10: #{forward.13} parent=5 // pred_check_branch
      %231 = sbr.rel (%p228) target = $region12
    $region11: #{forward.13} parent=5 // pred_region
      %s232 = ssub.s32 %s14, 1
      // Predicated region
      $region13: #{forward.13} parent=11 // pred_check
        %p233 = pneg %p87
      $region14: #{forward.13} parent=11 // pred_check_branch
        %235 = sbr.rel (%p233) target = $region16
      $region15: #{forward.13} parent=11 // pred_region
        _
      $region16: #{forward.13} parent=11 // pred_fallthru
        _
      // Predicated region
      $region17: #{forward.13} parent=11 // pred_check
        %p236 = pneg %p108
      $region18: #{forward.13} parent=11 // pred_check_branch
        %238 = sbr.rel (%p236) target = $region20
      $region19: #{forward.13} parent=11 // pred_region
        _
      $region20: #{forward.13} parent=11 // pred_fallthru
        _
      // Predicated region
      $region21: #{forward.13} parent=11 // pred_check
        %p239 = pneg %p129
      $region22: #{forward.13} parent=11 // pred_check_branch
        %241 = sbr.rel (%p239) target = $region24
      $region23: #{forward.13} parent=11 // pred_region
        _
      $region24: #{forward.13} parent=11 // pred_fallthru
        _
      // Predicated region
      $region25: #{forward.13} parent=11 // pred_check
        %p242 = pneg %p150
      $region26: #{forward.13} parent=11 // pred_check_branch
        %244 = sbr.rel (%p242) target = $region28
      $region27: #{forward.13} parent=11 // pred_region
        _
      $region28: #{forward.13} parent=11 // pred_fallthru
        _
      // Predicated region
      $region29: #{forward.13} parent=11 // pred_check
        %p245 = pneg %p171
      $region30: #{forward.13} parent=11 // pred_check_branch
        %247 = sbr.rel (%p245) target = $region32
      $region31: #{forward.13} parent=11 // pred_region
        _
      $region32: #{forward.13} parent=11 // pred_fallthru
        _
      // Predicated region
      $region33: #{forward.13} parent=11 // pred_check
        %p248 = pneg %p192
      $region34: #{forward.13} parent=11 // pred_check_branch
        %250 = sbr.rel (%p248) target = $region36
      $region35: #{forward.13} parent=11 // pred_region
        _
      $region36: #{forward.13} parent=11 // pred_fallthru
        _
    $region12: #{forward.13} parent=5 // pred_fallthru
      _
    %p251 = scmp.lt.s32.totalorder %s14, 2
    // Predicated region
    $region37: #{forward.13} parent=5 // pred_check
      %p252 = pneg %p251
    $region38: #{forward.13} parent=5 // pred_check_branch
      %254 = sbr.rel (%p252) target = $region40
    $region39: #{forward.13} parent=5 // pred_region
      // Predicated region
      $region41: #{forward.13} parent=39 // pred_check
        %p255 = pneg %p34
      $region42: #{forward.13} parent=39 // pred_check_branch
        %257 = sbr.rel (%p255) target = $region44
      $region43: #{forward.13} parent=39 // pred_region
        %s258 = smul.u32 8, %s14
        %p259 = scmp.lt.s32.totalorder %s258, 15
        %s260 = scalar_select %p259, %s258, 15
        %s261 = smul.addr %s260, 4
        %s262 = scalar_lea.vmem %s0, %s261
        %s263 = smul.u32 8, %s14
      $region44: #{forward.13} parent=39 // pred_fallthru
        _
      // Predicated region
      $region45: #{forward.13} parent=39 // pred_check
        %p264 = pneg %p60
      $region46: #{forward.13} parent=39 // pred_check_branch
        %266 = sbr.rel (%p264) target = $region48
      $region47: #{forward.13} parent=39 // pred_region
        %s267 = smul.u32 8, %s14
        %p268 = scmp.lt.s32.totalorder %s267, 15
        %s269 = scalar_select %p268, %s267, 15
        %s270 = smul.addr %s269, 4
        %s271 = scalar_lea.vmem %s1, %s270
        %s272 = smul.u32 8, %s14
      $region48: #{forward.13} parent=39 // pred_fallthru
        _
    $region40: #{forward.13} parent=5 // pred_fallthru
      _
    %p273 = scmp.le.s32.totalorder 1, %s14
    %p274 = scmp.lt.s32.totalorder %s14, 3
    %p275 = pnand %p273, %p274
    %p276 = pneg %p275
    // Predicated region
    $region49: #{forward.13} parent=5 // pred_check
      _
    $region50: #{forward.13} parent=5 // pred_check_branch
      %278 = sbr.rel (%p275) target = $region52
    $region51: #{forward.13} parent=5 // pred_region
      %s279 = ssub.s32 %s14, 1
      %s280 = smul.u32 8, %s19
      %p281 = scmp.lt.s32.totalorder %s280, 15
      %s282 = scalar_select %p281, %s280, 15
      %s283 = smul.addr %s282, 4
      %s284 = scalar_lea.vmem %s0, %s283
      %p285 = pneg %p40
      %p286 = pneg %p37
      %s287 = smul.u32 8, %s19
      %p288 = scmp.lt.s32.totalorder %s287, 15
      %s289 = scalar_select %p288, %s287, 15
      %s290 = smul.addr %s289, 4
      %s291 = scalar_lea.vmem %s1, %s290
      %p292 = pneg %p66
      %p293 = pneg %p63
      %p294 = pneg %p87
      %p295 = pneg %p84
      %p296 = pneg %p108
      %p297 = pneg %p105
      %p298 = pneg %p129
      %p299 = pneg %p126
      %p300 = pneg %p150
      %p301 = pneg %p147
      %p302 = pneg %p171
      %p303 = pneg %p168
      %p304 = pneg %p192
      %p305 = pneg %p189
      %p306 = pneg %p218
      %p307 = pneg %p215
      %s308 = smul.u32 8, %s19
      %p309 = scmp.lt.s32.totalorder %s308, 15
      %s310 = scalar_select %p309, %s308, 15
      %s311 = smul.addr %s310, 4
      %s312 = scalar_lea.vmem %s8, %s311
      %s313 = smul.u32 8, %s19
      %p314 = scmp.lt.s32.totalorder %s313, 15
      %s315 = scalar_select %p314, %s313, 15
      %s316 = smul.addr %s315, 4
      %s317 = scalar_lea.vmem %s0, %s316
      %s318 = smul.u32 8, %s19
      %s319 = smul.u32 8, %s19
      %p320 = scmp.lt.s32.totalorder %s319, 15
      %s321 = scalar_select %p320, %s319, 15
      %s322 = smul.addr %s321, 4
      %s323 = scalar_lea.vmem %s1, %s322
      %s324 = smul.u32 8, %s19
      %s325 = smul.u32 8, %s19
      %p326 = scmp.lt.s32.totalorder %s325, 15
      %s327 = scalar_select %p326, %s325, 15
      %s328 = smul.addr %s327, 4
      %s329 = scalar_lea.vmem %s8, %s328
      %s330 = smul.u32 8, %s19
      %v332 = vld [vmem:[%s317] sm:$0xf]
      %v333 = vld [vmem:[%s317 + $0x4] sm:$0xf]
      %v334 = vld [vmem:[%s317 + $0x8] sm:$0xf]
      %v335 = vld [vmem:[%s317 + $0xc] sm:$0xf]
      %v336 = vld [vmem:[%s317 + $0x10] sm:$0xf]
      %v337 = vld [vmem:[%s317 + $0x14] sm:$0xf]
      %v338 = vld [vmem:[%s317 + $0x18] sm:$0xf]
      %v339 = vld [vmem:[%s317 + $0x1c] sm:$0xf]
      %v340 = vunpack.c.l.bf16 %v332
      %v341 = vunpack.c.l.bf16 %v333
      %v342 = vunpack.c.l.bf16 %v334
      %v343 = vunpack.c.l.bf16 %v335
      %v344 = vunpack.c.l.bf16 %v336
      %v345 = vunpack.c.l.bf16 %v337
      %v346 = vunpack.c.l.bf16 %v338
      %v347 = vunpack.c.l.bf16 %v339
      %v348 = vld [vmem:[%s323] sm:$0xf]
      %v349 = vld [vmem:[%s323 + $0x4] sm:$0xf]
      %v350 = vld [vmem:[%s323 + $0x8] sm:$0xf]
      %v351 = vld [vmem:[%s323 + $0xc] sm:$0xf]
      %v352 = vld [vmem:[%s323 + $0x10] sm:$0xf]
      %v353 = vld [vmem:[%s323 + $0x14] sm:$0xf]
      %v354 = vld [vmem:[%s323 + $0x18] sm:$0xf]
      %v355 = vld [vmem:[%s323 + $0x1c] sm:$0xf]
      %v356 = vunpack.c.l.bf16 %v348
      %v357 = vunpack.c.l.bf16 %v349
      %v358 = vunpack.c.l.bf16 %v350
      %v359 = vunpack.c.l.bf16 %v351
      %v360 = vunpack.c.l.bf16 %v352
      %v361 = vunpack.c.l.bf16 %v353
      %v362 = vunpack.c.l.bf16 %v354
      %v363 = vunpack.c.l.bf16 %v355
      %v364 = vadd.f32 %v340, %v356
      %v365 = vadd.f32 %v341, %v357
      %v366 = vadd.f32 %v342, %v358
      %v367 = vadd.f32 %v343, %v359
      %v368 = vadd.f32 %v344, %v360
      %v369 = vadd.f32 %v345, %v361
      %v370 = vadd.f32 %v346, %v362
      %v371 = vadd.f32 %v347, %v363
      %v372 = vld [vmem:[%s2] sm:$0x1]
      %v373 = vld [vmem:[%s3] sm:$0x1]
      %vm374 = vcmask 261120
      %v375 = vsel %vm374, %v364, 0.0
      %376 = vadd.xlane.f32.xlu0 %v375
      %v377 = vpop.xlane.xlu0 %376
      %v378 = vsel %vm374, %v365, 0.0
      %379 = vadd.xlane.f32.xlu0 %v378
      %v380 = vpop.xlane.xlu0 %379
      %v381 = vsel %vm374, %v366, 0.0
      %382 = vadd.xlane.f32.xlu0 %v381
      %v383 = vpop.xlane.xlu0 %382
      %v384 = vsel %vm374, %v367, 0.0
      %385 = vadd.xlane.f32.xlu0 %v384
      %v386 = vpop.xlane.xlu0 %385
      %v387 = vsel %vm374, %v368, 0.0
      %388 = vadd.xlane.f32.xlu0 %v387
      %v389 = vpop.xlane.xlu0 %388
      %v390 = vsel %vm374, %v369, 0.0
      %391 = vadd.xlane.f32.xlu0 %v390
      %v392 = vpop.xlane.xlu0 %391
      %v393 = vsel %vm374, %v370, 0.0
      %394 = vadd.xlane.f32.xlu0 %v393
      %v395 = vpop.xlane.xlu0 %394
      %v396 = vsel %vm374, %v371, 0.0
      %397 = vadd.xlane.f32.xlu0 %v396
      %v398 = vpop.xlane.xlu0 %397
      %v399 = vrcp.pop 32.0
      %v400 = vmul.f32 32.0, %v399
      %v401 = vsub.f32 1.0, %v400
      %v402 = vmul.f32 %v399, %v401
      %v403 = vadd.f32 %v399, %v402
      %vm404 = vweird.f32 %v399
      %v405 = vsel %vm404, %v399, %v403
      %v406 = vmul.f32 %v377, %v405
      %v407 = vmul.f32 %v380, %v405
      %v408 = vmul.f32 %v383, %v405
      %v409 = vmul.f32 %v386, %v405
      %v410 = vmul.f32 %v389, %v405
      %v411 = vmul.f32 %v392, %v405
      %v412 = vmul.f32 %v395, %v405
      %v413 = vmul.f32 %v398, %v405
      %v414 = vsub.f32 %v364, %v406
      %v415 = vsub.f32 %v365, %v407
      %v416 = vsub.f32 %v366, %v408
      %v417 = vsub.f32 %v367, %v409
      %v418 = vsub.f32 %v368, %v410
      %v419 = vsub.f32 %v369, %v411
      %v420 = vsub.f32 %v370, %v412
      %v421 = vsub.f32 %v371, %v413
      %v422 = vmul.f32 %v414, %v414
      %v423 = vmul.f32 %v415, %v415
      %v424 = vmul.f32 %v416, %v416
      %v425 = vmul.f32 %v417, %v417
      %v426 = vmul.f32 %v418, %v418
      %v427 = vmul.f32 %v419, %v419
      %v428 = vmul.f32 %v420, %v420
      %v429 = vmul.f32 %v421, %v421
      %v430 = vsel %vm374, %v422, 0.0
      %431 = vadd.xlane.f32.xlu0 %v430
      %v432 = vpop.xlane.xlu0 %431
      %v433 = vsel %vm374, %v423, 0.0
      %434 = vadd.xlane.f32.xlu0 %v433
      %v435 = vpop.xlane.xlu0 %434
      %v436 = vsel %vm374, %v424, 0.0
      %437 = vadd.xlane.f32.xlu0 %v436
      %v438 = vpop.xlane.xlu0 %437
      %v439 = vsel %vm374, %v425, 0.0
      %440 = vadd.xlane.f32.xlu0 %v439
      %v441 = vpop.xlane.xlu0 %440
      %v442 = vsel %vm374, %v426, 0.0
      %443 = vadd.xlane.f32.xlu0 %v442
      %v444 = vpop.xlane.xlu0 %443
      %v445 = vsel %vm374, %v427, 0.0
      %446 = vadd.xlane.f32.xlu0 %v445
      %v447 = vpop.xlane.xlu0 %446
      %v448 = vsel %vm374, %v428, 0.0
      %449 = vadd.xlane.f32.xlu0 %v448
      %v450 = vpop.xlane.xlu0 %449
      %v451 = vsel %vm374, %v429, 0.0
      %452 = vadd.xlane.f32.xlu0 %v451
      %v453 = vpop.xlane.xlu0 %452
      %v454 = vmul.f32 %v432, %v405
      %v455 = vmul.f32 %v435, %v405
      %v456 = vmul.f32 %v438, %v405
      %v457 = vmul.f32 %v441, %v405
      %v458 = vmul.f32 %v444, %v405
      %v459 = vmul.f32 %v447, %v405
      %v460 = vmul.f32 %v450, %v405
      %v461 = vmul.f32 %v453, %v405
      %v462 = vadd.f32 %v454, 1e-05
      %v463 = vadd.f32 %v455, 1e-05
      %v464 = vadd.f32 %v456, 1e-05
      %v465 = vadd.f32 %v457, 1e-05
      %v466 = vadd.f32 %v458, 1e-05
      %v467 = vadd.f32 %v459, 1e-05
      %v468 = vadd.f32 %v460, 1e-05
      %v469 = vadd.f32 %v461, 1e-05
      %v470 = vrsqrt.pop %v462
      %v471 = vmul.f32 %v470, %v462
      %v472 = vmul.f32 %v471, %v470
      %v473 = vmul.f32 0.5, %v472
      %v474 = vsub.f32 1.5, %v473
      %v475 = vmul.f32 %v470, %v474
      %vm476 = vweird.f32 %v462
      %vm477 = vweird.f32 %v470
      %vm478 = vmor %vm476, %vm477
      %v479 = vsel %vm478, %v470, %v475
      %v480 = vrsqrt.pop %v463
      %v481 = vmul.f32 %v480, %v463
      %v482 = vmul.f32 %v481, %v480
      %v483 = vmul.f32 0.5, %v482
      %v484 = vsub.f32 1.5, %v483
      %v485 = vmul.f32 %v480, %v484
      %vm486 = vweird.f32 %v463
      %vm487 = vweird.f32 %v480
      %vm488 = vmor %vm486, %vm487
      %v489 = vsel %vm488, %v480, %v485
      %v490 = vrsqrt.pop %v464
      %v491 = vmul.f32 %v490, %v464
      %v492 = vmul.f32 %v491, %v490
      %v493 = vmul.f32 0.5, %v492
      %v494 = vsub.f32 1.5, %v493
      %v495 = vmul.f32 %v490, %v494
      %vm496 = vweird.f32 %v464
      %vm497 = vweird.f32 %v490
      %vm498 = vmor %vm496, %vm497
      %v499 = vsel %vm498, %v490, %v495
      %v500 = vrsqrt.pop %v465
      %v501 = vmul.f32 %v500, %v465
      %v502 = vmul.f32 %v501, %v500
      %v503 = vmul.f32 0.5, %v502
      %v504 = vsub.f32 1.5, %v503
      %v505 = vmul.f32 %v500, %v504
      %vm506 = vweird.f32 %v465
      %vm507 = vweird.f32 %v500
      %vm508 = vmor %vm506, %vm507
      %v509 = vsel %vm508, %v500, %v505
      %v510 = vrsqrt.pop %v466
      %v511 = vmul.f32 %v510, %v466
      %v512 = vmul.f32 %v511, %v510
      %v513 = vmul.f32 0.5, %v512
      %v514 = vsub.f32 1.5, %v513
      %v515 = vmul.f32 %v510, %v514
      %vm516 = vweird.f32 %v466
      %vm517 = vweird.f32 %v510
      %vm518 = vmor %vm516, %vm517
      %v519 = vsel %vm518, %v510, %v515
      %v520 = vrsqrt.pop %v467
      %v521 = vmul.f32 %v520, %v467
      %v522 = vmul.f32 %v521, %v520
      %v523 = vmul.f32 0.5, %v522
      %v524 = vsub.f32 1.5, %v523
      %v525 = vmul.f32 %v520, %v524
      %vm526 = vweird.f32 %v467
      %vm527 = vweird.f32 %v520
      %vm528 = vmor %vm526, %vm527
      %v529 = vsel %vm528, %v520, %v525
      %v530 = vrsqrt.pop %v468
      %v531 = vmul.f32 %v530, %v468
      %v532 = vmul.f32 %v531, %v530
      %v533 = vmul.f32 0.5, %v532
      %v534 = vsub.f32 1.5, %v533
      %v535 = vmul.f32 %v530, %v534
      %vm536 = vweird.f32 %v468
      %vm537 = vweird.f32 %v530
      %vm538 = vmor %vm536, %vm537
      %v539 = vsel %vm538, %v530, %v535
      %v540 = vrsqrt.pop %v469
      %v541 = vmul.f32 %v540, %v469
      %v542 = vmul.f32 %v541, %v540
      %v543 = vmul.f32 0.5, %v542
      %v544 = vsub.f32 1.5, %v543
      %v545 = vmul.f32 %v540, %v544
      %vm546 = vweird.f32 %v469
      %vm547 = vweird.f32 %v540
      %vm548 = vmor %vm546, %vm547
      %v549 = vsel %vm548, %v540, %v545
      %v550 = vmul.f32 %v414, %v479
      %v551 = vmul.f32 %v415, %v489
      %v552 = vmul.f32 %v416, %v499
      %v553 = vmul.f32 %v417, %v509
      %v554 = vmul.f32 %v418, %v519
      %v555 = vmul.f32 %v419, %v529
      %v556 = vmul.f32 %v420, %v539
      %v557 = vmul.f32 %v421, %v549
      %v559 = vperm.slane %v372, 0
      %v561 = vmul.f32 %v550, %v559
      %v562 = vmul.f32 %v551, %v559
      %v563 = vmul.f32 %v552, %v559
      %v564 = vmul.f32 %v553, %v559
      %v565 = vmul.f32 %v554, %v559
      %v566 = vmul.f32 %v555, %v559
      %v567 = vmul.f32 %v556, %v559
      %v568 = vmul.f32 %v557, %v559
      %v570 = vperm.slane %v373, 0
      %v572 = vadd.f32 %v561, %v570
      %v573 = vadd.f32 %v562, %v570
      %v574 = vadd.f32 %v563, %v570
      %v575 = vadd.f32 %v564, %v570
      %v576 = vadd.f32 %v565, %v570
      %v577 = vadd.f32 %v566, %v570
      %v578 = vadd.f32 %v567, %v570
      %v579 = vadd.f32 %v568, %v570
      %v580 = vld [vmem:[%s4] sm:$0xf]
      %v581 = vld [vmem:[%s4 + $0x4] sm:$0xf]
      %v582 = vld [vmem:[%s4 + $0x8] sm:$0xf]
      %v583 = vld [vmem:[%s4 + $0xc] sm:$0xf]
      %v584 = vpack.c.bf16 %v573, %v572
      %v585 = vpack.c.bf16 %v575, %v574
      %v586 = vpack.c.bf16 %v577, %v576
      %v587 = vpack.c.bf16 %v579, %v578
      %v588 = vld [vmem:[%s5] sm:$0x1]
      %v590 = vperm.slane %v588, 0
      %v596 = vunpack.c.l.b16 %v580
      %v597 = vunpack.c.l.b16 %v581
      %v598 = vunpack.c.l.b16 %v582
      %v599 = vunpack.c.l.b16 %v583
      %v600 = vpack.c.b16 %v597, %v596
      %v601 = vpack.c.b16 %v599, %v598
      %v605 = vsel %vm374, %v584, 0
      %v608 = vsel %vm374, %v585, 0
      %v611 = vsel %vm374, %v586, 0
      %v614 = vsel %vm374, %v587, 0
      %616 = vmatpush.bf16.msra.mxu0 0
      %617 = vmatpush.bf16.msra.mxu0 0
      %618 = vmatpush.bf16.msra.mxu0 0
      %619 = vmatpush.bf16.msra.mxu0 0
      %620 = vmatpush.bf16.msra.mxu0 0
      %621 = vmatpush.bf16.msra.mxu0 0
      %622 = vmatpush.bf16.msra.mxu0 %v601
      %623 = vmatpush.bf16.msra.mxu0 %v600
      %624 = vmatmul.bf16.gmra.mxu0 %v605
      %v625 = vpop.f32.mrf.mxu0
      %v626 = vadd.f32 %v590, %v625
      %v627 = vpop.f32.mrf.mxu0
      %v628 = vadd.f32 %v590, %v627
      %629 = vmatmul.bf16.gmra.mxu0 %v608
      %v630 = vpop.f32.mrf.mxu0
      %v631 = vadd.f32 %v590, %v630
      %v632 = vpop.f32.mrf.mxu0
      %v633 = vadd.f32 %v590, %v632
      %634 = vmatmul.bf16.gmra.mxu0 %v611
      %v635 = vpop.f32.mrf.mxu0
      %v636 = vadd.f32 %v590, %v635
      %v637 = vpop.f32.mrf.mxu0
      %v638 = vadd.f32 %v590, %v637
      %639 = vmatmul.bf16.gmra.mxu0 %v614
      %v640 = vpop.f32.mrf.mxu0
      %v641 = vadd.f32 %v590, %v640
      %v642 = vpop.f32.mrf.mxu0
      %v643 = vadd.f32 %v590, %v642
      %644 = vdwg.mxu0
      %v645 = vmul.f32 %v626, %v626
      %v646 = vmul.f32 %v628, %v628
      %v647 = vmul.f32 %v631, %v631
      %v648 = vmul.f32 %v633, %v633
      %v649 = vmul.f32 %v636, %v636
      %v650 = vmul.f32 %v638, %v638
      %v651 = vmul.f32 %v641, %v641
      %v652 = vmul.f32 %v643, %v643
      %v653 = vmul.f32 %v626, %v645
      %v654 = vmul.f32 %v628, %v646
      %v655 = vmul.f32 %v631, %v647
      %v656 = vmul.f32 %v633, %v648
      %v657 = vmul.f32 %v636, %v649
      %v658 = vmul.f32 %v638, %v650
      %v659 = vmul.f32 %v641, %v651
      %v660 = vmul.f32 %v643, %v652
      %v661 = vmul.f32 %v653, 0.044715
      %v662 = vmul.f32 %v654, 0.044715
      %v663 = vmul.f32 %v655, 0.044715
      %v664 = vmul.f32 %v656, 0.044715
      %v665 = vmul.f32 %v657, 0.044715
      %v666 = vmul.f32 %v658, 0.044715
      %v667 = vmul.f32 %v659, 0.044715
      %v668 = vmul.f32 %v660, 0.044715
      %v669 = vadd.f32 %v626, %v661
      %v670 = vadd.f32 %v628, %v662
      %v671 = vadd.f32 %v631, %v663
      %v672 = vadd.f32 %v633, %v664
      %v673 = vadd.f32 %v636, %v665
      %v674 = vadd.f32 %v638, %v666
      %v675 = vadd.f32 %v641, %v667
      %v676 = vadd.f32 %v643, %v668
      %v677 = vmul.f32 %v669, 0.7978846
      %v678 = vmul.f32 %v670, 0.7978846
      %v679 = vmul.f32 %v671, 0.7978846
      %v680 = vmul.f32 %v672, 0.7978846
      %v681 = vmul.f32 %v673, 0.7978846
      %v682 = vmul.f32 %v674, 0.7978846
      %v683 = vmul.f32 %v675, 0.7978846
      %v684 = vmul.f32 %v676, 0.7978846
      %v685 = vtanh.pop %v677
      %v686 = vtanh.pop %v678
      %v687 = vtanh.pop %v679
      %v688 = vtanh.pop %v680
      %v689 = vtanh.pop %v681
      %v690 = vtanh.pop %v682
      %v691 = vtanh.pop %v683
      %v692 = vtanh.pop %v684
      %v693 = vadd.f32 %v685, 1.0
      %v694 = vadd.f32 %v686, 1.0
      %v695 = vadd.f32 %v687, 1.0
      %v696 = vadd.f32 %v688, 1.0
      %v697 = vadd.f32 %v689, 1.0
      %v698 = vadd.f32 %v690, 1.0
      %v699 = vadd.f32 %v691, 1.0
      %v700 = vadd.f32 %v692, 1.0
      %v701 = vmul.f32 %v693, 0.5
      %v702 = vmul.f32 %v694, 0.5
      %v703 = vmul.f32 %v695, 0.5
      %v704 = vmul.f32 %v696, 0.5
      %v705 = vmul.f32 %v697, 0.5
      %v706 = vmul.f32 %v698, 0.5
      %v707 = vmul.f32 %v699, 0.5
      %v708 = vmul.f32 %v700, 0.5
      %v709 = vmul.f32 %v626, %v701
      %v710 = vmul.f32 %v628, %v702
      %v711 = vmul.f32 %v631, %v703
      %v712 = vmul.f32 %v633, %v704
      %v713 = vmul.f32 %v636, %v705
      %v714 = vmul.f32 %v638, %v706
      %v715 = vmul.f32 %v641, %v707
      %v716 = vmul.f32 %v643, %v708
      %v717 = vld [vmem:[%s6] sm:$0xf]
      %v718 = vld [vmem:[%s6 + $0x4] sm:$0xf]
      %v719 = vld [vmem:[%s6 + $0x8] sm:$0xf]
      %v720 = vld [vmem:[%s6 + $0xc] sm:$0xf]
      %v721 = vld [vmem:[%s6 + $0x10] sm:$0xf]
      %v722 = vld [vmem:[%s6 + $0x14] sm:$0xf]
      %v723 = vld [vmem:[%s6 + $0x18] sm:$0xf]
      %v724 = vld [vmem:[%s6 + $0x1c] sm:$0xf]
      %v725 = vld [vmem:[%s6 + $0x20] sm:$0xf]
      %v726 = vld [vmem:[%s6 + $0x24] sm:$0xf]
      %v727 = vld [vmem:[%s6 + $0x28] sm:$0xf]
      %v728 = vld [vmem:[%s6 + $0x2c] sm:$0xf]
      %v729 = vld [vmem:[%s6 + $0x30] sm:$0xf]
      %v730 = vld [vmem:[%s6 + $0x34] sm:$0xf]
      %v731 = vld [vmem:[%s6 + $0x38] sm:$0xf]
      %v732 = vld [vmem:[%s6 + $0x3c] sm:$0xf]
      %v733 = vpack.c.bf16 %v710, %v709
      %v734 = vpack.c.bf16 %v712, %v711
      %v735 = vpack.c.bf16 %v714, %v713
      %v736 = vpack.c.bf16 %v716, %v715
      %v737 = vld [vmem:[%s7] sm:$0x1]
      %v739 = vperm.slane %v737, 0
      %v757 = vunpack.c.l.b16 %v717
      %v758 = vunpack.c.l.b16 %v718
      %v759 = vunpack.c.l.b16 %v719
      %v760 = vunpack.c.l.b16 %v720
      %v761 = vunpack.c.l.b16 %v721
      %v762 = vunpack.c.l.b16 %v722
      %v763 = vunpack.c.l.b16 %v723
      %v764 = vunpack.c.l.b16 %v724
      %v765 = vunpack.c.l.b16 %v725
      %v766 = vunpack.c.l.b16 %v726
      %v767 = vunpack.c.l.b16 %v727
      %v768 = vunpack.c.l.b16 %v728
      %v769 = vunpack.c.l.b16 %v729
      %v770 = vunpack.c.l.b16 %v730
      %v771 = vunpack.c.l.b16 %v731
      %v772 = vunpack.c.l.b16 %v732
      %v773 = vpack.c.b16 %v758, %v757
      %v774 = vpack.c.b16 %v760, %v759
      %v775 = vpack.c.b16 %v762, %v761
      %v776 = vpack.c.b16 %v764, %v763
      %v777 = vpack.c.b16 %v766, %v765
      %v778 = vpack.c.b16 %v768, %v767
      %v779 = vpack.c.b16 %v770, %v769
      %v780 = vpack.c.b16 %v772, %v771
      %789 = vmatpush.bf16.msra.mxu0 %v780
      %790 = vmatpush.bf16.msra.mxu0 %v779
      %791 = vmatpush.bf16.msra.mxu0 %v778
      %792 = vmatpush.bf16.msra.mxu0 %v777
      %793 = vmatpush.bf16.msra.mxu0 %v776
      %794 = vmatpush.bf16.msra.mxu0 %v775
      %795 = vmatpush.bf16.msra.mxu0 %v774
      %796 = vmatpush.bf16.msra.mxu0 %v773
      %797 = vmatmul.bf16.gmra.mxu0 %v733
      %v798 = vpop.f32.mrf.mxu0
      %v799 = vadd.f32 %v739, %v798
      %v800 = vpop.f32.mrf.mxu0
      %v801 = vadd.f32 %v739, %v800
      %802 = vmatmul.bf16.gmra.mxu0 %v734
      %v803 = vpop.f32.mrf.mxu0
      %v804 = vadd.f32 %v739, %v803
      %v805 = vpop.f32.mrf.mxu0
      %v806 = vadd.f32 %v739, %v805
      %807 = vmatmul.bf16.gmra.mxu0 %v735
      %v808 = vpop.f32.mrf.mxu0
      %v809 = vadd.f32 %v739, %v808
      %v810 = vpop.f32.mrf.mxu0
      %v811 = vadd.f32 %v739, %v810
      %812 = vmatmul.bf16.gmra.mxu0 %v736
      %v813 = vpop.f32.mrf.mxu0
      %v814 = vadd.f32 %v739, %v813
      %v815 = vpop.f32.mrf.mxu0
      %v816 = vadd.f32 %v739, %v815
      %817 = vdwg.mxu0
      %v818 = vadd.f32 %v364, %v799
      %v819 = vadd.f32 %v365, %v801
      %v820 = vadd.f32 %v366, %v804
      %v821 = vadd.f32 %v367, %v806
      %v822 = vadd.f32 %v368, %v809
      %v823 = vadd.f32 %v369, %v811
      %v824 = vadd.f32 %v370, %v814
      %v825 = vadd.f32 %v371, %v816
      %v826 = vpack.c.bf16 %v818, %v818
      %v827 = vpack.c.bf16 %v819, %v819
      %v828 = vpack.c.bf16 %v820, %v820
      %v829 = vpack.c.bf16 %v821, %v821
      %v830 = vpack.c.bf16 %v822, %v822
      %v831 = vpack.c.bf16 %v823, %v823
      %v832 = vpack.c.bf16 %v824, %v824
      %v833 = vpack.c.bf16 %v825, %v825
      %vm834 = vcmask 257024
      %835 = vst.msk [vmem:[%s329] sm:$0xf] %vm834, %v826
      %836 = vst.msk [vmem:[%s329 + $0x4] sm:$0xf] %vm834, %v827
      %837 = vst.msk [vmem:[%s329 + $0x8] sm:$0xf] %vm834, %v828
      %838 = vst.msk [vmem:[%s329 + $0xc] sm:$0xf] %vm834, %v829
      %839 = vst.msk [vmem:[%s329 + $0x10] sm:$0xf] %vm834, %v830
      %840 = vst.msk [vmem:[%s329 + $0x14] sm:$0xf] %vm834, %v831
      %841 = vst.msk [vmem:[%s329 + $0x18] sm:$0xf] %vm834, %v832
      %842 = vst.msk [vmem:[%s329 + $0x1c] sm:$0xf] %vm834, %v833
      %s843 = smul.u32 8, %s19
      %p844 = scmp.lt.s32.totalorder %s843, 15
      %s845 = scalar_select %p844, %s843, 15
      %s846 = smul.addr %s845, 4
      %s847 = scalar_lea.vmem %s8, %s846
      // Predicated region
      $region53: #{forward.13} parent=51 // pred_check
        %p848 = pneg %p215
      $region54: #{forward.13} parent=51 // pred_check_branch
        %850 = sbr.rel (%p848) target = $region56
      $region55: #{forward.13} parent=51 // pred_region
        %s851 = smul.u32 8, %s19
      $region56: #{forward.13} parent=51 // pred_fallthru
        _
    $region52: #{forward.13} parent=5 // pred_fallthru
      _
    %p852 = scmp.le.s32.totalorder 2, %s14
    // Predicated region
    $region57: #{forward.13} parent=5 // pred_check
      %p853 = pneg %p852
    $region58: #{forward.13} parent=5 // pred_check_branch
      %855 = sbr.rel (%p853) target = $region60
    $region59: #{forward.13} parent=5 // pred_region
      %s856 = ssub.s32 %s14, 2
      // Predicated region
      $region61: #{forward.13} parent=59 // pred_check
        %p857 = pneg %p221
      $region62: #{forward.13} parent=59 // pred_check_branch
        %859 = sbr.rel (%p857) target = $region64
      $region63: #{forward.13} parent=59 // pred_region
        %s860 = smul.u32 8, %s20
        %p861 = scmp.lt.s32.totalorder %s860, 15
        %s862 = scalar_select %p861, %s860, 15
        %s863 = smul.addr %s862, 4
        %s864 = scalar_lea.vmem %s8, %s863
      $region64: #{forward.13} parent=59 // pred_fallthru
        _
    $region60: #{forward.13} parent=5 // pred_fallthru
      _
  $region6: #{forward.13} parent=0 // loop_footer
    %s18 = sadd.s32 1, %s14
  $region7: #{forward.13} parent=0 // loop_footer_branch
    %13 = sbr.rel target = $region3
  $region8: #{forward.13} parent=0 // loop_exit
    _

// kernel: forward.14
$region0: #{forward.14}
  #allocation0 [shape = 'u32[]', space=smem, size = 0x4, offset = 0x4, fixed_abs, tag = 'smem constant byte address 0x4 - core index']
  #allocation1 [shape = 'u32[72,128]{1,0:T(1,128)}', space=vmem, size = 0x9000, scoped, tag = 'internal scratch']
  %s0 = inlined_call_operand.vmem [shape: bf16[8,16,32], index: 0, kind: input, shape index: {}]
  %s1 = inlined_call_operand.vmem [shape: f32[1,32], index: 1, kind: input, shape index: {}]
  %s2 = inlined_call_operand.vmem [shape: f32[1,32], index: 2, kind: input, shape index: {}]
  %s3 = inlined_call_operand.vmem [shape: bf16[32,96], index: 3, kind: input, shape index: {}]
  %s4 = inlined_call_operand.vmem [shape: f32[1,96], index: 4, kind: input, shape index: {}]
  %s5 = inlined_call_operand.vmem [shape: bf16[32,32], index: 5, kind: input, shape index: {}]
  %s6 = inlined_call_operand.vmem [shape: f32[1,32], index: 6, kind: input, shape index: {}]
  %s7 = inlined_call_operand.vmem [shape: f32[2,16,16], index: 7, kind: input, shape index: {}]
  %s8 = inlined_call_operand.vmem [shape: f32[4,16,16], index: 8, kind: input, shape index: {}]
  %s9 = inlined_call_operand.vmem [shape: bf16[8,16,32], index: 9, kind: output, shape index: {}]
  %s10 = sld [smem:[#allocation0]]
  $region69: #{forward.14} parent=0
    _
  %s12 = ssub.s32 1, %s10
  %s13 = scalar_select 0, %s12, %s10
  loop: start=0, step=1, limit=10
  $region2: #{forward.14} parent=0 // loop_pre_header
    _
  $region3: #{forward.14} parent=0 // loop_header
    %s15 = sphi 0, %s19
    %p16 = scmp.ge.s32.totalorder %s15, 10
    %s22 = sphi 0, %s34
    %s23 = sphi 0, %s30
    %s24 = sphi 0, %s22
    %s25 = sphi 0, %s23
    %s26 = sphi 0, %s24
    %s27 = sphi 0, %s25
    %s41 = sphi 0, %s43
    %s44 = sphi 0, %s41
    %s45 = sphi 0, %s44
    %s61 = sphi 0, %s45
    %s65 = sphi 0, %s65
    %s67 = sphi 0, %s65
    %s68 = sphi 0, %s67
    %s82 = sphi 0, %s68
    %s86 = sphi 0, %s86
    %s88 = sphi 0, %s86
    %s89 = sphi 0, %s88
    %s103 = sphi 0, %s89
    %s107 = sphi 0, %s107
    %s109 = sphi 0, %s107
    %s110 = sphi 0, %s109
    %s124 = sphi 0, %s110
    %s128 = sphi 0, %s128
    %s130 = sphi 0, %s128
    %s131 = sphi 0, %s130
    %s145 = sphi 0, %s131
    %s149 = sphi 0, %s149
    %s151 = sphi 0, %s149
    %s152 = sphi 0, %s151
    %s166 = sphi 0, %s152
    %s170 = sphi 0, %s170
    %s172 = sphi 0, %s170
    %s173 = sphi 0, %s172
    %s187 = sphi 0, %s173
    %s191 = sphi 0, %s191
    %s193 = sphi 0, %s191
    %s194 = sphi 0, %s193
    %s208 = sphi 0, %s194
    %s214 = sphi 0, %s216
    %s217 = sphi 0, %s214
    %s218 = sphi 0, %s217
    %s234 = sphi 0, %s218
    %s244 = sphi 0, %s246
    %s247 = sphi 0, %s244
    %s248 = sphi 0, %s247
    %s264 = sphi 0, %s248
  $region4: #{forward.14} parent=0 // loop_header_branch
    %18 = sbr.rel (%p16) target = $region8
  $region5: #{forward.14} parent=0 // loop_body
    %s20 = ssub.s32 %s15, 1
    %s21 = ssub.s32 %s15, 2
    %s28 = sadd.s32 1, %s23
    %p29 = scmp.ge.s32.totalorder %s28, 4
    %s30 = scalar_select %p29, 0, %s28
    %s31 = sadd.s32 1, %s22
    %s32 = scalar_select %p29, %s31, %s22
    %p33 = scmp.ge.s32.totalorder %s32, 2
    %s34 = scalar_select %p33, 0, %s32
    %s35 = smul.u32 %s22, 4
    %s36 = sadd.s32 %s35, %s23
    %s37 = smul.u32 %s34, 4
    %s38 = sadd.s32 %s37, %s30
    %s39 = ssub.s32 %s36, %s38
    %p40 = scmp.eq.s32.totalorder %s39, 0
    %s42 = sadd.s32 %s41, 1
    %s43 = scalar_select %p40, %s41, %s42
    %p46 = pneg %p40
    %p47 = scmp.eq.s32.totalorder %s15, 7
    %p48 = por %p46, %p47
    %p49 = scmp.ne.s32.totalorder %s41, %s44
    %p50 = scmp.eq.s32.totalorder %s15, 0
    %p51 = por %p49, %p50
    %p52 = scmp.ne.s32.totalorder %s41, %s44
    %p53 = scmp.eq.s32.totalorder %s20, 7
    %p54 = por %p52, %p53
    %p55 = scmp.ne.s32.totalorder %s44, %s45
    %p56 = scmp.eq.s32.totalorder %s20, 0
    %p57 = por %p55, %p56
    %p58 = scmp.ne.s32.totalorder %s44, %s45
    %p59 = scmp.eq.s32.totalorder %s21, 7
    %p60 = por %p58, %p59
    %p62 = scmp.ne.s32.totalorder %s45, %s61
    %p63 = scmp.eq.s32.totalorder %s21, 0
    %p64 = por %p62, %p63
    %s66 = sadd.s32 %s65, 1
    %p69 = scmp.eq.s32.totalorder %s15, 7
    %p70 = scmp.ne.s32.totalorder %s65, %s67
    %p71 = scmp.eq.s32.totalorder %s15, 0
    %p72 = por %p70, %p71
    %p73 = scmp.ne.s32.totalorder %s65, %s67
    %p74 = scmp.eq.s32.totalorder %s20, 7
    %p75 = por %p73, %p74
    %p76 = scmp.ne.s32.totalorder %s67, %s68
    %p77 = scmp.eq.s32.totalorder %s20, 0
    %p78 = por %p76, %p77
    %p79 = scmp.ne.s32.totalorder %s67, %s68
    %p80 = scmp.eq.s32.totalorder %s21, 7
    %p81 = por %p79, %p80
    %p83 = scmp.ne.s32.totalorder %s68, %s82
    %p84 = scmp.eq.s32.totalorder %s21, 0
    %p85 = por %p83, %p84
    %s87 = sadd.s32 %s86, 1
    %p90 = scmp.eq.s32.totalorder %s15, 7
    %p91 = scmp.ne.s32.totalorder %s86, %s88
    %p92 = scmp.eq.s32.totalorder %s15, 0
    %p93 = por %p91, %p92
    %p94 = scmp.ne.s32.totalorder %s86, %s88
    %p95 = scmp.eq.s32.totalorder %s20, 7
    %p96 = por %p94, %p95
    %p97 = scmp.ne.s32.totalorder %s88, %s89
    %p98 = scmp.eq.s32.totalorder %s20, 0
    %p99 = por %p97, %p98
    %p100 = scmp.ne.s32.totalorder %s88, %s89
    %p101 = scmp.eq.s32.totalorder %s21, 7
    %p102 = por %p100, %p101
    %p104 = scmp.ne.s32.totalorder %s89, %s103
    %p105 = scmp.eq.s32.totalorder %s21, 0
    %p106 = por %p104, %p105
    %s108 = sadd.s32 %s107, 1
    %p111 = scmp.eq.s32.totalorder %s15, 7
    %p112 = scmp.ne.s32.totalorder %s107, %s109
    %p113 = scmp.eq.s32.totalorder %s15, 0
    %p114 = por %p112, %p113
    %p115 = scmp.ne.s32.totalorder %s107, %s109
    %p116 = scmp.eq.s32.totalorder %s20, 7
    %p117 = por %p115, %p116
    %p118 = scmp.ne.s32.totalorder %s109, %s110
    %p119 = scmp.eq.s32.totalorder %s20, 0
    %p120 = por %p118, %p119
    %p121 = scmp.ne.s32.totalorder %s109, %s110
    %p122 = scmp.eq.s32.totalorder %s21, 7
    %p123 = por %p121, %p122
    %p125 = scmp.ne.s32.totalorder %s110, %s124
    %p126 = scmp.eq.s32.totalorder %s21, 0
    %p127 = por %p125, %p126
    %s129 = sadd.s32 %s128, 1
    %p132 = scmp.eq.s32.totalorder %s15, 7
    %p133 = scmp.ne.s32.totalorder %s128, %s130
    %p134 = scmp.eq.s32.totalorder %s15, 0
    %p135 = por %p133, %p134
    %p136 = scmp.ne.s32.totalorder %s128, %s130
    %p137 = scmp.eq.s32.totalorder %s20, 7
    %p138 = por %p136, %p137
    %p139 = scmp.ne.s32.totalorder %s130, %s131
    %p140 = scmp.eq.s32.totalorder %s20, 0
    %p141 = por %p139, %p140
    %p142 = scmp.ne.s32.totalorder %s130, %s131
    %p143 = scmp.eq.s32.totalorder %s21, 7
    %p144 = por %p142, %p143
    %p146 = scmp.ne.s32.totalorder %s131, %s145
    %p147 = scmp.eq.s32.totalorder %s21, 0
    %p148 = por %p146, %p147
    %s150 = sadd.s32 %s149, 1
    %p153 = scmp.eq.s32.totalorder %s15, 7
    %p154 = scmp.ne.s32.totalorder %s149, %s151
    %p155 = scmp.eq.s32.totalorder %s15, 0
    %p156 = por %p154, %p155
    %p157 = scmp.ne.s32.totalorder %s149, %s151
    %p158 = scmp.eq.s32.totalorder %s20, 7
    %p159 = por %p157, %p158
    %p160 = scmp.ne.s32.totalorder %s151, %s152
    %p161 = scmp.eq.s32.totalorder %s20, 0
    %p162 = por %p160, %p161
    %p163 = scmp.ne.s32.totalorder %s151, %s152
    %p164 = scmp.eq.s32.totalorder %s21, 7
    %p165 = por %p163, %p164
    %p167 = scmp.ne.s32.totalorder %s152, %s166
    %p168 = scmp.eq.s32.totalorder %s21, 0
    %p169 = por %p167, %p168
    %s171 = sadd.s32 %s170, 1
    %p174 = scmp.eq.s32.totalorder %s15, 7
    %p175 = scmp.ne.s32.totalorder %s170, %s172
    %p176 = scmp.eq.s32.totalorder %s15, 0
    %p177 = por %p175, %p176
    %p178 = scmp.ne.s32.totalorder %s170, %s172
    %p179 = scmp.eq.s32.totalorder %s20, 7
    %p180 = por %p178, %p179
    %p181 = scmp.ne.s32.totalorder %s172, %s173
    %p182 = scmp.eq.s32.totalorder %s20, 0
    %p183 = por %p181, %p182
    %p184 = scmp.ne.s32.totalorder %s172, %s173
    %p185 = scmp.eq.s32.totalorder %s21, 7
    %p186 = por %p184, %p185
    %p188 = scmp.ne.s32.totalorder %s173, %s187
    %p189 = scmp.eq.s32.totalorder %s21, 0
    %p190 = por %p188, %p189
    %s192 = sadd.s32 %s191, 1
    %p195 = scmp.eq.s32.totalorder %s15, 7
    %p196 = scmp.ne.s32.totalorder %s191, %s193
    %p197 = scmp.eq.s32.totalorder %s15, 0
    %p198 = por %p196, %p197
    %p199 = scmp.ne.s32.totalorder %s191, %s193
    %p200 = scmp.eq.s32.totalorder %s20, 7
    %p201 = por %p199, %p200
    %p202 = scmp.ne.s32.totalorder %s193, %s194
    %p203 = scmp.eq.s32.totalorder %s20, 0
    %p204 = por %p202, %p203
    %p205 = scmp.ne.s32.totalorder %s193, %s194
    %p206 = scmp.eq.s32.totalorder %s21, 7
    %p207 = por %p205, %p206
    %p209 = scmp.ne.s32.totalorder %s194, %s208
    %p210 = scmp.eq.s32.totalorder %s21, 0
    %p211 = por %p209, %p210
    %s212 = ssub.s32 %s23, %s30
    %p213 = scmp.eq.s32.totalorder %s212, 0
    %s215 = sadd.s32 %s214, 1
    %s216 = scalar_select %p213, %s214, %s215
    %p219 = pneg %p213
    %p220 = scmp.eq.s32.totalorder %s15, 7
    %p221 = por %p219, %p220
    %p222 = scmp.ne.s32.totalorder %s214, %s217
    %p223 = scmp.eq.s32.totalorder %s15, 0
    %p224 = por %p222, %p223
    %p225 = scmp.ne.s32.totalorder %s214, %s217
    %p226 = scmp.eq.s32.totalorder %s20, 7
    %p227 = por %p225, %p226
    %p228 = scmp.ne.s32.totalorder %s217, %s218
    %p229 = scmp.eq.s32.totalorder %s20, 0
    %p230 = por %p228, %p229
    %p231 = scmp.ne.s32.totalorder %s217, %s218
    %p232 = scmp.eq.s32.totalorder %s21, 7
    %p233 = por %p231, %p232
    %p235 = scmp.ne.s32.totalorder %s218, %s234
    %p236 = scmp.eq.s32.totalorder %s21, 0
    %p237 = por %p235, %p236
    %s238 = smul.u32 %s22, 4
    %s239 = sadd.s32 %s238, %s23
    %s240 = smul.u32 %s34, 4
    %s241 = sadd.s32 %s240, %s30
    %s242 = ssub.s32 %s239, %s241
    %p243 = scmp.eq.s32.totalorder %s242, 0
    %s245 = sadd.s32 %s244, 1
    %s246 = scalar_select %p243, %s244, %s245
    %p249 = pneg %p243
    %p250 = scmp.eq.s32.totalorder %s15, 7
    %p251 = por %p249, %p250
    %p252 = scmp.ne.s32.totalorder %s244, %s247
    %p253 = scmp.eq.s32.totalorder %s15, 0
    %p254 = por %p252, %p253
    %p255 = scmp.ne.s32.totalorder %s244, %s247
    %p256 = scmp.eq.s32.totalorder %s20, 7
    %p257 = por %p255, %p256
    %p258 = scmp.ne.s32.totalorder %s247, %s248
    %p259 = scmp.eq.s32.totalorder %s20, 0
    %p260 = por %p258, %p259
    %p261 = scmp.ne.s32.totalorder %s247, %s248
    %p262 = scmp.eq.s32.totalorder %s21, 7
    %p263 = por %p261, %p262
    %p265 = scmp.ne.s32.totalorder %s248, %s264
    %p266 = scmp.eq.s32.totalorder %s21, 0
    %p267 = por %p265, %p266
    %p268 = scmp.le.s32.totalorder 1, %s15
    %p269 = scmp.lt.s32.totalorder %s15, 9
    %p270 = pnand %p268, %p269
    %p271 = pneg %p270
    // Predicated region
    $region9: #{forward.14} parent=5 // pred_check
      _
    $region10: #{forward.14} parent=5 // pred_check_branch
      %273 = sbr.rel (%p270) target = $region12
    $region11: #{forward.14} parent=5 // pred_region
      %s274 = ssub.s32 %s15, 1
      // Predicated region
      $region13: #{forward.14} parent=11 // pred_check
        %p275 = pneg %p78
      $region14: #{forward.14} parent=11 // pred_check_branch
        %277 = sbr.rel (%p275) target = $region16
      $region15: #{forward.14} parent=11 // pred_region
        _
      $region16: #{forward.14} parent=11 // pred_fallthru
        _
      // Predicated region
      $region17: #{forward.14} parent=11 // pred_check
        %p278 = pneg %p99
      $region18: #{forward.14} parent=11 // pred_check_branch
        %280 = sbr.rel (%p278) target = $region20
      $region19: #{forward.14} parent=11 // pred_region
        _
      $region20: #{forward.14} parent=11 // pred_fallthru
        _
      // Predicated region
      $region21: #{forward.14} parent=11 // pred_check
        %p281 = pneg %p120
      $region22: #{forward.14} parent=11 // pred_check_branch
        %283 = sbr.rel (%p281) target = $region24
      $region23: #{forward.14} parent=11 // pred_region
        _
      $region24: #{forward.14} parent=11 // pred_fallthru
        _
      // Predicated region
      $region25: #{forward.14} parent=11 // pred_check
        %p284 = pneg %p141
      $region26: #{forward.14} parent=11 // pred_check_branch
        %286 = sbr.rel (%p284) target = $region28
      $region27: #{forward.14} parent=11 // pred_region
        _
      $region28: #{forward.14} parent=11 // pred_fallthru
        _
      // Predicated region
      $region29: #{forward.14} parent=11 // pred_check
        %p287 = pneg %p162
      $region30: #{forward.14} parent=11 // pred_check_branch
        %289 = sbr.rel (%p287) target = $region32
      $region31: #{forward.14} parent=11 // pred_region
        _
      $region32: #{forward.14} parent=11 // pred_fallthru
        _
      // Predicated region
      $region33: #{forward.14} parent=11 // pred_check
        %p290 = pneg %p183
      $region34: #{forward.14} parent=11 // pred_check_branch
        %292 = sbr.rel (%p290) target = $region36
      $region35: #{forward.14} parent=11 // pred_region
        _
      $region36: #{forward.14} parent=11 // pred_fallthru
        _
      // Predicated region
      $region37: #{forward.14} parent=11 // pred_check
        %p293 = pneg %p204
      $region38: #{forward.14} parent=11 // pred_check_branch
        %295 = sbr.rel (%p293) target = $region40
      $region39: #{forward.14} parent=11 // pred_region
        _
      $region40: #{forward.14} parent=11 // pred_fallthru
        _
    $region12: #{forward.14} parent=5 // pred_fallthru
      _
    %p296 = scmp.lt.s32.totalorder %s15, 8
    // Predicated region
    $region41: #{forward.14} parent=5 // pred_check
      %p297 = pneg %p296
    $region42: #{forward.14} parent=5 // pred_check_branch
      %299 = sbr.rel (%p297) target = $region44
    $region43: #{forward.14} parent=5 // pred_region
      // Predicated region
      $region45: #{forward.14} parent=43 // pred_check
        %p300 = pneg %p51
      $region46: #{forward.14} parent=43 // pred_check_branch
        %302 = sbr.rel (%p300) target = $region48
      $region47: #{forward.14} parent=43 // pred_region
        %s303 = smul.u32 %s22, 4
        %s304 = sadd.s32 %s303, %s23
        %p305 = scmp.lt.s32.totalorder %s304, 7
        %s306 = scalar_select %p305, %s304, 7
        %s307 = smul.addr %s306, 2
        %s308 = smul.addr %s307, 4
        %s309 = scalar_lea.vmem %s0, %s308
        %s310 = smul.u32 %s22, 4
        %s311 = sadd.s32 %s310, %s23
      $region48: #{forward.14} parent=43 // pred_fallthru
        _
      // Predicated region
      $region49: #{forward.14} parent=43 // pred_check
        %p312 = pneg %p224
      $region50: #{forward.14} parent=43 // pred_check_branch
        %314 = sbr.rel (%p312) target = $region52
      $region51: #{forward.14} parent=43 // pred_region
        %p315 = scmp.lt.s32.totalorder %s23, 3
        %s316 = scalar_select %p315, %s23, 3
        %s317 = smul.addr %s316, 2
        %s318 = smul.addr %s317, 8
        %s319 = scalar_lea.vmem %s8, %s318
      $region52: #{forward.14} parent=43 // pred_fallthru
        _
    $region44: #{forward.14} parent=5 // pred_fallthru
      _
    %p320 = scmp.le.s32.totalorder 1, %s15
    %p321 = scmp.lt.s32.totalorder %s15, 9
    %p322 = pnand %p320, %p321
    %p323 = pneg %p322
    // Predicated region
    $region53: #{forward.14} parent=5 // pred_check
      _
    $region54: #{forward.14} parent=5 // pred_check_branch
      %325 = sbr.rel (%p322) target = $region56
    $region55: #{forward.14} parent=5 // pred_region
      %s326 = ssub.s32 %s15, 1
      %s327 = smul.u32 %s24, 4
      %s328 = sadd.s32 %s327, %s25
      %p329 = scmp.lt.s32.totalorder %s328, 7
      %s330 = scalar_select %p329, %s328, 7
      %s331 = smul.addr %s330, 2
      %s332 = smul.addr %s331, 4
      %s333 = scalar_lea.vmem %s0, %s332
      %p334 = pneg %p57
      %p335 = pneg %p54
      %p336 = pneg %p78
      %p337 = pneg %p75
      %p338 = pneg %p99
      %p339 = pneg %p96
      %p340 = pneg %p120
      %p341 = pneg %p117
      %p342 = pneg %p141
      %p343 = pneg %p138
      %p344 = pneg %p162
      %p345 = pneg %p159
      %p346 = pneg %p183
      %p347 = pneg %p180
      %p348 = pneg %p204
      %p349 = pneg %p201
      %p350 = scmp.lt.s32.totalorder %s25, 3
      %s351 = scalar_select %p350, %s25, 3
      %s352 = smul.addr %s351, 2
      %s353 = smul.addr %s352, 8
      %s354 = scalar_lea.vmem %s8, %s353
      %p355 = pneg %p230
      %p356 = pneg %p227
      %p357 = pneg %p260
      %p358 = pneg %p257
      %s359 = smul.u32 %s24, 4
      %s360 = sadd.s32 %s359, %s25
      %p361 = scmp.lt.s32.totalorder %s360, 7
      %s362 = scalar_select %p361, %s360, 7
      %s363 = smul.addr %s362, 2
      %s364 = smul.addr %s363, 4
      %s365 = scalar_lea.vmem %s9, %s364
      %s366 = smul.u32 %s24, 4
      %s367 = sadd.s32 %s366, %s25
      %p368 = scmp.lt.s32.totalorder %s367, 7
      %s369 = scalar_select %p368, %s367, 7
      %s370 = smul.addr %s369, 2
      %s371 = smul.addr %s370, 4
      %s372 = scalar_lea.vmem %s0, %s371
      %s373 = smul.u32 %s24, 4
      %s374 = sadd.s32 %s373, %s25
      %p375 = scmp.lt.s32.totalorder %s25, 3
      %s376 = scalar_select %p375, %s25, 3
      %s377 = smul.addr %s376, 2
      %s378 = smul.addr %s377, 8
      %s379 = scalar_lea.vmem %s8, %s378
      %s380 = smul.u32 %s24, 4
      %s381 = sadd.s32 %s380, %s25
      %p382 = scmp.lt.s32.totalorder %s381, 7
      %s383 = scalar_select %p382, %s381, 7
      %s384 = smul.addr %s383, 2
      %s385 = smul.addr %s384, 4
      %s386 = scalar_lea.vmem %s9, %s385
      %s387 = smul.u32 %s24, 4
      %s388 = sadd.s32 %s387, %s25
      %v390 = vld [vmem:[%s372] sm:$0xf]
      %v391 = vld [vmem:[%s372 + $0x4] sm:$0xf]
      %v392 = vunpack.c.l.bf16 %v390
      %v393 = vunpack.c.l.bf16 %v391
      %v394 = vld [vmem:[%s1] sm:$0x1]
      %v395 = vld [vmem:[%s2] sm:$0x1]
      %vm396 = vcmask 261120
      %v397 = vsel %vm396, %v392, 0.0
      %398 = vadd.xlane.f32.xlu0 %v397
      %v399 = vpop.xlane.xlu0 %398
      %v400 = vsel %vm396, %v393, 0.0
      %401 = vadd.xlane.f32.xlu0 %v400
      %v402 = vpop.xlane.xlu0 %401
      %v403 = vrcp.pop 32.0
      %v404 = vmul.f32 32.0, %v403
      %v405 = vsub.f32 1.0, %v404
      %v406 = vmul.f32 %v403, %v405
      %v407 = vadd.f32 %v403, %v406
      %vm408 = vweird.f32 %v403
      %v409 = vsel %vm408, %v403, %v407
      %v410 = vmul.f32 %v399, %v409
      %v411 = vmul.f32 %v402, %v409
      %v412 = vsub.f32 %v392, %v410
      %v413 = vsub.f32 %v393, %v411
      %v414 = vmul.f32 %v412, %v412
      %v415 = vmul.f32 %v413, %v413
      %v416 = vsel %vm396, %v414, 0.0
      %417 = vadd.xlane.f32.xlu0 %v416
      %v418 = vpop.xlane.xlu0 %417
      %v419 = vsel %vm396, %v415, 0.0
      %420 = vadd.xlane.f32.xlu0 %v419
      %v421 = vpop.xlane.xlu0 %420
      %v422 = vmul.f32 %v418, %v409
      %v423 = vmul.f32 %v421, %v409
      %v424 = vadd.f32 %v422, 1e-05
      %v425 = vadd.f32 %v423, 1e-05
      %v426 = vrsqrt.pop %v424
      %v427 = vmul.f32 %v426, %v424
      %v428 = vmul.f32 %v427, %v426
      %v429 = vmul.f32 0.5, %v428
      %v430 = vsub.f32 1.5, %v429
      %v431 = vmul.f32 %v426, %v430
      %vm432 = vweird.f32 %v424
      %vm433 = vweird.f32 %v426
      %vm434 = vmor %vm432, %vm433
      %v435 = vsel %vm434, %v426, %v431
      %v436 = vrsqrt.pop %v425
      %v437 = vmul.f32 %v436, %v425
      %v438 = vmul.f32 %v437, %v436
      %v439 = vmul.f32 0.5, %v438
      %v440 = vsub.f32 1.5, %v439
      %v441 = vmul.f32 %v436, %v440
      %vm442 = vweird.f32 %v425
      %vm443 = vweird.f32 %v436
      %vm444 = vmor %vm442, %vm443
      %v445 = vsel %vm444, %v436, %v441
      %v446 = vmul.f32 %v412, %v435
      %v447 = vmul.f32 %v413, %v445
      %v449 = vperm.slane %v394, 0
      %v451 = vmul.f32 %v446, %v449
      %v452 = vmul.f32 %v447, %v449
      %v454 = vperm.slane %v395, 0
      %v456 = vadd.f32 %v451, %v454
      %v457 = vadd.f32 %v452, %v454
      %v458 = vld [vmem:[%s3] sm:$0xf]
      %v459 = vld [vmem:[%s3 + $0x4] sm:$0xf]
      %v460 = vld [vmem:[%s3 + $0x8] sm:$0xf]
      %v461 = vld [vmem:[%s3 + $0xc] sm:$0xf]
      %v462 = vpack.c.bf16 %v457, %v456
      %v463 = vld [vmem:[%s4] sm:$0x1]
      %v465 = vperm.slane %v463, 0
      %v471 = vunpack.c.l.b16 %v458
      %v472 = vunpack.c.l.b16 %v459
      %v473 = vunpack.c.l.b16 %v460
      %v474 = vunpack.c.l.b16 %v461
      %v475 = vpack.c.b16 %v472, %v471
      %v476 = vpack.c.b16 %v474, %v473
      %v480 = vsel %vm396, %v462, 0
      %482 = vmatpush.bf16.msra.mxu0 0
      %483 = vmatpush.bf16.msra.mxu0 0
      %484 = vmatpush.bf16.msra.mxu0 0
      %485 = vmatpush.bf16.msra.mxu0 0
      %486 = vmatpush.bf16.msra.mxu0 0
      %487 = vmatpush.bf16.msra.mxu0 0
      %488 = vmatpush.bf16.msra.mxu0 %v476
      %489 = vmatpush.bf16.msra.mxu0 %v475
      %490 = vmatmul.bf16.gmra.mxu0 %v480
      %v491 = vpop.f32.mrf.mxu0
      %v492 = vadd.f32 %v465, %v491
      %v493 = vpop.f32.mrf.mxu0
      %v494 = vadd.f32 %v465, %v493
      %495 = vdwg.mxu0
      %v496 = vld [vmem:[%s7] sm:$0xff]
      %v497 = vld [vmem:[%s7 + $0x8] sm:$0xff]
      %v498 = vld [vmem:[%s7 + $0x10] sm:$0xff]
      %v499 = vld [vmem:[%s7 + $0x18] sm:$0xff]
      %v500 = vld [vmem:[%s379] sm:$0xff]
      %v501 = vld [vmem:[%s379 + $0x8] sm:$0xff]
      %v502 = vadd.f32 %v496, %v500
      %v503 = vadd.f32 %v497, %v501
      %v504 = vadd.f32 %v498, %v500
      %v505 = vadd.f32 %v499, %v501
      %508 = vrot.lane.b32.xlu0 %v492, 96
      %v509 = vpop.permute.xlu0 %508
      %510 = vrot.lane.b32.xlu0 %v494, 96
      %v511 = vpop.permute.xlu0 %510
      %vm512 = vcmask 130048
      %v513 = vsel %vm512, %v492, 0
      %v515 = vsel %vm512, %v494, 0
      %v517 = vsel %vm512, %v509, 0
      %v519 = vsel %vm512, %v511, 0
      %521 = vmatpush.xpose.msra.mxu0 0.0
      %522 = vmatpush.xpose.msra.mxu0 0.0
      %523 = vmatpush.xpose.msra.mxu0 0.0
      %524 = vmatpush.xpose.msra.mxu0 0.0
      %525 = vmatpush.xpose.msra.mxu0 0.0
      %526 = vmatpush.xpose.msra.mxu0 0.0
      %527 = vmatpush.xpose.msra.mxu0 0.0
      %528 = vmatpush.xpose.msra.mxu0 0.0
      %529 = vmatpush.xpose.msra.mxu0 0.0
      %530 = vmatpush.xpose.msra.mxu0 0.0
      %531 = vmatpush.xpose.msra.mxu0 0.0
      %532 = vmatpush.xpose.msra.mxu0 0.0
      %533 = vmatpush.xpose.msra.mxu0 0.0
      %534 = vmatpush.xpose.msra.mxu0 0.0
      %535 = vmatpush.xpose.msra.mxu0 %v519
      %536 = vmatpush.xpose.msra.mxu0 %v517
      %537 = vmatmul.f32.gmra.mxu0 %v513
      %v538 = vpop.f32.mrf.mxu0
      %v539 = vadd.f32 %v502, %v538
      %540 = vmatmul.f32.gmra.mxu0 %v515
      %v541 = vpop.f32.mrf.mxu0
      %v542 = vadd.f32 %v503, %v541
      %543 = vdwg.mxu0
      %v544 = vsel %vm512, %v539, -inf
      %545 = vmax.xlane.f32.xlu0 %v544
      %v546 = vpop.xlane.xlu0 %545
      %v547 = vsel %vm512, %v542, -inf
      %548 = vmax.xlane.f32.xlu0 %v547
      %v549 = vpop.xlane.xlu0 %548
      %v550 = vsub.f32 %v539, %v546
      %v551 = vsub.f32 %v542, %v549
      %v552 = vmul.f32 %v550, 1.442695
      %v553 = vpow.pop %v552
      %v554 = vmul.f32 %v551, 1.442695
      %v555 = vpow.pop %v554
      %v556 = vsel %vm512, %v553, 0.0
      %557 = vadd.xlane.f32.xlu0 %v556
      %v558 = vpop.xlane.xlu0 %557
      %v559 = vsel %vm512, %v555, 0.0
      %560 = vadd.xlane.f32.xlu0 %v559
      %v561 = vpop.xlane.xlu0 %560
      %v562 = vrcp.pop %v558
      %v563 = vrcp.pop %v561
      %v564 = vmul.f32 %v553, %v562
      %v565 = vmul.f32 %v555, %v563
      %566 = vrot.lane.b32.xlu0 %v492, 64
      %v567 = vpop.permute.xlu0 %566
      %568 = vrot.lane.b32.xlu0 %v494, 64
      %v569 = vpop.permute.xlu0 %568
      %v573 = vsel %vm512, %v564, 0
      %v576 = vsel %vm512, %v565, 0
      %578 = vmatpush.msra.mxu0 0.0
      %579 = vmatpush.msra.mxu0 0.0
      %580 = vmatpush.msra.mxu0 0.0
      %581 = vmatpush.msra.mxu0 0.0
      %582 = vmatpush.msra.mxu0 0.0
      %583 = vmatpush.msra.mxu0 0.0
      %584 = vmatpush.msra.mxu0 0.0
      %585 = vmatpush.msra.mxu0 0.0
      %586 = vmatpush.msra.mxu0 0.0
      %587 = vmatpush.msra.mxu0 0.0
      %588 = vmatpush.msra.mxu0 0.0
      %589 = vmatpush.msra.mxu0 0.0
      %590 = vmatpush.msra.mxu0 0.0
      %591 = vmatpush.msra.mxu0 0.0
      %592 = vmatpush.msra.mxu0 %v569
      %593 = vmatpush.msra.mxu0 %v567
      %594 = vmatmul.f32.gmra.mxu0 %v573
      %v595 = vpop.f32.mrf.mxu0
      %v596 = vadd.f32 0.0, %v595
      %597 = vmatmul.f32.gmra.mxu0 %v576
      %v598 = vpop.f32.mrf.mxu0
      %v599 = vadd.f32 0.0, %v598
      %600 = vdwg.mxu0
      %601 = vrot.lane.b32.xlu0 %v492, 112
      %v602 = vpop.permute.xlu0 %601
      %603 = vrot.lane.b32.xlu0 %v494, 112
      %v604 = vpop.permute.xlu0 %603
      %605 = vrot.lane.b32.xlu0 %v492, 80
      %v606 = vpop.permute.xlu0 %605
      %607 = vrot.lane.b32.xlu0 %v494, 80
      %v608 = vpop.permute.xlu0 %607
      %v609 = vsel %vm512, %v602, 0
      %v611 = vsel %vm512, %v604, 0
      %v613 = vsel %vm512, %v606, 0
      %v615 = vsel %vm512, %v608, 0
      %617 = vmatpush.xpose.msra.mxu0 0.0
      %618 = vmatpush.xpose.msra.mxu0 0.0
      %619 = vmatpush.xpose.msra.mxu0 0.0
      %620 = vmatpush.xpose.msra.mxu0 0.0
      %621 = vmatpush.xpose.msra.mxu0 0.0
      %622 = vmatpush.xpose.msra.mxu0 0.0
      %623 = vmatpush.xpose.msra.mxu0 0.0
      %624 = vmatpush.xpose.msra.mxu0 0.0
      %625 = vmatpush.xpose.msra.mxu0 0.0
      %626 = vmatpush.xpose.msra.mxu0 0.0
      %627 = vmatpush.xpose.msra.mxu0 0.0
      %628 = vmatpush.xpose.msra.mxu0 0.0
      %629 = vmatpush.xpose.msra.mxu0 0.0
      %630 = vmatpush.xpose.msra.mxu0 0.0
      %631 = vmatpush.xpose.msra.mxu0 %v615
      %632 = vmatpush.xpose.msra.mxu0 %v613
      %633 = vmatmul.f32.gmra.mxu0 %v609
      %v634 = vpop.f32.mrf.mxu0
      %v635 = vadd.f32 %v504, %v634
      %636 = vmatmul.f32.gmra.mxu0 %v611
      %v637 = vpop.f32.mrf.mxu0
      %v638 = vadd.f32 %v505, %v637
      %639 = vdwg.mxu0
      %v640 = vsel %vm512, %v635, -inf
      %641 = vmax.xlane.f32.xlu0 %v640
      %v642 = vpop.xlane.xlu0 %641
      %v643 = vsel %vm512, %v638, -inf
      %644 = vmax.xlane.f32.xlu0 %v643
      %v645 = vpop.xlane.xlu0 %644
      %v646 = vsub.f32 %v635, %v642
      %v647 = vsub.f32 %v638, %v645
      %v648 = vmul.f32 %v646, 1.442695
      %v649 = vpow.pop %v648
      %v650 = vmul.f32 %v647, 1.442695
      %v651 = vpow.pop %v650
      %v652 = vsel %vm512, %v649, 0.0
      %653 = vadd.xlane.f32.xlu0 %v652
      %v654 = vpop.xlane.xlu0 %653
      %v655 = vsel %vm512, %v651, 0.0
      %656 = vadd.xlane.f32.xlu0 %v655
      %v657 = vpop.xlane.xlu0 %656
      %v658 = vrcp.pop %v654
      %v659 = vrcp.pop %v657
      %v660 = vmul.f32 %v649, %v658
      %v661 = vmul.f32 %v651, %v659
      %662 = vrot.lane.b32.xlu0 %v492, 48
      %v663 = vpop.permute.xlu0 %662
      %664 = vrot.lane.b32.xlu0 %v494, 48
      %v665 = vpop.permute.xlu0 %664
      %v669 = vsel %vm512, %v660, 0
      %v672 = vsel %vm512, %v661, 0
      %674 = vmatpush.msra.mxu0 0.0
      %675 = vmatpush.msra.mxu0 0.0
      %676 = vmatpush.msra.mxu0 0.0
      %677 = vmatpush.msra.mxu0 0.0
      %678 = vmatpush.msra.mxu0 0.0
      %679 = vmatpush.msra.mxu0 0.0
      %680 = vmatpush.msra.mxu0 0.0
      %681 = vmatpush.msra.mxu0 0.0
      %682 = vmatpush.msra.mxu0 0.0
      %683 = vmatpush.msra.mxu0 0.0
      %684 = vmatpush.msra.mxu0 0.0
      %685 = vmatpush.msra.mxu0 0.0
      %686 = vmatpush.msra.mxu0 0.0
      %687 = vmatpush.msra.mxu0 0.0
      %688 = vmatpush.msra.mxu0 %v665
      %689 = vmatpush.msra.mxu0 %v663
      %690 = vmatmul.f32.gmra.mxu0 %v669
      %v691 = vpop.f32.mrf.mxu0
      %v692 = vadd.f32 0.0, %v691
      %693 = vmatmul.f32.gmra.mxu0 %v672
      %v694 = vpop.f32.mrf.mxu0
      %v695 = vadd.f32 0.0, %v694
      %696 = vdwg.mxu0
      %699 = vrot.lane.b32.xlu0 %v692, 16
      %v700 = vpop.permute.xlu0 %699
      %701 = vrot.lane.b32.xlu0 %v695, 16
      %v702 = vpop.permute.xlu0 %701
      %v705 = vsel %vm512, %v596, %v700
      %v706 = vsel %vm512, %v599, %v702
      %v707 = vld [vmem:[%s5] sm:$0xf]
      %v708 = vld [vmem:[%s5 + $0x4] sm:$0xf]
      %v709 = vld [vmem:[%s5 + $0x8] sm:$0xf]
      %v710 = vld [vmem:[%s5 + $0xc] sm:$0xf]
      %v711 = vpack.c.bf16 %v706, %v705
      %v712 = vld [vmem:[%s6] sm:$0x1]
      %v714 = vperm.slane %v712, 0
      %v720 = vunpack.c.l.b16 %v707
      %v721 = vunpack.c.l.b16 %v708
      %v722 = vunpack.c.l.b16 %v709
      %v723 = vunpack.c.l.b16 %v710
      %v724 = vpack.c.b16 %v721, %v720
      %v725 = vpack.c.b16 %v723, %v722
      %v729 = vsel %vm396, %v711, 0
      %731 = vmatpush.bf16.msra.mxu0 0
      %732 = vmatpush.bf16.msra.mxu0 0
      %733 = vmatpush.bf16.msra.mxu0 0
      %734 = vmatpush.bf16.msra.mxu0 0
      %735 = vmatpush.bf16.msra.mxu0 0
      %736 = vmatpush.bf16.msra.mxu0 0
      %737 = vmatpush.bf16.msra.mxu0 %v725
      %738 = vmatpush.bf16.msra.mxu0 %v724
      %739 = vmatmul.bf16.gmra.mxu0 %v729
      %v740 = vpop.f32.mrf.mxu0
      %v741 = vadd.f32 %v714, %v740
      %v742 = vpop.f32.mrf.mxu0
      %v743 = vadd.f32 %v714, %v742
      %744 = vdwg.mxu0
      %v745 = vpack.c.bf16 %v741, %v741
      %v746 = vpack.c.bf16 %v743, %v743
      %vm747 = vcmask 257024
      %748 = vst.msk [vmem:[%s386] sm:$0xf] %vm747, %v745
      %749 = vst.msk [vmem:[%s386 + $0x4] sm:$0xf] %vm747, %v746
      %s750 = smul.u32 %s24, 4
      %s751 = sadd.s32 %s750, %s25
      %p752 = scmp.lt.s32.totalorder %s751, 7
      %s753 = scalar_select %p752, %s751, 7
      %s754 = smul.addr %s753, 2
      %s755 = smul.addr %s754, 4
      %s756 = scalar_lea.vmem %s9, %s755
      // Predicated region
      $region57: #{forward.14} parent=55 // pred_check
        %p757 = pneg %p257
      $region58: #{forward.14} parent=55 // pred_check_branch
        %759 = sbr.rel (%p757) target = $region60
      $region59: #{forward.14} parent=55 // pred_region
        %s760 = smul.u32 %s24, 4
        %s761 = sadd.s32 %s760, %s25
      $region60: #{forward.14} parent=55 // pred_fallthru
        _
    $region56: #{forward.14} parent=5 // pred_fallthru
      _
    %p762 = scmp.le.s32.totalorder 2, %s15
    // Predicated region
    $region61: #{forward.14} parent=5 // pred_check
      %p763 = pneg %p762
    $region62: #{forward.14} parent=5 // pred_check_branch
      %765 = sbr.rel (%p763) target = $region64
    $region63: #{forward.14} parent=5 // pred_region
      %s766 = ssub.s32 %s15, 2
      // Predicated region
      $region65: #{forward.14} parent=63 // pred_check
        %p767 = pneg %p263
      $region66: #{forward.14} parent=63 // pred_check_branch
        %769 = sbr.rel (%p767) target = $region68
      $region67: #{forward.14} parent=63 // pred_region
        %s770 = smul.u32 %s26, 4
        %s771 = sadd.s32 %s770, %s27
        %p772 = scmp.lt.s32.totalorder %s771, 7
        %s773 = scalar_select %p772, %s771, 7
        %s774 = smul.addr %s773, 2
        %s775 = smul.addr %s774, 4
        %s776 = scalar_lea.vmem %s9, %s775
      $region68: #{forward.14} parent=63 // pred_fallthru
        _
    $region64: #{forward.14} parent=5 // pred_fallthru
      _
  $region6: #{forward.14} parent=0 // loop_footer
    %s19 = sadd.s32 1, %s15
  $region7: #{forward.14} parent=0 // loop_footer_branch
    %14 = sbr.rel target = $region3
  $region8: #{forward.14} parent=0 // loop_exit
    _

// kernel: forward.18
$region0: #{forward.18}
  #allocation0 [shape = 'u32[]', space=smem, size = 0x4, offset = 0x4, fixed_abs, tag = 'smem constant byte address 0x4 - core index']
  #allocation1 [shape = 'u32[72,128]{1,0:T(1,128)}', space=vmem, size = 0x9000, scoped, tag = 'internal scratch']
  %s0 = inlined_call_operand.vmem [shape: bf16[32,64], index: 0, kind: input, shape index: {}]
  %s1 = inlined_call_operand.vmem [shape: bf16[32,64], index: 1, kind: input, shape index: {}]
  %s2 = inlined_call_operand.vmem [shape: f32[1,64], index: 2, kind: input, shape index: {}]
  %s3 = inlined_call_operand.vmem [shape: f32[1,64], index: 3, kind: input, shape index: {}]
  %s4 = inlined_call_operand.vmem [shape: bf16[64,256], index: 4, kind: input, shape index: {}]
  %s5 = inlined_call_operand.vmem [shape: f32[1,256], index: 5, kind: input, shape index: {}]
  %s6 = inlined_call_operand.vmem [shape: bf16[256,64], index: 6, kind: input, shape index: {}]
  %s7 = inlined_call_operand.vmem [shape: f32[1,64], index: 7, kind: input, shape index: {}]
  %s8 = inlined_call_operand.vmem [shape: bf16[32,64], index: 8, kind: output, shape index: {}]
  %s9 = sld [smem:[#allocation0]]
  $region65: #{forward.18} parent=0
    _
  %s11 = ssub.s32 1, %s9
  %s12 = scalar_select 0, %s11, %s9
  loop: start=0, step=1, limit=4
  $region2: #{forward.18} parent=0 // loop_pre_header
    _
  $region3: #{forward.18} parent=0 // loop_header
    %s14 = sphi 0, %s18
    %p15 = scmp.ge.s32.totalorder %s14, 4
    %s24 = sphi 0, %s26
    %s27 = sphi 0, %s24
    %s28 = sphi 0, %s27
    %s44 = sphi 0, %s28
    %s50 = sphi 0, %s52
    %s53 = sphi 0, %s50
    %s54 = sphi 0, %s53
    %s70 = sphi 0, %s54
    %s74 = sphi 0, %s74
    %s76 = sphi 0, %s74
    %s77 = sphi 0, %s76
    %s91 = sphi 0, %s77
    %s95 = sphi 0, %s95
    %s97 = sphi 0, %s95
    %s98 = sphi 0, %s97
    %s112 = sphi 0, %s98
    %s116 = sphi 0, %s116
    %s118 = sphi 0, %s116
    %s119 = sphi 0, %s118
    %s133 = sphi 0, %s119
    %s137 = sphi 0, %s137
    %s139 = sphi 0, %s137
    %s140 = sphi 0, %s139
    %s154 = sphi 0, %s140
    %s158 = sphi 0, %s158
    %s160 = sphi 0, %s158
    %s161 = sphi 0, %s160
    %s175 = sphi 0, %s161
    %s179 = sphi 0, %s179
    %s181 = sphi 0, %s179
    %s182 = sphi 0, %s181
    %s196 = sphi 0, %s182
    %s202 = sphi 0, %s204
    %s205 = sphi 0, %s202
    %s206 = sphi 0, %s205
    %s222 = sphi 0, %s206
  $region4: #{forward.18} parent=0 // loop_header_branch
    %17 = sbr.rel (%p15) target = $region8
  $region5: #{forward.18} parent=0 // loop_body
    %s19 = ssub.s32 %s14, 1
    %s20 = ssub.s32 %s14, 2
    %s21 = sadd.s32 %s14, 1
    %s22 = ssub.s32 %s14, %s21
    %p23 = scmp.eq.s32.totalorder %s22, 0
    %s25 = sadd.s32 %s24, 1
    %s26 = scalar_select %p23, %s24, %s25
    %p29 = pneg %p23
    %p30 = scmp.eq.s32.totalorder %s14, 1
    %p31 = por %p29, %p30
    %p32 = scmp.ne.s32.totalorder %s24, %s27
    %p33 = scmp.eq.s32.totalorder %s14, 0
    %p34 = por %p32, %p33
    %p35 = scmp.ne.s32.totalorder %s24, %s27
    %p36 = scmp.eq.s32.totalorder %s19, 1
    %p37 = por %p35, %p36
    %p38 = scmp.ne.s32.totalorder %s27, %s28
    %p39 = scmp.eq.s32.totalorder %s19, 0
    %p40 = por %p38, %p39
    %p41 = scmp.ne.s32.totalorder %s27, %s28
    %p42 = scmp.eq.s32.totalorder %s20, 1
    %p43 = por %p41, %p42
    %p45 = scmp.ne.s32.totalorder %s28, %s44
    %p46 = scmp.eq.s32.totalorder %s20, 0
    %p47 = por %p45, %p46
    %s48 = ssub.s32 %s14, %s21
    %p49 = scmp.eq.s32.totalorder %s48, 0
    %s51 = sadd.s32 %s50, 1
    %s52 = scalar_select %p49, %s50, %s51
    %p55 = pneg %p49
    %p56 = scmp.eq.s32.totalorder %s14, 1
    %p57 = por %p55, %p56
    %p58 = scmp.ne.s32.totalorder %s50, %s53
    %p59 = scmp.eq.s32.totalorder %s14, 0
    %p60 = por %p58, %p59
    %p61 = scmp.ne.s32.totalorder %s50, %s53
    %p62 = scmp.eq.s32.totalorder %s19, 1
    %p63 = por %p61, %p62
    %p64 = scmp.ne.s32.totalorder %s53, %s54
    %p65 = scmp.eq.s32.totalorder %s19, 0
    %p66 = por %p64, %p65
    %p67 = scmp.ne.s32.totalorder %s53, %s54
    %p68 = scmp.eq.s32.totalorder %s20, 1
    %p69 = por %p67, %p68
    %p71 = scmp.ne.s32.totalorder %s54, %s70
    %p72 = scmp.eq.s32.totalorder %s20, 0
    %p73 = por %p71, %p72
    %s75 = sadd.s32 %s74, 1
    %p78 = scmp.eq.s32.totalorder %s14, 1
    %p79 = scmp.ne.s32.totalorder %s74, %s76
    %p80 = scmp.eq.s32.totalorder %s14, 0
    %p81 = por %p79, %p80
    %p82 = scmp.ne.s32.totalorder %s74, %s76
    %p83 = scmp.eq.s32.totalorder %s19, 1
    %p84 = por %p82, %p83
    %p85 = scmp.ne.s32.totalorder %s76, %s77
    %p86 = scmp.eq.s32.totalorder %s19, 0
    %p87 = por %p85, %p86
    %p88 = scmp.ne.s32.totalorder %s76, %s77
    %p89 = scmp.eq.s32.totalorder %s20, 1
    %p90 = por %p88, %p89
    %p92 = scmp.ne.s32.totalorder %s77, %s91
    %p93 = scmp.eq.s32.totalorder %s20, 0
    %p94 = por %p92, %p93
    %s96 = sadd.s32 %s95, 1
    %p99 = scmp.eq.s32.totalorder %s14, 1
    %p100 = scmp.ne.s32.totalorder %s95, %s97
    %p101 = scmp.eq.s32.totalorder %s14, 0
    %p102 = por %p100, %p101
    %p103 = scmp.ne.s32.totalorder %s95, %s97
    %p104 = scmp.eq.s32.totalorder %s19, 1
    %p105 = por %p103, %p104
    %p106 = scmp.ne.s32.totalorder %s97, %s98
    %p107 = scmp.eq.s32.totalorder %s19, 0
    %p108 = por %p106, %p107
    %p109 = scmp.ne.s32.totalorder %s97, %s98
    %p110 = scmp.eq.s32.totalorder %s20, 1
    %p111 = por %p109, %p110
    %p113 = scmp.ne.s32.totalorder %s98, %s112
    %p114 = scmp.eq.s32.totalorder %s20, 0
    %p115 = por %p113, %p114
    %s117 = sadd.s32 %s116, 1
    %p120 = scmp.eq.s32.totalorder %s14, 1
    %p121 = scmp.ne.s32.totalorder %s116, %s118
    %p122 = scmp.eq.s32.totalorder %s14, 0
    %p123 = por %p121, %p122
    %p124 = scmp.ne.s32.totalorder %s116, %s118
    %p125 = scmp.eq.s32.totalorder %s19, 1
    %p126 = por %p124, %p125
    %p127 = scmp.ne.s32.totalorder %s118, %s119
    %p128 = scmp.eq.s32.totalorder %s19, 0
    %p129 = por %p127, %p128
    %p130 = scmp.ne.s32.totalorder %s118, %s119
    %p131 = scmp.eq.s32.totalorder %s20, 1
    %p132 = por %p130, %p131
    %p134 = scmp.ne.s32.totalorder %s119, %s133
    %p135 = scmp.eq.s32.totalorder %s20, 0
    %p136 = por %p134, %p135
    %s138 = sadd.s32 %s137, 1
    %p141 = scmp.eq.s32.totalorder %s14, 1
    %p142 = scmp.ne.s32.totalorder %s137, %s139
    %p143 = scmp.eq.s32.totalorder %s14, 0
    %p144 = por %p142, %p143
    %p145 = scmp.ne.s32.totalorder %s137, %s139
    %p146 = scmp.eq.s32.totalorder %s19, 1
    %p147 = por %p145, %p146
    %p148 = scmp.ne.s32.totalorder %s139, %s140
    %p149 = scmp.eq.s32.totalorder %s19, 0
    %p150 = por %p148, %p149
    %p151 = scmp.ne.s32.totalorder %s139, %s140
    %p152 = scmp.eq.s32.totalorder %s20, 1
    %p153 = por %p151, %p152
    %p155 = scmp.ne.s32.totalorder %s140, %s154
    %p156 = scmp.eq.s32.totalorder %s20, 0
    %p157 = por %p155, %p156
    %s159 = sadd.s32 %s158, 1
    %p162 = scmp.eq.s32.totalorder %s14, 1
    %p163 = scmp.ne.s32.totalorder %s158, %s160
    %p164 = scmp.eq.s32.totalorder %s14, 0
    %p165 = por %p163, %p164
    %p166 = scmp.ne.s32.totalorder %s158, %s160
    %p167 = scmp.eq.s32.totalorder %s19, 1
    %p168 = por %p166, %p167
    %p169 = scmp.ne.s32.totalorder %s160, %s161
    %p170 = scmp.eq.s32.totalorder %s19, 0
    %p171 = por %p169, %p170
    %p172 = scmp.ne.s32.totalorder %s160, %s161
    %p173 = scmp.eq.s32.totalorder %s20, 1
    %p174 = por %p172, %p173
    %p176 = scmp.ne.s32.totalorder %s161, %s175
    %p177 = scmp.eq.s32.totalorder %s20, 0
    %p178 = por %p176, %p177
    %s180 = sadd.s32 %s179, 1
    %p183 = scmp.eq.s32.totalorder %s14, 1
    %p184 = scmp.ne.s32.totalorder %s179, %s181
    %p185 = scmp.eq.s32.totalorder %s14, 0
    %p186 = por %p184, %p185
    %p187 = scmp.ne.s32.totalorder %s179, %s181
    %p188 = scmp.eq.s32.totalorder %s19, 1
    %p189 = por %p187, %p188
    %p190 = scmp.ne.s32.totalorder %s181, %s182
    %p191 = scmp.eq.s32.totalorder %s19, 0
    %p192 = por %p190, %p191
    %p193 = scmp.ne.s32.totalorder %s181, %s182
    %p194 = scmp.eq.s32.totalorder %s20, 1
    %p195 = por %p193, %p194
    %p197 = scmp.ne.s32.totalorder %s182, %s196
    %p198 = scmp.eq.s32.totalorder %s20, 0
    %p199 = por %p197, %p198
    %s200 = ssub.s32 %s14, %s21
    %p201 = scmp.eq.s32.totalorder %s200, 0
    %s203 = sadd.s32 %s202, 1
    %s204 = scalar_select %p201, %s202, %s203
    %p207 = pneg %p201
    %p208 = scmp.eq.s32.totalorder %s14, 1
    %p209 = por %p207, %p208
    %p210 = scmp.ne.s32.totalorder %s202, %s205
    %p211 = scmp.eq.s32.totalorder %s14, 0
    %p212 = por %p210, %p211
    %p213 = scmp.ne.s32.totalorder %s202, %s205
    %p214 = scmp.eq.s32.totalorder %s19, 1
    %p215 = por %p213, %p214
    %p216 = scmp.ne.s32.totalorder %s205, %s206
    %p217 = scmp.eq.s32.totalorder %s19, 0
    %p218 = por %p216, %p217
    %p219 = scmp.ne.s32.totalorder %s205, %s206
    %p220 = scmp.eq.s32.totalorder %s20, 1
    %p221 = por %p219, %p220
    %p223 = scmp.ne.s32.totalorder %s206, %s222
    %p224 = scmp.eq.s32.totalorder %s20, 0
    %p225 = por %p223, %p224
    %p226 = scmp.le.s32.totalorder 1, %s14
    %p227 = scmp.lt.s32.totalorder %s14, 3
    %p228 = pnand %p226, %p227
    %p229 = pneg %p228
    // Predicated region
    $region9: #{forward.18} parent=5 // pred_check
      _
    $region10: #{forward.18} parent=5 // pred_check_branch
      %231 = sbr.rel (%p228) target = $region12
    $region11: #{forward.18} parent=5 // pred_region
      %s232 = ssub.s32 %s14, 1
      // Predicated region
      $region13: #{forward.18} parent=11 // pred_check
        %p233 = pneg %p87
      $region14: #{forward.18} parent=11 // pred_check_branch
        %235 = sbr.rel (%p233) target = $region16
      $region15: #{forward.18} parent=11 // pred_region
        _
      $region16: #{forward.18} parent=11 // pred_fallthru
        _
      // Predicated region
      $region17: #{forward.18} parent=11 // pred_check
        %p236 = pneg %p108
      $region18: #{forward.18} parent=11 // pred_check_branch
        %238 = sbr.rel (%p236) target = $region20
      $region19: #{forward.18} parent=11 // pred_region
        _
      $region20: #{forward.18} parent=11 // pred_fallthru
        _
      // Predicated region
      $region21: #{forward.18} parent=11 // pred_check
        %p239 = pneg %p129
      $region22: #{forward.18} parent=11 // pred_check_branch
        %241 = sbr.rel (%p239) target = $region24
      $region23: #{forward.18} parent=11 // pred_region
        _
      $region24: #{forward.18} parent=11 // pred_fallthru
        _
      // Predicated region
      $region25: #{forward.18} parent=11 // pred_check
        %p242 = pneg %p150
      $region26: #{forward.18} parent=11 // pred_check_branch
        %244 = sbr.rel (%p242) target = $region28
      $region27: #{forward.18} parent=11 // pred_region
        _
      $region28: #{forward.18} parent=11 // pred_fallthru
        _
      // Predicated region
      $region29: #{forward.18} parent=11 // pred_check
        %p245 = pneg %p171
      $region30: #{forward.18} parent=11 // pred_check_branch
        %247 = sbr.rel (%p245) target = $region32
      $region31: #{forward.18} parent=11 // pred_region
        _
      $region32: #{forward.18} parent=11 // pred_fallthru
        _
      // Predicated region
      $region33: #{forward.18} parent=11 // pred_check
        %p248 = pneg %p192
      $region34: #{forward.18} parent=11 // pred_check_branch
        %250 = sbr.rel (%p248) target = $region36
      $region35: #{forward.18} parent=11 // pred_region
        _
      $region36: #{forward.18} parent=11 // pred_fallthru
        _
    $region12: #{forward.18} parent=5 // pred_fallthru
      _
    %p251 = scmp.lt.s32.totalorder %s14, 2
    // Predicated region
    $region37: #{forward.18} parent=5 // pred_check
      %p252 = pneg %p251
    $region38: #{forward.18} parent=5 // pred_check_branch
      %254 = sbr.rel (%p252) target = $region40
    $region39: #{forward.18} parent=5 // pred_region
      // Predicated region
      $region41: #{forward.18} parent=39 // pred_check
        %p255 = pneg %p34
      $region42: #{forward.18} parent=39 // pred_check_branch
        %257 = sbr.rel (%p255) target = $region44
      $region43: #{forward.18} parent=39 // pred_region
        %s258 = smul.u32 2, %s14
        %p259 = scmp.lt.s32.totalorder %s258, 3
        %s260 = scalar_select %p259, %s258, 3
        %s261 = smul.addr %s260, 4
        %s262 = scalar_lea.vmem %s0, %s261
        %s263 = smul.u32 2, %s14
      $region44: #{forward.18} parent=39 // pred_fallthru
        _
      // Predicated region
      $region45: #{forward.18} parent=39 // pred_check
        %p264 = pneg %p60
      $region46: #{forward.18} parent=39 // pred_check_branch
        %266 = sbr.rel (%p264) target = $region48
      $region47: #{forward.18} parent=39 // pred_region
        %s267 = smul.u32 2, %s14
        %p268 = scmp.lt.s32.totalorder %s267, 3
        %s269 = scalar_select %p268, %s267, 3
        %s270 = smul.addr %s269, 4
        %s271 = scalar_lea.vmem %s1, %s270
        %s272 = smul.u32 2, %s14
      $region48: #{forward.18} parent=39 // pred_fallthru
        _
    $region40: #{forward.18} parent=5 // pred_fallthru
      _
    %p273 = scmp.le.s32.totalorder 1, %s14
    %p274 = scmp.lt.s32.totalorder %s14, 3
    %p275 = pnand %p273, %p274
    %p276 = pneg %p275
    // Predicated region
    $region49: #{forward.18} parent=5 // pred_check
      _
    $region50: #{forward.18} parent=5 // pred_check_branch
      %278 = sbr.rel (%p275) target = $region52
    $region51: #{forward.18} parent=5 // pred_region
      %s279 = ssub.s32 %s14, 1
      %s280 = smul.u32 2, %s19
      %p281 = scmp.lt.s32.totalorder %s280, 3
      %s282 = scalar_select %p281, %s280, 3
      %s283 = smul.addr %s282, 4
      %s284 = scalar_lea.vmem %s0, %s283
      %p285 = pneg %p40
      %p286 = pneg %p37
      %s287 = smul.u32 2, %s19
      %p288 = scmp.lt.s32.totalorder %s287, 3
      %s289 = scalar_select %p288, %s287, 3
      %s290 = smul.addr %s289, 4
      %s291 = scalar_lea.vmem %s1, %s290
      %p292 = pneg %p66
      %p293 = pneg %p63
      %p294 = pneg %p87
      %p295 = pneg %p84
      %p296 = pneg %p108
      %p297 = pneg %p105
      %p298 = pneg %p129
      %p299 = pneg %p126
      %p300 = pneg %p150
      %p301 = pneg %p147
      %p302 = pneg %p171
      %p303 = pneg %p168
      %p304 = pneg %p192
      %p305 = pneg %p189
      %p306 = pneg %p218
      %p307 = pneg %p215
      %s308 = smul.u32 2, %s19
      %p309 = scmp.lt.s32.totalorder %s308, 3
      %s310 = scalar_select %p309, %s308, 3
      %s311 = smul.addr %s310, 4
      %s312 = scalar_lea.vmem %s8, %s311
      %s313 = smul.u32 2, %s19
      %p314 = scmp.lt.s32.totalorder %s313, 3
      %s315 = scalar_select %p314, %s313, 3
      %s316 = smul.addr %s315, 4
      %s317 = scalar_lea.vmem %s0, %s316
      %s318 = smul.u32 2, %s19
      %s319 = smul.u32 2, %s19
      %p320 = scmp.lt.s32.totalorder %s319, 3
      %s321 = scalar_select %p320, %s319, 3
      %s322 = smul.addr %s321, 4
      %s323 = scalar_lea.vmem %s1, %s322
      %s324 = smul.u32 2, %s19
      %s325 = smul.u32 2, %s19
      %p326 = scmp.lt.s32.totalorder %s325, 3
      %s327 = scalar_select %p326, %s325, 3
      %s328 = smul.addr %s327, 4
      %s329 = scalar_lea.vmem %s8, %s328
      %s330 = smul.u32 2, %s19
      %v332 = vld [vmem:[%s317] sm:$0xf]
      %v333 = vld [vmem:[%s317 + $0x4] sm:$0xf]
      %v334 = vunpack.c.l.bf16 %v332
      %v335 = vunpack.c.l.bf16 %v333
      %v336 = vld [vmem:[%s323] sm:$0xf]
      %v337 = vld [vmem:[%s323 + $0x4] sm:$0xf]
      %v338 = vunpack.c.l.bf16 %v336
      %v339 = vunpack.c.l.bf16 %v337
      %v340 = vadd.f32 %v334, %v338
      %v341 = vadd.f32 %v335, %v339
      %v342 = vld [vmem:[%s2] sm:$0x1]
      %v343 = vld [vmem:[%s3] sm:$0x1]
      %vm344 = vcmask 523264
      %v345 = vsel %vm344, %v340, 0.0
      %346 = vadd.xlane.f32.xlu0 %v345
      %v347 = vpop.xlane.xlu0 %346
      %v348 = vsel %vm344, %v341, 0.0
      %349 = vadd.xlane.f32.xlu0 %v348
      %v350 = vpop.xlane.xlu0 %349
      %v351 = vrcp.pop 64.0
      %v352 = vmul.f32 64.0, %v351
      %v353 = vsub.f32 1.0, %v352
      %v354 = vmul.f32 %v351, %v353
      %v355 = vadd.f32 %v351, %v354
      %vm356 = vweird.f32 %v351
      %v357 = vsel %vm356, %v351, %v355
      %v358 = vmul.f32 %v347, %v357
      %v359 = vmul.f32 %v350, %v357
      %v360 = vsub.f32 %v340, %v358
      %v361 = vsub.f32 %v341, %v359
      %v362 = vmul.f32 %v360, %v360
      %v363 = vmul.f32 %v361, %v361
      %v364 = vsel %vm344, %v362, 0.0
      %365 = vadd.xlane.f32.xlu0 %v364
      %v366 = vpop.xlane.xlu0 %365
      %v367 = vsel %vm344, %v363, 0.0
      %368 = vadd.xlane.f32.xlu0 %v367
      %v369 = vpop.xlane.xlu0 %368
      %v370 = vmul.f32 %v366, %v357
      %v371 = vmul.f32 %v369, %v357
      %v372 = vadd.f32 %v370, 1e-05
      %v373 = vadd.f32 %v371, 1e-05
      %v374 = vrsqrt.pop %v372
      %v375 = vmul.f32 %v374, %v372
      %v376 = vmul.f32 %v375, %v374
      %v377 = vmul.f32 0.5, %v376
      %v378 = vsub.f32 1.5, %v377
      %v379 = vmul.f32 %v374, %v378
      %vm380 = vweird.f32 %v372
      %vm381 = vweird.f32 %v374
      %vm382 = vmor %vm380, %vm381
      %v383 = vsel %vm382, %v374, %v379
      %v384 = vrsqrt.pop %v373
      %v385 = vmul.f32 %v384, %v373
      %v386 = vmul.f32 %v385, %v384
      %v387 = vmul.f32 0.5, %v386
      %v388 = vsub.f32 1.5, %v387
      %v389 = vmul.f32 %v384, %v388
      %vm390 = vweird.f32 %v373
      %vm391 = vweird.f32 %v384
      %vm392 = vmor %vm390, %vm391
      %v393 = vsel %vm392, %v384, %v389
      %v394 = vmul.f32 %v360, %v383
      %v395 = vmul.f32 %v361, %v393
      %v397 = vperm.slane %v342, 0
      %v399 = vmul.f32 %v394, %v397
      %v400 = vmul.f32 %v395, %v397
      %v402 = vperm.slane %v343, 0
      %v404 = vadd.f32 %v399, %v402
      %v405 = vadd.f32 %v400, %v402
      %v406 = vld [vmem:[%s4] sm:$0xff]
      %v407 = vld [vmem:[%s4 + $0x8] sm:$0xff]
      %v408 = vld [vmem:[%s4 + $0x10] sm:$0xff]
      %v409 = vld [vmem:[%s4 + $0x18] sm:$0xff]
      %v410 = vld [vmem:[%s4 + $0x20] sm:$0xff]
      %v411 = vld [vmem:[%s4 + $0x28] sm:$0xff]
      %v412 = vld [vmem:[%s4 + $0x30] sm:$0xff]
      %v413 = vld [vmem:[%s4 + $0x38] sm:$0xff]
      %v414 = vpack.c.bf16 %v405, %v404
      %v415 = vld [vmem:[%s5] sm:$0x3]
      %v417 = vperm.slane %v415, 0
      %v418 = vperm.slane %v415, 1
      %v429 = vunpack.c.l.b16 %v406
      %v430 = vunpack.c.h.b16 %v406
      %v431 = vunpack.c.l.b16 %v407
      %v432 = vunpack.c.h.b16 %v407
      %v433 = vunpack.c.l.b16 %v408
      %v434 = vunpack.c.h.b16 %v408
      %v435 = vunpack.c.l.b16 %v409
      %v436 = vunpack.c.h.b16 %v409
      %v437 = vunpack.c.l.b16 %v410
      %v438 = vunpack.c.h.b16 %v410
      %v439 = vunpack.c.l.b16 %v411
      %v440 = vunpack.c.h.b16 %v411
      %v441 = vunpack.c.l.b16 %v412
      %v442 = vunpack.c.h.b16 %v412
      %v443 = vunpack.c.l.b16 %v413
      %v444 = vunpack.c.h.b16 %v413
      %v445 = vpack.c.b16 %v431, %v429
      %v446 = vpack.c.b16 %v432, %v430
      %v447 = vpack.c.b16 %v435, %v433
      %v448 = vpack.c.b16 %v436, %v434
      %v449 = vpack.c.b16 %v439, %v437
      %v450 = vpack.c.b16 %v440, %v438
      %v451 = vpack.c.b16 %v443, %v441
      %v452 = vpack.c.b16 %v444, %v442
      %v462 = vsel %vm344, %v414, 0
      %464 = vmatpush.bf16.msra.mxu0 0
      %465 = vmatpush.bf16.msra.mxu0 0
      %466 = vmatpush.bf16.msra.mxu0 0
      %467 = vmatpush.bf16.msra.mxu0 0
      %468 = vmatpush.bf16.msra.mxu0 %v451
      %469 = vmatpush.bf16.msra.mxu0 %v449
      %470 = vmatpush.bf16.msra.mxu0 %v447
      %471 = vmatpush.bf16.msra.mxu0 %v445
      %472 = vmatmul.bf16.gmra.mxu0 %v462
      %v473 = vpop.f32.mrf.mxu0
      %v474 = vadd.f32 %v417, %v473
      %v475 = vpop.f32.mrf.mxu0
      %v476 = vadd.f32 %v417, %v475
      %477 = vdwg.mxu0
      %478 = vmatpush.bf16.msra.mxu0 0
      %479 = vmatpush.bf16.msra.mxu0 0
      %480 = vmatpush.bf16.msra.mxu0 0
      %481 = vmatpush.bf16.msra.mxu0 0
      %482 = vmatpush.bf16.msra.mxu0 %v452
      %483 = vmatpush.bf16.msra.mxu0 %v450
      %484 = vmatpush.bf16.msra.mxu0 %v448
      %485 = vmatpush.bf16.msra.mxu0 %v446
      %486 = vmatmul.bf16.gmra.mxu0 %v462
      %v487 = vpop.f32.mrf.mxu0
      %v488 = vadd.f32 %v418, %v487
      %v489 = vpop.f32.mrf.mxu0
      %v490 = vadd.f32 %v418, %v489
      %491 = vdwg.mxu0
      %v492 = vmul.f32 %v474, %v474
      %v493 = vmul.f32 %v488, %v488
      %v494 = vmul.f32 %v476, %v476
      %v495 = vmul.f32 %v490, %v490
      %v496 = vmul.f32 %v474, %v492
      %v497 = vmul.f32 %v488, %v493
      %v498 = vmul.f32 %v476, %v494
      %v499 = vmul.f32 %v490, %v495
      %v500 = vmul.f32 %v496, 0.044715
      %v501 = vmul.f32 %v497, 0.044715
      %v502 = vmul.f32 %v498, 0.044715
      %v503 = vmul.f32 %v499, 0.044715
      %v504 = vadd.f32 %v474, %v500
      %v505 = vadd.f32 %v488, %v501
      %v506 = vadd.f32 %v476, %v502
      %v507 = vadd.f32 %v490, %v503
      %v508 = vmul.f32 %v504, 0.7978846
      %v509 = vmul.f32 %v505, 0.7978846
      %v510 = vmul.f32 %v506, 0.7978846
      %v511 = vmul.f32 %v507, 0.7978846
      %v512 = vtanh.pop %v508
      %v513 = vtanh.pop %v509
      %v514 = vtanh.pop %v510
      %v515 = vtanh.pop %v511
      %v516 = vadd.f32 %v512, 1.0
      %v517 = vadd.f32 %v513, 1.0
      %v518 = vadd.f32 %v514, 1.0
      %v519 = vadd.f32 %v515, 1.0
      %v520 = vmul.f32 %v516, 0.5
      %v521 = vmul.f32 %v517, 0.5
      %v522 = vmul.f32 %v518, 0.5
      %v523 = vmul.f32 %v519, 0.5
      %v524 = vmul.f32 %v474, %v520
      %v525 = vmul.f32 %v488, %v521
      %v526 = vmul.f32 %v476, %v522
      %v527 = vmul.f32 %v490, %v523
      %v528 = vld [vmem:[%s6] sm:$0xf]
      %v529 = vld [vmem:[%s6 + $0x4] sm:$0xf]
      %v530 = vld [vmem:[%s6 + $0x8] sm:$0xf]
      %v531 = vld [vmem:[%s6 + $0xc] sm:$0xf]
      %v532 = vld [vmem:[%s6 + $0x10] sm:$0xf]
      %v533 = vld [vmem:[%s6 + $0x14] sm:$0xf]
      %v534 = vld [vmem:[%s6 + $0x18] sm:$0xf]
      %v535 = vld [vmem:[%s6 + $0x1c] sm:$0xf]
      %v536 = vld [vmem:[%s6 + $0x20] sm:$0xf]
      %v537 = vld [vmem:[%s6 + $0x24] sm:$0xf]
      %v538 = vld [vmem:[%s6 + $0x28] sm:$0xf]
      %v539 = vld [vmem:[%s6 + $0x2c] sm:$0xf]
      %v540 = vld [vmem:[%s6 + $0x30] sm:$0xf]
      %v541 = vld [vmem:[%s6 + $0x34] sm:$0xf]
      %v542 = vld [vmem:[%s6 + $0x38] sm:$0xf]
      %v543 = vld [vmem:[%s6 + $0x3c] sm:$0xf]
      %v544 = vld [vmem:[%s6 + $0x40] sm:$0xf]
      %v545 = vld [vmem:[%s6 + $0x44] sm:$0xf]
      %v546 = vld [vmem:[%s6 + $0x48] sm:$0xf]
      %v547 = vld [vmem:[%s6 + $0x4c] sm:$0xf]
      %v548 = vld [vmem:[%s6 + $0x50] sm:$0xf]
      %v549 = vld [vmem:[%s6 + $0x54] sm:$0xf]
      %v550 = vld [vmem:[%s6 + $0x58] sm:$0xf]
      %v551 = vld [vmem:[%s6 + $0x5c] sm:$0xf]
      %v552 = vld [vmem:[%s6 + $0x60] sm:$0xf]
      %v553 = vld [vmem:[%s6 + $0x64] sm:$0xf]
      %v554 = vld [vmem:[%s6 + $0x68] sm:$0xf]
      %v555 = vld [vmem:[%s6 + $0x6c] sm:$0xf]
      %v556 = vld [vmem:[%s6 + $0x70] sm:$0xf]
      %v557 = vld [vmem:[%s6 + $0x74] sm:$0xf]
      %v558 = vld [vmem:[%s6 + $0x78] sm:$0xf]
      %v559 = vld [vmem:[%s6 + $0x7c] sm:$0xf]
      %v560 = vpack.c.bf16 %v526, %v524
      %v561 = vpack.c.bf16 %v527, %v525
      %v562 = vld [vmem:[%s7] sm:$0x1]
      %v564 = vperm.slane %v562, 0
      %v598 = vunpack.c.l.b16 %v528
      %v599 = vunpack.c.l.b16 %v529
      %v600 = vunpack.c.l.b16 %v530
      %v601 = vunpack.c.l.b16 %v531
      %v602 = vunpack.c.l.b16 %v532
      %v603 = vunpack.c.l.b16 %v533
      %v604 = vunpack.c.l.b16 %v534
      %v605 = vunpack.c.l.b16 %v535
      %v606 = vunpack.c.l.b16 %v536
      %v607 = vunpack.c.l.b16 %v537
      %v608 = vunpack.c.l.b16 %v538
      %v609 = vunpack.c.l.b16 %v539
      %v610 = vunpack.c.l.b16 %v540
      %v611 = vunpack.c.l.b16 %v541
      %v612 = vunpack.c.l.b16 %v542
      %v613 = vunpack.c.l.b16 %v543
      %v614 = vunpack.c.l.b16 %v544
      %v615 = vunpack.c.l.b16 %v545
      %v616 = vunpack.c.l.b16 %v546
      %v617 = vunpack.c.l.b16 %v547
      %v618 = vunpack.c.l.b16 %v548
      %v619 = vunpack.c.l.b16 %v549
      %v620 = vunpack.c.l.b16 %v550
      %v621 = vunpack.c.l.b16 %v551
      %v622 = vunpack.c.l.b16 %v552
      %v623 = vunpack.c.l.b16 %v553
      %v624 = vunpack.c.l.b16 %v554
      %v625 = vunpack.c.l.b16 %v555
      %v626 = vunpack.c.l.b16 %v556
      %v627 = vunpack.c.l.b16 %v557
      %v628 = vunpack.c.l.b16 %v558
      %v629 = vunpack.c.l.b16 %v559
      %v630 = vpack.c.b16 %v599, %v598
      %v631 = vpack.c.b16 %v601, %v600
      %v632 = vpack.c.b16 %v603, %v602
      %v633 = vpack.c.b16 %v605, %v604
      %v634 = vpack.c.b16 %v607, %v606
      %v635 = vpack.c.b16 %v609, %v608
      %v636 = vpack.c.b16 %v611, %v610
      %v637 = vpack.c.b16 %v613, %v612
      %v638 = vpack.c.b16 %v615, %v614
      %v639 = vpack.c.b16 %v617, %v616
      %v640 = vpack.c.b16 %v619, %v618
      %v641 = vpack.c.b16 %v621, %v620
      %v642 = vpack.c.b16 %v623, %v622
      %v643 = vpack.c.b16 %v625, %v624
      %v644 = vpack.c.b16 %v627, %v626
      %v645 = vpack.c.b16 %v629, %v628
      %662 = vmatpush.bf16.msra.mxu0 %v637
      %663 = vmatpush.bf16.msra.mxu0 %v636
      %664 = vmatpush.bf16.msra.mxu0 %v635
      %665 = vmatpush.bf16.msra.mxu0 %v634
      %666 = vmatpush.bf16.msra.mxu0 %v633
      %667 = vmatpush.bf16.msra.mxu0 %v632
      %668 = vmatpush.bf16.msra.mxu0 %v631
      %669 = vmatpush.bf16.msra.mxu0 %v630
      %670 = vmatmul.bf16.gmra.mxu0 %v560
      %v671 = vpop.f32.mrf.mxu0
      %v672 = vadd.f32 %v564, %v671
      %v673 = vpop.f32.mrf.mxu0
      %v674 = vadd.f32 %v564, %v673
      %675 = vdwg.mxu0
      %676 = vmatpush.bf16.msra.mxu0 %v645
      %677 = vmatpush.bf16.msra.mxu0 %v644
      %678 = vmatpush.bf16.msra.mxu0 %v643
      %679 = vmatpush.bf16.msra.mxu0 %v642
      %680 = vmatpush.bf16.msra.mxu0 %v641
      %681 = vmatpush.bf16.msra.mxu0 %v640
      %682 = vmatpush.bf16.msra.mxu0 %v639
      %683 = vmatpush.bf16.msra.mxu0 %v638
      %684 = vmatmul.bf16.gmra.mxu0 %v561
      %v685 = vpop.f32.mrf.mxu0
      %v686 = vadd.f32 %v672, %v685
      %v687 = vpop.f32.mrf.mxu0
      %v688 = vadd.f32 %v674, %v687
      %689 = vdwg.mxu0
      %v690 = vadd.f32 %v340, %v686
      %v691 = vadd.f32 %v341, %v688
      %v692 = vpack.c.bf16 %v690, %v690
      %v693 = vpack.c.bf16 %v691, %v691
      %vm694 = vcmask 519168
      %695 = vst.msk [vmem:[%s329] sm:$0xf] %vm694, %v692
      %696 = vst.msk [vmem:[%s329 + $0x4] sm:$0xf] %vm694, %v693
      %s697 = smul.u32 2, %s19
      %p698 = scmp.lt.s32.totalorder %s697, 3
      %s699 = scalar_select %p698, %s697, 3
      %s700 = smul.addr %s699, 4
      %s701 = scalar_lea.vmem %s8, %s700
      // Predicated region
      $region53: #{forward.18} parent=51 // pred_check
        %p702 = pneg %p215
      $region54: #{forward.18} parent=51 // pred_check_branch
        %704 = sbr.rel (%p702) target = $region56
      $region55: #{forward.18} parent=51 // pred_region
        %s705 = smul.u32 2, %s19
      $region56: #{forward.18} parent=51 // pred_fallthru
        _
    $region52: #{forward.18} parent=5 // pred_fallthru
      _
    %p706 = scmp.le.s32.totalorder 2, %s14
    // Predicated region
    $region57: #{forward.18} parent=5 // pred_check
      %p707 = pneg %p706
    $region58: #{forward.18} parent=5 // pred_check_branch
      %709 = sbr.rel (%p707) target = $region60
    $region59: #{forward.18} parent=5 // pred_region
      %s710 = ssub.s32 %s14, 2
      // Predicated region
      $region61: #{forward.18} parent=59 // pred_check
        %p711 = pneg %p221
      $region62: #{forward.18} parent=59 // pred_check_branch
        %713 = sbr.rel (%p711) target = $region64
      $region63: #{forward.18} parent=59 // pred_region
        %s714 = smul.u32 2, %s20
        %p715 = scmp.lt.s32.totalorder %s714, 3
        %s716 = scalar_select %p715, %s714, 3
        %s717 = smul.addr %s716, 4
        %s718 = scalar_lea.vmem %s8, %s717
      $region64: #{forward.18} parent=59 // pred_fallthru
        _
    $region60: #{forward.18} parent=5 // pred_fallthru
      _
  $region6: #{forward.18} parent=0 // loop_footer
    %s18 = sadd.s32 1, %s14
  $region7: #{forward.18} parent=0 // loop_footer_branch
    %13 = sbr.rel target = $region3
  $region8: #{forward.18} parent=0 // loop_exit
    _

// kernel: forward.16
$region0: #{forward.16}
  #allocation0 [shape = 'u32[]', space=smem, size = 0x4, offset = 0x4, fixed_abs, tag = 'smem constant byte address 0x4 - core index']
  #allocation1 [shape = 'u32[72,128]{1,0:T(1,128)}', space=vmem, size = 0x9000, scoped, tag = 'internal scratch']
  %s0 = inlined_call_operand.vmem [shape: bf16[32,128], index: 0, kind: input, shape index: {}]
  %s1 = inlined_call_operand.vmem [shape: f32[1,128], index: 1, kind: input, shape index: {}]
  %s2 = inlined_call_operand.vmem [shape: f32[1,128], index: 2, kind: input, shape index: {}]
  %s3 = inlined_call_operand.vmem [shape: bf16[128,64], index: 3, kind: input, shape index: {}]
  %s4 = inlined_call_operand.vmem [shape: bf16[32,64], index: 4, kind: output, shape index: {}]
  %s5 = sld [smem:[#allocation0]]
  $region49: #{forward.16} parent=0
    _
  %s7 = ssub.s32 1, %s5
  %s8 = scalar_select 0, %s7, %s5
  loop: start=0, step=1, limit=4
  $region2: #{forward.16} parent=0 // loop_pre_header
    _
  $region3: #{forward.16} parent=0 // loop_header
    %s10 = sphi 0, %s14
    %p11 = scmp.ge.s32.totalorder %s10, 4
    %s20 = sphi 0, %s22
    %s23 = sphi 0, %s20
    %s24 = sphi 0, %s23
    %s40 = sphi 0, %s24
    %s44 = sphi 0, %s44
    %s46 = sphi 0, %s44
    %s47 = sphi 0, %s46
    %s61 = sphi 0, %s47
    %s65 = sphi 0, %s65
    %s67 = sphi 0, %s65
    %s68 = sphi 0, %s67
    %s82 = sphi 0, %s68
    %s86 = sphi 0, %s86
    %s88 = sphi 0, %s86
    %s89 = sphi 0, %s88
    %s103 = sphi 0, %s89
    %s109 = sphi 0, %s111
    %s112 = sphi 0, %s109
    %s113 = sphi 0, %s112
    %s129 = sphi 0, %s113
  $region4: #{forward.16} parent=0 // loop_header_branch
    %13 = sbr.rel (%p11) target = $region8
  $region5: #{forward.16} parent=0 // loop_body
    %s15 = ssub.s32 %s10, 1
    %s16 = ssub.s32 %s10, 2
    %s17 = sadd.s32 %s10, 1
    %s18 = ssub.s32 %s10, %s17
    %p19 = scmp.eq.s32.totalorder %s18, 0
    %s21 = sadd.s32 %s20, 1
    %s22 = scalar_select %p19, %s20, %s21
    %p25 = pneg %p19
    %p26 = scmp.eq.s32.totalorder %s10, 1
    %p27 = por %p25, %p26
    %p28 = scmp.ne.s32.totalorder %s20, %s23
    %p29 = scmp.eq.s32.totalorder %s10, 0
    %p30 = por %p28, %p29
    %p31 = scmp.ne.s32.totalorder %s20, %s23
    %p32 = scmp.eq.s32.totalorder %s15, 1
    %p33 = por %p31, %p32
    %p34 = scmp.ne.s32.totalorder %s23, %s24
    %p35 = scmp.eq.s32.totalorder %s15, 0
    %p36 = por %p34, %p35
    %p37 = scmp.ne.s32.totalorder %s23, %s24
    %p38 = scmp.eq.s32.totalorder %s16, 1
    %p39 = por %p37, %p38
    %p41 = scmp.ne.s32.totalorder %s24, %s40
    %p42 = scmp.eq.s32.totalorder %s16, 0
    %p43 = por %p41, %p42
    %s45 = sadd.s32 %s44, 1
    %p48 = scmp.eq.s32.totalorder %s10, 1
    %p49 = scmp.ne.s32.totalorder %s44, %s46
    %p50 = scmp.eq.s32.totalorder %s10, 0
    %p51 = por %p49, %p50
    %p52 = scmp.ne.s32.totalorder %s44, %s46
    %p53 = scmp.eq.s32.totalorder %s15, 1
    %p54 = por %p52, %p53
    %p55 = scmp.ne.s32.totalorder %s46, %s47
    %p56 = scmp.eq.s32.totalorder %s15, 0
    %p57 = por %p55, %p56
    %p58 = scmp.ne.s32.totalorder %s46, %s47
    %p59 = scmp.eq.s32.totalorder %s16, 1
    %p60 = por %p58, %p59
    %p62 = scmp.ne.s32.totalorder %s47, %s61
    %p63 = scmp.eq.s32.totalorder %s16, 0
    %p64 = por %p62, %p63
    %s66 = sadd.s32 %s65, 1
    %p69 = scmp.eq.s32.totalorder %s10, 1
    %p70 = scmp.ne.s32.totalorder %s65, %s67
    %p71 = scmp.eq.s32.totalorder %s10, 0
    %p72 = por %p70, %p71
    %p73 = scmp.ne.s32.totalorder %s65, %s67
    %p74 = scmp.eq.s32.totalorder %s15, 1
    %p75 = por %p73, %p74
    %p76 = scmp.ne.s32.totalorder %s67, %s68
    %p77 = scmp.eq.s32.totalorder %s15, 0
    %p78 = por %p76, %p77
    %p79 = scmp.ne.s32.totalorder %s67, %s68
    %p80 = scmp.eq.s32.totalorder %s16, 1
    %p81 = por %p79, %p80
    %p83 = scmp.ne.s32.totalorder %s68, %s82
    %p84 = scmp.eq.s32.totalorder %s16, 0
    %p85 = por %p83, %p84
    %s87 = sadd.s32 %s86, 1
    %p90 = scmp.eq.s32.totalorder %s10, 1
    %p91 = scmp.ne.s32.totalorder %s86, %s88
    %p92 = scmp.eq.s32.totalorder %s10, 0
    %p93 = por %p91, %p92
    %p94 = scmp.ne.s32.totalorder %s86, %s88
    %p95 = scmp.eq.s32.totalorder %s15, 1
    %p96 = por %p94, %p95
    %p97 = scmp.ne.s32.totalorder %s88, %s89
    %p98 = scmp.eq.s32.totalorder %s15, 0
    %p99 = por %p97, %p98
    %p100 = scmp.ne.s32.totalorder %s88, %s89
    %p101 = scmp.eq.s32.totalorder %s16, 1
    %p102 = por %p100, %p101
    %p104 = scmp.ne.s32.totalorder %s89, %s103
    %p105 = scmp.eq.s32.totalorder %s16, 0
    %p106 = por %p104, %p105
    %s107 = ssub.s32 %s10, %s17
    %p108 = scmp.eq.s32.totalorder %s107, 0
    %s110 = sadd.s32 %s109, 1
    %s111 = scalar_select %p108, %s109, %s110
    %p114 = pneg %p108
    %p115 = scmp.eq.s32.totalorder %s10, 1
    %p116 = por %p114, %p115
    %p117 = scmp.ne.s32.totalorder %s109, %s112
    %p118 = scmp.eq.s32.totalorder %s10, 0
    %p119 = por %p117, %p118
    %p120 = scmp.ne.s32.totalorder %s109, %s112
    %p121 = scmp.eq.s32.totalorder %s15, 1
    %p122 = por %p120, %p121
    %p123 = scmp.ne.s32.totalorder %s112, %s113
    %p124 = scmp.eq.s32.totalorder %s15, 0
    %p125 = por %p123, %p124
    %p126 = scmp.ne.s32.totalorder %s112, %s113
    %p127 = scmp.eq.s32.totalorder %s16, 1
    %p128 = por %p126, %p127
    %p130 = scmp.ne.s32.totalorder %s113, %s129
    %p131 = scmp.eq.s32.totalorder %s16, 0
    %p132 = por %p130, %p131
    %p133 = scmp.le.s32.totalorder 1, %s10
    %p134 = scmp.lt.s32.totalorder %s10, 3
    %p135 = pnand %p133, %p134
    %p136 = pneg %p135
    // Predicated region
    $region9: #{forward.16} parent=5 // pred_check
      _
    $region10: #{forward.16} parent=5 // pred_check_branch
      %138 = sbr.rel (%p135) target = $region12
    $region11: #{forward.16} parent=5 // pred_region
      %s139 = ssub.s32 %s10, 1
      // Predicated region
      $region13: #{forward.16} parent=11 // pred_check
        %p140 = pneg %p57
      $region14: #{forward.16} parent=11 // pred_check_branch
        %142 = sbr.rel (%p140) target = $region16
      $region15: #{forward.16} parent=11 // pred_region
        _
      $region16: #{forward.16} parent=11 // pred_fallthru
        _
      // Predicated region
      $region17: #{forward.16} parent=11 // pred_check
        %p143 = pneg %p78
      $region18: #{forward.16} parent=11 // pred_check_branch
        %145 = sbr.rel (%p143) target = $region20
      $region19: #{forward.16} parent=11 // pred_region
        _
      $region20: #{forward.16} parent=11 // pred_fallthru
        _
      // Predicated region
      $region21: #{forward.16} parent=11 // pred_check
        %p146 = pneg %p99
      $region22: #{forward.16} parent=11 // pred_check_branch
        %148 = sbr.rel (%p146) target = $region24
      $region23: #{forward.16} parent=11 // pred_region
        _
      $region24: #{forward.16} parent=11 // pred_fallthru
        _
    $region12: #{forward.16} parent=5 // pred_fallthru
      _
    %p149 = scmp.lt.s32.totalorder %s10, 2
    // Predicated region
    $region25: #{forward.16} parent=5 // pred_check
      %p150 = pneg %p149
    $region26: #{forward.16} parent=5 // pred_check_branch
      %152 = sbr.rel (%p150) target = $region28
    $region27: #{forward.16} parent=5 // pred_region
      // Predicated region
      $region29: #{forward.16} parent=27 // pred_check
        %p153 = pneg %p30
      $region30: #{forward.16} parent=27 // pred_check_branch
        %155 = sbr.rel (%p153) target = $region32
      $region31: #{forward.16} parent=27 // pred_region
        %s156 = smul.u32 2, %s10
        %p157 = scmp.lt.s32.totalorder %s156, 3
        %s158 = scalar_select %p157, %s156, 3
        %s159 = smul.addr %s158, 4
        %s160 = scalar_lea.vmem %s0, %s159
        %s161 = smul.u32 2, %s10
      $region32: #{forward.16} parent=27 // pred_fallthru
        _
    $region28: #{forward.16} parent=5 // pred_fallthru
      _
    %p162 = scmp.le.s32.totalorder 1, %s10
    %p163 = scmp.lt.s32.totalorder %s10, 3
    %p164 = pnand %p162, %p163
    %p165 = pneg %p164
    // Predicated region
    $region33: #{forward.16} parent=5 // pred_check
      _
    $region34: #{forward.16} parent=5 // pred_check_branch
      %167 = sbr.rel (%p164) target = $region36
    $region35: #{forward.16} parent=5 // pred_region
      %s168 = ssub.s32 %s10, 1
      %s169 = smul.u32 2, %s15
      %p170 = scmp.lt.s32.totalorder %s169, 3
      %s171 = scalar_select %p170, %s169, 3
      %s172 = smul.addr %s171, 4
      %s173 = scalar_lea.vmem %s0, %s172
      %p174 = pneg %p36
      %p175 = pneg %p33
      %p176 = pneg %p57
      %p177 = pneg %p54
      %p178 = pneg %p78
      %p179 = pneg %p75
      %p180 = pneg %p99
      %p181 = pneg %p96
      %p182 = pneg %p125
      %p183 = pneg %p122
      %s184 = smul.u32 2, %s15
      %p185 = scmp.lt.s32.totalorder %s184, 3
      %s186 = scalar_select %p185, %s184, 3
      %s187 = smul.addr %s186, 4
      %s188 = scalar_lea.vmem %s4, %s187
      %s189 = smul.u32 2, %s15
      %p190 = scmp.lt.s32.totalorder %s189, 3
      %s191 = scalar_select %p190, %s189, 3
      %s192 = smul.addr %s191, 4
      %s193 = scalar_lea.vmem %s0, %s192
      %s194 = smul.u32 2, %s15
      %s195 = smul.u32 2, %s15
      %p196 = scmp.lt.s32.totalorder %s195, 3
      %s197 = scalar_select %p196, %s195, 3
      %s198 = smul.addr %s197, 4
      %s199 = scalar_lea.vmem %s4, %s198
      %s200 = smul.u32 2, %s15
      %v201 = vld [vmem:[%s193] sm:$0xf]
      %v202 = vld [vmem:[%s193 + $0x4] sm:$0xf]
      %v203 = vunpack.c.l.bf16 %v201
      %v204 = vunpack.c.l.bf16 %v202
      %v205 = vld [vmem:[%s1] sm:$0x1]
      %v206 = vld [vmem:[%s2] sm:$0x1]
      %207 = vadd.xlane.f32.xlu0 %v203
      %v208 = vpop.xlane.xlu0 %207
      %209 = vadd.xlane.f32.xlu0 %v204
      %v210 = vpop.xlane.xlu0 %209
      %v211 = vrcp.pop 128.0
      %v212 = vmul.f32 128.0, %v211
      %v213 = vsub.f32 1.0, %v212
      %v214 = vmul.f32 %v211, %v213
      %v215 = vadd.f32 %v211, %v214
      %vm216 = vweird.f32 %v211
      %v217 = vsel %vm216, %v211, %v215
      %v218 = vmul.f32 %v208, %v217
      %v219 = vmul.f32 %v210, %v217
      %v220 = vsub.f32 %v203, %v218
      %v221 = vsub.f32 %v204, %v219
      %v222 = vmul.f32 %v220, %v220
      %v223 = vmul.f32 %v221, %v221
      %224 = vadd.xlane.f32.xlu0 %v222
      %v225 = vpop.xlane.xlu0 %224
      %226 = vadd.xlane.f32.xlu0 %v223
      %v227 = vpop.xlane.xlu0 %226
      %v228 = vmul.f32 %v225, %v217
      %v229 = vmul.f32 %v227, %v217
      %v230 = vadd.f32 %v228, 1e-05
      %v231 = vadd.f32 %v229, 1e-05
      %v232 = vrsqrt.pop %v230
      %v233 = vmul.f32 %v232, %v230
      %v234 = vmul.f32 %v233, %v232
      %v235 = vmul.f32 0.5, %v234
      %v236 = vsub.f32 1.5, %v235
      %v237 = vmul.f32 %v232, %v236
      %vm238 = vweird.f32 %v230
      %vm239 = vweird.f32 %v232
      %vm240 = vmor %vm238, %vm239
      %v241 = vsel %vm240, %v232, %v237
      %v242 = vrsqrt.pop %v231
      %v243 = vmul.f32 %v242, %v231
      %v244 = vmul.f32 %v243, %v242
      %v245 = vmul.f32 0.5, %v244
      %v246 = vsub.f32 1.5, %v245
      %v247 = vmul.f32 %v242, %v246
      %vm248 = vweird.f32 %v231
      %vm249 = vweird.f32 %v242
      %vm250 = vmor %vm248, %vm249
      %v251 = vsel %vm250, %v242, %v247
      %v252 = vmul.f32 %v220, %v241
      %v253 = vmul.f32 %v221, %v251
      %v255 = vperm.slane %v205, 0
      %v257 = vmul.f32 %v252, %v255
      %v258 = vmul.f32 %v253, %v255
      %v260 = vperm.slane %v206, 0
      %v262 = vadd.f32 %v257, %v260
      %v263 = vadd.f32 %v258, %v260
      %v264 = vld [vmem:[%s3] sm:$0xf]
      %v265 = vld [vmem:[%s3 + $0x4] sm:$0xf]
      %v266 = vld [vmem:[%s3 + $0x8] sm:$0xf]
      %v267 = vld [vmem:[%s3 + $0xc] sm:$0xf]
      %v268 = vld [vmem:[%s3 + $0x10] sm:$0xf]
      %v269 = vld [vmem:[%s3 + $0x14] sm:$0xf]
      %v270 = vld [vmem:[%s3 + $0x18] sm:$0xf]
      %v271 = vld [vmem:[%s3 + $0x1c] sm:$0xf]
      %v272 = vld [vmem:[%s3 + $0x20] sm:$0xf]
      %v273 = vld [vmem:[%s3 + $0x24] sm:$0xf]
      %v274 = vld [vmem:[%s3 + $0x28] sm:$0xf]
      %v275 = vld [vmem:[%s3 + $0x2c] sm:$0xf]
      %v276 = vld [vmem:[%s3 + $0x30] sm:$0xf]
      %v277 = vld [vmem:[%s3 + $0x34] sm:$0xf]
      %v278 = vld [vmem:[%s3 + $0x38] sm:$0xf]
      %v279 = vld [vmem:[%s3 + $0x3c] sm:$0xf]
      %v280 = vpack.c.bf16 %v263, %v262
      %v297 = vunpack.c.l.b16 %v264
      %v298 = vunpack.c.l.b16 %v265
      %v299 = vunpack.c.l.b16 %v266
      %v300 = vunpack.c.l.b16 %v267
      %v301 = vunpack.c.l.b16 %v268
      %v302 = vunpack.c.l.b16 %v269
      %v303 = vunpack.c.l.b16 %v270
      %v304 = vunpack.c.l.b16 %v271
      %v305 = vunpack.c.l.b16 %v272
      %v306 = vunpack.c.l.b16 %v273
      %v307 = vunpack.c.l.b16 %v274
      %v308 = vunpack.c.l.b16 %v275
      %v309 = vunpack.c.l.b16 %v276
      %v310 = vunpack.c.l.b16 %v277
      %v311 = vunpack.c.l.b16 %v278
      %v312 = vunpack.c.l.b16 %v279
      %v313 = vpack.c.b16 %v298, %v297
      %v314 = vpack.c.b16 %v300, %v299
      %v315 = vpack.c.b16 %v302, %v301
      %v316 = vpack.c.b16 %v304, %v303
      %v317 = vpack.c.b16 %v306, %v305
      %v318 = vpack.c.b16 %v308, %v307
      %v319 = vpack.c.b16 %v310, %v309
      %v320 = vpack.c.b16 %v312, %v311
      %329 = vmatpush.bf16.msra.mxu0 %v320
      %330 = vmatpush.bf16.msra.mxu0 %v319
      %331 = vmatpush.bf16.msra.mxu0 %v318
      %332 = vmatpush.bf16.msra.mxu0 %v317
      %333 = vmatpush.bf16.msra.mxu0 %v316
      %334 = vmatpush.bf16.msra.mxu0 %v315
      %335 = vmatpush.bf16.msra.mxu0 %v314
      %336 = vmatpush.bf16.msra.mxu0 %v313
      %337 = vmatmul.bf16.gmra.mxu0 %v280
      %v338 = vpop.f32.mrf.mxu0
      %v339 = vadd.f32 0.0, %v338
      %v340 = vpop.f32.mrf.mxu0
      %v341 = vadd.f32 0.0, %v340
      %342 = vdwg.mxu0
      %v343 = vpack.c.bf16 %v339, %v339
      %v344 = vpack.c.bf16 %v341, %v341
      %vm345 = vcmask 519168
      %346 = vst.msk [vmem:[%s199] sm:$0xf] %vm345, %v343
      %347 = vst.msk [vmem:[%s199 + $0x4] sm:$0xf] %vm345, %v344
      %s348 = smul.u32 2, %s15
      %p349 = scmp.lt.s32.totalorder %s348, 3
      %s350 = scalar_select %p349, %s348, 3
      %s351 = smul.addr %s350, 4
      %s352 = scalar_lea.vmem %s4, %s351
      // Predicated region
      $region37: #{forward.16} parent=35 // pred_check
        %p353 = pneg %p122
      $region38: #{forward.16} parent=35 // pred_check_branch
        %355 = sbr.rel (%p353) target = $region40
      $region39: #{forward.16} parent=35 // pred_region
        %s356 = smul.u32 2, %s15
      $region40: #{forward.16} parent=35 // pred_fallthru
        _
    $region36: #{forward.16} parent=5 // pred_fallthru
      _
    %p357 = scmp.le.s32.totalorder 2, %s10
    // Predicated region
    $region41: #{forward.16} parent=5 // pred_check
      %p358 = pneg %p357
    $region42: #{forward.16} parent=5 // pred_check_branch
      %360 = sbr.rel (%p358) target = $region44
    $region43: #{forward.16} parent=5 // pred_region
      %s361 = ssub.s32 %s10, 2
      // Predicated region
      $region45: #{forward.16} parent=43 // pred_check
        %p362 = pneg %p128
      $region46: #{forward.16} parent=43 // pred_check_branch
        %364 = sbr.rel (%p362) target = $region48
      $region47: #{forward.16} parent=43 // pred_region
        %s365 = smul.u32 2, %s16
        %p366 = scmp.lt.s32.totalorder %s365, 3
        %s367 = scalar_select %p366, %s365, 3
        %s368 = smul.addr %s367, 4
        %s369 = scalar_lea.vmem %s4, %s368
      $region48: #{forward.16} parent=43 // pred_fallthru
        _
    $region44: #{forward.16} parent=5 // pred_fallthru
      _
  $region6: #{forward.16} parent=0 // loop_footer
    %s14 = sadd.s32 1, %s10
  $region7: #{forward.16} parent=0 // loop_footer_branch
    %9 = sbr.rel target = $region3
  $region8: #{forward.16} parent=0 // loop_exit
    _

// kernel: forward.17
$region0: #{forward.17}
  #allocation0 [shape = 'u32[]', space=smem, size = 0x4, offset = 0x4, fixed_abs, tag = 'smem constant byte address 0x4 - core index']
  #allocation1 [shape = 'u32[72,128]{1,0:T(1,128)}', space=vmem, size = 0x9000, scoped, tag = 'internal scratch']
  %s0 = inlined_call_operand.vmem [shape: bf16[2,16,64], index: 0, kind: input, shape index: {}]
  %s1 = inlined_call_operand.vmem [shape: f32[1,64], index: 1, kind: input, shape index: {}]
  %s2 = inlined_call_operand.vmem [shape: f32[1,64], index: 2, kind: input, shape index: {}]
  %s3 = inlined_call_operand.vmem [shape: bf16[64,192], index: 3, kind: input, shape index: {}]
  %s4 = inlined_call_operand.vmem [shape: f32[1,192], index: 4, kind: input, shape index: {}]
  %s5 = inlined_call_operand.vmem [shape: bf16[64,64], index: 5, kind: input, shape index: {}]
  %s6 = inlined_call_operand.vmem [shape: f32[1,64], index: 6, kind: input, shape index: {}]
  %s7 = inlined_call_operand.vmem [shape: f32[4,16,16], index: 7, kind: input, shape index: {}]
  %s8 = inlined_call_operand.vmem [shape: bf16[2,16,64], index: 8, kind: output, shape index: {}]
  %s9 = sld [smem:[#allocation0]]
  $region65: #{forward.17} parent=0
    _
  %s11 = ssub.s32 1, %s9
  %s12 = scalar_select 0, %s11, %s9
  loop: start=0, step=1, limit=4
  $region2: #{forward.17} parent=0 // loop_pre_header
    _
  $region3: #{forward.17} parent=0 // loop_header
    %s14 = sphi 0, %s18
    %p15 = scmp.ge.s32.totalorder %s14, 4
    %s21 = sphi 0, %s33
    %s22 = sphi 0, %s29
    %s23 = sphi 0, %s21
    %s24 = sphi 0, %s22
    %s25 = sphi 0, %s23
    %s26 = sphi 0, %s24
    %s38 = sphi 0, %s40
    %s41 = sphi 0, %s38
    %s42 = sphi 0, %s41
    %s58 = sphi 0, %s42
    %s62 = sphi 0, %s62
    %s64 = sphi 0, %s62
    %s65 = sphi 0, %s64
    %s79 = sphi 0, %s65
    %s83 = sphi 0, %s83
    %s85 = sphi 0, %s83
    %s86 = sphi 0, %s85
    %s100 = sphi 0, %s86
    %s104 = sphi 0, %s104
    %s106 = sphi 0, %s104
    %s107 = sphi 0, %s106
    %s121 = sphi 0, %s107
    %s125 = sphi 0, %s125
    %s127 = sphi 0, %s125
    %s128 = sphi 0, %s127
    %s142 = sphi 0, %s128
    %s146 = sphi 0, %s146
    %s148 = sphi 0, %s146
    %s149 = sphi 0, %s148
    %s163 = sphi 0, %s149
    %s167 = sphi 0, %s167
    %s169 = sphi 0, %s167
    %s170 = sphi 0, %s169
    %s184 = sphi 0, %s170
    %s188 = sphi 0, %s188
    %s190 = sphi 0, %s188
    %s191 = sphi 0, %s190
    %s205 = sphi 0, %s191
    %s213 = sphi 0, %s215
    %s216 = sphi 0, %s213
    %s217 = sphi 0, %s216
    %s233 = sphi 0, %s217
  $region4: #{forward.17} parent=0 // loop_header_branch
    %17 = sbr.rel (%p15) target = $region8
  $region5: #{forward.17} parent=0 // loop_body
    %s19 = ssub.s32 %s14, 1
    %s20 = ssub.s32 %s14, 2
    %s27 = sadd.s32 1, %s22
    %p28 = scmp.ge.s32.totalorder %s27, 1
    %s29 = scalar_select %p28, 0, %s27
    %s30 = sadd.s32 1, %s21
    %s31 = scalar_select %p28, %s30, %s21
    %p32 = scmp.ge.s32.totalorder %s31, 2
    %s33 = scalar_select %p32, 0, %s31
    %s34 = sadd.s32 %s21, %s22
    %s35 = sadd.s32 %s33, %s29
    %s36 = ssub.s32 %s34, %s35
    %p37 = scmp.eq.s32.totalorder %s36, 0
    %s39 = sadd.s32 %s38, 1
    %s40 = scalar_select %p37, %s38, %s39
    %p43 = pneg %p37
    %p44 = scmp.eq.s32.totalorder %s14, 1
    %p45 = por %p43, %p44
    %p46 = scmp.ne.s32.totalorder %s38, %s41
    %p47 = scmp.eq.s32.totalorder %s14, 0
    %p48 = por %p46, %p47
    %p49 = scmp.ne.s32.totalorder %s38, %s41
    %p50 = scmp.eq.s32.totalorder %s19, 1
    %p51 = por %p49, %p50
    %p52 = scmp.ne.s32.totalorder %s41, %s42
    %p53 = scmp.eq.s32.totalorder %s19, 0
    %p54 = por %p52, %p53
    %p55 = scmp.ne.s32.totalorder %s41, %s42
    %p56 = scmp.eq.s32.totalorder %s20, 1
    %p57 = por %p55, %p56
    %p59 = scmp.ne.s32.totalorder %s42, %s58
    %p60 = scmp.eq.s32.totalorder %s20, 0
    %p61 = por %p59, %p60
    %s63 = sadd.s32 %s62, 1
    %p66 = scmp.eq.s32.totalorder %s14, 1
    %p67 = scmp.ne.s32.totalorder %s62, %s64
    %p68 = scmp.eq.s32.totalorder %s14, 0
    %p69 = por %p67, %p68
    %p70 = scmp.ne.s32.totalorder %s62, %s64
    %p71 = scmp.eq.s32.totalorder %s19, 1
    %p72 = por %p70, %p71
    %p73 = scmp.ne.s32.totalorder %s64, %s65
    %p74 = scmp.eq.s32.totalorder %s19, 0
    %p75 = por %p73, %p74
    %p76 = scmp.ne.s32.totalorder %s64, %s65
    %p77 = scmp.eq.s32.totalorder %s20, 1
    %p78 = por %p76, %p77
    %p80 = scmp.ne.s32.totalorder %s65, %s79
    %p81 = scmp.eq.s32.totalorder %s20, 0
    %p82 = por %p80, %p81
    %s84 = sadd.s32 %s83, 1
    %p87 = scmp.eq.s32.totalorder %s14, 1
    %p88 = scmp.ne.s32.totalorder %s83, %s85
    %p89 = scmp.eq.s32.totalorder %s14, 0
    %p90 = por %p88, %p89
    %p91 = scmp.ne.s32.totalorder %s83, %s85
    %p92 = scmp.eq.s32.totalorder %s19, 1
    %p93 = por %p91, %p92
    %p94 = scmp.ne.s32.totalorder %s85, %s86
    %p95 = scmp.eq.s32.totalorder %s19, 0
    %p96 = por %p94, %p95
    %p97 = scmp.ne.s32.totalorder %s85, %s86
    %p98 = scmp.eq.s32.totalorder %s20, 1
    %p99 = por %p97, %p98
    %p101 = scmp.ne.s32.totalorder %s86, %s100
    %p102 = scmp.eq.s32.totalorder %s20, 0
    %p103 = por %p101, %p102
    %s105 = sadd.s32 %s104, 1
    %p108 = scmp.eq.s32.totalorder %s14, 1
    %p109 = scmp.ne.s32.totalorder %s104, %s106
    %p110 = scmp.eq.s32.totalorder %s14, 0
    %p111 = por %p109, %p110
    %p112 = scmp.ne.s32.totalorder %s104, %s106
    %p113 = scmp.eq.s32.totalorder %s19, 1
    %p114 = por %p112, %p113
    %p115 = scmp.ne.s32.totalorder %s106, %s107
    %p116 = scmp.eq.s32.totalorder %s19, 0
    %p117 = por %p115, %p116
    %p118 = scmp.ne.s32.totalorder %s106, %s107
    %p119 = scmp.eq.s32.totalorder %s20, 1
    %p120 = por %p118, %p119
    %p122 = scmp.ne.s32.totalorder %s107, %s121
    %p123 = scmp.eq.s32.totalorder %s20, 0
    %p124 = por %p122, %p123
    %s126 = sadd.s32 %s125, 1
    %p129 = scmp.eq.s32.totalorder %s14, 1
    %p130 = scmp.ne.s32.totalorder %s125, %s127
    %p131 = scmp.eq.s32.totalorder %s14, 0
    %p132 = por %p130, %p131
    %p133 = scmp.ne.s32.totalorder %s125, %s127
    %p134 = scmp.eq.s32.totalorder %s19, 1
    %p135 = por %p133, %p134
    %p136 = scmp.ne.s32.totalorder %s127, %s128
    %p137 = scmp.eq.s32.totalorder %s19, 0
    %p138 = por %p136, %p137
    %p139 = scmp.ne.s32.totalorder %s127, %s128
    %p140 = scmp.eq.s32.totalorder %s20, 1
    %p141 = por %p139, %p140
    %p143 = scmp.ne.s32.totalorder %s128, %s142
    %p144 = scmp.eq.s32.totalorder %s20, 0
    %p145 = por %p143, %p144
    %s147 = sadd.s32 %s146, 1
    %p150 = scmp.eq.s32.totalorder %s14, 1
    %p151 = scmp.ne.s32.totalorder %s146, %s148
    %p152 = scmp.eq.s32.totalorder %s14, 0
    %p153 = por %p151, %p152
    %p154 = scmp.ne.s32.totalorder %s146, %s148
    %p155 = scmp.eq.s32.totalorder %s19, 1
    %p156 = por %p154, %p155
    %p157 = scmp.ne.s32.totalorder %s148, %s149
    %p158 = scmp.eq.s32.totalorder %s19, 0
    %p159 = por %p157, %p158
    %p160 = scmp.ne.s32.totalorder %s148, %s149
    %p161 = scmp.eq.s32.totalorder %s20, 1
    %p162 = por %p160, %p161
    %p164 = scmp.ne.s32.totalorder %s149, %s163
    %p165 = scmp.eq.s32.totalorder %s20, 0
    %p166 = por %p164, %p165
    %s168 = sadd.s32 %s167, 1
    %p171 = scmp.eq.s32.totalorder %s14, 1
    %p172 = scmp.ne.s32.totalorder %s167, %s169
    %p173 = scmp.eq.s32.totalorder %s14, 0
    %p174 = por %p172, %p173
    %p175 = scmp.ne.s32.totalorder %s167, %s169
    %p176 = scmp.eq.s32.totalorder %s19, 1
    %p177 = por %p175, %p176
    %p178 = scmp.ne.s32.totalorder %s169, %s170
    %p179 = scmp.eq.s32.totalorder %s19, 0
    %p180 = por %p178, %p179
    %p181 = scmp.ne.s32.totalorder %s169, %s170
    %p182 = scmp.eq.s32.totalorder %s20, 1
    %p183 = por %p181, %p182
    %p185 = scmp.ne.s32.totalorder %s170, %s184
    %p186 = scmp.eq.s32.totalorder %s20, 0
    %p187 = por %p185, %p186
    %s189 = sadd.s32 %s188, 1
    %p192 = scmp.eq.s32.totalorder %s14, 1
    %p193 = scmp.ne.s32.totalorder %s188, %s190
    %p194 = scmp.eq.s32.totalorder %s14, 0
    %p195 = por %p193, %p194
    %p196 = scmp.ne.s32.totalorder %s188, %s190
    %p197 = scmp.eq.s32.totalorder %s19, 1
    %p198 = por %p196, %p197
    %p199 = scmp.ne.s32.totalorder %s190, %s191
    %p200 = scmp.eq.s32.totalorder %s19, 0
    %p201 = por %p199, %p200
    %p202 = scmp.ne.s32.totalorder %s190, %s191
    %p203 = scmp.eq.s32.totalorder %s20, 1
    %p204 = por %p202, %p203
    %p206 = scmp.ne.s32.totalorder %s191, %s205
    %p207 = scmp.eq.s32.totalorder %s20, 0
    %p208 = por %p206, %p207
    %s209 = sadd.s32 %s21, %s22
    %s210 = sadd.s32 %s33, %s29
    %s211 = ssub.s32 %s209, %s210
    %p212 = scmp.eq.s32.totalorder %s211, 0
    %s214 = sadd.s32 %s213, 1
    %s215 = scalar_select %p212, %s213, %s214
    %p218 = pneg %p212
    %p219 = scmp.eq.s32.totalorder %s14, 1
    %p220 = por %p218, %p219
    %p221 = scmp.ne.s32.totalorder %s213, %s216
    %p222 = scmp.eq.s32.totalorder %s14, 0
    %p223 = por %p221, %p222
    %p224 = scmp.ne.s32.totalorder %s213, %s216
    %p225 = scmp.eq.s32.totalorder %s19, 1
    %p226 = por %p224, %p225
    %p227 = scmp.ne.s32.totalorder %s216, %s217
    %p228 = scmp.eq.s32.totalorder %s19, 0
    %p229 = por %p227, %p228
    %p230 = scmp.ne.s32.totalorder %s216, %s217
    %p231 = scmp.eq.s32.totalorder %s20, 1
    %p232 = por %p230, %p231
    %p234 = scmp.ne.s32.totalorder %s217, %s233
    %p235 = scmp.eq.s32.totalorder %s20, 0
    %p236 = por %p234, %p235
    %p237 = scmp.le.s32.totalorder 1, %s14
    %p238 = scmp.lt.s32.totalorder %s14, 3
    %p239 = pnand %p237, %p238
    %p240 = pneg %p239
    // Predicated region
    $region9: #{forward.17} parent=5 // pred_check
      _
    $region10: #{forward.17} parent=5 // pred_check_branch
      %242 = sbr.rel (%p239) target = $region12
    $region11: #{forward.17} parent=5 // pred_region
      %s243 = ssub.s32 %s14, 1
      // Predicated region
      $region13: #{forward.17} parent=11 // pred_check
        %p244 = pneg %p75
      $region14: #{forward.17} parent=11 // pred_check_branch
        %246 = sbr.rel (%p244) target = $region16
      $region15: #{forward.17} parent=11 // pred_region
        _
      $region16: #{forward.17} parent=11 // pred_fallthru
        _
      // Predicated region
      $region17: #{forward.17} parent=11 // pred_check
        %p247 = pneg %p96
      $region18: #{forward.17} parent=11 // pred_check_branch
        %249 = sbr.rel (%p247) target = $region20
      $region19: #{forward.17} parent=11 // pred_region
        _
      $region20: #{forward.17} parent=11 // pred_fallthru
        _
      // Predicated region
      $region21: #{forward.17} parent=11 // pred_check
        %p250 = pneg %p117
      $region22: #{forward.17} parent=11 // pred_check_branch
        %252 = sbr.rel (%p250) target = $region24
      $region23: #{forward.17} parent=11 // pred_region
        _
      $region24: #{forward.17} parent=11 // pred_fallthru
        _
      // Predicated region
      $region25: #{forward.17} parent=11 // pred_check
        %p253 = pneg %p138
      $region26: #{forward.17} parent=11 // pred_check_branch
        %255 = sbr.rel (%p253) target = $region28
      $region27: #{forward.17} parent=11 // pred_region
        _
      $region28: #{forward.17} parent=11 // pred_fallthru
        _
      // Predicated region
      $region29: #{forward.17} parent=11 // pred_check
        %p256 = pneg %p159
      $region30: #{forward.17} parent=11 // pred_check_branch
        %258 = sbr.rel (%p256) target = $region32
      $region31: #{forward.17} parent=11 // pred_region
        _
      $region32: #{forward.17} parent=11 // pred_fallthru
        _
      // Predicated region
      $region33: #{forward.17} parent=11 // pred_check
        %p259 = pneg %p180
      $region34: #{forward.17} parent=11 // pred_check_branch
        %261 = sbr.rel (%p259) target = $region36
      $region35: #{forward.17} parent=11 // pred_region
        _
      $region36: #{forward.17} parent=11 // pred_fallthru
        _
      // Predicated region
      $region37: #{forward.17} parent=11 // pred_check
        %p262 = pneg %p201
      $region38: #{forward.17} parent=11 // pred_check_branch
        %264 = sbr.rel (%p262) target = $region40
      $region39: #{forward.17} parent=11 // pred_region
        _
      $region40: #{forward.17} parent=11 // pred_fallthru
        _
    $region12: #{forward.17} parent=5 // pred_fallthru
      _
    %p265 = scmp.lt.s32.totalorder %s14, 2
    // Predicated region
    $region41: #{forward.17} parent=5 // pred_check
      %p266 = pneg %p265
    $region42: #{forward.17} parent=5 // pred_check_branch
      %268 = sbr.rel (%p266) target = $region44
    $region43: #{forward.17} parent=5 // pred_region
      // Predicated region
      $region45: #{forward.17} parent=43 // pred_check
        %p269 = pneg %p48
      $region46: #{forward.17} parent=43 // pred_check_branch
        %271 = sbr.rel (%p269) target = $region48
      $region47: #{forward.17} parent=43 // pred_region
        %s272 = sadd.s32 %s21, %s22
        %p273 = scmp.lt.s32.totalorder %s272, 1
        %s274 = scalar_select %p273, %s272, 1
        %s275 = smul.addr %s274, 2
        %s276 = smul.addr %s275, 4
        %s277 = scalar_lea.vmem %s0, %s276
        %s278 = sadd.s32 %s21, %s22
      $region48: #{forward.17} parent=43 // pred_fallthru
        _
    $region44: #{forward.17} parent=5 // pred_fallthru
      _
    %p279 = scmp.le.s32.totalorder 1, %s14
    %p280 = scmp.lt.s32.totalorder %s14, 3
    %p281 = pnand %p279, %p280
    %p282 = pneg %p281
    // Predicated region
    $region49: #{forward.17} parent=5 // pred_check
      _
    $region50: #{forward.17} parent=5 // pred_check_branch
      %284 = sbr.rel (%p281) target = $region52
    $region51: #{forward.17} parent=5 // pred_region
      %s285 = ssub.s32 %s14, 1
      %s286 = sadd.s32 %s23, %s24
      %p287 = scmp.lt.s32.totalorder %s286, 1
      %s288 = scalar_select %p287, %s286, 1
      %s289 = smul.addr %s288, 2
      %s290 = smul.addr %s289, 4
      %s291 = scalar_lea.vmem %s0, %s290
      %p292 = pneg %p54
      %p293 = pneg %p51
      %p294 = pneg %p75
      %p295 = pneg %p72
      %p296 = pneg %p96
      %p297 = pneg %p93
      %p298 = pneg %p117
      %p299 = pneg %p114
      %p300 = pneg %p138
      %p301 = pneg %p135
      %p302 = pneg %p159
      %p303 = pneg %p156
      %p304 = pneg %p180
      %p305 = pneg %p177
      %p306 = pneg %p201
      %p307 = pneg %p198
      %p308 = pneg %p229
      %p309 = pneg %p226
      %s310 = sadd.s32 %s23, %s24
      %p311 = scmp.lt.s32.totalorder %s310, 1
      %s312 = scalar_select %p311, %s310, 1
      %s313 = smul.addr %s312, 2
      %s314 = smul.addr %s313, 4
      %s315 = scalar_lea.vmem %s8, %s314
      %s316 = sadd.s32 %s23, %s24
      %p317 = scmp.lt.s32.totalorder %s316, 1
      %s318 = scalar_select %p317, %s316, 1
      %s319 = smul.addr %s318, 2
      %s320 = smul.addr %s319, 4
      %s321 = scalar_lea.vmem %s0, %s320
      %s322 = sadd.s32 %s23, %s24
      %s323 = sadd.s32 %s23, %s24
      %p324 = scmp.lt.s32.totalorder %s323, 1
      %s325 = scalar_select %p324, %s323, 1
      %s326 = smul.addr %s325, 2
      %s327 = smul.addr %s326, 4
      %s328 = scalar_lea.vmem %s8, %s327
      %s329 = sadd.s32 %s23, %s24
      %v331 = vld [vmem:[%s321] sm:$0xf]
      %v332 = vld [vmem:[%s321 + $0x4] sm:$0xf]
      %v333 = vunpack.c.l.bf16 %v331
      %v334 = vunpack.c.l.bf16 %v332
      %v335 = vld [vmem:[%s1] sm:$0x1]
      %v336 = vld [vmem:[%s2] sm:$0x1]
      %vm337 = vcmask 523264
      %v338 = vsel %vm337, %v333, 0.0
      %339 = vadd.xlane.f32.xlu0 %v338
      %v340 = vpop.xlane.xlu0 %339
      %v341 = vsel %vm337, %v334, 0.0
      %342 = vadd.xlane.f32.xlu0 %v341
      %v343 = vpop.xlane.xlu0 %342
      %v344 = vrcp.pop 64.0
      %v345 = vmul.f32 64.0, %v344
      %v346 = vsub.f32 1.0, %v345
      %v347 = vmul.f32 %v344, %v346
      %v348 = vadd.f32 %v344, %v347
      %vm349 = vweird.f32 %v344
      %v350 = vsel %vm349, %v344, %v348
      %v351 = vmul.f32 %v340, %v350
      %v352 = vmul.f32 %v343, %v350
      %v353 = vsub.f32 %v333, %v351
      %v354 = vsub.f32 %v334, %v352
      %v355 = vmul.f32 %v353, %v353
      %v356 = vmul.f32 %v354, %v354
      %v357 = vsel %vm337, %v355, 0.0
      %358 = vadd.xlane.f32.xlu0 %v357
      %v359 = vpop.xlane.xlu0 %358
      %v360 = vsel %vm337, %v356, 0.0
      %361 = vadd.xlane.f32.xlu0 %v360
      %v362 = vpop.xlane.xlu0 %361
      %v363 = vmul.f32 %v359, %v350
      %v364 = vmul.f32 %v362, %v350
      %v365 = vadd.f32 %v363, 1e-05
      %v366 = vadd.f32 %v364, 1e-05
      %v367 = vrsqrt.pop %v365
      %v368 = vmul.f32 %v367, %v365
      %v369 = vmul.f32 %v368, %v367
      %v370 = vmul.f32 0.5, %v369
      %v371 = vsub.f32 1.5, %v370
      %v372 = vmul.f32 %v367, %v371
      %vm373 = vweird.f32 %v365
      %vm374 = vweird.f32 %v367
      %vm375 = vmor %vm373, %vm374
      %v376 = vsel %vm375, %v367, %v372
      %v377 = vrsqrt.pop %v366
      %v378 = vmul.f32 %v377, %v366
      %v379 = vmul.f32 %v378, %v377
      %v380 = vmul.f32 0.5, %v379
      %v381 = vsub.f32 1.5, %v380
      %v382 = vmul.f32 %v377, %v381
      %vm383 = vweird.f32 %v366
      %vm384 = vweird.f32 %v377
      %vm385 = vmor %vm383, %vm384
      %v386 = vsel %vm385, %v377, %v382
      %v387 = vmul.f32 %v353, %v376
      %v388 = vmul.f32 %v354, %v386
      %v390 = vperm.slane %v335, 0
      %v392 = vmul.f32 %v387, %v390
      %v393 = vmul.f32 %v388, %v390
      %v395 = vperm.slane %v336, 0
      %v397 = vadd.f32 %v392, %v395
      %v398 = vadd.f32 %v393, %v395
      %v399 = vld [vmem:[%s3] sm:$0xff]
      %v400 = vld [vmem:[%s3 + $0x8] sm:$0xff]
      %v401 = vld [vmem:[%s3 + $0x10] sm:$0xff]
      %v402 = vld [vmem:[%s3 + $0x18] sm:$0xff]
      %v403 = vld [vmem:[%s3 + $0x20] sm:$0xff]
      %v404 = vld [vmem:[%s3 + $0x28] sm:$0xff]
      %v405 = vld [vmem:[%s3 + $0x30] sm:$0xff]
      %v406 = vld [vmem:[%s3 + $0x38] sm:$0xff]
      %v407 = vpack.c.bf16 %v398, %v397
      %v408 = vld [vmem:[%s4] sm:$0x3]
      %v410 = vperm.slane %v408, 0
      %v411 = vperm.slane %v408, 1
      %v422 = vunpack.c.l.b16 %v399
      %v423 = vunpack.c.h.b16 %v399
      %v424 = vunpack.c.l.b16 %v400
      %v425 = vunpack.c.h.b16 %v400
      %v426 = vunpack.c.l.b16 %v401
      %v427 = vunpack.c.h.b16 %v401
      %v428 = vunpack.c.l.b16 %v402
      %v429 = vunpack.c.h.b16 %v402
      %v430 = vunpack.c.l.b16 %v403
      %v431 = vunpack.c.h.b16 %v403
      %v432 = vunpack.c.l.b16 %v404
      %v433 = vunpack.c.h.b16 %v404
      %v434 = vunpack.c.l.b16 %v405
      %v435 = vunpack.c.h.b16 %v405
      %v436 = vunpack.c.l.b16 %v406
      %v437 = vunpack.c.h.b16 %v406
      %v438 = vpack.c.b16 %v424, %v422
      %v439 = vpack.c.b16 %v425, %v423
      %v440 = vpack.c.b16 %v428, %v426
      %v441 = vpack.c.b16 %v429, %v427
      %v442 = vpack.c.b16 %v432, %v430
      %v443 = vpack.c.b16 %v433, %v431
      %v444 = vpack.c.b16 %v436, %v434
      %v445 = vpack.c.b16 %v437, %v435
      %v455 = vsel %vm337, %v407, 0
      %457 = vmatpush.bf16.msra.mxu0 0
      %458 = vmatpush.bf16.msra.mxu0 0
      %459 = vmatpush.bf16.msra.mxu0 0
      %460 = vmatpush.bf16.msra.mxu0 0
      %461 = vmatpush.bf16.msra.mxu0 %v444
      %462 = vmatpush.bf16.msra.mxu0 %v442
      %463 = vmatpush.bf16.msra.mxu0 %v440
      %464 = vmatpush.bf16.msra.mxu0 %v438
      %465 = vmatmul.bf16.gmra.mxu0 %v455
      %v466 = vpop.f32.mrf.mxu0
      %v467 = vadd.f32 %v410, %v466
      %v468 = vpop.f32.mrf.mxu0
      %v469 = vadd.f32 %v410, %v468
      %470 = vdwg.mxu0
      %471 = vmatpush.bf16.msra.mxu0 0
      %472 = vmatpush.bf16.msra.mxu0 0
      %473 = vmatpush.bf16.msra.mxu0 0
      %474 = vmatpush.bf16.msra.mxu0 0
      %475 = vmatpush.bf16.msra.mxu0 %v445
      %476 = vmatpush.bf16.msra.mxu0 %v443
      %477 = vmatpush.bf16.msra.mxu0 %v441
      %478 = vmatpush.bf16.msra.mxu0 %v439
      %479 = vmatmul.bf16.gmra.mxu0 %v455
      %v480 = vpop.f32.mrf.mxu0
      %v481 = vadd.f32 %v411, %v480
      %v482 = vpop.f32.mrf.mxu0
      %v483 = vadd.f32 %v411, %v482
      %484 = vdwg.mxu0
      %v485 = vld [vmem:[%s7] sm:$0xff]
      %v486 = vld [vmem:[%s7 + $0x8] sm:$0xff]
      %v487 = vld [vmem:[%s7 + $0x10] sm:$0xff]
      %v488 = vld [vmem:[%s7 + $0x18] sm:$0xff]
      %v489 = vld [vmem:[%s7 + $0x20] sm:$0xff]
      %v490 = vld [vmem:[%s7 + $0x28] sm:$0xff]
      %v491 = vld [vmem:[%s7 + $0x30] sm:$0xff]
      %v492 = vld [vmem:[%s7 + $0x38] sm:$0xff]
      %495 = vrot.lane.b32.xlu0 %v467, 64
      %v496 = vpop.permute.xlu0 %495
      %497 = vrot.lane.b32.xlu0 %v469, 64
      %v498 = vpop.permute.xlu0 %497
      %vm499 = vcmask 130048
      %v500 = vsel %vm499, %v467, 0
      %v502 = vsel %vm499, %v469, 0
      %v504 = vsel %vm499, %v496, 0
      %v506 = vsel %vm499, %v498, 0
      %508 = vmatpush.xpose.msra.mxu0 0.0
      %509 = vmatpush.xpose.msra.mxu0 0.0
      %510 = vmatpush.xpose.msra.mxu0 0.0
      %511 = vmatpush.xpose.msra.mxu0 0.0
      %512 = vmatpush.xpose.msra.mxu0 0.0
      %513 = vmatpush.xpose.msra.mxu0 0.0
      %514 = vmatpush.xpose.msra.mxu0 0.0
      %515 = vmatpush.xpose.msra.mxu0 0.0
      %516 = vmatpush.xpose.msra.mxu0 0.0
      %517 = vmatpush.xpose.msra.mxu0 0.0
      %518 = vmatpush.xpose.msra.mxu0 0.0
      %519 = vmatpush.xpose.msra.mxu0 0.0
      %520 = vmatpush.xpose.msra.mxu0 0.0
      %521 = vmatpush.xpose.msra.mxu0 0.0
      %522 = vmatpush.xpose.msra.mxu0 %v506
      %523 = vmatpush.xpose.msra.mxu0 %v504
      %524 = vmatmul.f32.gmra.mxu0 %v500
      %v525 = vpop.f32.mrf.mxu0
      %v526 = vadd.f32 %v485, %v525
      %527 = vmatmul.f32.gmra.mxu0 %v502
      %v528 = vpop.f32.mrf.mxu0
      %v529 = vadd.f32 %v486, %v528
      %530 = vdwg.mxu0
      %v531 = vsel %vm499, %v526, -inf
      %532 = vmax.xlane.f32.xlu0 %v531
      %v533 = vpop.xlane.xlu0 %532
      %v534 = vsel %vm499, %v529, -inf
      %535 = vmax.xlane.f32.xlu0 %v534
      %v536 = vpop.xlane.xlu0 %535
      %v537 = vsub.f32 %v526, %v533
      %v538 = vsub.f32 %v529, %v536
      %v539 = vmul.f32 %v537, 1.442695
      %v540 = vpow.pop %v539
      %v541 = vmul.f32 %v538, 1.442695
      %v542 = vpow.pop %v541
      %v543 = vsel %vm499, %v540, 0.0
      %544 = vadd.xlane.f32.xlu0 %v543
      %v545 = vpop.xlane.xlu0 %544
      %v546 = vsel %vm499, %v542, 0.0
      %547 = vadd.xlane.f32.xlu0 %v546
      %v548 = vpop.xlane.xlu0 %547
      %v549 = vrcp.pop %v545
      %v550 = vrcp.pop %v548
      %v551 = vmul.f32 %v540, %v549
      %v552 = vmul.f32 %v542, %v550
      %v554 = vsel %vm499, %v551, 0
      %v557 = vsel %vm499, %v552, 0
      %559 = vmatpush.msra.mxu0 0.0
      %560 = vmatpush.msra.mxu0 0.0
      %561 = vmatpush.msra.mxu0 0.0
      %562 = vmatpush.msra.mxu0 0.0
      %563 = vmatpush.msra.mxu0 0.0
      %564 = vmatpush.msra.mxu0 0.0
      %565 = vmatpush.msra.mxu0 0.0
      %566 = vmatpush.msra.mxu0 0.0
      %567 = vmatpush.msra.mxu0 0.0
      %568 = vmatpush.msra.mxu0 0.0
      %569 = vmatpush.msra.mxu0 0.0
      %570 = vmatpush.msra.mxu0 0.0
      %571 = vmatpush.msra.mxu0 0.0
      %572 = vmatpush.msra.mxu0 0.0
      %573 = vmatpush.msra.mxu0 %v483
      %574 = vmatpush.msra.mxu0 %v481
      %575 = vmatmul.f32.gmra.mxu0 %v554
      %v576 = vpop.f32.mrf.mxu0
      %v577 = vadd.f32 0.0, %v576
      %578 = vmatmul.f32.gmra.mxu0 %v557
      %v579 = vpop.f32.mrf.mxu0
      %v580 = vadd.f32 0.0, %v579
      %581 = vdwg.mxu0
      %582 = vrot.lane.b32.xlu0 %v467, 112
      %v583 = vpop.permute.xlu0 %582
      %584 = vrot.lane.b32.xlu0 %v469, 112
      %v585 = vpop.permute.xlu0 %584
      %586 = vrot.lane.b32.xlu0 %v467, 48
      %v587 = vpop.permute.xlu0 %586
      %588 = vrot.lane.b32.xlu0 %v469, 48
      %v589 = vpop.permute.xlu0 %588
      %v590 = vsel %vm499, %v583, 0
      %v592 = vsel %vm499, %v585, 0
      %v594 = vsel %vm499, %v587, 0
      %v596 = vsel %vm499, %v589, 0
      %598 = vmatpush.xpose.msra.mxu0 0.0
      %599 = vmatpush.xpose.msra.mxu0 0.0
      %600 = vmatpush.xpose.msra.mxu0 0.0
      %601 = vmatpush.xpose.msra.mxu0 0.0
      %602 = vmatpush.xpose.msra.mxu0 0.0
      %603 = vmatpush.xpose.msra.mxu0 0.0
      %604 = vmatpush.xpose.msra.mxu0 0.0
      %605 = vmatpush.xpose.msra.mxu0 0.0
      %606 = vmatpush.xpose.msra.mxu0 0.0
      %607 = vmatpush.xpose.msra.mxu0 0.0
      %608 = vmatpush.xpose.msra.mxu0 0.0
      %609 = vmatpush.xpose.msra.mxu0 0.0
      %610 = vmatpush.xpose.msra.mxu0 0.0
      %611 = vmatpush.xpose.msra.mxu0 0.0
      %612 = vmatpush.xpose.msra.mxu0 %v596
      %613 = vmatpush.xpose.msra.mxu0 %v594
      %614 = vmatmul.f32.gmra.mxu0 %v590
      %v615 = vpop.f32.mrf.mxu0
      %v616 = vadd.f32 %v487, %v615
      %617 = vmatmul.f32.gmra.mxu0 %v592
      %v618 = vpop.f32.mrf.mxu0
      %v619 = vadd.f32 %v488, %v618
      %620 = vdwg.mxu0
      %v621 = vsel %vm499, %v616, -inf
      %622 = vmax.xlane.f32.xlu0 %v621
      %v623 = vpop.xlane.xlu0 %622
      %v624 = vsel %vm499, %v619, -inf
      %625 = vmax.xlane.f32.xlu0 %v624
      %v626 = vpop.xlane.xlu0 %625
      %v627 = vsub.f32 %v616, %v623
      %v628 = vsub.f32 %v619, %v626
      %v629 = vmul.f32 %v627, 1.442695
      %v630 = vpow.pop %v629
      %v631 = vmul.f32 %v628, 1.442695
      %v632 = vpow.pop %v631
      %v633 = vsel %vm499, %v630, 0.0
      %634 = vadd.xlane.f32.xlu0 %v633
      %v635 = vpop.xlane.xlu0 %634
      %v636 = vsel %vm499, %v632, 0.0
      %637 = vadd.xlane.f32.xlu0 %v636
      %v638 = vpop.xlane.xlu0 %637
      %v639 = vrcp.pop %v635
      %v640 = vrcp.pop %v638
      %v641 = vmul.f32 %v630, %v639
      %v642 = vmul.f32 %v632, %v640
      %645 = vrot.lane.b32.xlu0 %v481, 112
      %v646 = vpop.permute.xlu0 %645
      %647 = vrot.lane.b32.xlu0 %v483, 112
      %v648 = vpop.permute.xlu0 %647
      %v652 = vsel %vm499, %v641, 0
      %v655 = vsel %vm499, %v642, 0
      %657 = vmatpush.msra.mxu0 0.0
      %658 = vmatpush.msra.mxu0 0.0
      %659 = vmatpush.msra.mxu0 0.0
      %660 = vmatpush.msra.mxu0 0.0
      %661 = vmatpush.msra.mxu0 0.0
      %662 = vmatpush.msra.mxu0 0.0
      %663 = vmatpush.msra.mxu0 0.0
      %664 = vmatpush.msra.mxu0 0.0
      %665 = vmatpush.msra.mxu0 0.0
      %666 = vmatpush.msra.mxu0 0.0
      %667 = vmatpush.msra.mxu0 0.0
      %668 = vmatpush.msra.mxu0 0.0
      %669 = vmatpush.msra.mxu0 0.0
      %670 = vmatpush.msra.mxu0 0.0
      %671 = vmatpush.msra.mxu0 %v648
      %672 = vmatpush.msra.mxu0 %v646
      %673 = vmatmul.f32.gmra.mxu0 %v652
      %v674 = vpop.f32.mrf.mxu0
      %v675 = vadd.f32 0.0, %v674
      %676 = vmatmul.f32.gmra.mxu0 %v655
      %v677 = vpop.f32.mrf.mxu0
      %v678 = vadd.f32 0.0, %v677
      %679 = vdwg.mxu0
      %680 = vrot.lane.b32.xlu0 %v467, 96
      %v681 = vpop.permute.xlu0 %680
      %682 = vrot.lane.b32.xlu0 %v469, 96
      %v683 = vpop.permute.xlu0 %682
      %684 = vrot.lane.b32.xlu0 %v467, 32
      %v685 = vpop.permute.xlu0 %684
      %686 = vrot.lane.b32.xlu0 %v469, 32
      %v687 = vpop.permute.xlu0 %686
      %v688 = vsel %vm499, %v681, 0
      %v690 = vsel %vm499, %v683, 0
      %v692 = vsel %vm499, %v685, 0
      %v694 = vsel %vm499, %v687, 0
      %696 = vmatpush.xpose.msra.mxu0 0.0
      %697 = vmatpush.xpose.msra.mxu0 0.0
      %698 = vmatpush.xpose.msra.mxu0 0.0
      %699 = vmatpush.xpose.msra.mxu0 0.0
      %700 = vmatpush.xpose.msra.mxu0 0.0
      %701 = vmatpush.xpose.msra.mxu0 0.0
      %702 = vmatpush.xpose.msra.mxu0 0.0
      %703 = vmatpush.xpose.msra.mxu0 0.0
      %704 = vmatpush.xpose.msra.mxu0 0.0
      %705 = vmatpush.xpose.msra.mxu0 0.0
      %706 = vmatpush.xpose.msra.mxu0 0.0
      %707 = vmatpush.xpose.msra.mxu0 0.0
      %708 = vmatpush.xpose.msra.mxu0 0.0
      %709 = vmatpush.xpose.msra.mxu0 0.0
      %710 = vmatpush.xpose.msra.mxu0 %v694
      %711 = vmatpush.xpose.msra.mxu0 %v692
      %712 = vmatmul.f32.gmra.mxu0 %v688
      %v713 = vpop.f32.mrf.mxu0
      %v714 = vadd.f32 %v489, %v713
      %715 = vmatmul.f32.gmra.mxu0 %v690
      %v716 = vpop.f32.mrf.mxu0
      %v717 = vadd.f32 %v490, %v716
      %718 = vdwg.mxu0
      %v719 = vsel %vm499, %v714, -inf
      %720 = vmax.xlane.f32.xlu0 %v719
      %v721 = vpop.xlane.xlu0 %720
      %v722 = vsel %vm499, %v717, -inf
      %723 = vmax.xlane.f32.xlu0 %v722
      %v724 = vpop.xlane.xlu0 %723
      %v725 = vsub.f32 %v714, %v721
      %v726 = vsub.f32 %v717, %v724
      %v727 = vmul.f32 %v725, 1.442695
      %v728 = vpow.pop %v727
      %v729 = vmul.f32 %v726, 1.442695
      %v730 = vpow.pop %v729
      %v731 = vsel %vm499, %v728, 0.0
      %732 = vadd.xlane.f32.xlu0 %v731
      %v733 = vpop.xlane.xlu0 %732
      %v734 = vsel %vm499, %v730, 0.0
      %735 = vadd.xlane.f32.xlu0 %v734
      %v736 = vpop.xlane.xlu0 %735
      %v737 = vrcp.pop %v733
      %v738 = vrcp.pop %v736
      %v739 = vmul.f32 %v728, %v737
      %v740 = vmul.f32 %v730, %v738
      %741 = vrot.lane.b32.xlu0 %v481, 96
      %v742 = vpop.permute.xlu0 %741
      %743 = vrot.lane.b32.xlu0 %v483, 96
      %v744 = vpop.permute.xlu0 %743
      %v748 = vsel %vm499, %v739, 0
      %v751 = vsel %vm499, %v740, 0
      %753 = vmatpush.msra.mxu0 0.0
      %754 = vmatpush.msra.mxu0 0.0
      %755 = vmatpush.msra.mxu0 0.0
      %756 = vmatpush.msra.mxu0 0.0
      %757 = vmatpush.msra.mxu0 0.0
      %758 = vmatpush.msra.mxu0 0.0
      %759 = vmatpush.msra.mxu0 0.0
      %760 = vmatpush.msra.mxu0 0.0
      %761 = vmatpush.msra.mxu0 0.0
      %762 = vmatpush.msra.mxu0 0.0
      %763 = vmatpush.msra.mxu0 0.0
      %764 = vmatpush.msra.mxu0 0.0
      %765 = vmatpush.msra.mxu0 0.0
      %766 = vmatpush.msra.mxu0 0.0
      %767 = vmatpush.msra.mxu0 %v744
      %768 = vmatpush.msra.mxu0 %v742
      %769 = vmatmul.f32.gmra.mxu0 %v748
      %v770 = vpop.f32.mrf.mxu0
      %v771 = vadd.f32 0.0, %v770
      %772 = vmatmul.f32.gmra.mxu0 %v751
      %v773 = vpop.f32.mrf.mxu0
      %v774 = vadd.f32 0.0, %v773
      %775 = vdwg.mxu0
      %776 = vrot.lane.b32.xlu0 %v467, 80
      %v777 = vpop.permute.xlu0 %776
      %778 = vrot.lane.b32.xlu0 %v469, 80
      %v779 = vpop.permute.xlu0 %778
      %780 = vrot.lane.b32.xlu0 %v467, 16
      %v781 = vpop.permute.xlu0 %780
      %782 = vrot.lane.b32.xlu0 %v469, 16
      %v783 = vpop.permute.xlu0 %782
      %v784 = vsel %vm499, %v777, 0
      %v786 = vsel %vm499, %v779, 0
      %v788 = vsel %vm499, %v781, 0
      %v790 = vsel %vm499, %v783, 0
      %792 = vmatpush.xpose.msra.mxu0 0.0
      %793 = vmatpush.xpose.msra.mxu0 0.0
      %794 = vmatpush.xpose.msra.mxu0 0.0
      %795 = vmatpush.xpose.msra.mxu0 0.0
      %796 = vmatpush.xpose.msra.mxu0 0.0
      %797 = vmatpush.xpose.msra.mxu0 0.0
      %798 = vmatpush.xpose.msra.mxu0 0.0
      %799 = vmatpush.xpose.msra.mxu0 0.0
      %800 = vmatpush.xpose.msra.mxu0 0.0
      %801 = vmatpush.xpose.msra.mxu0 0.0
      %802 = vmatpush.xpose.msra.mxu0 0.0
      %803 = vmatpush.xpose.msra.mxu0 0.0
      %804 = vmatpush.xpose.msra.mxu0 0.0
      %805 = vmatpush.xpose.msra.mxu0 0.0
      %806 = vmatpush.xpose.msra.mxu0 %v790
      %807 = vmatpush.xpose.msra.mxu0 %v788
      %808 = vmatmul.f32.gmra.mxu0 %v784
      %v809 = vpop.f32.mrf.mxu0
      %v810 = vadd.f32 %v491, %v809
      %811 = vmatmul.f32.gmra.mxu0 %v786
      %v812 = vpop.f32.mrf.mxu0
      %v813 = vadd.f32 %v492, %v812
      %814 = vdwg.mxu0
      %v815 = vsel %vm499, %v810, -inf
      %816 = vmax.xlane.f32.xlu0 %v815
      %v817 = vpop.xlane.xlu0 %816
      %v818 = vsel %vm499, %v813, -inf
      %819 = vmax.xlane.f32.xlu0 %v818
      %v820 = vpop.xlane.xlu0 %819
      %v821 = vsub.f32 %v810, %v817
      %v822 = vsub.f32 %v813, %v820
      %v823 = vmul.f32 %v821, 1.442695
      %v824 = vpow.pop %v823
      %v825 = vmul.f32 %v822, 1.442695
      %v826 = vpow.pop %v825
      %v827 = vsel %vm499, %v824, 0.0
      %828 = vadd.xlane.f32.xlu0 %v827
      %v829 = vpop.xlane.xlu0 %828
      %v830 = vsel %vm499, %v826, 0.0
      %831 = vadd.xlane.f32.xlu0 %v830
      %v832 = vpop.xlane.xlu0 %831
      %v833 = vrcp.pop %v829
      %v834 = vrcp.pop %v832
      %v835 = vmul.f32 %v824, %v833
      %v836 = vmul.f32 %v826, %v834
      %837 = vrot.lane.b32.xlu0 %v481, 80
      %v838 = vpop.permute.xlu0 %837
      %839 = vrot.lane.b32.xlu0 %v483, 80
      %v840 = vpop.permute.xlu0 %839
      %v844 = vsel %vm499, %v835, 0
      %v847 = vsel %vm499, %v836, 0
      %849 = vmatpush.msra.mxu0 0.0
      %850 = vmatpush.msra.mxu0 0.0
      %851 = vmatpush.msra.mxu0 0.0
      %852 = vmatpush.msra.mxu0 0.0
      %853 = vmatpush.msra.mxu0 0.0
      %854 = vmatpush.msra.mxu0 0.0
      %855 = vmatpush.msra.mxu0 0.0
      %856 = vmatpush.msra.mxu0 0.0
      %857 = vmatpush.msra.mxu0 0.0
      %858 = vmatpush.msra.mxu0 0.0
      %859 = vmatpush.msra.mxu0 0.0
      %860 = vmatpush.msra.mxu0 0.0
      %861 = vmatpush.msra.mxu0 0.0
      %862 = vmatpush.msra.mxu0 0.0
      %863 = vmatpush.msra.mxu0 %v840
      %864 = vmatpush.msra.mxu0 %v838
      %865 = vmatmul.f32.gmra.mxu0 %v844
      %v866 = vpop.f32.mrf.mxu0
      %v867 = vadd.f32 0.0, %v866
      %868 = vmatmul.f32.gmra.mxu0 %v847
      %v869 = vpop.f32.mrf.mxu0
      %v870 = vadd.f32 0.0, %v869
      %871 = vdwg.mxu0
      %874 = vrot.lane.b32.xlu0 %v675, 16
      %v875 = vpop.permute.xlu0 %874
      %876 = vrot.lane.b32.xlu0 %v678, 16
      %v877 = vpop.permute.xlu0 %876
      %882 = vrot.lane.b32.xlu0 %v771, 32
      %v883 = vpop.permute.xlu0 %882
      %884 = vrot.lane.b32.xlu0 %v774, 32
      %v885 = vpop.permute.xlu0 %884
      %890 = vrot.lane.b32.xlu0 %v867, 48
      %v891 = vpop.permute.xlu0 %890
      %892 = vrot.lane.b32.xlu0 %v870, 48
      %v893 = vpop.permute.xlu0 %892
      %v896 = vsel %vm499, %v577, %v875
      %v897 = vsel %vm499, %v580, %v877
      %vm898 = vcmask 261120
      %v899 = vsel %vm898, %v896, %v883
      %v900 = vsel %vm898, %v897, %v885
      %vm901 = vcmask 392192
      %v902 = vsel %vm901, %v899, %v891
      %v903 = vsel %vm901, %v900, %v893
      %v904 = vld [vmem:[%s5] sm:$0xf]
      %v905 = vld [vmem:[%s5 + $0x4] sm:$0xf]
      %v906 = vld [vmem:[%s5 + $0x8] sm:$0xf]
      %v907 = vld [vmem:[%s5 + $0xc] sm:$0xf]
      %v908 = vld [vmem:[%s5 + $0x10] sm:$0xf]
      %v909 = vld [vmem:[%s5 + $0x14] sm:$0xf]
      %v910 = vld [vmem:[%s5 + $0x18] sm:$0xf]
      %v911 = vld [vmem:[%s5 + $0x1c] sm:$0xf]
      %v912 = vpack.c.bf16 %v903, %v902
      %v913 = vld [vmem:[%s6] sm:$0x1]
      %v915 = vperm.slane %v913, 0
      %v925 = vunpack.c.l.b16 %v904
      %v926 = vunpack.c.l.b16 %v905
      %v927 = vunpack.c.l.b16 %v906
      %v928 = vunpack.c.l.b16 %v907
      %v929 = vunpack.c.l.b16 %v908
      %v930 = vunpack.c.l.b16 %v909
      %v931 = vunpack.c.l.b16 %v910
      %v932 = vunpack.c.l.b16 %v911
      %v933 = vpack.c.b16 %v926, %v925
      %v934 = vpack.c.b16 %v928, %v927
      %v935 = vpack.c.b16 %v930, %v929
      %v936 = vpack.c.b16 %v932, %v931
      %v942 = vsel %vm337, %v912, 0
      %944 = vmatpush.bf16.msra.mxu0 0
      %945 = vmatpush.bf16.msra.mxu0 0
      %946 = vmatpush.bf16.msra.mxu0 0
      %947 = vmatpush.bf16.msra.mxu0 0
      %948 = vmatpush.bf16.msra.mxu0 %v936
      %949 = vmatpush.bf16.msra.mxu0 %v935
      %950 = vmatpush.bf16.msra.mxu0 %v934
      %951 = vmatpush.bf16.msra.mxu0 %v933
      %952 = vmatmul.bf16.gmra.mxu0 %v942
      %v953 = vpop.f32.mrf.mxu0
      %v954 = vadd.f32 %v915, %v953
      %v955 = vpop.f32.mrf.mxu0
      %v956 = vadd.f32 %v915, %v955
      %957 = vdwg.mxu0
      %v958 = vpack.c.bf16 %v954, %v954
      %v959 = vpack.c.bf16 %v956, %v956
      %vm960 = vcmask 519168
      %961 = vst.msk [vmem:[%s328] sm:$0xf] %vm960, %v958
      %962 = vst.msk [vmem:[%s328 + $0x4] sm:$0xf] %vm960, %v959
      %s963 = sadd.s32 %s23, %s24
      %p964 = scmp.lt.s32.totalorder %s963, 1
      %s965 = scalar_select %p964, %s963, 1
      %s966 = smul.addr %s965, 2
      %s967 = smul.addr %s966, 4
      %s968 = scalar_lea.vmem %s8, %s967
      // Predicated region
      $region53: #{forward.17} parent=51 // pred_check
        %p969 = pneg %p226
      $region54: #{forward.17} parent=51 // pred_check_branch
        %971 = sbr.rel (%p969) target = $region56
      $region55: #{forward.17} parent=51 // pred_region
        %s972 = sadd.s32 %s23, %s24
      $region56: #{forward.17} parent=51 // pred_fallthru
        _
    $region52: #{forward.17} parent=5 // pred_fallthru
      _
    %p973 = scmp.le.s32.totalorder 2, %s14
    // Predicated region
    $region57: #{forward.17} parent=5 // pred_check
      %p974 = pneg %p973
    $region58: #{forward.17} parent=5 // pred_check_branch
      %976 = sbr.rel (%p974) target = $region60
    $region59: #{forward.17} parent=5 // pred_region
      %s977 = ssub.s32 %s14, 2
      // Predicated region
      $region61: #{forward.17} parent=59 // pred_check
        %p978 = pneg %p232
      $region62: #{forward.17} parent=59 // pred_check_branch
        %980 = sbr.rel (%p978) target = $region64
      $region63: #{forward.17} parent=59 // pred_region
        %s981 = sadd.s32 %s25, %s26
        %p982 = scmp.lt.s32.totalorder %s981, 1
        %s983 = scalar_select %p982, %s981, 1
        %s984 = smul.addr %s983, 2
        %s985 = smul.addr %s984, 4
        %s986 = scalar_lea.vmem %s8, %s985
      $region64: #{forward.17} parent=59 // pred_fallthru
        _
    $region60: #{forward.17} parent=5 // pred_fallthru
      _
  $region6: #{forward.17} parent=0 // loop_footer
    %s18 = sadd.s32 1, %s14
  $region7: #{forward.17} parent=0 // loop_footer_branch
    %13 = sbr.rel target = $region3
  $region8: #{forward.17} parent=0 // loop_exit
    _

// kernel: forward.21
$region0: #{forward.21}
  #allocation0 [shape = 'u32[]', space=smem, size = 0x4, offset = 0x4, fixed_abs, tag = 'smem constant byte address 0x4 - core index']
  #allocation1 [shape = 'u32[72,128]{1,0:T(1,128)}', space=vmem, size = 0x9000, scoped, tag = 'internal scratch']
  %s0 = inlined_call_operand.vmem [shape: bf16[2,16,64], index: 0, kind: input, shape index: {}]
  %s1 = inlined_call_operand.vmem [shape: f32[1,64], index: 1, kind: input, shape index: {}]
  %s2 = inlined_call_operand.vmem [shape: f32[1,64], index: 2, kind: input, shape index: {}]
  %s3 = inlined_call_operand.hbm [shape: f32[2,1,64], index: 3, kind: output, shape index: {}]
  %s4 = sld [smem:[#allocation0]]
  $region45: #{forward.21} parent=0
    _
  %s6 = ssub.s32 1, %s4
  %s7 = scalar_select 0, %s6, %s4
  $region1: #{forward.21} parent=0
    #allocation2 [shape = 'u8[1024]{0}', space=vmem, size = 0x400, scoped, tag = 'output window, operand 0']
    #allocation3 [shape = 's32[2]{0}', space=sflag, size = 0x8, scoped, tag = 'scoped memory for forward.21']
    %8 = vsyncpa [#allocation3], 0
    %s9 = scalar_lea.sflag [#allocation3], 1
    %10 = vsyncpa %s9, 0
    loop: start=0, step=1, limit=4
    $region2: #{forward.21} parent=1 // loop_pre_header
      _
    $region3: #{forward.21} parent=1 // loop_header
      %s12 = sphi 0, %s16
      %p13 = scmp.ge.s32.totalorder %s12, 4
      %s22 = sphi 0, %s24
      %s25 = sphi 0, %s22
      %s26 = sphi 0, %s25
      %s42 = sphi 0, %s26
      %s46 = sphi 0, %s46
      %s48 = sphi 0, %s46
      %s49 = sphi 0, %s48
      %s63 = sphi 0, %s49
      %s67 = sphi 0, %s67
      %s69 = sphi 0, %s67
      %s70 = sphi 0, %s69
      %s84 = sphi 0, %s70
      %s90 = sphi 0, %s92
      %s93 = sphi 0, %s90
      %s94 = sphi 0, %s93
      %s110 = sphi 0, %s94
    $region4: #{forward.21} parent=1 // loop_header_branch
      %15 = sbr.rel (%p13) target = $region8
    $region5: #{forward.21} parent=1 // loop_body
      %s17 = ssub.s32 %s12, 1
      %s18 = ssub.s32 %s12, 2
      %s19 = sadd.s32 %s12, 1
      %s20 = ssub.s32 %s12, %s19
      %p21 = scmp.eq.s32.totalorder %s20, 0
      %s23 = sadd.s32 %s22, 1
      %s24 = scalar_select %p21, %s22, %s23
      %p27 = pneg %p21
      %p28 = scmp.eq.s32.totalorder %s12, 1
      %p29 = por %p27, %p28
      %p30 = scmp.ne.s32.totalorder %s22, %s25
      %p31 = scmp.eq.s32.totalorder %s12, 0
      %p32 = por %p30, %p31
      %p33 = scmp.ne.s32.totalorder %s22, %s25
      %p34 = scmp.eq.s32.totalorder %s17, 1
      %p35 = por %p33, %p34
      %p36 = scmp.ne.s32.totalorder %s25, %s26
      %p37 = scmp.eq.s32.totalorder %s17, 0
      %p38 = por %p36, %p37
      %p39 = scmp.ne.s32.totalorder %s25, %s26
      %p40 = scmp.eq.s32.totalorder %s18, 1
      %p41 = por %p39, %p40
      %p43 = scmp.ne.s32.totalorder %s26, %s42
      %p44 = scmp.eq.s32.totalorder %s18, 0
      %p45 = por %p43, %p44
      %s47 = sadd.s32 %s46, 1
      %p50 = scmp.eq.s32.totalorder %s12, 1
      %p51 = scmp.ne.s32.totalorder %s46, %s48
      %p52 = scmp.eq.s32.totalorder %s12, 0
      %p53 = por %p51, %p52
      %p54 = scmp.ne.s32.totalorder %s46, %s48
      %p55 = scmp.eq.s32.totalorder %s17, 1
      %p56 = por %p54, %p55
      %p57 = scmp.ne.s32.totalorder %s48, %s49
      %p58 = scmp.eq.s32.totalorder %s17, 0
      %p59 = por %p57, %p58
      %p60 = scmp.ne.s32.totalorder %s48, %s49
      %p61 = scmp.eq.s32.totalorder %s18, 1
      %p62 = por %p60, %p61
      %p64 = scmp.ne.s32.totalorder %s49, %s63
      %p65 = scmp.eq.s32.totalorder %s18, 0
      %p66 = por %p64, %p65
      %s68 = sadd.s32 %s67, 1
      %p71 = scmp.eq.s32.totalorder %s12, 1
      %p72 = scmp.ne.s32.totalorder %s67, %s69
      %p73 = scmp.eq.s32.totalorder %s12, 0
      %p74 = por %p72, %p73
      %p75 = scmp.ne.s32.totalorder %s67, %s69
      %p76 = scmp.eq.s32.totalorder %s17, 1
      %p77 = por %p75, %p76
      %p78 = scmp.ne.s32.totalorder %s69, %s70
      %p79 = scmp.eq.s32.totalorder %s17, 0
      %p80 = por %p78, %p79
      %p81 = scmp.ne.s32.totalorder %s69, %s70
      %p82 = scmp.eq.s32.totalorder %s18, 1
      %p83 = por %p81, %p82
      %p85 = scmp.ne.s32.totalorder %s70, %s84
      %p86 = scmp.eq.s32.totalorder %s18, 0
      %p87 = por %p85, %p86
      %s88 = ssub.s32 %s12, %s19
      %p89 = scmp.eq.s32.totalorder %s88, 0
      %s91 = sadd.s32 %s90, 1
      %s92 = scalar_select %p89, %s90, %s91
      %p95 = pneg %p89
      %p96 = scmp.eq.s32.totalorder %s12, 1
      %p97 = por %p95, %p96
      %p98 = scmp.ne.s32.totalorder %s90, %s93
      %p99 = scmp.eq.s32.totalorder %s12, 0
      %p100 = por %p98, %p99
      %p101 = scmp.ne.s32.totalorder %s90, %s93
      %p102 = scmp.eq.s32.totalorder %s17, 1
      %p103 = por %p101, %p102
      %p104 = scmp.ne.s32.totalorder %s93, %s94
      %p105 = scmp.eq.s32.totalorder %s17, 0
      %p106 = por %p104, %p105
      %p107 = scmp.ne.s32.totalorder %s93, %s94
      %p108 = scmp.eq.s32.totalorder %s18, 1
      %p109 = por %p107, %p108
      %p111 = scmp.ne.s32.totalorder %s94, %s110
      %p112 = scmp.eq.s32.totalorder %s18, 0
      %p113 = por %p111, %p112
      %p114 = scmp.le.s32.totalorder 1, %s12
      %p115 = scmp.lt.s32.totalorder %s12, 3
      %p116 = pnand %p114, %p115
      %p117 = pneg %p116
      // Predicated region
      $region9: #{forward.21} parent=5 // pred_check
        _
      $region10: #{forward.21} parent=5 // pred_check_branch
        %119 = sbr.rel (%p116) target = $region12
      $region11: #{forward.21} parent=5 // pred_region
        %s120 = ssub.s32 %s12, 1
        // Predicated region
        $region13: #{forward.21} parent=11 // pred_check
          %p121 = pneg %p59
        $region14: #{forward.21} parent=11 // pred_check_branch
          %123 = sbr.rel (%p121) target = $region16
        $region15: #{forward.21} parent=11 // pred_region
          _
        $region16: #{forward.21} parent=11 // pred_fallthru
          _
        // Predicated region
        $region17: #{forward.21} parent=11 // pred_check
          %p124 = pneg %p80
        $region18: #{forward.21} parent=11 // pred_check_branch
          %126 = sbr.rel (%p124) target = $region20
        $region19: #{forward.21} parent=11 // pred_region
          _
        $region20: #{forward.21} parent=11 // pred_fallthru
          _
      $region12: #{forward.21} parent=5 // pred_fallthru
        _
      %p127 = scmp.lt.s32.totalorder %s12, 2
      // Predicated region
      $region21: #{forward.21} parent=5 // pred_check
        %p128 = pneg %p127
      $region22: #{forward.21} parent=5 // pred_check_branch
        %130 = sbr.rel (%p128) target = $region24
      $region23: #{forward.21} parent=5 // pred_region
        // Predicated region
        $region25: #{forward.21} parent=23 // pred_check
          %p131 = pneg %p32
        $region26: #{forward.21} parent=23 // pred_check_branch
          %133 = sbr.rel (%p131) target = $region28
        $region27: #{forward.21} parent=23 // pred_region
          %p134 = scmp.lt.s32.totalorder %s12, 1
          %s135 = scalar_select %p134, %s12, 1
          %s136 = smul.addr %s135, 2
          %s137 = smul.addr %s136, 4
          %s138 = scalar_lea.vmem %s0, %s137
        $region28: #{forward.21} parent=23 // pred_fallthru
          _
      $region24: #{forward.21} parent=5 // pred_fallthru
        _
      %p139 = scmp.le.s32.totalorder 1, %s12
      %p140 = scmp.lt.s32.totalorder %s12, 3
      %p141 = pnand %p139, %p140
      %p142 = pneg %p141
      // Predicated region
      $region29: #{forward.21} parent=5 // pred_check
        _
      $region30: #{forward.21} parent=5 // pred_check_branch
        %144 = sbr.rel (%p141) target = $region32
      $region31: #{forward.21} parent=5 // pred_region
        %s145 = ssub.s32 %s12, 1
        %p146 = scmp.lt.s32.totalorder %s17, 1
        %s147 = scalar_select %p146, %s17, 1
        %s148 = smul.addr %s147, 2
        %s149 = smul.addr %s148, 4
        %s150 = scalar_lea.vmem %s0, %s149
        %p151 = pneg %p38
        %p152 = pneg %p35
        %p153 = pneg %p59
        %p154 = pneg %p56
        %p155 = pneg %p80
        %p156 = pneg %p77
        %p157 = pneg %p106
        %p158 = pneg %p103
        %s159 = sand.u32 %s93, 1
        %s160 = scalar_lea.sflag [#allocation3], %s159
        %s161 = sand.u32 %s93, 1
        %s162 = scalar_lea.vmem [#allocation2], %s161
        %p163 = scmp.lt.s32.totalorder %s17, 1
        %s164 = scalar_select %p163, %s17, 1
        %s165 = smul.addr %s164, 2
        %s166 = smul.addr %s165, 4
        %s167 = scalar_lea.vmem %s0, %s166
        %v168 = vld [vmem:[%s167] sm:$0xf]
        %v169 = vld [vmem:[%s167 + $0x4] sm:$0xf]
        %v170 = vunpack.c.l.bf16 %v168
        %v171 = vunpack.c.l.bf16 %v169
        %v172 = vld [vmem:[%s1] sm:$0x1]
        %v173 = vld [vmem:[%s2] sm:$0x1]
        %vm174 = vcmask 523264
        %v175 = vsel %vm174, %v170, 0.0
        %176 = vadd.xlane.f32.xlu0 %v175
        %v177 = vpop.xlane.xlu0 %176
        %v178 = vsel %vm174, %v171, 0.0
        %179 = vadd.xlane.f32.xlu0 %v178
        %v180 = vpop.xlane.xlu0 %179
        %v181 = vrcp.pop 64.0
        %v182 = vmul.f32 64.0, %v181
        %v183 = vsub.f32 1.0, %v182
        %v184 = vmul.f32 %v181, %v183
        %v185 = vadd.f32 %v181, %v184
        %vm186 = vweird.f32 %v181
        %v187 = vsel %vm186, %v181, %v185
        %v188 = vmul.f32 %v177, %v187
        %v189 = vmul.f32 %v180, %v187
        %v190 = vsub.f32 %v170, %v188
        %v191 = vsub.f32 %v171, %v189
        %v192 = vmul.f32 %v190, %v190
        %v193 = vmul.f32 %v191, %v191
        %v194 = vsel %vm174, %v192, 0.0
        %195 = vadd.xlane.f32.xlu0 %v194
        %v196 = vpop.xlane.xlu0 %195
        %v197 = vsel %vm174, %v193, 0.0
        %198 = vadd.xlane.f32.xlu0 %v197
        %v199 = vpop.xlane.xlu0 %198
        %v200 = vmul.f32 %v196, %v187
        %v201 = vmul.f32 %v199, %v187
        %v202 = vadd.f32 %v200, 1e-05
        %v203 = vadd.f32 %v201, 1e-05
        %v204 = vrsqrt.pop %v202
        %v205 = vmul.f32 %v204, %v202
        %v206 = vmul.f32 %v205, %v204
        %v207 = vmul.f32 0.5, %v206
        %v208 = vsub.f32 1.5, %v207
        %v209 = vmul.f32 %v204, %v208
        %vm210 = vweird.f32 %v202
        %vm211 = vweird.f32 %v204
        %vm212 = vmor %vm210, %vm211
        %v213 = vsel %vm212, %v204, %v209
        %v214 = vrsqrt.pop %v203
        %v215 = vmul.f32 %v214, %v203
        %v216 = vmul.f32 %v215, %v214
        %v217 = vmul.f32 0.5, %v216
        %v218 = vsub.f32 1.5, %v217
        %v219 = vmul.f32 %v214, %v218
        %vm220 = vweird.f32 %v203
        %vm221 = vweird.f32 %v214
        %vm222 = vmor %vm220, %vm221
        %v223 = vsel %vm222, %v214, %v219
        %v224 = vmul.f32 %v190, %v213
        %v225 = vmul.f32 %v191, %v223
        %v227 = vperm.slane %v172, 0
        %v229 = vmul.f32 %v224, %v227
        %v230 = vmul.f32 %v225, %v227
        %v232 = vperm.slane %v173, 0
        %v234 = vadd.f32 %v229, %v232
        %v235 = vadd.f32 %v230, %v232
        %v236 = vsel %vm174, %v234, 0.0
        %v237 = vsel %vm174, %v235, 0.0
        %v238 = vadd.f32 %v236, %v237
        %v239 = vrot.slane %v238, 4
        %v240 = vadd.f32 %v238, %v239
        %v241 = vrot.slane %v240, 2
        %v242 = vadd.f32 %v240, %v241
        %v243 = vrot.slane %v242, 1
        %v244 = vadd.f32 %v242, %v243
        %v245 = vrcp.pop 16.0
        %v246 = vmul.f32 16.0, %v245
        %v247 = vsub.f32 1.0, %v246
        %v248 = vmul.f32 %v245, %v247
        %v249 = vadd.f32 %v245, %v248
        %vm250 = vweird.f32 %v245
        %v251 = vsel %vm250, %v245, %v249
        %v252 = vmul.f32 %v244, %v251
        %vm253 = vcmask 516096
        %254 = vst.msk [vmem:[%s162] sm:$0x1] %vm253, %v252
        %s255 = sand.u32 %s93, 1
        %s256 = scalar_lea.sflag [#allocation3], %s255
        %s257 = sand.u32 %s93, 1
        %s258 = scalar_lea.vmem [#allocation2], %s257
        // Predicated region
        $region33: #{forward.21} parent=31 // pred_check
          %p259 = pneg %p103
        $region34: #{forward.21} parent=31 // pred_check_branch
          %261 = sbr.rel (%p259) target = $region36
        $region35: #{forward.21} parent=31 // pred_region
          %263 = vsyncadd %s256, 0
          %s264 = scalar_lea.hbm %s3, %s17
          %s266 = sshll.u32 %s258, 4
          %s267 = int_to_ptr.vmem [resolvable:$true] %s266
          %s268 = sshll.u32 %s264, 4
          %s269 = int_to_ptr.hbm [resolvable:$true] %s268
          %271 = dma.vmem_to_hbm [thread:$0]  %s267, 16, %s269, %s256
        $region36: #{forward.21} parent=31 // pred_fallthru
          _
      $region32: #{forward.21} parent=5 // pred_fallthru
        _
      %p272 = scmp.le.s32.totalorder 2, %s12
      // Predicated region
      $region37: #{forward.21} parent=5 // pred_check
        %p273 = pneg %p272
      $region38: #{forward.21} parent=5 // pred_check_branch
        %275 = sbr.rel (%p273) target = $region40
      $region39: #{forward.21} parent=5 // pred_region
        %s276 = ssub.s32 %s12, 2
        // Predicated region
        $region41: #{forward.21} parent=39 // pred_check
          %p277 = pneg %p109
        $region42: #{forward.21} parent=39 // pred_check_branch
          %279 = sbr.rel (%p277) target = $region44
        $region43: #{forward.21} parent=39 // pred_region
          %s280 = sand.u32 %s94, 1
          %s281 = scalar_lea.sflag [#allocation3], %s280
          %s282 = sand.u32 %s94, 1
          %s283 = scalar_lea.vmem [#allocation2], %s282
          %285 = dma.done %s281, 16
        $region44: #{forward.21} parent=39 // pred_fallthru
          _
      $region40: #{forward.21} parent=5 // pred_fallthru
        _
    $region6: #{forward.21} parent=1 // loop_footer
      %s16 = sadd.s32 1, %s12
    $region7: #{forward.21} parent=1 // loop_footer_branch
      %11 = sbr.rel target = $region3
    $region8: #{forward.21} parent=1 // loop_exit
      _
    %286 = vsyncpa [#allocation3], 1
    %s287 = scalar_lea.sflag [#allocation3], 1
    %288 = vsyncpa %s287, 1

</llo_original>
